<compile_context>
chip_gen: v5e
topology: v5e:2x2
jax: 0.10.0
libtpu: 0.0.40
codegen_flags: <defaults>
</compile_context>

<pallas_src>
import functools

import jax
import jax.numpy as jnp
import numpy as np
from jax.experimental import pallas as pl
from jax.experimental.pallas import tpu as pltpu

KERNEL_SIZE = 7
RF_NUM = 3
PAD = KERNEL_SIZE // 2


def _edge_masks(H, W, K):
    """Row / column validity masks for the zero-padded KxK conv, flat over H*W."""
    pad = K // 2
    ii = np.arange(H * W)
    hh, ww = ii // W, ii % W
    rowm = np.zeros((K, H * W), np.float32)
    colm = np.zeros((K, H * W), np.float32)
    for k in range(K):
        d = k - pad
        rowm[k] = ((hh + d >= 0) & (hh + d < H)).astype(np.float32)
        colm[k] = ((ww + d >= 0) & (ww + d < W)).astype(np.float32)
    return jnp.asarray(rowm), jnp.asarray(colm)


def _select_blocks(B, C, R, HW, K):
    """VMEM-budget-driven (Bblk, Cblk) selection plus a per-chip vmem limit."""
    try:
        info = pltpu.get_tpu_info()
        vmem_cap = int(getattr(info, "vmem_capacity_bytes", 64 * 1024 * 1024))
    except Exception:  # pragma: no cover - e.g. interpret mode / query failure
        vmem_cap = 64 * 1024 * 1024

    budget = int(vmem_cap * 0.40)                      # working-set target
    vmem_limit = min(int(vmem_cap * 0.75), 112 * 1024 * 1024)

    def fits(bb, cb):
        inputs = 2 * R * bb * cb * HW * 4              # double-buffered inputs
        out = 2 * R * bb * HW * 4
        scratch = 2 * R * bb * HW * 4
        masks = 2 * 2 * K * HW * 4
        return inputs + out + scratch + masks + (1 << 20) <= budget

    def ok_sub(d, full):                               # keep sublane dim tile-friendly
        return d == full or d % 8 == 0

    # Single-TC chips (v5e/v6e) prefer one big block (fewer 0.35us grid steps).
    # TODO(synk): on v7x (2 TensorCores) prefer an even number of batch blocks so
    # both cores get work once the core count is queryable here.
    b_divs = sorted((d for d in range(1, B + 1) if B % d == 0), reverse=True)
    c_divs = sorted((d for d in range(1, C + 1) if C % d == 0), reverse=True)
    for bb in b_divs:
        if not ok_sub(bb, B):
            continue
        for cb in c_divs:
            if fits(bb, cb):
                return bb, cb, vmem_limit
    return 1, 1, vmem_limit


def rf_attention_kernel(w1_s, wa1_s, wa2_s, rowm_ref, colm_ref, *refs,
                        H, W, K, R, C, Cblk, Bblk):
    """Fused channel mean/max -> 7x7 conv (zero pad) -> 1x1 MLP -> channel softmax.

    Grid: (batch blocks [parallel], channel blocks [arbitrary]).

    w1_s    : SMEM f32[2*K*K]   conv1 weight, flattened (in-ch 0 = avg, 1 = max)
    wa1_s   : SMEM f32[4R*R]    attention[0] 1x1 weight, row-major [4R, R]
    wa2_s   : SMEM f32[R*4R]    attention[2] 1x1 weight, row-major [R, 4R]
    rowm_ref: VMEM f32[K, H*W]  rowm[k, i] = 1 iff (i//W + k - K//2) in [0, H)
    colm_ref: VMEM f32[K, H*W]  colm[k, i] = 1 iff (i%W  + k - K//2) in [0, W)
    refs    : R inputs  VMEM f32[Bblk, Cblk*H*W]   (lane-dense flattened (C, H, W))
              1 output  VMEM f32[R, Bblk, H*W]
              2 scratch VMEM f32[R, Bblk, H*W]     running channel sum / max
    """
    x_refs = refs[:R]
    out_ref = refs[R]
    sum_ref = refs[R + 1]
    max_ref = refs[R + 2]

    HW = H * W
    ci = pl.program_id(1)

    # ---- Phase A: partial channel sum/max for this channel block ----------------
    part = []
    for r in range(R):
        xr = x_refs[r]
        v = xr[:, 0:HW].astype(jnp.float32)
        psum, pmax = v, v
        for cc in range(1, Cblk):   # TODO(synk): lax.fori_loop for very large Cblk
            v = xr[:, cc * HW:(cc + 1) * HW].astype(jnp.float32)
            psum = psum + v
            pmax = jnp.maximum(pmax, v)
        part.append((psum, pmax))

    @pl.when(ci == 0)
    def _init():
        for r in range(R):
            sum_ref[r] = part[r][0]
            max_ref[r] = part[r][1]

    @pl.when(ci > 0)
    def _accumulate():
        for r in range(R):
            sum_ref[r] = sum_ref[r] + part[r][0]
            max_ref[r] = jnp.maximum(max_ref[r], part[r][1])

    # ---- Phase B: conv + MLP + softmax on the reduced maps (last C block) -------
    @pl.when(ci == pl.num_programs(1) - 1)
    def _finish():
        pad = K // 2
        inv_c = jnp.float32(1.0 / C)
        avg = [sum_ref[r] * inv_c for r in range(R)]          # [Bblk, HW]
        mxv = [max_ref[r] for r in range(R)]

        # Edge masks, hoisted once (JAX does not CSE broadcasts inside loops).
        rowm = [rowm_ref[k:k + 1, :] for k in range(K)]       # [1, HW]
        colm = [colm_ref[k:k + 1, :] for k in range(K)]

        # 7x7 conv over the zero-padded avg/max maps, fully lane-dense:
        # each tap = one static XLU lane-roll of the flat map + a VPU madd; the
        # masks zero the taps whose source fell into the conv's zero padding
        # (equivalently: where the roll wrapped across a row / the map edge).
        acc = [jnp.zeros((Bblk, HW), jnp.float32) for _ in range(R)]
        for kh in range(K):
            dh = kh - pad
            for kw in range(K):
                dw = kw - pad
                shift = (-(dh * W + dw)) % HW                 # left shift by dh*W+dw
                w_a = w1_s[kh * K + kw]                       # avg-channel weight
                w_m = w1_s[K * K + kh * K + kw]               # max-channel weight
                mask = rowm[kh] * colm[kw]                    # [1, HW]
                for r in range(R):
                    if shift == 0:
                        ra, rm = avg[r], mxv[r]
                    else:
                        ra = pltpu.roll(avg[r], shift, 1)
                        rm = pltpu.roll(mxv[r], shift, 1)
                    acc[r] = acc[r] + mask * (w_a * ra + w_m * rm)

        # Attention MLP (1x1 convs) as scalar-splat madds over lane-dense rows.
        h1 = []
        for j in range(4 * R):
            v = wa1_s[j * R] * acc[0]
            for r in range(1, R):
                v = v + wa1_s[j * R + r] * acc[r]
            h1.append(jnp.maximum(v, 0.0))

        logits = []
        for o in range(R):
            v = wa2_s[o * 4 * R] * h1[0]
            for j in range(1, 4 * R):
                v = v + wa2_s[o * 4 * R + j] * h1[j]
            logits.append(v)

        # Channel softmax (dim=1 in NCHW == the R branches here).
        m = logits[0]
        for o in range(1, R):
            m = jnp.maximum(m, logits[o])
        exps = [jnp.exp(v - m) for v in logits]
        den = exps[0]
        for o in range(1, R):
            den = den + exps[o]
        inv = pl.reciprocal(den, approx=True)                 # EUP slot, otherwise idle
        for r in range(R):
            out_ref[r] = (exps[r] * inv).astype(out_ref.dtype)


def rf_attention_forward(x_list, w_conv1, w_att1, w_att2):
    R = len(x_list)
    B, C, H, W = x_list[0].shape
    K = KERNEL_SIZE
    HW = H * W
    # TODO(synk): the lane-dense layout assumes H*W % 128 == 0; pad HW (a map-sized,
    # not activation-sized, cost) if that ever stops holding.

    Bblk, Cblk, vmem_limit = _select_blocks(B, C, R, HW, K)
    G = B // Bblk
    Cg = C // Cblk

    # Free reshapes only: no stack / transpose / pad of the big activation in HBM.
    xs = [x.reshape(B, C * HW) for x in x_list]

    w1_flat = w_conv1.reshape(-1).astype(jnp.float32)         # [2*K*K]
    wa1_flat = w_att1.reshape(-1).astype(jnp.float32)         # [4R*R]
    wa2_flat = w_att2.reshape(-1).astype(jnp.float32)         # [R*4R]
    rowm, colm = _edge_masks(H, W, K)

    kernel = functools.partial(rf_attention_kernel, H=H, W=W, K=K, R=R, C=C,
                               Cblk=Cblk, Bblk=Bblk)

    in_specs = [
        pl.BlockSpec(memory_space=pltpu.MemorySpace.SMEM),    # conv1 weight
        pl.BlockSpec(memory_space=pltpu.MemorySpace.SMEM),    # attention[0] weight
        pl.BlockSpec(memory_space=pltpu.MemorySpace.SMEM),    # attention[2] weight
        pl.BlockSpec((K, HW), lambda i, c: (0, 0)),           # row edge masks
        pl.BlockSpec((K, HW), lambda i, c: (0, 0)),           # col edge masks
    ] + [
        pl.BlockSpec((Bblk, Cblk * HW), lambda i, c: (i, c))  # per-branch activations
        for _ in range(R)
    ]

    out = pl.pallas_call(
        kernel,
        out_shape=jax.ShapeDtypeStruct((R, B, HW), jnp.float32),
        grid_spec=pltpu.PrefetchScalarGridSpec(
            num_scalar_prefetch=0,
            grid=(G, Cg),
            in_specs=in_specs,
            out_specs=pl.BlockSpec((R, Bblk, HW), lambda i, c: (0, i, 0)),
            scratch_shapes=[
                pltpu.VMEM((R, Bblk, HW), jnp.float32),       # running channel sum
                pltpu.VMEM((R, Bblk, HW), jnp.float32),       # running channel max
            ],
        ),
        compiler_params=pltpu.CompilerParams(
            dimension_semantics=("parallel", "arbitrary"),
            vmem_limit_bytes=vmem_limit),
    )(w1_flat, wa1_flat, wa2_flat, rowm, colm, *xs)

    # Tiny output-side relayout (B*R*H*W floats), negligible vs the input stream.
    return jnp.transpose(out, (1, 0, 2)).reshape(B, R, H, W)


def rf_attention_ref(x_list, w_conv1, w_att1, w_att2):
    """Pure-JAX reference mirroring the PyTorch module."""
    dn = ("NCHW", "OIHW", "NCHW")
    outs = []
    for x in x_list:
        avg = jnp.mean(x, axis=1, keepdims=True)
        mx = jnp.max(x, axis=1, keepdims=True)
        cat = jnp.concatenate([avg, mx], axis=1)                       # [B,2,H,W]
        s = jax.lax.conv_general_dilated(
            cat, w_conv1, window_strides=(1, 1),
            padding=[(PAD, PAD), (PAD, PAD)], dimension_numbers=dn)
        outs.append(s)                                                 # [B,1,H,W]
    o = jnp.concatenate(outs, axis=1)                                  # [B,R,H,W]
    h1 = jax.lax.conv_general_dilated(o, w_att1, (1, 1), "VALID",
                                      dimension_numbers=dn)
    h1 = jnp.maximum(h1, 0.0)
    h2 = jax.lax.conv_general_dilated(h1, w_att2, (1, 1), "VALID",
                                      dimension_numbers=dn)
    return jax.nn.softmax(h2, axis=1)


if __name__ == "__main__":
    key = jax.random.PRNGKey(0)
    keys = jax.random.split(key, 6)

    B, C, H, W = 4, 4, 16, 16
    x_list = [
        jax.random.normal(keys[i], (B, C, H, W), jnp.float32)
        for i in range(RF_NUM)
    ]

    # Deterministic synthetic parameters (shapes from the module's __init__).
    w_conv1 = 0.1 * jax.random.normal(
        keys[3], (1, 2, KERNEL_SIZE, KERNEL_SIZE), jnp.float32)        # conv1
    w_att1 = 0.3 * jax.random.normal(
        keys[4], (4 * RF_NUM, RF_NUM, 1, 1), jnp.float32)              # attention[0]
    w_att2 = 0.3 * jax.random.normal(
        keys[5], (RF_NUM, 4 * RF_NUM, 1, 1), jnp.float32)              # attention[2]

    out = rf_attention_forward(x_list, w_conv1, w_att1, w_att2)
    out = jax.block_until_ready(out)

    ref = rf_attention_ref(x_list, w_conv1, w_att1, w_att2)
    assert out.shape == (B, RF_NUM, H, W)
    np.testing.assert_allclose(np.asarray(out), np.asarray(ref),
                               atol=5e-3, rtol=5e-2)
    print("KERNEL_OK")
</pallas_src>

<mosaic_0001>
module attributes {stable_mosaic.version = 11 : i64} {
  func.func @rf_attention_kernel(%arg0: i32, %arg1: i32, %arg2: memref<98xf32, #tpu.memory_space<smem>>, %arg3: memref<36xf32, #tpu.memory_space<smem>>, %arg4: memref<36xf32, #tpu.memory_space<smem>>, %arg5: memref<7x256xf32, #tpu.memory_space<vmem>>, %arg6: memref<7x256xf32, #tpu.memory_space<vmem>>, %arg7: memref<4x1024xf32, #tpu.memory_space<vmem>>, %arg8: memref<4x1024xf32, #tpu.memory_space<vmem>>, %arg9: memref<4x1024xf32, #tpu.memory_space<vmem>>, %arg10: memref<3x4x256xf32, #tpu.memory_space<vmem>>, %arg11: memref<3x4x256xf32, #tpu.memory_space<vmem>>, %arg12: memref<3x4x256xf32, #tpu.memory_space<vmem>>) attributes {dimension_semantics = [#tpu.dimension_semantics<parallel>, #tpu.dimension_semantics<arbitrary>], iteration_bounds = array<i64: 1, 1>, scalar_prefetch = 0 : i64, scratch_operands = 2 : i64, tpu.core_type = #tpu.core_type<tc>, window_params = [{transform_indices = @transform_0, window_bounds = array<i64: 98>}, {transform_indices = @transform_1, window_bounds = array<i64: 36>}, {transform_indices = @transform_2, window_bounds = array<i64: 36>}, {pipeline_mode = #tpu.pipeline_mode<synchronous>, transform_indices = @transform_3, window_bounds = array<i64: 7, 256>}, {pipeline_mode = #tpu.pipeline_mode<synchronous>, transform_indices = @transform_4, window_bounds = array<i64: 7, 256>}, {transform_indices = @transform_5, window_bounds = array<i64: 4, 1024>}, {transform_indices = @transform_6, window_bounds = array<i64: 4, 1024>}, {transform_indices = @transform_7, window_bounds = array<i64: 4, 1024>}, {transform_indices = @transform_8, window_bounds = array<i64: 3, 4, 256>}]} {
    %c0 = arith.constant 0 : index
    %c0_0 = arith.constant 0 : index
    %0 = vector.load %arg7[%c0, %c0_0] : memref<4x1024xf32, #tpu.memory_space<vmem>>, vector<4x256xf32>
    %c0_1 = arith.constant 0 : index
    %c256 = arith.constant 256 : index
    %1 = vector.load %arg7[%c0_1, %c256] : memref<4x1024xf32, #tpu.memory_space<vmem>>, vector<4x256xf32>
    %2 = arith.addf %0, %1 : vector<4x256xf32>
    %3 = arith.maximumf %0, %1 : vector<4x256xf32>
    %c0_2 = arith.constant 0 : index
    %c512 = arith.constant 512 : index
    %4 = vector.load %arg7[%c0_2, %c512] : memref<4x1024xf32, #tpu.memory_space<vmem>>, vector<4x256xf32>
    %5 = arith.addf %2, %4 : vector<4x256xf32>
    %6 = arith.maximumf %3, %4 : vector<4x256xf32>
    %c0_3 = arith.constant 0 : index
    %c768 = arith.constant 768 : index
    %7 = vector.load %arg7[%c0_3, %c768] : memref<4x1024xf32, #tpu.memory_space<vmem>>, vector<4x256xf32>
    %8 = arith.addf %5, %7 : vector<4x256xf32>
    %9 = arith.maximumf %6, %7 : vector<4x256xf32>
    %c0_4 = arith.constant 0 : index
    %c0_5 = arith.constant 0 : index
    %10 = vector.load %arg8[%c0_4, %c0_5] : memref<4x1024xf32, #tpu.memory_space<vmem>>, vector<4x256xf32>
    %c0_6 = arith.constant 0 : index
    %c256_7 = arith.constant 256 : index
    %11 = vector.load %arg8[%c0_6, %c256_7] : memref<4x1024xf32, #tpu.memory_space<vmem>>, vector<4x256xf32>
    %12 = arith.addf %10, %11 : vector<4x256xf32>
    %13 = arith.maximumf %10, %11 : vector<4x256xf32>
    %c0_8 = arith.constant 0 : index
    %c512_9 = arith.constant 512 : index
    %14 = vector.load %arg8[%c0_8, %c512_9] : memref<4x1024xf32, #tpu.memory_space<vmem>>, vector<4x256xf32>
    %15 = arith.addf %12, %14 : vector<4x256xf32>
    %16 = arith.maximumf %13, %14 : vector<4x256xf32>
    %c0_10 = arith.constant 0 : index
    %c768_11 = arith.constant 768 : index
    %17 = vector.load %arg8[%c0_10, %c768_11] : memref<4x1024xf32, #tpu.memory_space<vmem>>, vector<4x256xf32>
    %18 = arith.addf %15, %17 : vector<4x256xf32>
    %19 = arith.maximumf %16, %17 : vector<4x256xf32>
    %c0_12 = arith.constant 0 : index
    %c0_13 = arith.constant 0 : index
    %20 = vector.load %arg9[%c0_12, %c0_13] : memref<4x1024xf32, #tpu.memory_space<vmem>>, vector<4x256xf32>
    %c0_14 = arith.constant 0 : index
    %c256_15 = arith.constant 256 : index
    %21 = vector.load %arg9[%c0_14, %c256_15] : memref<4x1024xf32, #tpu.memory_space<vmem>>, vector<4x256xf32>
    %22 = arith.addf %20, %21 : vector<4x256xf32>
    %23 = arith.maximumf %20, %21 : vector<4x256xf32>
    %c0_16 = arith.constant 0 : index
    %c512_17 = arith.constant 512 : index
    %24 = vector.load %arg9[%c0_16, %c512_17] : memref<4x1024xf32, #tpu.memory_space<vmem>>, vector<4x256xf32>
    %25 = arith.addf %22, %24 : vector<4x256xf32>
    %26 = arith.maximumf %23, %24 : vector<4x256xf32>
    %c0_18 = arith.constant 0 : index
    %c768_19 = arith.constant 768 : index
    %27 = vector.load %arg9[%c0_18, %c768_19] : memref<4x1024xf32, #tpu.memory_space<vmem>>, vector<4x256xf32>
    %28 = arith.addf %25, %27 : vector<4x256xf32>
    %29 = arith.maximumf %26, %27 : vector<4x256xf32>
    %c0_i32 = arith.constant 0 : i32
    %30 = arith.cmpi eq, %arg1, %c0_i32 : i32
    %31 = arith.extui %30 : i1 to i32
    %c0_i32_20 = arith.constant 0 : i32
    %32 = arith.cmpi ne, %31, %c0_i32_20 : i32
    scf.if %32 {
      %c0_25 = arith.constant 0 : index
      %c0_26 = arith.constant 0 : index
      %c0_27 = arith.constant 0 : index
      %39 = vector.load %arg11[%c0_25, %c0_26, %c0_27] : memref<3x4x256xf32, #tpu.memory_space<vmem>>, vector<1x4x256xf32>
      %40 = vector.shape_cast %39 : vector<1x4x256xf32> to vector<4x256xf32>
      %41 = vector.shape_cast %8 : vector<4x256xf32> to vector<1x4x256xf32>
      tpu.vector_store %arg11[%c0_25, %c0_26, %c0_27], %41 {strides = array<i32>} : memref<3x4x256xf32, #tpu.memory_space<vmem>>, vector<1x4x256xf32>,
      %c0_28 = arith.constant 0 : index
      %c0_29 = arith.constant 0 : index
      %c0_30 = arith.constant 0 : index
      %42 = vector.load %arg12[%c0_28, %c0_29, %c0_30] : memref<3x4x256xf32, #tpu.memory_space<vmem>>, vector<1x4x256xf32>
      %43 = vector.shape_cast %42 : vector<1x4x256xf32> to vector<4x256xf32>
      %44 = vector.shape_cast %9 : vector<4x256xf32> to vector<1x4x256xf32>
      tpu.vector_store %arg12[%c0_28, %c0_29, %c0_30], %44 {strides = array<i32>} : memref<3x4x256xf32, #tpu.memory_space<vmem>>, vector<1x4x256xf32>,
      %c1 = arith.constant 1 : index
      %c0_31 = arith.constant 0 : index
      %c0_32 = arith.constant 0 : index
      %45 = vector.load %arg11[%c1, %c0_31, %c0_32] : memref<3x4x256xf32, #tpu.memory_space<vmem>>, vector<1x4x256xf32>
      %46 = vector.shape_cast %45 : vector<1x4x256xf32> to vector<4x256xf32>
      %47 = vector.shape_cast %18 : vector<4x256xf32> to vector<1x4x256xf32>
      tpu.vector_store %arg11[%c1, %c0_31, %c0_32], %47 {strides = array<i32>} : memref<3x4x256xf32, #tpu.memory_space<vmem>>, vector<1x4x256xf32>,
      %c1_33 = arith.constant 1 : index
      %c0_34 = arith.constant 0 : index
      %c0_35 = arith.constant 0 : index
      %48 = vector.load %arg12[%c1_33, %c0_34, %c0_35] : memref<3x4x256xf32, #tpu.memory_space<vmem>>, vector<1x4x256xf32>
      %49 = vector.shape_cast %48 : vector<1x4x256xf32> to vector<4x256xf32>
      %50 = vector.shape_cast %19 : vector<4x256xf32> to vector<1x4x256xf32>
      tpu.vector_store %arg12[%c1_33, %c0_34, %c0_35], %50 {strides = array<i32>} : memref<3x4x256xf32, #tpu.memory_space<vmem>>, vector<1x4x256xf32>,
      %c2 = arith.constant 2 : index
      %c0_36 = arith.constant 0 : index
      %c0_37 = arith.constant 0 : index
      %51 = vector.load %arg11[%c2, %c0_36, %c0_37] : memref<3x4x256xf32, #tpu.memory_space<vmem>>, vector<1x4x256xf32>
      %52 = vector.shape_cast %51 : vector<1x4x256xf32> to vector<4x256xf32>
      %53 = vector.shape_cast %28 : vector<4x256xf32> to vector<1x4x256xf32>
      tpu.vector_store %arg11[%c2, %c0_36, %c0_37], %53 {strides = array<i32>} : memref<3x4x256xf32, #tpu.memory_space<vmem>>, vector<1x4x256xf32>,
      %c2_38 = arith.constant 2 : index
      %c0_39 = arith.constant 0 : index
      %c0_40 = arith.constant 0 : index
      %54 = vector.load %arg12[%c2_38, %c0_39, %c0_40] : memref<3x4x256xf32, #tpu.memory_space<vmem>>, vector<1x4x256xf32>
      %55 = vector.shape_cast %54 : vector<1x4x256xf32> to vector<4x256xf32>
      %56 = vector.shape_cast %29 : vector<4x256xf32> to vector<1x4x256xf32>
      tpu.vector_store %arg12[%c2_38, %c0_39, %c0_40], %56 {strides = array<i32>} : memref<3x4x256xf32, #tpu.memory_space<vmem>>, vector<1x4x256xf32>,
    } else {
    }
    %c0_i32_21 = arith.constant 0 : i32
    %33 = arith.cmpi sgt, %arg1, %c0_i32_21 : i32
    %34 = arith.extui %33 : i1 to i32
    %c0_i32_22 = arith.constant 0 : i32
    %35 = arith.cmpi ne, %34, %c0_i32_22 : i32
    scf.if %35 {
      %c0_25 = arith.constant 0 : index
      %c0_26 = arith.constant 0 : index
      %c0_27 = arith.constant 0 : index
      %39 = vector.load %arg11[%c0_25, %c0_26, %c0_27] : memref<3x4x256xf32, #tpu.memory_space<vmem>>, vector<1x4x256xf32>
      %40 = vector.shape_cast %39 : vector<1x4x256xf32> to vector<4x256xf32>
      %41 = arith.addf %40, %8 : vector<4x256xf32>
      %c0_28 = arith.constant 0 : index
      %c0_29 = arith.constant 0 : index
      %c0_30 = arith.constant 0 : index
      %42 = vector.load %arg11[%c0_28, %c0_29, %c0_30] : memref<3x4x256xf32, #tpu.memory_space<vmem>>, vector<1x4x256xf32>
      %43 = vector.shape_cast %42 : vector<1x4x256xf32> to vector<4x256xf32>
      %44 = vector.shape_cast %41 : vector<4x256xf32> to vector<1x4x256xf32>
      tpu.vector_store %arg11[%c0_28, %c0_29, %c0_30], %44 {strides = array<i32>} : memref<3x4x256xf32, #tpu.memory_space<vmem>>, vector<1x4x256xf32>,
      %c0_31 = arith.constant 0 : index
      %c0_32 = arith.constant 0 : index
      %c0_33 = arith.constant 0 : index
      %45 = vector.load %arg12[%c0_31, %c0_32, %c0_33] : memref<3x4x256xf32, #tpu.memory_space<vmem>>, vector<1x4x256xf32>
      %46 = vector.shape_cast %45 : vector<1x4x256xf32> to vector<4x256xf32>
      %47 = arith.maximumf %46, %9 : vector<4x256xf32>
      %c0_34 = arith.constant 0 : index
      %c0_35 = arith.constant 0 : index
      %c0_36 = arith.constant 0 : index
      %48 = vector.load %arg12[%c0_34, %c0_35, %c0_36] : memref<3x4x256xf32, #tpu.memory_space<vmem>>, vector<1x4x256xf32>
      %49 = vector.shape_cast %48 : vector<1x4x256xf32> to vector<4x256xf32>
      %50 = vector.shape_cast %47 : vector<4x256xf32> to vector<1x4x256xf32>
      tpu.vector_store %arg12[%c0_34, %c0_35, %c0_36], %50 {strides = array<i32>} : memref<3x4x256xf32, #tpu.memory_space<vmem>>, vector<1x4x256xf32>,
      %c1 = arith.constant 1 : index
      %c0_37 = arith.constant 0 : index
      %c0_38 = arith.constant 0 : index
      %51 = vector.load %arg11[%c1, %c0_37, %c0_38] : memref<3x4x256xf32, #tpu.memory_space<vmem>>, vector<1x4x256xf32>
      %52 = vector.shape_cast %51 : vector<1x4x256xf32> to vector<4x256xf32>
      %53 = arith.addf %52, %18 : vector<4x256xf32>
      %c1_39 = arith.constant 1 : index
      %c0_40 = arith.constant 0 : index
      %c0_41 = arith.constant 0 : index
      %54 = vector.load %arg11[%c1_39, %c0_40, %c0_41] : memref<3x4x256xf32, #tpu.memory_space<vmem>>, vector<1x4x256xf32>
      %55 = vector.shape_cast %54 : vector<1x4x256xf32> to vector<4x256xf32>
      %56 = vector.shape_cast %53 : vector<4x256xf32> to vector<1x4x256xf32>
      tpu.vector_store %arg11[%c1_39, %c0_40, %c0_41], %56 {strides = array<i32>} : memref<3x4x256xf32, #tpu.memory_space<vmem>>, vector<1x4x256xf32>,
      %c1_42 = arith.constant 1 : index
      %c0_43 = arith.constant 0 : index
      %c0_44 = arith.constant 0 : index
      %57 = vector.load %arg12[%c1_42, %c0_43, %c0_44] : memref<3x4x256xf32, #tpu.memory_space<vmem>>, vector<1x4x256xf32>
      %58 = vector.shape_cast %57 : vector<1x4x256xf32> to vector<4x256xf32>
      %59 = arith.maximumf %58, %19 : vector<4x256xf32>
      %c1_45 = arith.constant 1 : index
      %c0_46 = arith.constant 0 : index
      %c0_47 = arith.constant 0 : index
      %60 = vector.load %arg12[%c1_45, %c0_46, %c0_47] : memref<3x4x256xf32, #tpu.memory_space<vmem>>, vector<1x4x256xf32>
      %61 = vector.shape_cast %60 : vector<1x4x256xf32> to vector<4x256xf32>
      %62 = vector.shape_cast %59 : vector<4x256xf32> to vector<1x4x256xf32>
      tpu.vector_store %arg12[%c1_45, %c0_46, %c0_47], %62 {strides = array<i32>} : memref<3x4x256xf32, #tpu.memory_space<vmem>>, vector<1x4x256xf32>,
      %c2 = arith.constant 2 : index
      %c0_48 = arith.constant 0 : index
      %c0_49 = arith.constant 0 : index
      %63 = vector.load %arg11[%c2, %c0_48, %c0_49] : memref<3x4x256xf32, #tpu.memory_space<vmem>>, vector<1x4x256xf32>
      %64 = vector.shape_cast %63 : vector<1x4x256xf32> to vector<4x256xf32>
      %65 = arith.addf %64, %28 : vector<4x256xf32>
      %c2_50 = arith.constant 2 : index
      %c0_51 = arith.constant 0 : index
      %c0_52 = arith.constant 0 : index
      %66 = vector.load %arg11[%c2_50, %c0_51, %c0_52] : memref<3x4x256xf32, #tpu.memory_space<vmem>>, vector<1x4x256xf32>
      %67 = vector.shape_cast %66 : vector<1x4x256xf32> to vector<4x256xf32>
      %68 = vector.shape_cast %65 : vector<4x256xf32> to vector<1x4x256xf32>
      tpu.vector_store %arg11[%c2_50, %c0_51, %c0_52], %68 {strides = array<i32>} : memref<3x4x256xf32, #tpu.memory_space<vmem>>, vector<1x4x256xf32>,
      %c2_53 = arith.constant 2 : index
      %c0_54 = arith.constant 0 : index
      %c0_55 = arith.constant 0 : index
      %69 = vector.load %arg12[%c2_53, %c0_54, %c0_55] : memref<3x4x256xf32, #tpu.memory_space<vmem>>, vector<1x4x256xf32>
      %70 = vector.shape_cast %69 : vector<1x4x256xf32> to vector<4x256xf32>
      %71 = arith.maximumf %70, %29 : vector<4x256xf32>
      %c2_56 = arith.constant 2 : index
      %c0_57 = arith.constant 0 : index
      %c0_58 = arith.constant 0 : index
      %72 = vector.load %arg12[%c2_56, %c0_57, %c0_58] : memref<3x4x256xf32, #tpu.memory_space<vmem>>, vector<1x4x256xf32>
      %73 = vector.shape_cast %72 : vector<1x4x256xf32> to vector<4x256xf32>
      %74 = vector.shape_cast %71 : vector<4x256xf32> to vector<1x4x256xf32>
      tpu.vector_store %arg12[%c2_56, %c0_57, %c0_58], %74 {strides = array<i32>} : memref<3x4x256xf32, #tpu.memory_space<vmem>>, vector<1x4x256xf32>,
    } else {
    }
    %c0_i32_23 = arith.constant 0 : i32
    %36 = arith.cmpi eq, %arg1, %c0_i32_23 : i32
    %37 = arith.extui %36 : i1 to i32
    %c0_i32_24 = arith.constant 0 : i32
    %38 = arith.cmpi ne, %37, %c0_i32_24 : i32
    scf.if %38 {
      %c0_25 = arith.constant 0 : index
      %c0_26 = arith.constant 0 : index
      %c0_27 = arith.constant 0 : index
      %39 = vector.load %arg11[%c0_25, %c0_26, %c0_27] : memref<3x4x256xf32, #tpu.memory_space<vmem>>, vector<1x4x256xf32>
      %40 = vector.shape_cast %39 : vector<1x4x256xf32> to vector<4x256xf32>
      %cst = arith.constant 2.500000e-01 : f32
      %41 = vector.broadcast %cst : f32 to vector<4x256xf32>
      %42 = arith.mulf %40, %41 : vector<4x256xf32>
      %c1 = arith.constant 1 : index
      %c0_28 = arith.constant 0 : index
      %c0_29 = arith.constant 0 : index
      %43 = vector.load %arg11[%c1, %c0_28, %c0_29] : memref<3x4x256xf32, #tpu.memory_space<vmem>>, vector<1x4x256xf32>
      %44 = vector.shape_cast %43 : vector<1x4x256xf32> to vector<4x256xf32>
      %cst_30 = arith.constant 2.500000e-01 : f32
      %45 = vector.broadcast %cst_30 : f32 to vector<4x256xf32>
      %46 = arith.mulf %44, %45 : vector<4x256xf32>
      %c2 = arith.constant 2 : index
      %c0_31 = arith.constant 0 : index
      %c0_32 = arith.constant 0 : index
      %47 = vector.load %arg11[%c2, %c0_31, %c0_32] : memref<3x4x256xf32, #tpu.memory_space<vmem>>, vector<1x4x256xf32>
      %48 = vector.shape_cast %47 : vector<1x4x256xf32> to vector<4x256xf32>
      %cst_33 = arith.constant 2.500000e-01 : f32
      %49 = vector.broadcast %cst_33 : f32 to vector<4x256xf32>
      %50 = arith.mulf %48, %49 : vector<4x256xf32>
      %c0_34 = arith.constant 0 : index
      %c0_35 = arith.constant 0 : index
      %c0_36 = arith.constant 0 : index
      %51 = vector.load %arg12[%c0_34, %c0_35, %c0_36] : memref<3x4x256xf32, #tpu.memory_space<vmem>>, vector<1x4x256xf32>
      %52 = vector.shape_cast %51 : vector<1x4x256xf32> to vector<4x256xf32>
      %c1_37 = arith.constant 1 : index
      %c0_38 = arith.constant 0 : index
      %c0_39 = arith.constant 0 : index
      %53 = vector.load %arg12[%c1_37, %c0_38, %c0_39] : memref<3x4x256xf32, #tpu.memory_space<vmem>>, vector<1x4x256xf32>
      %54 = vector.shape_cast %53 : vector<1x4x256xf32> to vector<4x256xf32>
      %c2_40 = arith.constant 2 : index
      %c0_41 = arith.constant 0 : index
      %c0_42 = arith.constant 0 : index
      %55 = vector.load %arg12[%c2_40, %c0_41, %c0_42] : memref<3x4x256xf32, #tpu.memory_space<vmem>>, vector<1x4x256xf32>
      %56 = vector.shape_cast %55 : vector<1x4x256xf32> to vector<4x256xf32>
      %c0_43 = arith.constant 0 : index
      %c0_44 = arith.constant 0 : index
      %57 = vector.load %arg5[%c0_43, %c0_44] : memref<7x256xf32, #tpu.memory_space<vmem>>, vector<1x256xf32>
      %c1_45 = arith.constant 1 : index
      %c0_46 = arith.constant 0 : index
      %58 = vector.load %arg5[%c1_45, %c0_46] : memref<7x256xf32, #tpu.memory_space<vmem>>, vector<1x256xf32>
      %c2_47 = arith.constant 2 : index
      %c0_48 = arith.constant 0 : index
      %59 = vector.load %arg5[%c2_47, %c0_48] : memref<7x256xf32, #tpu.memory_space<vmem>>, vector<1x256xf32>
      %c3 = arith.constant 3 : index
      %c0_49 = arith.constant 0 : index
      %60 = vector.load %arg5[%c3, %c0_49] : memref<7x256xf32, #tpu.memory_space<vmem>>, vector<1x256xf32>
      %c4 = arith.constant 4 : index
      %c0_50 = arith.constant 0 : index
      %61 = vector.load %arg5[%c4, %c0_50] : memref<7x256xf32, #tpu.memory_space<vmem>>, vector<1x256xf32>
      %c5 = arith.constant 5 : index
      %c0_51 = arith.constant 0 : index
      %62 = vector.load %arg5[%c5, %c0_51] : memref<7x256xf32, #tpu.memory_space<vmem>>, vector<1x256xf32>
      %c6 = arith.constant 6 : index
      %c0_52 = arith.constant 0 : index
      %63 = vector.load %arg5[%c6, %c0_52] : memref<7x256xf32, #tpu.memory_space<vmem>>, vector<1x256xf32>
      %c0_53 = arith.constant 0 : index
      %c0_54 = arith.constant 0 : index
      %64 = vector.load %arg6[%c0_53, %c0_54] : memref<7x256xf32, #tpu.memory_space<vmem>>, vector<1x256xf32>
      %c1_55 = arith.constant 1 : index
      %c0_56 = arith.constant 0 : index
      %65 = vector.load %arg6[%c1_55, %c0_56] : memref<7x256xf32, #tpu.memory_space<vmem>>, vector<1x256xf32>
      %c2_57 = arith.constant 2 : index
      %c0_58 = arith.constant 0 : index
      %66 = vector.load %arg6[%c2_57, %c0_58] : memref<7x256xf32, #tpu.memory_space<vmem>>, vector<1x256xf32>
      %c3_59 = arith.constant 3 : index
      %c0_60 = arith.constant 0 : index
      %67 = vector.load %arg6[%c3_59, %c0_60] : memref<7x256xf32, #tpu.memory_space<vmem>>, vector<1x256xf32>
      %c4_61 = arith.constant 4 : index
      %c0_62 = arith.constant 0 : index
      %68 = vector.load %arg6[%c4_61, %c0_62] : memref<7x256xf32, #tpu.memory_space<vmem>>, vector<1x256xf32>
      %c5_63 = arith.constant 5 : index
      %c0_64 = arith.constant 0 : index
      %69 = vector.load %arg6[%c5_63, %c0_64] : memref<7x256xf32, #tpu.memory_space<vmem>>, vector<1x256xf32>
      %c6_65 = arith.constant 6 : index
      %c0_66 = arith.constant 0 : index
      %70 = vector.load %arg6[%c6_65, %c0_66] : memref<7x256xf32, #tpu.memory_space<vmem>>, vector<1x256xf32>
      %cst_67 = arith.constant 0.000000e+00 : f32
      %71 = vector.broadcast %cst_67 : f32 to vector<4x256xf32>
      %cst_68 = arith.constant 0.000000e+00 : f32
      %72 = vector.broadcast %cst_68 : f32 to vector<4x256xf32>
      %cst_69 = arith.constant 0.000000e+00 : f32
      %73 = vector.broadcast %cst_69 : f32 to vector<4x256xf32>
      %c0_70 = arith.constant 0 : index
      %74 = memref.load %arg2[%c0_70] : memref<98xf32, #tpu.memory_space<smem>>
      %c49 = arith.constant 49 : index
      %75 = memref.load %arg2[%c49] : memref<98xf32, #tpu.memory_space<smem>>
      %76 = arith.mulf %57, %64 : vector<1x256xf32>
      %c51_i32 = arith.constant 51 : i32
      %77 = tpu.dynamic_rotate %42 by %c51_i32 dim 1 : vector<4x256xf32>, i32 -> vector<4x256xf32>
      %c51_i32_71 = arith.constant 51 : i32
      %78 = tpu.dynamic_rotate %52 by %c51_i32_71 dim 1 : vector<4x256xf32>, i32 -> vector<4x256xf32>
      %79 = vector.broadcast %74 : f32 to vector<4x256xf32>
      %80 = arith.mulf %79, %77 : vector<4x256xf32>
      %81 = vector.broadcast %75 : f32 to vector<4x256xf32>
      %82 = arith.mulf %81, %78 : vector<4x256xf32>
      %83 = arith.addf %80, %82 : vector<4x256xf32>
      %84 = vector.broadcast %76 : vector<1x256xf32> to vector<4x256xf32>
      %85 = arith.mulf %84, %83 : vector<4x256xf32>
      %86 = arith.addf %71, %85 : vector<4x256xf32>
      %c51_i32_72 = arith.constant 51 : i32
      %87 = tpu.dynamic_rotate %46 by %c51_i32_72 dim 1 : vector<4x256xf32>, i32 -> vector<4x256xf32>
      %c51_i32_73 = arith.constant 51 : i32
      %88 = tpu.dynamic_rotate %54 by %c51_i32_73 dim 1 : vector<4x256xf32>, i32 -> vector<4x256xf32>
      %89 = vector.broadcast %74 : f32 to vector<4x256xf32>
      %90 = arith.mulf %89, %87 : vector<4x256xf32>
      %91 = vector.broadcast %75 : f32 to vector<4x256xf32>
      %92 = arith.mulf %91, %88 : vector<4x256xf32>
      %93 = arith.addf %90, %92 : vector<4x256xf32>
      %94 = vector.broadcast %76 : vector<1x256xf32> to vector<4x256xf32>
      %95 = arith.mulf %94, %93 : vector<4x256xf32>
      %96 = arith.addf %72, %95 : vector<4x256xf32>
      %c51_i32_74 = arith.constant 51 : i32
      %97 = tpu.dynamic_rotate %50 by %c51_i32_74 dim 1 : vector<4x256xf32>, i32 -> vector<4x256xf32>
      %c51_i32_75 = arith.constant 51 : i32
      %98 = tpu.dynamic_rotate %56 by %c51_i32_75 dim 1 : vector<4x256xf32>, i32 -> vector<4x256xf32>
      %99 = vector.broadcast %74 : f32 to vector<4x256xf32>
      %100 = arith.mulf %99, %97 : vector<4x256xf32>
      %101 = vector.broadcast %75 : f32 to vector<4x256xf32>
      %102 = arith.mulf %101, %98 : vector<4x256xf32>
      %103 = arith.addf %100, %102 : vector<4x256xf32>
      %104 = vector.broadcast %76 : vector<1x256xf32> to vector<4x256xf32>
      %105 = arith.mulf %104, %103 : vector<4x256xf32>
      %106 = arith.addf %73, %105 : vector<4x256xf32>
      %c1_76 = arith.constant 1 : index
      %107 = memref.load %arg2[%c1_76] : memref<98xf32, #tpu.memory_space<smem>>
      %c50 = arith.constant 50 : index
      %108 = memref.load %arg2[%c50] : memref<98xf32, #tpu.memory_space<smem>>
      %109 = arith.mulf %57, %65 : vector<1x256xf32>
      %c50_i32 = arith.constant 50 : i32
      %110 = tpu.dynamic_rotate %42 by %c50_i32 dim 1 : vector<4x256xf32>, i32 -> vector<4x256xf32>
      %c50_i32_77 = arith.constant 50 : i32
      %111 = tpu.dynamic_rotate %52 by %c50_i32_77 dim 1 : vector<4x256xf32>, i32 -> vector<4x256xf32>
      %112 = vector.broadcast %107 : f32 to vector<4x256xf32>
      %113 = arith.mulf %112, %110 : vector<4x256xf32>
      %114 = vector.broadcast %108 : f32 to vector<4x256xf32>
      %115 = arith.mulf %114, %111 : vector<4x256xf32>
      %116 = arith.addf %113, %115 : vector<4x256xf32>
      %117 = vector.broadcast %109 : vector<1x256xf32> to vector<4x256xf32>
      %118 = arith.mulf %117, %116 : vector<4x256xf32>
      %119 = arith.addf %86, %118 : vector<4x256xf32>
      %c50_i32_78 = arith.constant 50 : i32
      %120 = tpu.dynamic_rotate %46 by %c50_i32_78 dim 1 : vector<4x256xf32>, i32 -> vector<4x256xf32>
      %c50_i32_79 = arith.constant 50 : i32
      %121 = tpu.dynamic_rotate %54 by %c50_i32_79 dim 1 : vector<4x256xf32>, i32 -> vector<4x256xf32>
      %122 = vector.broadcast %107 : f32 to vector<4x256xf32>
      %123 = arith.mulf %122, %120 : vector<4x256xf32>
      %124 = vector.broadcast %108 : f32 to vector<4x256xf32>
      %125 = arith.mulf %124, %121 : vector<4x256xf32>
      %126 = arith.addf %123, %125 : vector<4x256xf32>
      %127 = vector.broadcast %109 : vector<1x256xf32> to vector<4x256xf32>
      %128 = arith.mulf %127, %126 : vector<4x256xf32>
      %129 = arith.addf %96, %128 : vector<4x256xf32>
      %c50_i32_80 = arith.constant 50 : i32
      %130 = tpu.dynamic_rotate %50 by %c50_i32_80 dim 1 : vector<4x256xf32>, i32 -> vector<4x256xf32>
      %c50_i32_81 = arith.constant 50 : i32
      %131 = tpu.dynamic_rotate %56 by %c50_i32_81 dim 1 : vector<4x256xf32>, i32 -> vector<4x256xf32>
      %132 = vector.broadcast %107 : f32 to vector<4x256xf32>
      %133 = arith.mulf %132, %130 : vector<4x256xf32>
      %134 = vector.broadcast %108 : f32 to vector<4x256xf32>
      %135 = arith.mulf %134, %131 : vector<4x256xf32>
      %136 = arith.addf %133, %135 : vector<4x256xf32>
      %137 = vector.broadcast %109 : vector<1x256xf32> to vector<4x256xf32>
      %138 = arith.mulf %137, %136 : vector<4x256xf32>
      %139 = arith.addf %106, %138 : vector<4x256xf32>
      %c2_82 = arith.constant 2 : index
      %140 = memref.load %arg2[%c2_82] : memref<98xf32, #tpu.memory_space<smem>>
      %c51 = arith.constant 51 : index
      %141 = memref.load %arg2[%c51] : memref<98xf32, #tpu.memory_space<smem>>
      %142 = arith.mulf %57, %66 : vector<1x256xf32>
      %c49_i32 = arith.constant 49 : i32
      %143 = tpu.dynamic_rotate %42 by %c49_i32 dim 1 : vector<4x256xf32>, i32 -> vector<4x256xf32>
      %c49_i32_83 = arith.constant 49 : i32
      %144 = tpu.dynamic_rotate %52 by %c49_i32_83 dim 1 : vector<4x256xf32>, i32 -> vector<4x256xf32>
      %145 = vector.broadcast %140 : f32 to vector<4x256xf32>
      %146 = arith.mulf %145, %143 : vector<4x256xf32>
      %147 = vector.broadcast %141 : f32 to vector<4x256xf32>
      %148 = arith.mulf %147, %144 : vector<4x256xf32>
      %149 = arith.addf %146, %148 : vector<4x256xf32>
      %150 = vector.broadcast %142 : vector<1x256xf32> to vector<4x256xf32>
      %151 = arith.mulf %150, %149 : vector<4x256xf32>
      %152 = arith.addf %119, %151 : vector<4x256xf32>
      %c49_i32_84 = arith.constant 49 : i32
      %153 = tpu.dynamic_rotate %46 by %c49_i32_84 dim 1 : vector<4x256xf32>, i32 -> vector<4x256xf32>
      %c49_i32_85 = arith.constant 49 : i32
      %154 = tpu.dynamic_rotate %54 by %c49_i32_85 dim 1 : vector<4x256xf32>, i32 -> vector<4x256xf32>
      %155 = vector.broadcast %140 : f32 to vector<4x256xf32>
      %156 = arith.mulf %155, %153 : vector<4x256xf32>
      %157 = vector.broadcast %141 : f32 to vector<4x256xf32>
      %158 = arith.mulf %157, %154 : vector<4x256xf32>
      %159 = arith.addf %156, %158 : vector<4x256xf32>
      %160 = vector.broadcast %142 : vector<1x256xf32> to vector<4x256xf32>
      %161 = arith.mulf %160, %159 : vector<4x256xf32>
      %162 = arith.addf %129, %161 : vector<4x256xf32>
      %c49_i32_86 = arith.constant 49 : i32
      %163 = tpu.dynamic_rotate %50 by %c49_i32_86 dim 1 : vector<4x256xf32>, i32 -> vector<4x256xf32>
      %c49_i32_87 = arith.constant 49 : i32
      %164 = tpu.dynamic_rotate %56 by %c49_i32_87 dim 1 : vector<4x256xf32>, i32 -> vector<4x256xf32>
      %165 = vector.broadcast %140 : f32 to vector<4x256xf32>
      %166 = arith.mulf %165, %163 : vector<4x256xf32>
      %167 = vector.broadcast %141 : f32 to vector<4x256xf32>
      %168 = arith.mulf %167, %164 : vector<4x256xf32>
      %169 = arith.addf %166, %168 : vector<4x256xf32>
      %170 = vector.broadcast %142 : vector<1x256xf32> to vector<4x256xf32>
      %171 = arith.mulf %170, %169 : vector<4x256xf32>
      %172 = arith.addf %139, %171 : vector<4x256xf32>
      %c3_88 = arith.constant 3 : index
      %173 = memref.load %arg2[%c3_88] : memref<98xf32, #tpu.memory_space<smem>>
      %c52 = arith.constant 52 : index
      %174 = memref.load %arg2[%c52] : memref<98xf32, #tpu.memory_space<smem>>
      %175 = arith.mulf %57, %67 : vector<1x256xf32>
      %c48_i32 = arith.constant 48 : i32
      %176 = tpu.dynamic_rotate %42 by %c48_i32 dim 1 : vector<4x256xf32>, i32 -> vector<4x256xf32>
      %c48_i32_89 = arith.constant 48 : i32
      %177 = tpu.dynamic_rotate %52 by %c48_i32_89 dim 1 : vector<4x256xf32>, i32 -> vector<4x256xf32>
      %178 = vector.broadcast %173 : f32 to vector<4x256xf32>
      %179 = arith.mulf %178, %176 : vector<4x256xf32>
      %180 = vector.broadcast %174 : f32 to vector<4x256xf32>
      %181 = arith.mulf %180, %177 : vector<4x256xf32>
      %182 = arith.addf %179, %181 : vector<4x256xf32>
      %183 = vector.broadcast %175 : vector<1x256xf32> to vector<4x256xf32>
      %184 = arith.mulf %183, %182 : vector<4x256xf32>
      %185 = arith.addf %152, %184 : vector<4x256xf32>
      %c48_i32_90 = arith.constant 48 : i32
      %186 = tpu.dynamic_rotate %46 by %c48_i32_90 dim 1 : vector<4x256xf32>, i32 -> vector<4x256xf32>
      %c48_i32_91 = arith.constant 48 : i32
      %187 = tpu.dynamic_rotate %54 by %c48_i32_91 dim 1 : vector<4x256xf32>, i32 -> vector<4x256xf32>
      %188 = vector.broadcast %173 : f32 to vector<4x256xf32>
      %189 = arith.mulf %188, %186 : vector<4x256xf32>
      %190 = vector.broadcast %174 : f32 to vector<4x256xf32>
      %191 = arith.mulf %190, %187 : vector<4x256xf32>
      %192 = arith.addf %189, %191 : vector<4x256xf32>
      %193 = vector.broadcast %175 : vector<1x256xf32> to vector<4x256xf32>
      %194 = arith.mulf %193, %192 : vector<4x256xf32>
      %195 = arith.addf %162, %194 : vector<4x256xf32>
      %c48_i32_92 = arith.constant 48 : i32
      %196 = tpu.dynamic_rotate %50 by %c48_i32_92 dim 1 : vector<4x256xf32>, i32 -> vector<4x256xf32>
      %c48_i32_93 = arith.constant 48 : i32
      %197 = tpu.dynamic_rotate %56 by %c48_i32_93 dim 1 : vector<4x256xf32>, i32 -> vector<4x256xf32>
      %198 = vector.broadcast %173 : f32 to vector<4x256xf32>
      %199 = arith.mulf %198, %196 : vector<4x256xf32>
      %200 = vector.broadcast %174 : f32 to vector<4x256xf32>
      %201 = arith.mulf %200, %197 : vector<4x256xf32>
      %202 = arith.addf %199, %201 : vector<4x256xf32>
      %203 = vector.broadcast %175 : vector<1x256xf32> to vector<4x256xf32>
      %204 = arith.mulf %203, %202 : vector<4x256xf32>
      %205 = arith.addf %172, %204 : vector<4x256xf32>
      %c4_94 = arith.constant 4 : index
      %206 = memref.load %arg2[%c4_94] : memref<98xf32, #tpu.memory_space<smem>>
      %c53 = arith.constant 53 : index
      %207 = memref.load %arg2[%c53] : memref<98xf32, #tpu.memory_space<smem>>
      %208 = arith.mulf %57, %68 : vector<1x256xf32>
      %c47_i32 = arith.constant 47 : i32
      %209 = tpu.dynamic_rotate %42 by %c47_i32 dim 1 : vector<4x256xf32>, i32 -> vector<4x256xf32>
      %c47_i32_95 = arith.constant 47 : i32
      %210 = tpu.dynamic_rotate %52 by %c47_i32_95 dim 1 : vector<4x256xf32>, i32 -> vector<4x256xf32>
      %211 = vector.broadcast %206 : f32 to vector<4x256xf32>
      %212 = arith.mulf %211, %209 : vector<4x256xf32>
      %213 = vector.broadcast %207 : f32 to vector<4x256xf32>
      %214 = arith.mulf %213, %210 : vector<4x256xf32>
      %215 = arith.addf %212, %214 : vector<4x256xf32>
      %216 = vector.broadcast %208 : vector<1x256xf32> to vector<4x256xf32>
      %217 = arith.mulf %216, %215 : vector<4x256xf32>
      %218 = arith.addf %185, %217 : vector<4x256xf32>
      %c47_i32_96 = arith.constant 47 : i32
      %219 = tpu.dynamic_rotate %46 by %c47_i32_96 dim 1 : vector<4x256xf32>, i32 -> vector<4x256xf32>
      %c47_i32_97 = arith.constant 47 : i32
      %220 = tpu.dynamic_rotate %54 by %c47_i32_97 dim 1 : vector<4x256xf32>, i32 -> vector<4x256xf32>
      %221 = vector.broadcast %206 : f32 to vector<4x256xf32>
      %222 = arith.mulf %221, %219 : vector<4x256xf32>
      %223 = vector.broadcast %207 : f32 to vector<4x256xf32>
      %224 = arith.mulf %223, %220 : vector<4x256xf32>
      %225 = arith.addf %222, %224 : vector<4x256xf32>
      %226 = vector.broadcast %208 : vector<1x256xf32> to vector<4x256xf32>
      %227 = arith.mulf %226, %225 : vector<4x256xf32>
      %228 = arith.addf %195, %227 : vector<4x256xf32>
      %c47_i32_98 = arith.constant 47 : i32
      %229 = tpu.dynamic_rotate %50 by %c47_i32_98 dim 1 : vector<4x256xf32>, i32 -> vector<4x256xf32>
      %c47_i32_99 = arith.constant 47 : i32
      %230 = tpu.dynamic_rotate %56 by %c47_i32_99 dim 1 : vector<4x256xf32>, i32 -> vector<4x256xf32>
      %231 = vector.broadcast %206 : f32 to vector<4x256xf32>
      %232 = arith.mulf %231, %229 : vector<4x256xf32>
      %233 = vector.broadcast %207 : f32 to vector<4x256xf32>
      %234 = arith.mulf %233, %230 : vector<4x256xf32>
      %235 = arith.addf %232, %234 : vector<4x256xf32>
      %236 = vector.broadcast %208 : vector<1x256xf32> to vector<4x256xf32>
      %237 = arith.mulf %236, %235 : vector<4x256xf32>
      %238 = arith.addf %205, %237 : vector<4x256xf32>
      %c5_100 = arith.constant 5 : index
      %239 = memref.load %arg2[%c5_100] : memref<98xf32, #tpu.memory_space<smem>>
      %c54 = arith.constant 54 : index
      %240 = memref.load %arg2[%c54] : memref<98xf32, #tpu.memory_space<smem>>
      %241 = arith.mulf %57, %69 : vector<1x256xf32>
      %c46_i32 = arith.constant 46 : i32
      %242 = tpu.dynamic_rotate %42 by %c46_i32 dim 1 : vector<4x256xf32>, i32 -> vector<4x256xf32>
      %c46_i32_101 = arith.constant 46 : i32
      %243 = tpu.dynamic_rotate %52 by %c46_i32_101 dim 1 : vector<4x256xf32>, i32 -> vector<4x256xf32>
      %244 = vector.broadcast %239 : f32 to vector<4x256xf32>
      %245 = arith.mulf %244, %242 : vector<4x256xf32>
      %246 = vector.broadcast %240 : f32 to vector<4x256xf32>
      %247 = arith.mulf %246, %243 : vector<4x256xf32>
      %248 = arith.addf %245, %247 : vector<4x256xf32>
      %249 = vector.broadcast %241 : vector<1x256xf32> to vector<4x256xf32>
      %250 = arith.mulf %249, %248 : vector<4x256xf32>
      %251 = arith.addf %218, %250 : vector<4x256xf32>
      %c46_i32_102 = arith.constant 46 : i32
      %252 = tpu.dynamic_rotate %46 by %c46_i32_102 dim 1 : vector<4x256xf32>, i32 -> vector<4x256xf32>
      %c46_i32_103 = arith.constant 46 : i32
      %253 = tpu.dynamic_rotate %54 by %c46_i32_103 dim 1 : vector<4x256xf32>, i32 -> vector<4x256xf32>
      %254 = vector.broadcast %239 : f32 to vector<4x256xf32>
      %255 = arith.mulf %254, %252 : vector<4x256xf32>
      %256 = vector.broadcast %240 : f32 to vector<4x256xf32>
      %257 = arith.mulf %256, %253 : vector<4x256xf32>
      %258 = arith.addf %255, %257 : vector<4x256xf32>
      %259 = vector.broadcast %241 : vector<1x256xf32> to vector<4x256xf32>
      %260 = arith.mulf %259, %258 : vector<4x256xf32>
      %261 = arith.addf %228, %260 : vector<4x256xf32>
      %c46_i32_104 = arith.constant 46 : i32
      %262 = tpu.dynamic_rotate %50 by %c46_i32_104 dim 1 : vector<4x256xf32>, i32 -> vector<4x256xf32>
      %c46_i32_105 = arith.constant 46 : i32
      %263 = tpu.dynamic_rotate %56 by %c46_i32_105 dim 1 : vector<4x256xf32>, i32 -> vector<4x256xf32>
      %264 = vector.broadcast %239 : f32 to vector<4x256xf32>
      %265 = arith.mulf %264, %262 : vector<4x256xf32>
      %266 = vector.broadcast %240 : f32 to vector<4x256xf32>
      %267 = arith.mulf %266, %263 : vector<4x256xf32>
      %268 = arith.addf %265, %267 : vector<4x256xf32>
      %269 = vector.broadcast %241 : vector<1x256xf32> to vector<4x256xf32>
      %270 = arith.mulf %269, %268 : vector<4x256xf32>
      %271 = arith.addf %238, %270 : vector<4x256xf32>
      %c6_106 = arith.constant 6 : index
      %272 = memref.load %arg2[%c6_106] : memref<98xf32, #tpu.memory_space<smem>>
      %c55 = arith.constant 55 : index
      %273 = memref.load %arg2[%c55] : memref<98xf32, #tpu.memory_space<smem>>
      %274 = arith.mulf %57, %70 : vector<1x256xf32>
      %c45_i32 = arith.constant 45 : i32
      %275 = tpu.dynamic_rotate %42 by %c45_i32 dim 1 : vector<4x256xf32>, i32 -> vector<4x256xf32>
      %c45_i32_107 = arith.constant 45 : i32
      %276 = tpu.dynamic_rotate %52 by %c45_i32_107 dim 1 : vector<4x256xf32>, i32 -> vector<4x256xf32>
      %277 = vector.broadcast %272 : f32 to vector<4x256xf32>
      %278 = arith.mulf %277, %275 : vector<4x256xf32>
      %279 = vector.broadcast %273 : f32 to vector<4x256xf32>
      %280 = arith.mulf %279, %276 : vector<4x256xf32>
      %281 = arith.addf %278, %280 : vector<4x256xf32>
      %282 = vector.broadcast %274 : vector<1x256xf32> to vector<4x256xf32>
      %283 = arith.mulf %282, %281 : vector<4x256xf32>
      %284 = arith.addf %251, %283 : vector<4x256xf32>
      %c45_i32_108 = arith.constant 45 : i32
      %285 = tpu.dynamic_rotate %46 by %c45_i32_108 dim 1 : vector<4x256xf32>, i32 -> vector<4x256xf32>
      %c45_i32_109 = arith.constant 45 : i32
      %286 = tpu.dynamic_rotate %54 by %c45_i32_109 dim 1 : vector<4x256xf32>, i32 -> vector<4x256xf32>
      %287 = vector.broadcast %272 : f32 to vector<4x256xf32>
      %288 = arith.mulf %287, %285 : vector<4x256xf32>
      %289 = vector.broadcast %273 : f32 to vector<4x256xf32>
      %290 = arith.mulf %289, %286 : vector<4x256xf32>
      %291 = arith.addf %288, %290 : vector<4x256xf32>
      %292 = vector.broadcast %274 : vector<1x256xf32> to vector<4x256xf32>
      %293 = arith.mulf %292, %291 : vector<4x256xf32>
      %294 = arith.addf %261, %293 : vector<4x256xf32>
      %c45_i32_110 = arith.constant 45 : i32
      %295 = tpu.dynamic_rotate %50 by %c45_i32_110 dim 1 : vector<4x256xf32>, i32 -> vector<4x256xf32>
      %c45_i32_111 = arith.constant 45 : i32
      %296 = tpu.dynamic_rotate %56 by %c45_i32_111 dim 1 : vector<4x256xf32>, i32 -> vector<4x256xf32>
      %297 = vector.broadcast %272 : f32 to vector<4x256xf32>
      %298 = arith.mulf %297, %295 : vector<4x256xf32>
      %299 = vector.broadcast %273 : f32 to vector<4x256xf32>
      %300 = arith.mulf %299, %296 : vector<4x256xf32>
      %301 = arith.addf %298, %300 : vector<4x256xf32>
      %302 = vector.broadcast %274 : vector<1x256xf32> to vector<4x256xf32>
      %303 = arith.mulf %302, %301 : vector<4x256xf32>
      %304 = arith.addf %271, %303 : vector<4x256xf32>
      %c7 = arith.constant 7 : index
      %305 = memref.load %arg2[%c7] : memref<98xf32, #tpu.memory_space<smem>>
      %c56 = arith.constant 56 : index
      %306 = memref.load %arg2[%c56] : memref<98xf32, #tpu.memory_space<smem>>
      %307 = arith.mulf %58, %64 : vector<1x256xf32>
      %c35_i32 = arith.constant 35 : i32
      %308 = tpu.dynamic_rotate %42 by %c35_i32 dim 1 : vector<4x256xf32>, i32 -> vector<4x256xf32>
      %c35_i32_112 = arith.constant 35 : i32
      %309 = tpu.dynamic_rotate %52 by %c35_i32_112 dim 1 : vector<4x256xf32>, i32 -> vector<4x256xf32>
      %310 = vector.broadcast %305 : f32 to vector<4x256xf32>
      %311 = arith.mulf %310, %308 : vector<4x256xf32>
      %312 = vector.broadcast %306 : f32 to vector<4x256xf32>
      %313 = arith.mulf %312, %309 : vector<4x256xf32>
      %314 = arith.addf %311, %313 : vector<4x256xf32>
      %315 = vector.broadcast %307 : vector<1x256xf32> to vector<4x256xf32>
      %316 = arith.mulf %315, %314 : vector<4x256xf32>
      %317 = arith.addf %284, %316 : vector<4x256xf32>
      %c35_i32_113 = arith.constant 35 : i32
      %318 = tpu.dynamic_rotate %46 by %c35_i32_113 dim 1 : vector<4x256xf32>, i32 -> vector<4x256xf32>
      %c35_i32_114 = arith.constant 35 : i32
      %319 = tpu.dynamic_rotate %54 by %c35_i32_114 dim 1 : vector<4x256xf32>, i32 -> vector<4x256xf32>
      %320 = vector.broadcast %305 : f32 to vector<4x256xf32>
      %321 = arith.mulf %320, %318 : vector<4x256xf32>
      %322 = vector.broadcast %306 : f32 to vector<4x256xf32>
      %323 = arith.mulf %322, %319 : vector<4x256xf32>
      %324 = arith.addf %321, %323 : vector<4x256xf32>
      %325 = vector.broadcast %307 : vector<1x256xf32> to vector<4x256xf32>
      %326 = arith.mulf %325, %324 : vector<4x256xf32>
      %327 = arith.addf %294, %326 : vector<4x256xf32>
      %c35_i32_115 = arith.constant 35 : i32
      %328 = tpu.dynamic_rotate %50 by %c35_i32_115 dim 1 : vector<4x256xf32>, i32 -> vector<4x256xf32>
      %c35_i32_116 = arith.constant 35 : i32
      %329 = tpu.dynamic_rotate %56 by %c35_i32_116 dim 1 : vector<4x256xf32>, i32 -> vector<4x256xf32>
      %330 = vector.broadcast %305 : f32 to vector<4x256xf32>
      %331 = arith.mulf %330, %328 : vector<4x256xf32>
      %332 = vector.broadcast %306 : f32 to vector<4x256xf32>
      %333 = arith.mulf %332, %329 : vector<4x256xf32>
      %334 = arith.addf %331, %333 : vector<4x256xf32>
      %335 = vector.broadcast %307 : vector<1x256xf32> to vector<4x256xf32>
      %336 = arith.mulf %335, %334 : vector<4x256xf32>
      %337 = arith.addf %304, %336 : vector<4x256xf32>
      %c8 = arith.constant 8 : index
      %338 = memref.load %arg2[%c8] : memref<98xf32, #tpu.memory_space<smem>>
      %c57 = arith.constant 57 : index
      %339 = memref.load %arg2[%c57] : memref<98xf32, #tpu.memory_space<smem>>
      %340 = arith.mulf %58, %65 : vector<1x256xf32>
      %c34_i32 = arith.constant 34 : i32
      %341 = tpu.dynamic_rotate %42 by %c34_i32 dim 1 : vector<4x256xf32>, i32 -> vector<4x256xf32>
      %c34_i32_117 = arith.constant 34 : i32
      %342 = tpu.dynamic_rotate %52 by %c34_i32_117 dim 1 : vector<4x256xf32>, i32 -> vector<4x256xf32>
      %343 = vector.broadcast %338 : f32 to vector<4x256xf32>
      %344 = arith.mulf %343, %341 : vector<4x256xf32>
      %345 = vector.broadcast %339 : f32 to vector<4x256xf32>
      %346 = arith.mulf %345, %342 : vector<4x256xf32>
      %347 = arith.addf %344, %346 : vector<4x256xf32>
      %348 = vector.broadcast %340 : vector<1x256xf32> to vector<4x256xf32>
      %349 = arith.mulf %348, %347 : vector<4x256xf32>
      %350 = arith.addf %317, %349 : vector<4x256xf32>
      %c34_i32_118 = arith.constant 34 : i32
      %351 = tpu.dynamic_rotate %46 by %c34_i32_118 dim 1 : vector<4x256xf32>, i32 -> vector<4x256xf32>
      %c34_i32_119 = arith.constant 34 : i32
      %352 = tpu.dynamic_rotate %54 by %c34_i32_119 dim 1 : vector<4x256xf32>, i32 -> vector<4x256xf32>
      %353 = vector.broadcast %338 : f32 to vector<4x256xf32>
      %354 = arith.mulf %353, %351 : vector<4x256xf32>
      %355 = vector.broadcast %339 : f32 to vector<4x256xf32>
      %356 = arith.mulf %355, %352 : vector<4x256xf32>
      %357 = arith.addf %354, %356 : vector<4x256xf32>
      %358 = vector.broadcast %340 : vector<1x256xf32> to vector<4x256xf32>
      %359 = arith.mulf %358, %357 : vector<4x256xf32>
      %360 = arith.addf %327, %359 : vector<4x256xf32>
      %c34_i32_120 = arith.constant 34 : i32
      %361 = tpu.dynamic_rotate %50 by %c34_i32_120 dim 1 : vector<4x256xf32>, i32 -> vector<4x256xf32>
      %c34_i32_121 = arith.constant 34 : i32
      %362 = tpu.dynamic_rotate %56 by %c34_i32_121 dim 1 : vector<4x256xf32>, i32 -> vector<4x256xf32>
      %363 = vector.broadcast %338 : f32 to vector<4x256xf32>
      %364 = arith.mulf %363, %361 : vector<4x256xf32>
      %365 = vector.broadcast %339 : f32 to vector<4x256xf32>
      %366 = arith.mulf %365, %362 : vector<4x256xf32>
      %367 = arith.addf %364, %366 : vector<4x256xf32>
      %368 = vector.broadcast %340 : vector<1x256xf32> to vector<4x256xf32>
      %369 = arith.mulf %368, %367 : vector<4x256xf32>
      %370 = arith.addf %337, %369 : vector<4x256xf32>
      %c9 = arith.constant 9 : index
      %371 = memref.load %arg2[%c9] : memref<98xf32, #tpu.memory_space<smem>>
      %c58 = arith.constant 58 : index
      %372 = memref.load %arg2[%c58] : memref<98xf32, #tpu.memory_space<smem>>
      %373 = arith.mulf %58, %66 : vector<1x256xf32>
      %c33_i32 = arith.constant 33 : i32
      %374 = tpu.dynamic_rotate %42 by %c33_i32 dim 1 : vector<4x256xf32>, i32 -> vector<4x256xf32>
      %c33_i32_122 = arith.constant 33 : i32
      %375 = tpu.dynamic_rotate %52 by %c33_i32_122 dim 1 : vector<4x256xf32>, i32 -> vector<4x256xf32>
      %376 = vector.broadcast %371 : f32 to vector<4x256xf32>
      %377 = arith.mulf %376, %374 : vector<4x256xf32>
      %378 = vector.broadcast %372 : f32 to vector<4x256xf32>
      %379 = arith.mulf %378, %375 : vector<4x256xf32>
      %380 = arith.addf %377, %379 : vector<4x256xf32>
      %381 = vector.broadcast %373 : vector<1x256xf32> to vector<4x256xf32>
      %382 = arith.mulf %381, %380 : vector<4x256xf32>
      %383 = arith.addf %350, %382 : vector<4x256xf32>
      %c33_i32_123 = arith.constant 33 : i32
      %384 = tpu.dynamic_rotate %46 by %c33_i32_123 dim 1 : vector<4x256xf32>, i32 -> vector<4x256xf32>
      %c33_i32_124 = arith.constant 33 : i32
      %385 = tpu.dynamic_rotate %54 by %c33_i32_124 dim 1 : vector<4x256xf32>, i32 -> vector<4x256xf32>
      %386 = vector.broadcast %371 : f32 to vector<4x256xf32>
      %387 = arith.mulf %386, %384 : vector<4x256xf32>
      %388 = vector.broadcast %372 : f32 to vector<4x256xf32>
      %389 = arith.mulf %388, %385 : vector<4x256xf32>
      %390 = arith.addf %387, %389 : vector<4x256xf32>
      %391 = vector.broadcast %373 : vector<1x256xf32> to vector<4x256xf32>
      %392 = arith.mulf %391, %390 : vector<4x256xf32>
      %393 = arith.addf %360, %392 : vector<4x256xf32>
      %c33_i32_125 = arith.constant 33 : i32
      %394 = tpu.dynamic_rotate %50 by %c33_i32_125 dim 1 : vector<4x256xf32>, i32 -> vector<4x256xf32>
      %c33_i32_126 = arith.constant 33 : i32
      %395 = tpu.dynamic_rotate %56 by %c33_i32_126 dim 1 : vector<4x256xf32>, i32 -> vector<4x256xf32>
      %396 = vector.broadcast %371 : f32 to vector<4x256xf32>
      %397 = arith.mulf %396, %394 : vector<4x256xf32>
      %398 = vector.broadcast %372 : f32 to vector<4x256xf32>
      %399 = arith.mulf %398, %395 : vector<4x256xf32>
      %400 = arith.addf %397, %399 : vector<4x256xf32>
      %401 = vector.broadcast %373 : vector<1x256xf32> to vector<4x256xf32>
      %402 = arith.mulf %401, %400 : vector<4x256xf32>
      %403 = arith.addf %370, %402 : vector<4x256xf32>
      %c10 = arith.constant 10 : index
      %404 = memref.load %arg2[%c10] : memref<98xf32, #tpu.memory_space<smem>>
      %c59 = arith.constant 59 : index
      %405 = memref.load %arg2[%c59] : memref<98xf32, #tpu.memory_space<smem>>
      %406 = arith.mulf %58, %67 : vector<1x256xf32>
      %c32_i32 = arith.constant 32 : i32
      %407 = tpu.dynamic_rotate %42 by %c32_i32 dim 1 : vector<4x256xf32>, i32 -> vector<4x256xf32>
      %c32_i32_127 = arith.constant 32 : i32
      %408 = tpu.dynamic_rotate %52 by %c32_i32_127 dim 1 : vector<4x256xf32>, i32 -> vector<4x256xf32>
      %409 = vector.broadcast %404 : f32 to vector<4x256xf32>
      %410 = arith.mulf %409, %407 : vector<4x256xf32>
      %411 = vector.broadcast %405 : f32 to vector<4x256xf32>
      %412 = arith.mulf %411, %408 : vector<4x256xf32>
      %413 = arith.addf %410, %412 : vector<4x256xf32>
      %414 = vector.broadcast %406 : vector<1x256xf32> to vector<4x256xf32>
      %415 = arith.mulf %414, %413 : vector<4x256xf32>
      %416 = arith.addf %383, %415 : vector<4x256xf32>
      %c32_i32_128 = arith.constant 32 : i32
      %417 = tpu.dynamic_rotate %46 by %c32_i32_128 dim 1 : vector<4x256xf32>, i32 -> vector<4x256xf32>
      %c32_i32_129 = arith.constant 32 : i32
      %418 = tpu.dynamic_rotate %54 by %c32_i32_129 dim 1 : vector<4x256xf32>, i32 -> vector<4x256xf32>
      %419 = vector.broadcast %404 : f32 to vector<4x256xf32>
      %420 = arith.mulf %419, %417 : vector<4x256xf32>
      %421 = vector.broadcast %405 : f32 to vector<4x256xf32>
      %422 = arith.mulf %421, %418 : vector<4x256xf32>
      %423 = arith.addf %420, %422 : vector<4x256xf32>
      %424 = vector.broadcast %406 : vector<1x256xf32> to vector<4x256xf32>
      %425 = arith.mulf %424, %423 : vector<4x256xf32>
      %426 = arith.addf %393, %425 : vector<4x256xf32>
      %c32_i32_130 = arith.constant 32 : i32
      %427 = tpu.dynamic_rotate %50 by %c32_i32_130 dim 1 : vector<4x256xf32>, i32 -> vector<4x256xf32>
      %c32_i32_131 = arith.constant 32 : i32
      %428 = tpu.dynamic_rotate %56 by %c32_i32_131 dim 1 : vector<4x256xf32>, i32 -> vector<4x256xf32>
      %429 = vector.broadcast %404 : f32 to vector<4x256xf32>
      %430 = arith.mulf %429, %427 : vector<4x256xf32>
      %431 = vector.broadcast %405 : f32 to vector<4x256xf32>
      %432 = arith.mulf %431, %428 : vector<4x256xf32>
      %433 = arith.addf %430, %432 : vector<4x256xf32>
      %434 = vector.broadcast %406 : vector<1x256xf32> to vector<4x256xf32>
      %435 = arith.mulf %434, %433 : vector<4x256xf32>
      %436 = arith.addf %403, %435 : vector<4x256xf32>
      %c11 = arith.constant 11 : index
      %437 = memref.load %arg2[%c11] : memref<98xf32, #tpu.memory_space<smem>>
      %c60 = arith.constant 60 : index
      %438 = memref.load %arg2[%c60] : memref<98xf32, #tpu.memory_space<smem>>
      %439 = arith.mulf %58, %68 : vector<1x256xf32>
      %c31_i32 = arith.constant 31 : i32
      %440 = tpu.dynamic_rotate %42 by %c31_i32 dim 1 : vector<4x256xf32>, i32 -> vector<4x256xf32>
      %c31_i32_132 = arith.constant 31 : i32
      %441 = tpu.dynamic_rotate %52 by %c31_i32_132 dim 1 : vector<4x256xf32>, i32 -> vector<4x256xf32>
      %442 = vector.broadcast %437 : f32 to vector<4x256xf32>
      %443 = arith.mulf %442, %440 : vector<4x256xf32>
      %444 = vector.broadcast %438 : f32 to vector<4x256xf32>
      %445 = arith.mulf %444, %441 : vector<4x256xf32>
      %446 = arith.addf %443, %445 : vector<4x256xf32>
      %447 = vector.broadcast %439 : vector<1x256xf32> to vector<4x256xf32>
      %448 = arith.mulf %447, %446 : vector<4x256xf32>
      %449 = arith.addf %416, %448 : vector<4x256xf32>
      %c31_i32_133 = arith.constant 31 : i32
      %450 = tpu.dynamic_rotate %46 by %c31_i32_133 dim 1 : vector<4x256xf32>, i32 -> vector<4x256xf32>
      %c31_i32_134 = arith.constant 31 : i32
      %451 = tpu.dynamic_rotate %54 by %c31_i32_134 dim 1 : vector<4x256xf32>, i32 -> vector<4x256xf32>
      %452 = vector.broadcast %437 : f32 to vector<4x256xf32>
      %453 = arith.mulf %452, %450 : vector<4x256xf32>
      %454 = vector.broadcast %438 : f32 to vector<4x256xf32>
      %455 = arith.mulf %454, %451 : vector<4x256xf32>
      %456 = arith.addf %453, %455 : vector<4x256xf32>
      %457 = vector.broadcast %439 : vector<1x256xf32> to vector<4x256xf32>
      %458 = arith.mulf %457, %456 : vector<4x256xf32>
      %459 = arith.addf %426, %458 : vector<4x256xf32>
      %c31_i32_135 = arith.constant 31 : i32
      %460 = tpu.dynamic_rotate %50 by %c31_i32_135 dim 1 : vector<4x256xf32>, i32 -> vector<4x256xf32>
      %c31_i32_136 = arith.constant 31 : i32
      %461 = tpu.dynamic_rotate %56 by %c31_i32_136 dim 1 : vector<4x256xf32>, i32 -> vector<4x256xf32>
      %462 = vector.broadcast %437 : f32 to vector<4x256xf32>
      %463 = arith.mulf %462, %460 : vector<4x256xf32>
      %464 = vector.broadcast %438 : f32 to vector<4x256xf32>
      %465 = arith.mulf %464, %461 : vector<4x256xf32>
      %466 = arith.addf %463, %465 : vector<4x256xf32>
      %467 = vector.broadcast %439 : vector<1x256xf32> to vector<4x256xf32>
      %468 = arith.mulf %467, %466 : vector<4x256xf32>
      %469 = arith.addf %436, %468 : vector<4x256xf32>
      %c12 = arith.constant 12 : index
      %470 = memref.load %arg2[%c12] : memref<98xf32, #tpu.memory_space<smem>>
      %c61 = arith.constant 61 : index
      %471 = memref.load %arg2[%c61] : memref<98xf32, #tpu.memory_space<smem>>
      %472 = arith.mulf %58, %69 : vector<1x256xf32>
      %c30_i32 = arith.constant 30 : i32
      %473 = tpu.dynamic_rotate %42 by %c30_i32 dim 1 : vector<4x256xf32>, i32 -> vector<4x256xf32>
      %c30_i32_137 = arith.constant 30 : i32
      %474 = tpu.dynamic_rotate %52 by %c30_i32_137 dim 1 : vector<4x256xf32>, i32 -> vector<4x256xf32>
      %475 = vector.broadcast %470 : f32 to vector<4x256xf32>
      %476 = arith.mulf %475, %473 : vector<4x256xf32>
      %477 = vector.broadcast %471 : f32 to vector<4x256xf32>
      %478 = arith.mulf %477, %474 : vector<4x256xf32>
      %479 = arith.addf %476, %478 : vector<4x256xf32>
      %480 = vector.broadcast %472 : vector<1x256xf32> to vector<4x256xf32>
      %481 = arith.mulf %480, %479 : vector<4x256xf32>
      %482 = arith.addf %449, %481 : vector<4x256xf32>
      %c30_i32_138 = arith.constant 30 : i32
      %483 = tpu.dynamic_rotate %46 by %c30_i32_138 dim 1 : vector<4x256xf32>, i32 -> vector<4x256xf32>
      %c30_i32_139 = arith.constant 30 : i32
      %484 = tpu.dynamic_rotate %54 by %c30_i32_139 dim 1 : vector<4x256xf32>, i32 -> vector<4x256xf32>
      %485 = vector.broadcast %470 : f32 to vector<4x256xf32>
      %486 = arith.mulf %485, %483 : vector<4x256xf32>
      %487 = vector.broadcast %471 : f32 to vector<4x256xf32>
      %488 = arith.mulf %487, %484 : vector<4x256xf32>
      %489 = arith.addf %486, %488 : vector<4x256xf32>
      %490 = vector.broadcast %472 : vector<1x256xf32> to vector<4x256xf32>
      %491 = arith.mulf %490, %489 : vector<4x256xf32>
      %492 = arith.addf %459, %491 : vector<4x256xf32>
      %c30_i32_140 = arith.constant 30 : i32
      %493 = tpu.dynamic_rotate %50 by %c30_i32_140 dim 1 : vector<4x256xf32>, i32 -> vector<4x256xf32>
      %c30_i32_141 = arith.constant 30 : i32
      %494 = tpu.dynamic_rotate %56 by %c30_i32_141 dim 1 : vector<4x256xf32>, i32 -> vector<4x256xf32>
      %495 = vector.broadcast %470 : f32 to vector<4x256xf32>
      %496 = arith.mulf %495, %493 : vector<4x256xf32>
      %497 = vector.broadcast %471 : f32 to vector<4x256xf32>
      %498 = arith.mulf %497, %494 : vector<4x256xf32>
      %499 = arith.addf %496, %498 : vector<4x256xf32>
      %500 = vector.broadcast %472 : vector<1x256xf32> to vector<4x256xf32>
      %501 = arith.mulf %500, %499 : vector<4x256xf32>
      %502 = arith.addf %469, %501 : vector<4x256xf32>
      %c13 = arith.constant 13 : index
      %503 = memref.load %arg2[%c13] : memref<98xf32, #tpu.memory_space<smem>>
      %c62 = arith.constant 62 : index
      %504 = memref.load %arg2[%c62] : memref<98xf32, #tpu.memory_space<smem>>
      %505 = arith.mulf %58, %70 : vector<1x256xf32>
      %c29_i32 = arith.constant 29 : i32
      %506 = tpu.dynamic_rotate %42 by %c29_i32 dim 1 : vector<4x256xf32>, i32 -> vector<4x256xf32>
      %c29_i32_142 = arith.constant 29 : i32
      %507 = tpu.dynamic_rotate %52 by %c29_i32_142 dim 1 : vector<4x256xf32>, i32 -> vector<4x256xf32>
      %508 = vector.broadcast %503 : f32 to vector<4x256xf32>
      %509 = arith.mulf %508, %506 : vector<4x256xf32>
      %510 = vector.broadcast %504 : f32 to vector<4x256xf32>
      %511 = arith.mulf %510, %507 : vector<4x256xf32>
      %512 = arith.addf %509, %511 : vector<4x256xf32>
      %513 = vector.broadcast %505 : vector<1x256xf32> to vector<4x256xf32>
      %514 = arith.mulf %513, %512 : vector<4x256xf32>
      %515 = arith.addf %482, %514 : vector<4x256xf32>
      %c29_i32_143 = arith.constant 29 : i32
      %516 = tpu.dynamic_rotate %46 by %c29_i32_143 dim 1 : vector<4x256xf32>, i32 -> vector<4x256xf32>
      %c29_i32_144 = arith.constant 29 : i32
      %517 = tpu.dynamic_rotate %54 by %c29_i32_144 dim 1 : vector<4x256xf32>, i32 -> vector<4x256xf32>
      %518 = vector.broadcast %503 : f32 to vector<4x256xf32>
      %519 = arith.mulf %518, %516 : vector<4x256xf32>
      %520 = vector.broadcast %504 : f32 to vector<4x256xf32>
      %521 = arith.mulf %520, %517 : vector<4x256xf32>
      %522 = arith.addf %519, %521 : vector<4x256xf32>
      %523 = vector.broadcast %505 : vector<1x256xf32> to vector<4x256xf32>
      %524 = arith.mulf %523, %522 : vector<4x256xf32>
      %525 = arith.addf %492, %524 : vector<4x256xf32>
      %c29_i32_145 = arith.constant 29 : i32
      %526 = tpu.dynamic_rotate %50 by %c29_i32_145 dim 1 : vector<4x256xf32>, i32 -> vector<4x256xf32>
      %c29_i32_146 = arith.constant 29 : i32
      %527 = tpu.dynamic_rotate %56 by %c29_i32_146 dim 1 : vector<4x256xf32>, i32 -> vector<4x256xf32>
      %528 = vector.broadcast %503 : f32 to vector<4x256xf32>
      %529 = arith.mulf %528, %526 : vector<4x256xf32>
      %530 = vector.broadcast %504 : f32 to vector<4x256xf32>
      %531 = arith.mulf %530, %527 : vector<4x256xf32>
      %532 = arith.addf %529, %531 : vector<4x256xf32>
      %533 = vector.broadcast %505 : vector<1x256xf32> to vector<4x256xf32>
      %534 = arith.mulf %533, %532 : vector<4x256xf32>
      %535 = arith.addf %502, %534 : vector<4x256xf32>
      %c14 = arith.constant 14 : index
      %536 = memref.load %arg2[%c14] : memref<98xf32, #tpu.memory_space<smem>>
      %c63 = arith.constant 63 : index
      %537 = memref.load %arg2[%c63] : memref<98xf32, #tpu.memory_space<smem>>
      %538 = arith.mulf %59, %64 : vector<1x256xf32>
      %c19_i32 = arith.constant 19 : i32
      %539 = tpu.dynamic_rotate %42 by %c19_i32 dim 1 : vector<4x256xf32>, i32 -> vector<4x256xf32>
      %c19_i32_147 = arith.constant 19 : i32
      %540 = tpu.dynamic_rotate %52 by %c19_i32_147 dim 1 : vector<4x256xf32>, i32 -> vector<4x256xf32>
      %541 = vector.broadcast %536 : f32 to vector<4x256xf32>
      %542 = arith.mulf %541, %539 : vector<4x256xf32>
      %543 = vector.broadcast %537 : f32 to vector<4x256xf32>
      %544 = arith.mulf %543, %540 : vector<4x256xf32>
      %545 = arith.addf %542, %544 : vector<4x256xf32>
      %546 = vector.broadcast %538 : vector<1x256xf32> to vector<4x256xf32>
      %547 = arith.mulf %546, %545 : vector<4x256xf32>
      %548 = arith.addf %515, %547 : vector<4x256xf32>
      %c19_i32_148 = arith.constant 19 : i32
      %549 = tpu.dynamic_rotate %46 by %c19_i32_148 dim 1 : vector<4x256xf32>, i32 -> vector<4x256xf32>
      %c19_i32_149 = arith.constant 19 : i32
      %550 = tpu.dynamic_rotate %54 by %c19_i32_149 dim 1 : vector<4x256xf32>, i32 -> vector<4x256xf32>
      %551 = vector.broadcast %536 : f32 to vector<4x256xf32>
      %552 = arith.mulf %551, %549 : vector<4x256xf32>
      %553 = vector.broadcast %537 : f32 to vector<4x256xf32>
      %554 = arith.mulf %553, %550 : vector<4x256xf32>
      %555 = arith.addf %552, %554 : vector<4x256xf32>
      %556 = vector.broadcast %538 : vector<1x256xf32> to vector<4x256xf32>
      %557 = arith.mulf %556, %555 : vector<4x256xf32>
      %558 = arith.addf %525, %557 : vector<4x256xf32>
      %c19_i32_150 = arith.constant 19 : i32
      %559 = tpu.dynamic_rotate %50 by %c19_i32_150 dim 1 : vector<4x256xf32>, i32 -> vector<4x256xf32>
      %c19_i32_151 = arith.constant 19 : i32
      %560 = tpu.dynamic_rotate %56 by %c19_i32_151 dim 1 : vector<4x256xf32>, i32 -> vector<4x256xf32>
      %561 = vector.broadcast %536 : f32 to vector<4x256xf32>
      %562 = arith.mulf %561, %559 : vector<4x256xf32>
      %563 = vector.broadcast %537 : f32 to vector<4x256xf32>
      %564 = arith.mulf %563, %560 : vector<4x256xf32>
      %565 = arith.addf %562, %564 : vector<4x256xf32>
      %566 = vector.broadcast %538 : vector<1x256xf32> to vector<4x256xf32>
      %567 = arith.mulf %566, %565 : vector<4x256xf32>
      %568 = arith.addf %535, %567 : vector<4x256xf32>
      %c15 = arith.constant 15 : index
      %569 = memref.load %arg2[%c15] : memref<98xf32, #tpu.memory_space<smem>>
      %c64 = arith.constant 64 : index
      %570 = memref.load %arg2[%c64] : memref<98xf32, #tpu.memory_space<smem>>
      %571 = arith.mulf %59, %65 : vector<1x256xf32>
      %c18_i32 = arith.constant 18 : i32
      %572 = tpu.dynamic_rotate %42 by %c18_i32 dim 1 : vector<4x256xf32>, i32 -> vector<4x256xf32>
      %c18_i32_152 = arith.constant 18 : i32
      %573 = tpu.dynamic_rotate %52 by %c18_i32_152 dim 1 : vector<4x256xf32>, i32 -> vector<4x256xf32>
      %574 = vector.broadcast %569 : f32 to vector<4x256xf32>
      %575 = arith.mulf %574, %572 : vector<4x256xf32>
      %576 = vector.broadcast %570 : f32 to vector<4x256xf32>
      %577 = arith.mulf %576, %573 : vector<4x256xf32>
      %578 = arith.addf %575, %577 : vector<4x256xf32>
      %579 = vector.broadcast %571 : vector<1x256xf32> to vector<4x256xf32>
      %580 = arith.mulf %579, %578 : vector<4x256xf32>
      %581 = arith.addf %548, %580 : vector<4x256xf32>
      %c18_i32_153 = arith.constant 18 : i32
      %582 = tpu.dynamic_rotate %46 by %c18_i32_153 dim 1 : vector<4x256xf32>, i32 -> vector<4x256xf32>
      %c18_i32_154 = arith.constant 18 : i32
      %583 = tpu.dynamic_rotate %54 by %c18_i32_154 dim 1 : vector<4x256xf32>, i32 -> vector<4x256xf32>
      %584 = vector.broadcast %569 : f32 to vector<4x256xf32>
      %585 = arith.mulf %584, %582 : vector<4x256xf32>
      %586 = vector.broadcast %570 : f32 to vector<4x256xf32>
      %587 = arith.mulf %586, %583 : vector<4x256xf32>
      %588 = arith.addf %585, %587 : vector<4x256xf32>
      %589 = vector.broadcast %571 : vector<1x256xf32> to vector<4x256xf32>
      %590 = arith.mulf %589, %588 : vector<4x256xf32>
      %591 = arith.addf %558, %590 : vector<4x256xf32>
      %c18_i32_155 = arith.constant 18 : i32
      %592 = tpu.dynamic_rotate %50 by %c18_i32_155 dim 1 : vector<4x256xf32>, i32 -> vector<4x256xf32>
      %c18_i32_156 = arith.constant 18 : i32
      %593 = tpu.dynamic_rotate %56 by %c18_i32_156 dim 1 : vector<4x256xf32>, i32 -> vector<4x256xf32>
      %594 = vector.broadcast %569 : f32 to vector<4x256xf32>
      %595 = arith.mulf %594, %592 : vector<4x256xf32>
      %596 = vector.broadcast %570 : f32 to vector<4x256xf32>
      %597 = arith.mulf %596, %593 : vector<4x256xf32>
      %598 = arith.addf %595, %597 : vector<4x256xf32>
      %599 = vector.broadcast %571 : vector<1x256xf32> to vector<4x256xf32>
      %600 = arith.mulf %599, %598 : vector<4x256xf32>
      %601 = arith.addf %568, %600 : vector<4x256xf32>
      %c16 = arith.constant 16 : index
      %602 = memref.load %arg2[%c16] : memref<98xf32, #tpu.memory_space<smem>>
      %c65 = arith.constant 65 : index
      %603 = memref.load %arg2[%c65] : memref<98xf32, #tpu.memory_space<smem>>
      %604 = arith.mulf %59, %66 : vector<1x256xf32>
      %c17_i32 = arith.constant 17 : i32
      %605 = tpu.dynamic_rotate %42 by %c17_i32 dim 1 : vector<4x256xf32>, i32 -> vector<4x256xf32>
      %c17_i32_157 = arith.constant 17 : i32
      %606 = tpu.dynamic_rotate %52 by %c17_i32_157 dim 1 : vector<4x256xf32>, i32 -> vector<4x256xf32>
      %607 = vector.broadcast %602 : f32 to vector<4x256xf32>
      %608 = arith.mulf %607, %605 : vector<4x256xf32>
      %609 = vector.broadcast %603 : f32 to vector<4x256xf32>
      %610 = arith.mulf %609, %606 : vector<4x256xf32>
      %611 = arith.addf %608, %610 : vector<4x256xf32>
      %612 = vector.broadcast %604 : vector<1x256xf32> to vector<4x256xf32>
      %613 = arith.mulf %612, %611 : vector<4x256xf32>
      %614 = arith.addf %581, %613 : vector<4x256xf32>
      %c17_i32_158 = arith.constant 17 : i32
      %615 = tpu.dynamic_rotate %46 by %c17_i32_158 dim 1 : vector<4x256xf32>, i32 -> vector<4x256xf32>
      %c17_i32_159 = arith.constant 17 : i32
      %616 = tpu.dynamic_rotate %54 by %c17_i32_159 dim 1 : vector<4x256xf32>, i32 -> vector<4x256xf32>
      %617 = vector.broadcast %602 : f32 to vector<4x256xf32>
      %618 = arith.mulf %617, %615 : vector<4x256xf32>
      %619 = vector.broadcast %603 : f32 to vector<4x256xf32>
      %620 = arith.mulf %619, %616 : vector<4x256xf32>
      %621 = arith.addf %618, %620 : vector<4x256xf32>
      %622 = vector.broadcast %604 : vector<1x256xf32> to vector<4x256xf32>
      %623 = arith.mulf %622, %621 : vector<4x256xf32>
      %624 = arith.addf %591, %623 : vector<4x256xf32>
      %c17_i32_160 = arith.constant 17 : i32
      %625 = tpu.dynamic_rotate %50 by %c17_i32_160 dim 1 : vector<4x256xf32>, i32 -> vector<4x256xf32>
      %c17_i32_161 = arith.constant 17 : i32
      %626 = tpu.dynamic_rotate %56 by %c17_i32_161 dim 1 : vector<4x256xf32>, i32 -> vector<4x256xf32>
      %627 = vector.broadcast %602 : f32 to vector<4x256xf32>
      %628 = arith.mulf %627, %625 : vector<4x256xf32>
      %629 = vector.broadcast %603 : f32 to vector<4x256xf32>
      %630 = arith.mulf %629, %626 : vector<4x256xf32>
      %631 = arith.addf %628, %630 : vector<4x256xf32>
      %632 = vector.broadcast %604 : vector<1x256xf32> to vector<4x256xf32>
      %633 = arith.mulf %632, %631 : vector<4x256xf32>
      %634 = arith.addf %601, %633 : vector<4x256xf32>
      %c17 = arith.constant 17 : index
      %635 = memref.load %arg2[%c17] : memref<98xf32, #tpu.memory_space<smem>>
      %c66 = arith.constant 66 : index
      %636 = memref.load %arg2[%c66] : memref<98xf32, #tpu.memory_space<smem>>
      %637 = arith.mulf %59, %67 : vector<1x256xf32>
      %c16_i32 = arith.constant 16 : i32
      %638 = tpu.dynamic_rotate %42 by %c16_i32 dim 1 : vector<4x256xf32>, i32 -> vector<4x256xf32>
      %c16_i32_162 = arith.constant 16 : i32
      %639 = tpu.dynamic_rotate %52 by %c16_i32_162 dim 1 : vector<4x256xf32>, i32 -> vector<4x256xf32>
      %640 = vector.broadcast %635 : f32 to vector<4x256xf32>
      %641 = arith.mulf %640, %638 : vector<4x256xf32>
      %642 = vector.broadcast %636 : f32 to vector<4x256xf32>
      %643 = arith.mulf %642, %639 : vector<4x256xf32>
      %644 = arith.addf %641, %643 : vector<4x256xf32>
      %645 = vector.broadcast %637 : vector<1x256xf32> to vector<4x256xf32>
      %646 = arith.mulf %645, %644 : vector<4x256xf32>
      %647 = arith.addf %614, %646 : vector<4x256xf32>
      %c16_i32_163 = arith.constant 16 : i32
      %648 = tpu.dynamic_rotate %46 by %c16_i32_163 dim 1 : vector<4x256xf32>, i32 -> vector<4x256xf32>
      %c16_i32_164 = arith.constant 16 : i32
      %649 = tpu.dynamic_rotate %54 by %c16_i32_164 dim 1 : vector<4x256xf32>, i32 -> vector<4x256xf32>
      %650 = vector.broadcast %635 : f32 to vector<4x256xf32>
      %651 = arith.mulf %650, %648 : vector<4x256xf32>
      %652 = vector.broadcast %636 : f32 to vector<4x256xf32>
      %653 = arith.mulf %652, %649 : vector<4x256xf32>
      %654 = arith.addf %651, %653 : vector<4x256xf32>
      %655 = vector.broadcast %637 : vector<1x256xf32> to vector<4x256xf32>
      %656 = arith.mulf %655, %654 : vector<4x256xf32>
      %657 = arith.addf %624, %656 : vector<4x256xf32>
      %c16_i32_165 = arith.constant 16 : i32
      %658 = tpu.dynamic_rotate %50 by %c16_i32_165 dim 1 : vector<4x256xf32>, i32 -> vector<4x256xf32>
      %c16_i32_166 = arith.constant 16 : i32
      %659 = tpu.dynamic_rotate %56 by %c16_i32_166 dim 1 : vector<4x256xf32>, i32 -> vector<4x256xf32>
      %660 = vector.broadcast %635 : f32 to vector<4x256xf32>
      %661 = arith.mulf %660, %658 : vector<4x256xf32>
      %662 = vector.broadcast %636 : f32 to vector<4x256xf32>
      %663 = arith.mulf %662, %659 : vector<4x256xf32>
      %664 = arith.addf %661, %663 : vector<4x256xf32>
      %665 = vector.broadcast %637 : vector<1x256xf32> to vector<4x256xf32>
      %666 = arith.mulf %665, %664 : vector<4x256xf32>
      %667 = arith.addf %634, %666 : vector<4x256xf32>
      %c18 = arith.constant 18 : index
      %668 = memref.load %arg2[%c18] : memref<98xf32, #tpu.memory_space<smem>>
      %c67 = arith.constant 67 : index
      %669 = memref.load %arg2[%c67] : memref<98xf32, #tpu.memory_space<smem>>
      %670 = arith.mulf %59, %68 : vector<1x256xf32>
      %c15_i32 = arith.constant 15 : i32
      %671 = tpu.dynamic_rotate %42 by %c15_i32 dim 1 : vector<4x256xf32>, i32 -> vector<4x256xf32>
      %c15_i32_167 = arith.constant 15 : i32
      %672 = tpu.dynamic_rotate %52 by %c15_i32_167 dim 1 : vector<4x256xf32>, i32 -> vector<4x256xf32>
      %673 = vector.broadcast %668 : f32 to vector<4x256xf32>
      %674 = arith.mulf %673, %671 : vector<4x256xf32>
      %675 = vector.broadcast %669 : f32 to vector<4x256xf32>
      %676 = arith.mulf %675, %672 : vector<4x256xf32>
      %677 = arith.addf %674, %676 : vector<4x256xf32>
      %678 = vector.broadcast %670 : vector<1x256xf32> to vector<4x256xf32>
      %679 = arith.mulf %678, %677 : vector<4x256xf32>
      %680 = arith.addf %647, %679 : vector<4x256xf32>
      %c15_i32_168 = arith.constant 15 : i32
      %681 = tpu.dynamic_rotate %46 by %c15_i32_168 dim 1 : vector<4x256xf32>, i32 -> vector<4x256xf32>
      %c15_i32_169 = arith.constant 15 : i32
      %682 = tpu.dynamic_rotate %54 by %c15_i32_169 dim 1 : vector<4x256xf32>, i32 -> vector<4x256xf32>
      %683 = vector.broadcast %668 : f32 to vector<4x256xf32>
      %684 = arith.mulf %683, %681 : vector<4x256xf32>
      %685 = vector.broadcast %669 : f32 to vector<4x256xf32>
      %686 = arith.mulf %685, %682 : vector<4x256xf32>
      %687 = arith.addf %684, %686 : vector<4x256xf32>
      %688 = vector.broadcast %670 : vector<1x256xf32> to vector<4x256xf32>
      %689 = arith.mulf %688, %687 : vector<4x256xf32>
      %690 = arith.addf %657, %689 : vector<4x256xf32>
      %c15_i32_170 = arith.constant 15 : i32
      %691 = tpu.dynamic_rotate %50 by %c15_i32_170 dim 1 : vector<4x256xf32>, i32 -> vector<4x256xf32>
      %c15_i32_171 = arith.constant 15 : i32
      %692 = tpu.dynamic_rotate %56 by %c15_i32_171 dim 1 : vector<4x256xf32>, i32 -> vector<4x256xf32>
      %693 = vector.broadcast %668 : f32 to vector<4x256xf32>
      %694 = arith.mulf %693, %691 : vector<4x256xf32>
      %695 = vector.broadcast %669 : f32 to vector<4x256xf32>
      %696 = arith.mulf %695, %692 : vector<4x256xf32>
      %697 = arith.addf %694, %696 : vector<4x256xf32>
      %698 = vector.broadcast %670 : vector<1x256xf32> to vector<4x256xf32>
      %699 = arith.mulf %698, %697 : vector<4x256xf32>
      %700 = arith.addf %667, %699 : vector<4x256xf32>
      %c19 = arith.constant 19 : index
      %701 = memref.load %arg2[%c19] : memref<98xf32, #tpu.memory_space<smem>>
      %c68 = arith.constant 68 : index
      %702 = memref.load %arg2[%c68] : memref<98xf32, #tpu.memory_space<smem>>
      %703 = arith.mulf %59, %69 : vector<1x256xf32>
      %c14_i32 = arith.constant 14 : i32
      %704 = tpu.dynamic_rotate %42 by %c14_i32 dim 1 : vector<4x256xf32>, i32 -> vector<4x256xf32>
      %c14_i32_172 = arith.constant 14 : i32
      %705 = tpu.dynamic_rotate %52 by %c14_i32_172 dim 1 : vector<4x256xf32>, i32 -> vector<4x256xf32>
      %706 = vector.broadcast %701 : f32 to vector<4x256xf32>
      %707 = arith.mulf %706, %704 : vector<4x256xf32>
      %708 = vector.broadcast %702 : f32 to vector<4x256xf32>
      %709 = arith.mulf %708, %705 : vector<4x256xf32>
      %710 = arith.addf %707, %709 : vector<4x256xf32>
      %711 = vector.broadcast %703 : vector<1x256xf32> to vector<4x256xf32>
      %712 = arith.mulf %711, %710 : vector<4x256xf32>
      %713 = arith.addf %680, %712 : vector<4x256xf32>
      %c14_i32_173 = arith.constant 14 : i32
      %714 = tpu.dynamic_rotate %46 by %c14_i32_173 dim 1 : vector<4x256xf32>, i32 -> vector<4x256xf32>
      %c14_i32_174 = arith.constant 14 : i32
      %715 = tpu.dynamic_rotate %54 by %c14_i32_174 dim 1 : vector<4x256xf32>, i32 -> vector<4x256xf32>
      %716 = vector.broadcast %701 : f32 to vector<4x256xf32>
      %717 = arith.mulf %716, %714 : vector<4x256xf32>
      %718 = vector.broadcast %702 : f32 to vector<4x256xf32>
      %719 = arith.mulf %718, %715 : vector<4x256xf32>
      %720 = arith.addf %717, %719 : vector<4x256xf32>
      %721 = vector.broadcast %703 : vector<1x256xf32> to vector<4x256xf32>
      %722 = arith.mulf %721, %720 : vector<4x256xf32>
      %723 = arith.addf %690, %722 : vector<4x256xf32>
      %c14_i32_175 = arith.constant 14 : i32
      %724 = tpu.dynamic_rotate %50 by %c14_i32_175 dim 1 : vector<4x256xf32>, i32 -> vector<4x256xf32>
      %c14_i32_176 = arith.constant 14 : i32
      %725 = tpu.dynamic_rotate %56 by %c14_i32_176 dim 1 : vector<4x256xf32>, i32 -> vector<4x256xf32>
      %726 = vector.broadcast %701 : f32 to vector<4x256xf32>
      %727 = arith.mulf %726, %724 : vector<4x256xf32>
      %728 = vector.broadcast %702 : f32 to vector<4x256xf32>
      %729 = arith.mulf %728, %725 : vector<4x256xf32>
      %730 = arith.addf %727, %729 : vector<4x256xf32>
      %731 = vector.broadcast %703 : vector<1x256xf32> to vector<4x256xf32>
      %732 = arith.mulf %731, %730 : vector<4x256xf32>
      %733 = arith.addf %700, %732 : vector<4x256xf32>
      %c20 = arith.constant 20 : index
      %734 = memref.load %arg2[%c20] : memref<98xf32, #tpu.memory_space<smem>>
      %c69 = arith.constant 69 : index
      %735 = memref.load %arg2[%c69] : memref<98xf32, #tpu.memory_space<smem>>
      %736 = arith.mulf %59, %70 : vector<1x256xf32>
      %c13_i32 = arith.constant 13 : i32
      %737 = tpu.dynamic_rotate %42 by %c13_i32 dim 1 : vector<4x256xf32>, i32 -> vector<4x256xf32>
      %c13_i32_177 = arith.constant 13 : i32
      %738 = tpu.dynamic_rotate %52 by %c13_i32_177 dim 1 : vector<4x256xf32>, i32 -> vector<4x256xf32>
      %739 = vector.broadcast %734 : f32 to vector<4x256xf32>
      %740 = arith.mulf %739, %737 : vector<4x256xf32>
      %741 = vector.broadcast %735 : f32 to vector<4x256xf32>
      %742 = arith.mulf %741, %738 : vector<4x256xf32>
      %743 = arith.addf %740, %742 : vector<4x256xf32>
      %744 = vector.broadcast %736 : vector<1x256xf32> to vector<4x256xf32>
      %745 = arith.mulf %744, %743 : vector<4x256xf32>
      %746 = arith.addf %713, %745 : vector<4x256xf32>
      %c13_i32_178 = arith.constant 13 : i32
      %747 = tpu.dynamic_rotate %46 by %c13_i32_178 dim 1 : vector<4x256xf32>, i32 -> vector<4x256xf32>
      %c13_i32_179 = arith.constant 13 : i32
      %748 = tpu.dynamic_rotate %54 by %c13_i32_179 dim 1 : vector<4x256xf32>, i32 -> vector<4x256xf32>
      %749 = vector.broadcast %734 : f32 to vector<4x256xf32>
      %750 = arith.mulf %749, %747 : vector<4x256xf32>
      %751 = vector.broadcast %735 : f32 to vector<4x256xf32>
      %752 = arith.mulf %751, %748 : vector<4x256xf32>
      %753 = arith.addf %750, %752 : vector<4x256xf32>
      %754 = vector.broadcast %736 : vector<1x256xf32> to vector<4x256xf32>
      %755 = arith.mulf %754, %753 : vector<4x256xf32>
      %756 = arith.addf %723, %755 : vector<4x256xf32>
      %c13_i32_180 = arith.constant 13 : i32
      %757 = tpu.dynamic_rotate %50 by %c13_i32_180 dim 1 : vector<4x256xf32>, i32 -> vector<4x256xf32>
      %c13_i32_181 = arith.constant 13 : i32
      %758 = tpu.dynamic_rotate %56 by %c13_i32_181 dim 1 : vector<4x256xf32>, i32 -> vector<4x256xf32>
      %759 = vector.broadcast %734 : f32 to vector<4x256xf32>
      %760 = arith.mulf %759, %757 : vector<4x256xf32>
      %761 = vector.broadcast %735 : f32 to vector<4x256xf32>
      %762 = arith.mulf %761, %758 : vector<4x256xf32>
      %763 = arith.addf %760, %762 : vector<4x256xf32>
      %764 = vector.broadcast %736 : vector<1x256xf32> to vector<4x256xf32>
      %765 = arith.mulf %764, %763 : vector<4x256xf32>
      %766 = arith.addf %733, %765 : vector<4x256xf32>
      %c21 = arith.constant 21 : index
      %767 = memref.load %arg2[%c21] : memref<98xf32, #tpu.memory_space<smem>>
      %c70 = arith.constant 70 : index
      %768 = memref.load %arg2[%c70] : memref<98xf32, #tpu.memory_space<smem>>
      %769 = arith.mulf %60, %64 : vector<1x256xf32>
      %c3_i32 = arith.constant 3 : i32
      %770 = tpu.dynamic_rotate %42 by %c3_i32 dim 1 : vector<4x256xf32>, i32 -> vector<4x256xf32>
      %c3_i32_182 = arith.constant 3 : i32
      %771 = tpu.dynamic_rotate %52 by %c3_i32_182 dim 1 : vector<4x256xf32>, i32 -> vector<4x256xf32>
      %772 = vector.broadcast %767 : f32 to vector<4x256xf32>
      %773 = arith.mulf %772, %770 : vector<4x256xf32>
      %774 = vector.broadcast %768 : f32 to vector<4x256xf32>
      %775 = arith.mulf %774, %771 : vector<4x256xf32>
      %776 = arith.addf %773, %775 : vector<4x256xf32>
      %777 = vector.broadcast %769 : vector<1x256xf32> to vector<4x256xf32>
      %778 = arith.mulf %777, %776 : vector<4x256xf32>
      %779 = arith.addf %746, %778 : vector<4x256xf32>
      %c3_i32_183 = arith.constant 3 : i32
      %780 = tpu.dynamic_rotate %46 by %c3_i32_183 dim 1 : vector<4x256xf32>, i32 -> vector<4x256xf32>
      %c3_i32_184 = arith.constant 3 : i32
      %781 = tpu.dynamic_rotate %54 by %c3_i32_184 dim 1 : vector<4x256xf32>, i32 -> vector<4x256xf32>
      %782 = vector.broadcast %767 : f32 to vector<4x256xf32>
      %783 = arith.mulf %782, %780 : vector<4x256xf32>
      %784 = vector.broadcast %768 : f32 to vector<4x256xf32>
      %785 = arith.mulf %784, %781 : vector<4x256xf32>
      %786 = arith.addf %783, %785 : vector<4x256xf32>
      %787 = vector.broadcast %769 : vector<1x256xf32> to vector<4x256xf32>
      %788 = arith.mulf %787, %786 : vector<4x256xf32>
      %789 = arith.addf %756, %788 : vector<4x256xf32>
      %c3_i32_185 = arith.constant 3 : i32
      %790 = tpu.dynamic_rotate %50 by %c3_i32_185 dim 1 : vector<4x256xf32>, i32 -> vector<4x256xf32>
      %c3_i32_186 = arith.constant 3 : i32
      %791 = tpu.dynamic_rotate %56 by %c3_i32_186 dim 1 : vector<4x256xf32>, i32 -> vector<4x256xf32>
      %792 = vector.broadcast %767 : f32 to vector<4x256xf32>
      %793 = arith.mulf %792, %790 : vector<4x256xf32>
      %794 = vector.broadcast %768 : f32 to vector<4x256xf32>
      %795 = arith.mulf %794, %791 : vector<4x256xf32>
      %796 = arith.addf %793, %795 : vector<4x256xf32>
      %797 = vector.broadcast %769 : vector<1x256xf32> to vector<4x256xf32>
      %798 = arith.mulf %797, %796 : vector<4x256xf32>
      %799 = arith.addf %766, %798 : vector<4x256xf32>
      %c22 = arith.constant 22 : index
      %800 = memref.load %arg2[%c22] : memref<98xf32, #tpu.memory_space<smem>>
      %c71 = arith.constant 71 : index
      %801 = memref.load %arg2[%c71] : memref<98xf32, #tpu.memory_space<smem>>
      %802 = arith.mulf %60, %65 : vector<1x256xf32>
      %c2_i32 = arith.constant 2 : i32
      %803 = tpu.dynamic_rotate %42 by %c2_i32 dim 1 : vector<4x256xf32>, i32 -> vector<4x256xf32>
      %c2_i32_187 = arith.constant 2 : i32
      %804 = tpu.dynamic_rotate %52 by %c2_i32_187 dim 1 : vector<4x256xf32>, i32 -> vector<4x256xf32>
      %805 = vector.broadcast %800 : f32 to vector<4x256xf32>
      %806 = arith.mulf %805, %803 : vector<4x256xf32>
      %807 = vector.broadcast %801 : f32 to vector<4x256xf32>
      %808 = arith.mulf %807, %804 : vector<4x256xf32>
      %809 = arith.addf %806, %808 : vector<4x256xf32>
      %810 = vector.broadcast %802 : vector<1x256xf32> to vector<4x256xf32>
      %811 = arith.mulf %810, %809 : vector<4x256xf32>
      %812 = arith.addf %779, %811 : vector<4x256xf32>
      %c2_i32_188 = arith.constant 2 : i32
      %813 = tpu.dynamic_rotate %46 by %c2_i32_188 dim 1 : vector<4x256xf32>, i32 -> vector<4x256xf32>
      %c2_i32_189 = arith.constant 2 : i32
      %814 = tpu.dynamic_rotate %54 by %c2_i32_189 dim 1 : vector<4x256xf32>, i32 -> vector<4x256xf32>
      %815 = vector.broadcast %800 : f32 to vector<4x256xf32>
      %816 = arith.mulf %815, %813 : vector<4x256xf32>
      %817 = vector.broadcast %801 : f32 to vector<4x256xf32>
      %818 = arith.mulf %817, %814 : vector<4x256xf32>
      %819 = arith.addf %816, %818 : vector<4x256xf32>
      %820 = vector.broadcast %802 : vector<1x256xf32> to vector<4x256xf32>
      %821 = arith.mulf %820, %819 : vector<4x256xf32>
      %822 = arith.addf %789, %821 : vector<4x256xf32>
      %c2_i32_190 = arith.constant 2 : i32
      %823 = tpu.dynamic_rotate %50 by %c2_i32_190 dim 1 : vector<4x256xf32>, i32 -> vector<4x256xf32>
      %c2_i32_191 = arith.constant 2 : i32
      %824 = tpu.dynamic_rotate %56 by %c2_i32_191 dim 1 : vector<4x256xf32>, i32 -> vector<4x256xf32>
      %825 = vector.broadcast %800 : f32 to vector<4x256xf32>
      %826 = arith.mulf %825, %823 : vector<4x256xf32>
      %827 = vector.broadcast %801 : f32 to vector<4x256xf32>
      %828 = arith.mulf %827, %824 : vector<4x256xf32>
      %829 = arith.addf %826, %828 : vector<4x256xf32>
      %830 = vector.broadcast %802 : vector<1x256xf32> to vector<4x256xf32>
      %831 = arith.mulf %830, %829 : vector<4x256xf32>
      %832 = arith.addf %799, %831 : vector<4x256xf32>
      %c23 = arith.constant 23 : index
      %833 = memref.load %arg2[%c23] : memref<98xf32, #tpu.memory_space<smem>>
      %c72 = arith.constant 72 : index
      %834 = memref.load %arg2[%c72] : memref<98xf32, #tpu.memory_space<smem>>
      %835 = arith.mulf %60, %66 : vector<1x256xf32>
      %c1_i32 = arith.constant 1 : i32
      %836 = tpu.dynamic_rotate %42 by %c1_i32 dim 1 : vector<4x256xf32>, i32 -> vector<4x256xf32>
      %c1_i32_192 = arith.constant 1 : i32
      %837 = tpu.dynamic_rotate %52 by %c1_i32_192 dim 1 : vector<4x256xf32>, i32 -> vector<4x256xf32>
      %838 = vector.broadcast %833 : f32 to vector<4x256xf32>
      %839 = arith.mulf %838, %836 : vector<4x256xf32>
      %840 = vector.broadcast %834 : f32 to vector<4x256xf32>
      %841 = arith.mulf %840, %837 : vector<4x256xf32>
      %842 = arith.addf %839, %841 : vector<4x256xf32>
      %843 = vector.broadcast %835 : vector<1x256xf32> to vector<4x256xf32>
      %844 = arith.mulf %843, %842 : vector<4x256xf32>
      %845 = arith.addf %812, %844 : vector<4x256xf32>
      %c1_i32_193 = arith.constant 1 : i32
      %846 = tpu.dynamic_rotate %46 by %c1_i32_193 dim 1 : vector<4x256xf32>, i32 -> vector<4x256xf32>
      %c1_i32_194 = arith.constant 1 : i32
      %847 = tpu.dynamic_rotate %54 by %c1_i32_194 dim 1 : vector<4x256xf32>, i32 -> vector<4x256xf32>
      %848 = vector.broadcast %833 : f32 to vector<4x256xf32>
      %849 = arith.mulf %848, %846 : vector<4x256xf32>
      %850 = vector.broadcast %834 : f32 to vector<4x256xf32>
      %851 = arith.mulf %850, %847 : vector<4x256xf32>
      %852 = arith.addf %849, %851 : vector<4x256xf32>
      %853 = vector.broadcast %835 : vector<1x256xf32> to vector<4x256xf32>
      %854 = arith.mulf %853, %852 : vector<4x256xf32>
      %855 = arith.addf %822, %854 : vector<4x256xf32>
      %c1_i32_195 = arith.constant 1 : i32
      %856 = tpu.dynamic_rotate %50 by %c1_i32_195 dim 1 : vector<4x256xf32>, i32 -> vector<4x256xf32>
      %c1_i32_196 = arith.constant 1 : i32
      %857 = tpu.dynamic_rotate %56 by %c1_i32_196 dim 1 : vector<4x256xf32>, i32 -> vector<4x256xf32>
      %858 = vector.broadcast %833 : f32 to vector<4x256xf32>
      %859 = arith.mulf %858, %856 : vector<4x256xf32>
      %860 = vector.broadcast %834 : f32 to vector<4x256xf32>
      %861 = arith.mulf %860, %857 : vector<4x256xf32>
      %862 = arith.addf %859, %861 : vector<4x256xf32>
      %863 = vector.broadcast %835 : vector<1x256xf32> to vector<4x256xf32>
      %864 = arith.mulf %863, %862 : vector<4x256xf32>
      %865 = arith.addf %832, %864 : vector<4x256xf32>
      %c24 = arith.constant 24 : index
      %866 = memref.load %arg2[%c24] : memref<98xf32, #tpu.memory_space<smem>>
      %c73 = arith.constant 73 : index
      %867 = memref.load %arg2[%c73] : memref<98xf32, #tpu.memory_space<smem>>
      %868 = arith.mulf %60, %67 : vector<1x256xf32>
      %869 = vector.broadcast %866 : f32 to vector<4x256xf32>
      %870 = arith.mulf %869, %42 : vector<4x256xf32>
      %871 = vector.broadcast %867 : f32 to vector<4x256xf32>
      %872 = arith.mulf %871, %52 : vector<4x256xf32>
      %873 = arith.addf %870, %872 : vector<4x256xf32>
      %874 = vector.broadcast %868 : vector<1x256xf32> to vector<4x256xf32>
      %875 = arith.mulf %874, %873 : vector<4x256xf32>
      %876 = arith.addf %845, %875 : vector<4x256xf32>
      %877 = vector.broadcast %866 : f32 to vector<4x256xf32>
      %878 = arith.mulf %877, %46 : vector<4x256xf32>
      %879 = vector.broadcast %867 : f32 to vector<4x256xf32>
      %880 = arith.mulf %879, %54 : vector<4x256xf32>
      %881 = arith.addf %878, %880 : vector<4x256xf32>
      %882 = vector.broadcast %868 : vector<1x256xf32> to vector<4x256xf32>
      %883 = arith.mulf %882, %881 : vector<4x256xf32>
      %884 = arith.addf %855, %883 : vector<4x256xf32>
      %885 = vector.broadcast %866 : f32 to vector<4x256xf32>
      %886 = arith.mulf %885, %50 : vector<4x256xf32>
      %887 = vector.broadcast %867 : f32 to vector<4x256xf32>
      %888 = arith.mulf %887, %56 : vector<4x256xf32>
      %889 = arith.addf %886, %888 : vector<4x256xf32>
      %890 = vector.broadcast %868 : vector<1x256xf32> to vector<4x256xf32>
      %891 = arith.mulf %890, %889 : vector<4x256xf32>
      %892 = arith.addf %865, %891 : vector<4x256xf32>
      %c25 = arith.constant 25 : index
      %893 = memref.load %arg2[%c25] : memref<98xf32, #tpu.memory_space<smem>>
      %c74 = arith.constant 74 : index
      %894 = memref.load %arg2[%c74] : memref<98xf32, #tpu.memory_space<smem>>
      %895 = arith.mulf %60, %68 : vector<1x256xf32>
      %c255_i32 = arith.constant 255 : i32
      %896 = tpu.dynamic_rotate %42 by %c255_i32 dim 1 : vector<4x256xf32>, i32 -> vector<4x256xf32>
      %c255_i32_197 = arith.constant 255 : i32
      %897 = tpu.dynamic_rotate %52 by %c255_i32_197 dim 1 : vector<4x256xf32>, i32 -> vector<4x256xf32>
      %898 = vector.broadcast %893 : f32 to vector<4x256xf32>
      %899 = arith.mulf %898, %896 : vector<4x256xf32>
      %900 = vector.broadcast %894 : f32 to vector<4x256xf32>
      %901 = arith.mulf %900, %897 : vector<4x256xf32>
      %902 = arith.addf %899, %901 : vector<4x256xf32>
      %903 = vector.broadcast %895 : vector<1x256xf32> to vector<4x256xf32>
      %904 = arith.mulf %903, %902 : vector<4x256xf32>
      %905 = arith.addf %876, %904 : vector<4x256xf32>
      %c255_i32_198 = arith.constant 255 : i32
      %906 = tpu.dynamic_rotate %46 by %c255_i32_198 dim 1 : vector<4x256xf32>, i32 -> vector<4x256xf32>
      %c255_i32_199 = arith.constant 255 : i32
      %907 = tpu.dynamic_rotate %54 by %c255_i32_199 dim 1 : vector<4x256xf32>, i32 -> vector<4x256xf32>
      %908 = vector.broadcast %893 : f32 to vector<4x256xf32>
      %909 = arith.mulf %908, %906 : vector<4x256xf32>
      %910 = vector.broadcast %894 : f32 to vector<4x256xf32>
      %911 = arith.mulf %910, %907 : vector<4x256xf32>
      %912 = arith.addf %909, %911 : vector<4x256xf32>
      %913 = vector.broadcast %895 : vector<1x256xf32> to vector<4x256xf32>
      %914 = arith.mulf %913, %912 : vector<4x256xf32>
      %915 = arith.addf %884, %914 : vector<4x256xf32>
      %c255_i32_200 = arith.constant 255 : i32
      %916 = tpu.dynamic_rotate %50 by %c255_i32_200 dim 1 : vector<4x256xf32>, i32 -> vector<4x256xf32>
      %c255_i32_201 = arith.constant 255 : i32
      %917 = tpu.dynamic_rotate %56 by %c255_i32_201 dim 1 : vector<4x256xf32>, i32 -> vector<4x256xf32>
      %918 = vector.broadcast %893 : f32 to vector<4x256xf32>
      %919 = arith.mulf %918, %916 : vector<4x256xf32>
      %920 = vector.broadcast %894 : f32 to vector<4x256xf32>
      %921 = arith.mulf %920, %917 : vector<4x256xf32>
      %922 = arith.addf %919, %921 : vector<4x256xf32>
      %923 = vector.broadcast %895 : vector<1x256xf32> to vector<4x256xf32>
      %924 = arith.mulf %923, %922 : vector<4x256xf32>
      %925 = arith.addf %892, %924 : vector<4x256xf32>
      %c26 = arith.constant 26 : index
      %926 = memref.load %arg2[%c26] : memref<98xf32, #tpu.memory_space<smem>>
      %c75 = arith.constant 75 : index
      %927 = memref.load %arg2[%c75] : memref<98xf32, #tpu.memory_space<smem>>
      %928 = arith.mulf %60, %69 : vector<1x256xf32>
      %c254_i32 = arith.constant 254 : i32
      %929 = tpu.dynamic_rotate %42 by %c254_i32 dim 1 : vector<4x256xf32>, i32 -> vector<4x256xf32>
      %c254_i32_202 = arith.constant 254 : i32
      %930 = tpu.dynamic_rotate %52 by %c254_i32_202 dim 1 : vector<4x256xf32>, i32 -> vector<4x256xf32>
      %931 = vector.broadcast %926 : f32 to vector<4x256xf32>
      %932 = arith.mulf %931, %929 : vector<4x256xf32>
      %933 = vector.broadcast %927 : f32 to vector<4x256xf32>
      %934 = arith.mulf %933, %930 : vector<4x256xf32>
      %935 = arith.addf %932, %934 : vector<4x256xf32>
      %936 = vector.broadcast %928 : vector<1x256xf32> to vector<4x256xf32>
      %937 = arith.mulf %936, %935 : vector<4x256xf32>
      %938 = arith.addf %905, %937 : vector<4x256xf32>
      %c254_i32_203 = arith.constant 254 : i32
      %939 = tpu.dynamic_rotate %46 by %c254_i32_203 dim 1 : vector<4x256xf32>, i32 -> vector<4x256xf32>
      %c254_i32_204 = arith.constant 254 : i32
      %940 = tpu.dynamic_rotate %54 by %c254_i32_204 dim 1 : vector<4x256xf32>, i32 -> vector<4x256xf32>
      %941 = vector.broadcast %926 : f32 to vector<4x256xf32>
      %942 = arith.mulf %941, %939 : vector<4x256xf32>
      %943 = vector.broadcast %927 : f32 to vector<4x256xf32>
      %944 = arith.mulf %943, %940 : vector<4x256xf32>
      %945 = arith.addf %942, %944 : vector<4x256xf32>
      %946 = vector.broadcast %928 : vector<1x256xf32> to vector<4x256xf32>
      %947 = arith.mulf %946, %945 : vector<4x256xf32>
      %948 = arith.addf %915, %947 : vector<4x256xf32>
      %c254_i32_205 = arith.constant 254 : i32
      %949 = tpu.dynamic_rotate %50 by %c254_i32_205 dim 1 : vector<4x256xf32>, i32 -> vector<4x256xf32>
      %c254_i32_206 = arith.constant 254 : i32
      %950 = tpu.dynamic_rotate %56 by %c254_i32_206 dim 1 : vector<4x256xf32>, i32 -> vector<4x256xf32>
      %951 = vector.broadcast %926 : f32 to vector<4x256xf32>
      %952 = arith.mulf %951, %949 : vector<4x256xf32>
      %953 = vector.broadcast %927 : f32 to vector<4x256xf32>
      %954 = arith.mulf %953, %950 : vector<4x256xf32>
      %955 = arith.addf %952, %954 : vector<4x256xf32>
      %956 = vector.broadcast %928 : vector<1x256xf32> to vector<4x256xf32>
      %957 = arith.mulf %956, %955 : vector<4x256xf32>
      %958 = arith.addf %925, %957 : vector<4x256xf32>
      %c27 = arith.constant 27 : index
      %959 = memref.load %arg2[%c27] : memref<98xf32, #tpu.memory_space<smem>>
      %c76 = arith.constant 76 : index
      %960 = memref.load %arg2[%c76] : memref<98xf32, #tpu.memory_space<smem>>
      %961 = arith.mulf %60, %70 : vector<1x256xf32>
      %c253_i32 = arith.constant 253 : i32
      %962 = tpu.dynamic_rotate %42 by %c253_i32 dim 1 : vector<4x256xf32>, i32 -> vector<4x256xf32>
      %c253_i32_207 = arith.constant 253 : i32
      %963 = tpu.dynamic_rotate %52 by %c253_i32_207 dim 1 : vector<4x256xf32>, i32 -> vector<4x256xf32>
      %964 = vector.broadcast %959 : f32 to vector<4x256xf32>
      %965 = arith.mulf %964, %962 : vector<4x256xf32>
      %966 = vector.broadcast %960 : f32 to vector<4x256xf32>
      %967 = arith.mulf %966, %963 : vector<4x256xf32>
      %968 = arith.addf %965, %967 : vector<4x256xf32>
      %969 = vector.broadcast %961 : vector<1x256xf32> to vector<4x256xf32>
      %970 = arith.mulf %969, %968 : vector<4x256xf32>
      %971 = arith.addf %938, %970 : vector<4x256xf32>
      %c253_i32_208 = arith.constant 253 : i32
      %972 = tpu.dynamic_rotate %46 by %c253_i32_208 dim 1 : vector<4x256xf32>, i32 -> vector<4x256xf32>
      %c253_i32_209 = arith.constant 253 : i32
      %973 = tpu.dynamic_rotate %54 by %c253_i32_209 dim 1 : vector<4x256xf32>, i32 -> vector<4x256xf32>
      %974 = vector.broadcast %959 : f32 to vector<4x256xf32>
      %975 = arith.mulf %974, %972 : vector<4x256xf32>
      %976 = vector.broadcast %960 : f32 to vector<4x256xf32>
      %977 = arith.mulf %976, %973 : vector<4x256xf32>
      %978 = arith.addf %975, %977 : vector<4x256xf32>
      %979 = vector.broadcast %961 : vector<1x256xf32> to vector<4x256xf32>
      %980 = arith.mulf %979, %978 : vector<4x256xf32>
      %981 = arith.addf %948, %980 : vector<4x256xf32>
      %c253_i32_210 = arith.constant 253 : i32
      %982 = tpu.dynamic_rotate %50 by %c253_i32_210 dim 1 : vector<4x256xf32>, i32 -> vector<4x256xf32>
      %c253_i32_211 = arith.constant 253 : i32
      %983 = tpu.dynamic_rotate %56 by %c253_i32_211 dim 1 : vector<4x256xf32>, i32 -> vector<4x256xf32>
      %984 = vector.broadcast %959 : f32 to vector<4x256xf32>
      %985 = arith.mulf %984, %982 : vector<4x256xf32>
      %986 = vector.broadcast %960 : f32 to vector<4x256xf32>
      %987 = arith.mulf %986, %983 : vector<4x256xf32>
      %988 = arith.addf %985, %987 : vector<4x256xf32>
      %989 = vector.broadcast %961 : vector<1x256xf32> to vector<4x256xf32>
      %990 = arith.mulf %989, %988 : vector<4x256xf32>
      %991 = arith.addf %958, %990 : vector<4x256xf32>
      %c28 = arith.constant 28 : index
      %992 = memref.load %arg2[%c28] : memref<98xf32, #tpu.memory_space<smem>>
      %c77 = arith.constant 77 : index
      %993 = memref.load %arg2[%c77] : memref<98xf32, #tpu.memory_space<smem>>
      %994 = arith.mulf %61, %64 : vector<1x256xf32>
      %c243_i32 = arith.constant 243 : i32
      %995 = tpu.dynamic_rotate %42 by %c243_i32 dim 1 : vector<4x256xf32>, i32 -> vector<4x256xf32>
      %c243_i32_212 = arith.constant 243 : i32
      %996 = tpu.dynamic_rotate %52 by %c243_i32_212 dim 1 : vector<4x256xf32>, i32 -> vector<4x256xf32>
      %997 = vector.broadcast %992 : f32 to vector<4x256xf32>
      %998 = arith.mulf %997, %995 : vector<4x256xf32>
      %999 = vector.broadcast %993 : f32 to vector<4x256xf32>
      %1000 = arith.mulf %999, %996 : vector<4x256xf32>
      %1001 = arith.addf %998, %1000 : vector<4x256xf32>
      %1002 = vector.broadcast %994 : vector<1x256xf32> to vector<4x256xf32>
      %1003 = arith.mulf %1002, %1001 : vector<4x256xf32>
      %1004 = arith.addf %971, %1003 : vector<4x256xf32>
      %c243_i32_213 = arith.constant 243 : i32
      %1005 = tpu.dynamic_rotate %46 by %c243_i32_213 dim 1 : vector<4x256xf32>, i32 -> vector<4x256xf32>
      %c243_i32_214 = arith.constant 243 : i32
      %1006 = tpu.dynamic_rotate %54 by %c243_i32_214 dim 1 : vector<4x256xf32>, i32 -> vector<4x256xf32>
      %1007 = vector.broadcast %992 : f32 to vector<4x256xf32>
      %1008 = arith.mulf %1007, %1005 : vector<4x256xf32>
      %1009 = vector.broadcast %993 : f32 to vector<4x256xf32>
      %1010 = arith.mulf %1009, %1006 : vector<4x256xf32>
      %1011 = arith.addf %1008, %1010 : vector<4x256xf32>
      %1012 = vector.broadcast %994 : vector<1x256xf32> to vector<4x256xf32>
      %1013 = arith.mulf %1012, %1011 : vector<4x256xf32>
      %1014 = arith.addf %981, %1013 : vector<4x256xf32>
      %c243_i32_215 = arith.constant 243 : i32
      %1015 = tpu.dynamic_rotate %50 by %c243_i32_215 dim 1 : vector<4x256xf32>, i32 -> vector<4x256xf32>
      %c243_i32_216 = arith.constant 243 : i32
      %1016 = tpu.dynamic_rotate %56 by %c243_i32_216 dim 1 : vector<4x256xf32>, i32 -> vector<4x256xf32>
      %1017 = vector.broadcast %992 : f32 to vector<4x256xf32>
      %1018 = arith.mulf %1017, %1015 : vector<4x256xf32>
      %1019 = vector.broadcast %993 : f32 to vector<4x256xf32>
      %1020 = arith.mulf %1019, %1016 : vector<4x256xf32>
      %1021 = arith.addf %1018, %1020 : vector<4x256xf32>
      %1022 = vector.broadcast %994 : vector<1x256xf32> to vector<4x256xf32>
      %1023 = arith.mulf %1022, %1021 : vector<4x256xf32>
      %1024 = arith.addf %991, %1023 : vector<4x256xf32>
      %c29 = arith.constant 29 : index
      %1025 = memref.load %arg2[%c29] : memref<98xf32, #tpu.memory_space<smem>>
      %c78 = arith.constant 78 : index
      %1026 = memref.load %arg2[%c78] : memref<98xf32, #tpu.memory_space<smem>>
      %1027 = arith.mulf %61, %65 : vector<1x256xf32>
      %c242_i32 = arith.constant 242 : i32
      %1028 = tpu.dynamic_rotate %42 by %c242_i32 dim 1 : vector<4x256xf32>, i32 -> vector<4x256xf32>
      %c242_i32_217 = arith.constant 242 : i32
      %1029 = tpu.dynamic_rotate %52 by %c242_i32_217 dim 1 : vector<4x256xf32>, i32 -> vector<4x256xf32>
      %1030 = vector.broadcast %1025 : f32 to vector<4x256xf32>
      %1031 = arith.mulf %1030, %1028 : vector<4x256xf32>
      %1032 = vector.broadcast %1026 : f32 to vector<4x256xf32>
      %1033 = arith.mulf %1032, %1029 : vector<4x256xf32>
      %1034 = arith.addf %1031, %1033 : vector<4x256xf32>
      %1035 = vector.broadcast %1027 : vector<1x256xf32> to vector<4x256xf32>
      %1036 = arith.mulf %1035, %1034 : vector<4x256xf32>
      %1037 = arith.addf %1004, %1036 : vector<4x256xf32>
      %c242_i32_218 = arith.constant 242 : i32
      %1038 = tpu.dynamic_rotate %46 by %c242_i32_218 dim 1 : vector<4x256xf32>, i32 -> vector<4x256xf32>
      %c242_i32_219 = arith.constant 242 : i32
      %1039 = tpu.dynamic_rotate %54 by %c242_i32_219 dim 1 : vector<4x256xf32>, i32 -> vector<4x256xf32>
      %1040 = vector.broadcast %1025 : f32 to vector<4x256xf32>
      %1041 = arith.mulf %1040, %1038 : vector<4x256xf32>
      %1042 = vector.broadcast %1026 : f32 to vector<4x256xf32>
      %1043 = arith.mulf %1042, %1039 : vector<4x256xf32>
      %1044 = arith.addf %1041, %1043 : vector<4x256xf32>
      %1045 = vector.broadcast %1027 : vector<1x256xf32> to vector<4x256xf32>
      %1046 = arith.mulf %1045, %1044 : vector<4x256xf32>
      %1047 = arith.addf %1014, %1046 : vector<4x256xf32>
      %c242_i32_220 = arith.constant 242 : i32
      %1048 = tpu.dynamic_rotate %50 by %c242_i32_220 dim 1 : vector<4x256xf32>, i32 -> vector<4x256xf32>
      %c242_i32_221 = arith.constant 242 : i32
      %1049 = tpu.dynamic_rotate %56 by %c242_i32_221 dim 1 : vector<4x256xf32>, i32 -> vector<4x256xf32>
      %1050 = vector.broadcast %1025 : f32 to vector<4x256xf32>
      %1051 = arith.mulf %1050, %1048 : vector<4x256xf32>
      %1052 = vector.broadcast %1026 : f32 to vector<4x256xf32>
      %1053 = arith.mulf %1052, %1049 : vector<4x256xf32>
      %1054 = arith.addf %1051, %1053 : vector<4x256xf32>
      %1055 = vector.broadcast %1027 : vector<1x256xf32> to vector<4x256xf32>
      %1056 = arith.mulf %1055, %1054 : vector<4x256xf32>
      %1057 = arith.addf %1024, %1056 : vector<4x256xf32>
      %c30 = arith.constant 30 : index
      %1058 = memref.load %arg2[%c30] : memref<98xf32, #tpu.memory_space<smem>>
      %c79 = arith.constant 79 : index
      %1059 = memref.load %arg2[%c79] : memref<98xf32, #tpu.memory_space<smem>>
      %1060 = arith.mulf %61, %66 : vector<1x256xf32>
      %c241_i32 = arith.constant 241 : i32
      %1061 = tpu.dynamic_rotate %42 by %c241_i32 dim 1 : vector<4x256xf32>, i32 -> vector<4x256xf32>
      %c241_i32_222 = arith.constant 241 : i32
      %1062 = tpu.dynamic_rotate %52 by %c241_i32_222 dim 1 : vector<4x256xf32>, i32 -> vector<4x256xf32>
      %1063 = vector.broadcast %1058 : f32 to vector<4x256xf32>
      %1064 = arith.mulf %1063, %1061 : vector<4x256xf32>
      %1065 = vector.broadcast %1059 : f32 to vector<4x256xf32>
      %1066 = arith.mulf %1065, %1062 : vector<4x256xf32>
      %1067 = arith.addf %1064, %1066 : vector<4x256xf32>
      %1068 = vector.broadcast %1060 : vector<1x256xf32> to vector<4x256xf32>
      %1069 = arith.mulf %1068, %1067 : vector<4x256xf32>
      %1070 = arith.addf %1037, %1069 : vector<4x256xf32>
      %c241_i32_223 = arith.constant 241 : i32
      %1071 = tpu.dynamic_rotate %46 by %c241_i32_223 dim 1 : vector<4x256xf32>, i32 -> vector<4x256xf32>
      %c241_i32_224 = arith.constant 241 : i32
      %1072 = tpu.dynamic_rotate %54 by %c241_i32_224 dim 1 : vector<4x256xf32>, i32 -> vector<4x256xf32>
      %1073 = vector.broadcast %1058 : f32 to vector<4x256xf32>
      %1074 = arith.mulf %1073, %1071 : vector<4x256xf32>
      %1075 = vector.broadcast %1059 : f32 to vector<4x256xf32>
      %1076 = arith.mulf %1075, %1072 : vector<4x256xf32>
      %1077 = arith.addf %1074, %1076 : vector<4x256xf32>
      %1078 = vector.broadcast %1060 : vector<1x256xf32> to vector<4x256xf32>
      %1079 = arith.mulf %1078, %1077 : vector<4x256xf32>
      %1080 = arith.addf %1047, %1079 : vector<4x256xf32>
      %c241_i32_225 = arith.constant 241 : i32
      %1081 = tpu.dynamic_rotate %50 by %c241_i32_225 dim 1 : vector<4x256xf32>, i32 -> vector<4x256xf32>
      %c241_i32_226 = arith.constant 241 : i32
      %1082 = tpu.dynamic_rotate %56 by %c241_i32_226 dim 1 : vector<4x256xf32>, i32 -> vector<4x256xf32>
      %1083 = vector.broadcast %1058 : f32 to vector<4x256xf32>
      %1084 = arith.mulf %1083, %1081 : vector<4x256xf32>
      %1085 = vector.broadcast %1059 : f32 to vector<4x256xf32>
      %1086 = arith.mulf %1085, %1082 : vector<4x256xf32>
      %1087 = arith.addf %1084, %1086 : vector<4x256xf32>
      %1088 = vector.broadcast %1060 : vector<1x256xf32> to vector<4x256xf32>
      %1089 = arith.mulf %1088, %1087 : vector<4x256xf32>
      %1090 = arith.addf %1057, %1089 : vector<4x256xf32>
      %c31 = arith.constant 31 : index
      %1091 = memref.load %arg2[%c31] : memref<98xf32, #tpu.memory_space<smem>>
      %c80 = arith.constant 80 : index
      %1092 = memref.load %arg2[%c80] : memref<98xf32, #tpu.memory_space<smem>>
      %1093 = arith.mulf %61, %67 : vector<1x256xf32>
      %c240_i32 = arith.constant 240 : i32
      %1094 = tpu.dynamic_rotate %42 by %c240_i32 dim 1 : vector<4x256xf32>, i32 -> vector<4x256xf32>
      %c240_i32_227 = arith.constant 240 : i32
      %1095 = tpu.dynamic_rotate %52 by %c240_i32_227 dim 1 : vector<4x256xf32>, i32 -> vector<4x256xf32>
      %1096 = vector.broadcast %1091 : f32 to vector<4x256xf32>
      %1097 = arith.mulf %1096, %1094 : vector<4x256xf32>
      %1098 = vector.broadcast %1092 : f32 to vector<4x256xf32>
      %1099 = arith.mulf %1098, %1095 : vector<4x256xf32>
      %1100 = arith.addf %1097, %1099 : vector<4x256xf32>
      %1101 = vector.broadcast %1093 : vector<1x256xf32> to vector<4x256xf32>
      %1102 = arith.mulf %1101, %1100 : vector<4x256xf32>
      %1103 = arith.addf %1070, %1102 : vector<4x256xf32>
      %c240_i32_228 = arith.constant 240 : i32
      %1104 = tpu.dynamic_rotate %46 by %c240_i32_228 dim 1 : vector<4x256xf32>, i32 -> vector<4x256xf32>
      %c240_i32_229 = arith.constant 240 : i32
      %1105 = tpu.dynamic_rotate %54 by %c240_i32_229 dim 1 : vector<4x256xf32>, i32 -> vector<4x256xf32>
      %1106 = vector.broadcast %1091 : f32 to vector<4x256xf32>
      %1107 = arith.mulf %1106, %1104 : vector<4x256xf32>
      %1108 = vector.broadcast %1092 : f32 to vector<4x256xf32>
      %1109 = arith.mulf %1108, %1105 : vector<4x256xf32>
      %1110 = arith.addf %1107, %1109 : vector<4x256xf32>
      %1111 = vector.broadcast %1093 : vector<1x256xf32> to vector<4x256xf32>
      %1112 = arith.mulf %1111, %1110 : vector<4x256xf32>
      %1113 = arith.addf %1080, %1112 : vector<4x256xf32>
      %c240_i32_230 = arith.constant 240 : i32
      %1114 = tpu.dynamic_rotate %50 by %c240_i32_230 dim 1 : vector<4x256xf32>, i32 -> vector<4x256xf32>
      %c240_i32_231 = arith.constant 240 : i32
      %1115 = tpu.dynamic_rotate %56 by %c240_i32_231 dim 1 : vector<4x256xf32>, i32 -> vector<4x256xf32>
      %1116 = vector.broadcast %1091 : f32 to vector<4x256xf32>
      %1117 = arith.mulf %1116, %1114 : vector<4x256xf32>
      %1118 = vector.broadcast %1092 : f32 to vector<4x256xf32>
      %1119 = arith.mulf %1118, %1115 : vector<4x256xf32>
      %1120 = arith.addf %1117, %1119 : vector<4x256xf32>
      %1121 = vector.broadcast %1093 : vector<1x256xf32> to vector<4x256xf32>
      %1122 = arith.mulf %1121, %1120 : vector<4x256xf32>
      %1123 = arith.addf %1090, %1122 : vector<4x256xf32>
      %c32 = arith.constant 32 : index
      %1124 = memref.load %arg2[%c32] : memref<98xf32, #tpu.memory_space<smem>>
      %c81 = arith.constant 81 : index
      %1125 = memref.load %arg2[%c81] : memref<98xf32, #tpu.memory_space<smem>>
      %1126 = arith.mulf %61, %68 : vector<1x256xf32>
      %c239_i32 = arith.constant 239 : i32
      %1127 = tpu.dynamic_rotate %42 by %c239_i32 dim 1 : vector<4x256xf32>, i32 -> vector<4x256xf32>
      %c239_i32_232 = arith.constant 239 : i32
      %1128 = tpu.dynamic_rotate %52 by %c239_i32_232 dim 1 : vector<4x256xf32>, i32 -> vector<4x256xf32>
      %1129 = vector.broadcast %1124 : f32 to vector<4x256xf32>
      %1130 = arith.mulf %1129, %1127 : vector<4x256xf32>
      %1131 = vector.broadcast %1125 : f32 to vector<4x256xf32>
      %1132 = arith.mulf %1131, %1128 : vector<4x256xf32>
      %1133 = arith.addf %1130, %1132 : vector<4x256xf32>
      %1134 = vector.broadcast %1126 : vector<1x256xf32> to vector<4x256xf32>
      %1135 = arith.mulf %1134, %1133 : vector<4x256xf32>
      %1136 = arith.addf %1103, %1135 : vector<4x256xf32>
      %c239_i32_233 = arith.constant 239 : i32
      %1137 = tpu.dynamic_rotate %46 by %c239_i32_233 dim 1 : vector<4x256xf32>, i32 -> vector<4x256xf32>
      %c239_i32_234 = arith.constant 239 : i32
      %1138 = tpu.dynamic_rotate %54 by %c239_i32_234 dim 1 : vector<4x256xf32>, i32 -> vector<4x256xf32>
      %1139 = vector.broadcast %1124 : f32 to vector<4x256xf32>
      %1140 = arith.mulf %1139, %1137 : vector<4x256xf32>
      %1141 = vector.broadcast %1125 : f32 to vector<4x256xf32>
      %1142 = arith.mulf %1141, %1138 : vector<4x256xf32>
      %1143 = arith.addf %1140, %1142 : vector<4x256xf32>
      %1144 = vector.broadcast %1126 : vector<1x256xf32> to vector<4x256xf32>
      %1145 = arith.mulf %1144, %1143 : vector<4x256xf32>
      %1146 = arith.addf %1113, %1145 : vector<4x256xf32>
      %c239_i32_235 = arith.constant 239 : i32
      %1147 = tpu.dynamic_rotate %50 by %c239_i32_235 dim 1 : vector<4x256xf32>, i32 -> vector<4x256xf32>
      %c239_i32_236 = arith.constant 239 : i32
      %1148 = tpu.dynamic_rotate %56 by %c239_i32_236 dim 1 : vector<4x256xf32>, i32 -> vector<4x256xf32>
      %1149 = vector.broadcast %1124 : f32 to vector<4x256xf32>
      %1150 = arith.mulf %1149, %1147 : vector<4x256xf32>
      %1151 = vector.broadcast %1125 : f32 to vector<4x256xf32>
      %1152 = arith.mulf %1151, %1148 : vector<4x256xf32>
      %1153 = arith.addf %1150, %1152 : vector<4x256xf32>
      %1154 = vector.broadcast %1126 : vector<1x256xf32> to vector<4x256xf32>
      %1155 = arith.mulf %1154, %1153 : vector<4x256xf32>
      %1156 = arith.addf %1123, %1155 : vector<4x256xf32>
      %c33 = arith.constant 33 : index
      %1157 = memref.load %arg2[%c33] : memref<98xf32, #tpu.memory_space<smem>>
      %c82 = arith.constant 82 : index
      %1158 = memref.load %arg2[%c82] : memref<98xf32, #tpu.memory_space<smem>>
      %1159 = arith.mulf %61, %69 : vector<1x256xf32>
      %c238_i32 = arith.constant 238 : i32
      %1160 = tpu.dynamic_rotate %42 by %c238_i32 dim 1 : vector<4x256xf32>, i32 -> vector<4x256xf32>
      %c238_i32_237 = arith.constant 238 : i32
      %1161 = tpu.dynamic_rotate %52 by %c238_i32_237 dim 1 : vector<4x256xf32>, i32 -> vector<4x256xf32>
      %1162 = vector.broadcast %1157 : f32 to vector<4x256xf32>
      %1163 = arith.mulf %1162, %1160 : vector<4x256xf32>
      %1164 = vector.broadcast %1158 : f32 to vector<4x256xf32>
      %1165 = arith.mulf %1164, %1161 : vector<4x256xf32>
      %1166 = arith.addf %1163, %1165 : vector<4x256xf32>
      %1167 = vector.broadcast %1159 : vector<1x256xf32> to vector<4x256xf32>
      %1168 = arith.mulf %1167, %1166 : vector<4x256xf32>
      %1169 = arith.addf %1136, %1168 : vector<4x256xf32>
      %c238_i32_238 = arith.constant 238 : i32
      %1170 = tpu.dynamic_rotate %46 by %c238_i32_238 dim 1 : vector<4x256xf32>, i32 -> vector<4x256xf32>
      %c238_i32_239 = arith.constant 238 : i32
      %1171 = tpu.dynamic_rotate %54 by %c238_i32_239 dim 1 : vector<4x256xf32>, i32 -> vector<4x256xf32>
      %1172 = vector.broadcast %1157 : f32 to vector<4x256xf32>
      %1173 = arith.mulf %1172, %1170 : vector<4x256xf32>
      %1174 = vector.broadcast %1158 : f32 to vector<4x256xf32>
      %1175 = arith.mulf %1174, %1171 : vector<4x256xf32>
      %1176 = arith.addf %1173, %1175 : vector<4x256xf32>
      %1177 = vector.broadcast %1159 : vector<1x256xf32> to vector<4x256xf32>
      %1178 = arith.mulf %1177, %1176 : vector<4x256xf32>
      %1179 = arith.addf %1146, %1178 : vector<4x256xf32>
      %c238_i32_240 = arith.constant 238 : i32
      %1180 = tpu.dynamic_rotate %50 by %c238_i32_240 dim 1 : vector<4x256xf32>, i32 -> vector<4x256xf32>
      %c238_i32_241 = arith.constant 238 : i32
      %1181 = tpu.dynamic_rotate %56 by %c238_i32_241 dim 1 : vector<4x256xf32>, i32 -> vector<4x256xf32>
      %1182 = vector.broadcast %1157 : f32 to vector<4x256xf32>
      %1183 = arith.mulf %1182, %1180 : vector<4x256xf32>
      %1184 = vector.broadcast %1158 : f32 to vector<4x256xf32>
      %1185 = arith.mulf %1184, %1181 : vector<4x256xf32>
      %1186 = arith.addf %1183, %1185 : vector<4x256xf32>
      %1187 = vector.broadcast %1159 : vector<1x256xf32> to vector<4x256xf32>
      %1188 = arith.mulf %1187, %1186 : vector<4x256xf32>
      %1189 = arith.addf %1156, %1188 : vector<4x256xf32>
      %c34 = arith.constant 34 : index
      %1190 = memref.load %arg2[%c34] : memref<98xf32, #tpu.memory_space<smem>>
      %c83 = arith.constant 83 : index
      %1191 = memref.load %arg2[%c83] : memref<98xf32, #tpu.memory_space<smem>>
      %1192 = arith.mulf %61, %70 : vector<1x256xf32>
      %c237_i32 = arith.constant 237 : i32
      %1193 = tpu.dynamic_rotate %42 by %c237_i32 dim 1 : vector<4x256xf32>, i32 -> vector<4x256xf32>
      %c237_i32_242 = arith.constant 237 : i32
      %1194 = tpu.dynamic_rotate %52 by %c237_i32_242 dim 1 : vector<4x256xf32>, i32 -> vector<4x256xf32>
      %1195 = vector.broadcast %1190 : f32 to vector<4x256xf32>
      %1196 = arith.mulf %1195, %1193 : vector<4x256xf32>
      %1197 = vector.broadcast %1191 : f32 to vector<4x256xf32>
      %1198 = arith.mulf %1197, %1194 : vector<4x256xf32>
      %1199 = arith.addf %1196, %1198 : vector<4x256xf32>
      %1200 = vector.broadcast %1192 : vector<1x256xf32> to vector<4x256xf32>
      %1201 = arith.mulf %1200, %1199 : vector<4x256xf32>
      %1202 = arith.addf %1169, %1201 : vector<4x256xf32>
      %c237_i32_243 = arith.constant 237 : i32
      %1203 = tpu.dynamic_rotate %46 by %c237_i32_243 dim 1 : vector<4x256xf32>, i32 -> vector<4x256xf32>
      %c237_i32_244 = arith.constant 237 : i32
      %1204 = tpu.dynamic_rotate %54 by %c237_i32_244 dim 1 : vector<4x256xf32>, i32 -> vector<4x256xf32>
      %1205 = vector.broadcast %1190 : f32 to vector<4x256xf32>
      %1206 = arith.mulf %1205, %1203 : vector<4x256xf32>
      %1207 = vector.broadcast %1191 : f32 to vector<4x256xf32>
      %1208 = arith.mulf %1207, %1204 : vector<4x256xf32>
      %1209 = arith.addf %1206, %1208 : vector<4x256xf32>
      %1210 = vector.broadcast %1192 : vector<1x256xf32> to vector<4x256xf32>
      %1211 = arith.mulf %1210, %1209 : vector<4x256xf32>
      %1212 = arith.addf %1179, %1211 : vector<4x256xf32>
      %c237_i32_245 = arith.constant 237 : i32
      %1213 = tpu.dynamic_rotate %50 by %c237_i32_245 dim 1 : vector<4x256xf32>, i32 -> vector<4x256xf32>
      %c237_i32_246 = arith.constant 237 : i32
      %1214 = tpu.dynamic_rotate %56 by %c237_i32_246 dim 1 : vector<4x256xf32>, i32 -> vector<4x256xf32>
      %1215 = vector.broadcast %1190 : f32 to vector<4x256xf32>
      %1216 = arith.mulf %1215, %1213 : vector<4x256xf32>
      %1217 = vector.broadcast %1191 : f32 to vector<4x256xf32>
      %1218 = arith.mulf %1217, %1214 : vector<4x256xf32>
      %1219 = arith.addf %1216, %1218 : vector<4x256xf32>
      %1220 = vector.broadcast %1192 : vector<1x256xf32> to vector<4x256xf32>
      %1221 = arith.mulf %1220, %1219 : vector<4x256xf32>
      %1222 = arith.addf %1189, %1221 : vector<4x256xf32>
      %c35 = arith.constant 35 : index
      %1223 = memref.load %arg2[%c35] : memref<98xf32, #tpu.memory_space<smem>>
      %c84 = arith.constant 84 : index
      %1224 = memref.load %arg2[%c84] : memref<98xf32, #tpu.memory_space<smem>>
      %1225 = arith.mulf %62, %64 : vector<1x256xf32>
      %c227_i32 = arith.constant 227 : i32
      %1226 = tpu.dynamic_rotate %42 by %c227_i32 dim 1 : vector<4x256xf32>, i32 -> vector<4x256xf32>
      %c227_i32_247 = arith.constant 227 : i32
      %1227 = tpu.dynamic_rotate %52 by %c227_i32_247 dim 1 : vector<4x256xf32>, i32 -> vector<4x256xf32>
      %1228 = vector.broadcast %1223 : f32 to vector<4x256xf32>
      %1229 = arith.mulf %1228, %1226 : vector<4x256xf32>
      %1230 = vector.broadcast %1224 : f32 to vector<4x256xf32>
      %1231 = arith.mulf %1230, %1227 : vector<4x256xf32>
      %1232 = arith.addf %1229, %1231 : vector<4x256xf32>
      %1233 = vector.broadcast %1225 : vector<1x256xf32> to vector<4x256xf32>
      %1234 = arith.mulf %1233, %1232 : vector<4x256xf32>
      %1235 = arith.addf %1202, %1234 : vector<4x256xf32>
      %c227_i32_248 = arith.constant 227 : i32
      %1236 = tpu.dynamic_rotate %46 by %c227_i32_248 dim 1 : vector<4x256xf32>, i32 -> vector<4x256xf32>
      %c227_i32_249 = arith.constant 227 : i32
      %1237 = tpu.dynamic_rotate %54 by %c227_i32_249 dim 1 : vector<4x256xf32>, i32 -> vector<4x256xf32>
      %1238 = vector.broadcast %1223 : f32 to vector<4x256xf32>
      %1239 = arith.mulf %1238, %1236 : vector<4x256xf32>
      %1240 = vector.broadcast %1224 : f32 to vector<4x256xf32>
      %1241 = arith.mulf %1240, %1237 : vector<4x256xf32>
      %1242 = arith.addf %1239, %1241 : vector<4x256xf32>
      %1243 = vector.broadcast %1225 : vector<1x256xf32> to vector<4x256xf32>
      %1244 = arith.mulf %1243, %1242 : vector<4x256xf32>
      %1245 = arith.addf %1212, %1244 : vector<4x256xf32>
      %c227_i32_250 = arith.constant 227 : i32
      %1246 = tpu.dynamic_rotate %50 by %c227_i32_250 dim 1 : vector<4x256xf32>, i32 -> vector<4x256xf32>
      %c227_i32_251 = arith.constant 227 : i32
      %1247 = tpu.dynamic_rotate %56 by %c227_i32_251 dim 1 : vector<4x256xf32>, i32 -> vector<4x256xf32>
      %1248 = vector.broadcast %1223 : f32 to vector<4x256xf32>
      %1249 = arith.mulf %1248, %1246 : vector<4x256xf32>
      %1250 = vector.broadcast %1224 : f32 to vector<4x256xf32>
      %1251 = arith.mulf %1250, %1247 : vector<4x256xf32>
      %1252 = arith.addf %1249, %1251 : vector<4x256xf32>
      %1253 = vector.broadcast %1225 : vector<1x256xf32> to vector<4x256xf32>
      %1254 = arith.mulf %1253, %1252 : vector<4x256xf32>
      %1255 = arith.addf %1222, %1254 : vector<4x256xf32>
      %c36 = arith.constant 36 : index
      %1256 = memref.load %arg2[%c36] : memref<98xf32, #tpu.memory_space<smem>>
      %c85 = arith.constant 85 : index
      %1257 = memref.load %arg2[%c85] : memref<98xf32, #tpu.memory_space<smem>>
      %1258 = arith.mulf %62, %65 : vector<1x256xf32>
      %c226_i32 = arith.constant 226 : i32
      %1259 = tpu.dynamic_rotate %42 by %c226_i32 dim 1 : vector<4x256xf32>, i32 -> vector<4x256xf32>
      %c226_i32_252 = arith.constant 226 : i32
      %1260 = tpu.dynamic_rotate %52 by %c226_i32_252 dim 1 : vector<4x256xf32>, i32 -> vector<4x256xf32>
      %1261 = vector.broadcast %1256 : f32 to vector<4x256xf32>
      %1262 = arith.mulf %1261, %1259 : vector<4x256xf32>
      %1263 = vector.broadcast %1257 : f32 to vector<4x256xf32>
      %1264 = arith.mulf %1263, %1260 : vector<4x256xf32>
      %1265 = arith.addf %1262, %1264 : vector<4x256xf32>
      %1266 = vector.broadcast %1258 : vector<1x256xf32> to vector<4x256xf32>
      %1267 = arith.mulf %1266, %1265 : vector<4x256xf32>
      %1268 = arith.addf %1235, %1267 : vector<4x256xf32>
      %c226_i32_253 = arith.constant 226 : i32
      %1269 = tpu.dynamic_rotate %46 by %c226_i32_253 dim 1 : vector<4x256xf32>, i32 -> vector<4x256xf32>
      %c226_i32_254 = arith.constant 226 : i32
      %1270 = tpu.dynamic_rotate %54 by %c226_i32_254 dim 1 : vector<4x256xf32>, i32 -> vector<4x256xf32>
      %1271 = vector.broadcast %1256 : f32 to vector<4x256xf32>
      %1272 = arith.mulf %1271, %1269 : vector<4x256xf32>
      %1273 = vector.broadcast %1257 : f32 to vector<4x256xf32>
      %1274 = arith.mulf %1273, %1270 : vector<4x256xf32>
      %1275 = arith.addf %1272, %1274 : vector<4x256xf32>
      %1276 = vector.broadcast %1258 : vector<1x256xf32> to vector<4x256xf32>
      %1277 = arith.mulf %1276, %1275 : vector<4x256xf32>
      %1278 = arith.addf %1245, %1277 : vector<4x256xf32>
      %c226_i32_255 = arith.constant 226 : i32
      %1279 = tpu.dynamic_rotate %50 by %c226_i32_255 dim 1 : vector<4x256xf32>, i32 -> vector<4x256xf32>
      %c226_i32_256 = arith.constant 226 : i32
      %1280 = tpu.dynamic_rotate %56 by %c226_i32_256 dim 1 : vector<4x256xf32>, i32 -> vector<4x256xf32>
      %1281 = vector.broadcast %1256 : f32 to vector<4x256xf32>
      %1282 = arith.mulf %1281, %1279 : vector<4x256xf32>
      %1283 = vector.broadcast %1257 : f32 to vector<4x256xf32>
      %1284 = arith.mulf %1283, %1280 : vector<4x256xf32>
      %1285 = arith.addf %1282, %1284 : vector<4x256xf32>
      %1286 = vector.broadcast %1258 : vector<1x256xf32> to vector<4x256xf32>
      %1287 = arith.mulf %1286, %1285 : vector<4x256xf32>
      %1288 = arith.addf %1255, %1287 : vector<4x256xf32>
      %c37 = arith.constant 37 : index
      %1289 = memref.load %arg2[%c37] : memref<98xf32, #tpu.memory_space<smem>>
      %c86 = arith.constant 86 : index
      %1290 = memref.load %arg2[%c86] : memref<98xf32, #tpu.memory_space<smem>>
      %1291 = arith.mulf %62, %66 : vector<1x256xf32>
      %c225_i32 = arith.constant 225 : i32
      %1292 = tpu.dynamic_rotate %42 by %c225_i32 dim 1 : vector<4x256xf32>, i32 -> vector<4x256xf32>
      %c225_i32_257 = arith.constant 225 : i32
      %1293 = tpu.dynamic_rotate %52 by %c225_i32_257 dim 1 : vector<4x256xf32>, i32 -> vector<4x256xf32>
      %1294 = vector.broadcast %1289 : f32 to vector<4x256xf32>
      %1295 = arith.mulf %1294, %1292 : vector<4x256xf32>
      %1296 = vector.broadcast %1290 : f32 to vector<4x256xf32>
      %1297 = arith.mulf %1296, %1293 : vector<4x256xf32>
      %1298 = arith.addf %1295, %1297 : vector<4x256xf32>
      %1299 = vector.broadcast %1291 : vector<1x256xf32> to vector<4x256xf32>
      %1300 = arith.mulf %1299, %1298 : vector<4x256xf32>
      %1301 = arith.addf %1268, %1300 : vector<4x256xf32>
      %c225_i32_258 = arith.constant 225 : i32
      %1302 = tpu.dynamic_rotate %46 by %c225_i32_258 dim 1 : vector<4x256xf32>, i32 -> vector<4x256xf32>
      %c225_i32_259 = arith.constant 225 : i32
      %1303 = tpu.dynamic_rotate %54 by %c225_i32_259 dim 1 : vector<4x256xf32>, i32 -> vector<4x256xf32>
      %1304 = vector.broadcast %1289 : f32 to vector<4x256xf32>
      %1305 = arith.mulf %1304, %1302 : vector<4x256xf32>
      %1306 = vector.broadcast %1290 : f32 to vector<4x256xf32>
      %1307 = arith.mulf %1306, %1303 : vector<4x256xf32>
      %1308 = arith.addf %1305, %1307 : vector<4x256xf32>
      %1309 = vector.broadcast %1291 : vector<1x256xf32> to vector<4x256xf32>
      %1310 = arith.mulf %1309, %1308 : vector<4x256xf32>
      %1311 = arith.addf %1278, %1310 : vector<4x256xf32>
      %c225_i32_260 = arith.constant 225 : i32
      %1312 = tpu.dynamic_rotate %50 by %c225_i32_260 dim 1 : vector<4x256xf32>, i32 -> vector<4x256xf32>
      %c225_i32_261 = arith.constant 225 : i32
      %1313 = tpu.dynamic_rotate %56 by %c225_i32_261 dim 1 : vector<4x256xf32>, i32 -> vector<4x256xf32>
      %1314 = vector.broadcast %1289 : f32 to vector<4x256xf32>
      %1315 = arith.mulf %1314, %1312 : vector<4x256xf32>
      %1316 = vector.broadcast %1290 : f32 to vector<4x256xf32>
      %1317 = arith.mulf %1316, %1313 : vector<4x256xf32>
      %1318 = arith.addf %1315, %1317 : vector<4x256xf32>
      %1319 = vector.broadcast %1291 : vector<1x256xf32> to vector<4x256xf32>
      %1320 = arith.mulf %1319, %1318 : vector<4x256xf32>
      %1321 = arith.addf %1288, %1320 : vector<4x256xf32>
      %c38 = arith.constant 38 : index
      %1322 = memref.load %arg2[%c38] : memref<98xf32, #tpu.memory_space<smem>>
      %c87 = arith.constant 87 : index
      %1323 = memref.load %arg2[%c87] : memref<98xf32, #tpu.memory_space<smem>>
      %1324 = arith.mulf %62, %67 : vector<1x256xf32>
      %c224_i32 = arith.constant 224 : i32
      %1325 = tpu.dynamic_rotate %42 by %c224_i32 dim 1 : vector<4x256xf32>, i32 -> vector<4x256xf32>
      %c224_i32_262 = arith.constant 224 : i32
      %1326 = tpu.dynamic_rotate %52 by %c224_i32_262 dim 1 : vector<4x256xf32>, i32 -> vector<4x256xf32>
      %1327 = vector.broadcast %1322 : f32 to vector<4x256xf32>
      %1328 = arith.mulf %1327, %1325 : vector<4x256xf32>
      %1329 = vector.broadcast %1323 : f32 to vector<4x256xf32>
      %1330 = arith.mulf %1329, %1326 : vector<4x256xf32>
      %1331 = arith.addf %1328, %1330 : vector<4x256xf32>
      %1332 = vector.broadcast %1324 : vector<1x256xf32> to vector<4x256xf32>
      %1333 = arith.mulf %1332, %1331 : vector<4x256xf32>
      %1334 = arith.addf %1301, %1333 : vector<4x256xf32>
      %c224_i32_263 = arith.constant 224 : i32
      %1335 = tpu.dynamic_rotate %46 by %c224_i32_263 dim 1 : vector<4x256xf32>, i32 -> vector<4x256xf32>
      %c224_i32_264 = arith.constant 224 : i32
      %1336 = tpu.dynamic_rotate %54 by %c224_i32_264 dim 1 : vector<4x256xf32>, i32 -> vector<4x256xf32>
      %1337 = vector.broadcast %1322 : f32 to vector<4x256xf32>
      %1338 = arith.mulf %1337, %1335 : vector<4x256xf32>
      %1339 = vector.broadcast %1323 : f32 to vector<4x256xf32>
      %1340 = arith.mulf %1339, %1336 : vector<4x256xf32>
      %1341 = arith.addf %1338, %1340 : vector<4x256xf32>
      %1342 = vector.broadcast %1324 : vector<1x256xf32> to vector<4x256xf32>
      %1343 = arith.mulf %1342, %1341 : vector<4x256xf32>
      %1344 = arith.addf %1311, %1343 : vector<4x256xf32>
      %c224_i32_265 = arith.constant 224 : i32
      %1345 = tpu.dynamic_rotate %50 by %c224_i32_265 dim 1 : vector<4x256xf32>, i32 -> vector<4x256xf32>
      %c224_i32_266 = arith.constant 224 : i32
      %1346 = tpu.dynamic_rotate %56 by %c224_i32_266 dim 1 : vector<4x256xf32>, i32 -> vector<4x256xf32>
      %1347 = vector.broadcast %1322 : f32 to vector<4x256xf32>
      %1348 = arith.mulf %1347, %1345 : vector<4x256xf32>
      %1349 = vector.broadcast %1323 : f32 to vector<4x256xf32>
      %1350 = arith.mulf %1349, %1346 : vector<4x256xf32>
      %1351 = arith.addf %1348, %1350 : vector<4x256xf32>
      %1352 = vector.broadcast %1324 : vector<1x256xf32> to vector<4x256xf32>
      %1353 = arith.mulf %1352, %1351 : vector<4x256xf32>
      %1354 = arith.addf %1321, %1353 : vector<4x256xf32>
      %c39 = arith.constant 39 : index
      %1355 = memref.load %arg2[%c39] : memref<98xf32, #tpu.memory_space<smem>>
      %c88 = arith.constant 88 : index
      %1356 = memref.load %arg2[%c88] : memref<98xf32, #tpu.memory_space<smem>>
      %1357 = arith.mulf %62, %68 : vector<1x256xf32>
      %c223_i32 = arith.constant 223 : i32
      %1358 = tpu.dynamic_rotate %42 by %c223_i32 dim 1 : vector<4x256xf32>, i32 -> vector<4x256xf32>
      %c223_i32_267 = arith.constant 223 : i32
      %1359 = tpu.dynamic_rotate %52 by %c223_i32_267 dim 1 : vector<4x256xf32>, i32 -> vector<4x256xf32>
      %1360 = vector.broadcast %1355 : f32 to vector<4x256xf32>
      %1361 = arith.mulf %1360, %1358 : vector<4x256xf32>
      %1362 = vector.broadcast %1356 : f32 to vector<4x256xf32>
      %1363 = arith.mulf %1362, %1359 : vector<4x256xf32>
      %1364 = arith.addf %1361, %1363 : vector<4x256xf32>
      %1365 = vector.broadcast %1357 : vector<1x256xf32> to vector<4x256xf32>
      %1366 = arith.mulf %1365, %1364 : vector<4x256xf32>
      %1367 = arith.addf %1334, %1366 : vector<4x256xf32>
      %c223_i32_268 = arith.constant 223 : i32
      %1368 = tpu.dynamic_rotate %46 by %c223_i32_268 dim 1 : vector<4x256xf32>, i32 -> vector<4x256xf32>
      %c223_i32_269 = arith.constant 223 : i32
      %1369 = tpu.dynamic_rotate %54 by %c223_i32_269 dim 1 : vector<4x256xf32>, i32 -> vector<4x256xf32>
      %1370 = vector.broadcast %1355 : f32 to vector<4x256xf32>
      %1371 = arith.mulf %1370, %1368 : vector<4x256xf32>
      %1372 = vector.broadcast %1356 : f32 to vector<4x256xf32>
      %1373 = arith.mulf %1372, %1369 : vector<4x256xf32>
      %1374 = arith.addf %1371, %1373 : vector<4x256xf32>
      %1375 = vector.broadcast %1357 : vector<1x256xf32> to vector<4x256xf32>
      %1376 = arith.mulf %1375, %1374 : vector<4x256xf32>
      %1377 = arith.addf %1344, %1376 : vector<4x256xf32>
      %c223_i32_270 = arith.constant 223 : i32
      %1378 = tpu.dynamic_rotate %50 by %c223_i32_270 dim 1 : vector<4x256xf32>, i32 -> vector<4x256xf32>
      %c223_i32_271 = arith.constant 223 : i32
      %1379 = tpu.dynamic_rotate %56 by %c223_i32_271 dim 1 : vector<4x256xf32>, i32 -> vector<4x256xf32>
      %1380 = vector.broadcast %1355 : f32 to vector<4x256xf32>
      %1381 = arith.mulf %1380, %1378 : vector<4x256xf32>
      %1382 = vector.broadcast %1356 : f32 to vector<4x256xf32>
      %1383 = arith.mulf %1382, %1379 : vector<4x256xf32>
      %1384 = arith.addf %1381, %1383 : vector<4x256xf32>
      %1385 = vector.broadcast %1357 : vector<1x256xf32> to vector<4x256xf32>
      %1386 = arith.mulf %1385, %1384 : vector<4x256xf32>
      %1387 = arith.addf %1354, %1386 : vector<4x256xf32>
      %c40 = arith.constant 40 : index
      %1388 = memref.load %arg2[%c40] : memref<98xf32, #tpu.memory_space<smem>>
      %c89 = arith.constant 89 : index
      %1389 = memref.load %arg2[%c89] : memref<98xf32, #tpu.memory_space<smem>>
      %1390 = arith.mulf %62, %69 : vector<1x256xf32>
      %c222_i32 = arith.constant 222 : i32
      %1391 = tpu.dynamic_rotate %42 by %c222_i32 dim 1 : vector<4x256xf32>, i32 -> vector<4x256xf32>
      %c222_i32_272 = arith.constant 222 : i32
      %1392 = tpu.dynamic_rotate %52 by %c222_i32_272 dim 1 : vector<4x256xf32>, i32 -> vector<4x256xf32>
      %1393 = vector.broadcast %1388 : f32 to vector<4x256xf32>
      %1394 = arith.mulf %1393, %1391 : vector<4x256xf32>
      %1395 = vector.broadcast %1389 : f32 to vector<4x256xf32>
      %1396 = arith.mulf %1395, %1392 : vector<4x256xf32>
      %1397 = arith.addf %1394, %1396 : vector<4x256xf32>
      %1398 = vector.broadcast %1390 : vector<1x256xf32> to vector<4x256xf32>
      %1399 = arith.mulf %1398, %1397 : vector<4x256xf32>
      %1400 = arith.addf %1367, %1399 : vector<4x256xf32>
      %c222_i32_273 = arith.constant 222 : i32
      %1401 = tpu.dynamic_rotate %46 by %c222_i32_273 dim 1 : vector<4x256xf32>, i32 -> vector<4x256xf32>
      %c222_i32_274 = arith.constant 222 : i32
      %1402 = tpu.dynamic_rotate %54 by %c222_i32_274 dim 1 : vector<4x256xf32>, i32 -> vector<4x256xf32>
      %1403 = vector.broadcast %1388 : f32 to vector<4x256xf32>
      %1404 = arith.mulf %1403, %1401 : vector<4x256xf32>
      %1405 = vector.broadcast %1389 : f32 to vector<4x256xf32>
      %1406 = arith.mulf %1405, %1402 : vector<4x256xf32>
      %1407 = arith.addf %1404, %1406 : vector<4x256xf32>
      %1408 = vector.broadcast %1390 : vector<1x256xf32> to vector<4x256xf32>
      %1409 = arith.mulf %1408, %1407 : vector<4x256xf32>
      %1410 = arith.addf %1377, %1409 : vector<4x256xf32>
      %c222_i32_275 = arith.constant 222 : i32
      %1411 = tpu.dynamic_rotate %50 by %c222_i32_275 dim 1 : vector<4x256xf32>, i32 -> vector<4x256xf32>
      %c222_i32_276 = arith.constant 222 : i32
      %1412 = tpu.dynamic_rotate %56 by %c222_i32_276 dim 1 : vector<4x256xf32>, i32 -> vector<4x256xf32>
      %1413 = vector.broadcast %1388 : f32 to vector<4x256xf32>
      %1414 = arith.mulf %1413, %1411 : vector<4x256xf32>
      %1415 = vector.broadcast %1389 : f32 to vector<4x256xf32>
      %1416 = arith.mulf %1415, %1412 : vector<4x256xf32>
      %1417 = arith.addf %1414, %1416 : vector<4x256xf32>
      %1418 = vector.broadcast %1390 : vector<1x256xf32> to vector<4x256xf32>
      %1419 = arith.mulf %1418, %1417 : vector<4x256xf32>
      %1420 = arith.addf %1387, %1419 : vector<4x256xf32>
      %c41 = arith.constant 41 : index
      %1421 = memref.load %arg2[%c41] : memref<98xf32, #tpu.memory_space<smem>>
      %c90 = arith.constant 90 : index
      %1422 = memref.load %arg2[%c90] : memref<98xf32, #tpu.memory_space<smem>>
      %1423 = arith.mulf %62, %70 : vector<1x256xf32>
      %c221_i32 = arith.constant 221 : i32
      %1424 = tpu.dynamic_rotate %42 by %c221_i32 dim 1 : vector<4x256xf32>, i32 -> vector<4x256xf32>
      %c221_i32_277 = arith.constant 221 : i32
      %1425 = tpu.dynamic_rotate %52 by %c221_i32_277 dim 1 : vector<4x256xf32>, i32 -> vector<4x256xf32>
      %1426 = vector.broadcast %1421 : f32 to vector<4x256xf32>
      %1427 = arith.mulf %1426, %1424 : vector<4x256xf32>
      %1428 = vector.broadcast %1422 : f32 to vector<4x256xf32>
      %1429 = arith.mulf %1428, %1425 : vector<4x256xf32>
      %1430 = arith.addf %1427, %1429 : vector<4x256xf32>
      %1431 = vector.broadcast %1423 : vector<1x256xf32> to vector<4x256xf32>
      %1432 = arith.mulf %1431, %1430 : vector<4x256xf32>
      %1433 = arith.addf %1400, %1432 : vector<4x256xf32>
      %c221_i32_278 = arith.constant 221 : i32
      %1434 = tpu.dynamic_rotate %46 by %c221_i32_278 dim 1 : vector<4x256xf32>, i32 -> vector<4x256xf32>
      %c221_i32_279 = arith.constant 221 : i32
      %1435 = tpu.dynamic_rotate %54 by %c221_i32_279 dim 1 : vector<4x256xf32>, i32 -> vector<4x256xf32>
      %1436 = vector.broadcast %1421 : f32 to vector<4x256xf32>
      %1437 = arith.mulf %1436, %1434 : vector<4x256xf32>
      %1438 = vector.broadcast %1422 : f32 to vector<4x256xf32>
      %1439 = arith.mulf %1438, %1435 : vector<4x256xf32>
      %1440 = arith.addf %1437, %1439 : vector<4x256xf32>
      %1441 = vector.broadcast %1423 : vector<1x256xf32> to vector<4x256xf32>
      %1442 = arith.mulf %1441, %1440 : vector<4x256xf32>
      %1443 = arith.addf %1410, %1442 : vector<4x256xf32>
      %c221_i32_280 = arith.constant 221 : i32
      %1444 = tpu.dynamic_rotate %50 by %c221_i32_280 dim 1 : vector<4x256xf32>, i32 -> vector<4x256xf32>
      %c221_i32_281 = arith.constant 221 : i32
      %1445 = tpu.dynamic_rotate %56 by %c221_i32_281 dim 1 : vector<4x256xf32>, i32 -> vector<4x256xf32>
      %1446 = vector.broadcast %1421 : f32 to vector<4x256xf32>
      %1447 = arith.mulf %1446, %1444 : vector<4x256xf32>
      %1448 = vector.broadcast %1422 : f32 to vector<4x256xf32>
      %1449 = arith.mulf %1448, %1445 : vector<4x256xf32>
      %1450 = arith.addf %1447, %1449 : vector<4x256xf32>
      %1451 = vector.broadcast %1423 : vector<1x256xf32> to vector<4x256xf32>
      %1452 = arith.mulf %1451, %1450 : vector<4x256xf32>
      %1453 = arith.addf %1420, %1452 : vector<4x256xf32>
      %c42 = arith.constant 42 : index
      %1454 = memref.load %arg2[%c42] : memref<98xf32, #tpu.memory_space<smem>>
      %c91 = arith.constant 91 : index
      %1455 = memref.load %arg2[%c91] : memref<98xf32, #tpu.memory_space<smem>>
      %1456 = arith.mulf %63, %64 : vector<1x256xf32>
      %c211_i32 = arith.constant 211 : i32
      %1457 = tpu.dynamic_rotate %42 by %c211_i32 dim 1 : vector<4x256xf32>, i32 -> vector<4x256xf32>
      %c211_i32_282 = arith.constant 211 : i32
      %1458 = tpu.dynamic_rotate %52 by %c211_i32_282 dim 1 : vector<4x256xf32>, i32 -> vector<4x256xf32>
      %1459 = vector.broadcast %1454 : f32 to vector<4x256xf32>
      %1460 = arith.mulf %1459, %1457 : vector<4x256xf32>
      %1461 = vector.broadcast %1455 : f32 to vector<4x256xf32>
      %1462 = arith.mulf %1461, %1458 : vector<4x256xf32>
      %1463 = arith.addf %1460, %1462 : vector<4x256xf32>
      %1464 = vector.broadcast %1456 : vector<1x256xf32> to vector<4x256xf32>
      %1465 = arith.mulf %1464, %1463 : vector<4x256xf32>
      %1466 = arith.addf %1433, %1465 : vector<4x256xf32>
      %c211_i32_283 = arith.constant 211 : i32
      %1467 = tpu.dynamic_rotate %46 by %c211_i32_283 dim 1 : vector<4x256xf32>, i32 -> vector<4x256xf32>
      %c211_i32_284 = arith.constant 211 : i32
      %1468 = tpu.dynamic_rotate %54 by %c211_i32_284 dim 1 : vector<4x256xf32>, i32 -> vector<4x256xf32>
      %1469 = vector.broadcast %1454 : f32 to vector<4x256xf32>
      %1470 = arith.mulf %1469, %1467 : vector<4x256xf32>
      %1471 = vector.broadcast %1455 : f32 to vector<4x256xf32>
      %1472 = arith.mulf %1471, %1468 : vector<4x256xf32>
      %1473 = arith.addf %1470, %1472 : vector<4x256xf32>
      %1474 = vector.broadcast %1456 : vector<1x256xf32> to vector<4x256xf32>
      %1475 = arith.mulf %1474, %1473 : vector<4x256xf32>
      %1476 = arith.addf %1443, %1475 : vector<4x256xf32>
      %c211_i32_285 = arith.constant 211 : i32
      %1477 = tpu.dynamic_rotate %50 by %c211_i32_285 dim 1 : vector<4x256xf32>, i32 -> vector<4x256xf32>
      %c211_i32_286 = arith.constant 211 : i32
      %1478 = tpu.dynamic_rotate %56 by %c211_i32_286 dim 1 : vector<4x256xf32>, i32 -> vector<4x256xf32>
      %1479 = vector.broadcast %1454 : f32 to vector<4x256xf32>
      %1480 = arith.mulf %1479, %1477 : vector<4x256xf32>
      %1481 = vector.broadcast %1455 : f32 to vector<4x256xf32>
      %1482 = arith.mulf %1481, %1478 : vector<4x256xf32>
      %1483 = arith.addf %1480, %1482 : vector<4x256xf32>
      %1484 = vector.broadcast %1456 : vector<1x256xf32> to vector<4x256xf32>
      %1485 = arith.mulf %1484, %1483 : vector<4x256xf32>
      %1486 = arith.addf %1453, %1485 : vector<4x256xf32>
      %c43 = arith.constant 43 : index
      %1487 = memref.load %arg2[%c43] : memref<98xf32, #tpu.memory_space<smem>>
      %c92 = arith.constant 92 : index
      %1488 = memref.load %arg2[%c92] : memref<98xf32, #tpu.memory_space<smem>>
      %1489 = arith.mulf %63, %65 : vector<1x256xf32>
      %c210_i32 = arith.constant 210 : i32
      %1490 = tpu.dynamic_rotate %42 by %c210_i32 dim 1 : vector<4x256xf32>, i32 -> vector<4x256xf32>
      %c210_i32_287 = arith.constant 210 : i32
      %1491 = tpu.dynamic_rotate %52 by %c210_i32_287 dim 1 : vector<4x256xf32>, i32 -> vector<4x256xf32>
      %1492 = vector.broadcast %1487 : f32 to vector<4x256xf32>
      %1493 = arith.mulf %1492, %1490 : vector<4x256xf32>
      %1494 = vector.broadcast %1488 : f32 to vector<4x256xf32>
      %1495 = arith.mulf %1494, %1491 : vector<4x256xf32>
      %1496 = arith.addf %1493, %1495 : vector<4x256xf32>
      %1497 = vector.broadcast %1489 : vector<1x256xf32> to vector<4x256xf32>
      %1498 = arith.mulf %1497, %1496 : vector<4x256xf32>
      %1499 = arith.addf %1466, %1498 : vector<4x256xf32>
      %c210_i32_288 = arith.constant 210 : i32
      %1500 = tpu.dynamic_rotate %46 by %c210_i32_288 dim 1 : vector<4x256xf32>, i32 -> vector<4x256xf32>
      %c210_i32_289 = arith.constant 210 : i32
      %1501 = tpu.dynamic_rotate %54 by %c210_i32_289 dim 1 : vector<4x256xf32>, i32 -> vector<4x256xf32>
      %1502 = vector.broadcast %1487 : f32 to vector<4x256xf32>
      %1503 = arith.mulf %1502, %1500 : vector<4x256xf32>
      %1504 = vector.broadcast %1488 : f32 to vector<4x256xf32>
      %1505 = arith.mulf %1504, %1501 : vector<4x256xf32>
      %1506 = arith.addf %1503, %1505 : vector<4x256xf32>
      %1507 = vector.broadcast %1489 : vector<1x256xf32> to vector<4x256xf32>
      %1508 = arith.mulf %1507, %1506 : vector<4x256xf32>
      %1509 = arith.addf %1476, %1508 : vector<4x256xf32>
      %c210_i32_290 = arith.constant 210 : i32
      %1510 = tpu.dynamic_rotate %50 by %c210_i32_290 dim 1 : vector<4x256xf32>, i32 -> vector<4x256xf32>
      %c210_i32_291 = arith.constant 210 : i32
      %1511 = tpu.dynamic_rotate %56 by %c210_i32_291 dim 1 : vector<4x256xf32>, i32 -> vector<4x256xf32>
      %1512 = vector.broadcast %1487 : f32 to vector<4x256xf32>
      %1513 = arith.mulf %1512, %1510 : vector<4x256xf32>
      %1514 = vector.broadcast %1488 : f32 to vector<4x256xf32>
      %1515 = arith.mulf %1514, %1511 : vector<4x256xf32>
      %1516 = arith.addf %1513, %1515 : vector<4x256xf32>
      %1517 = vector.broadcast %1489 : vector<1x256xf32> to vector<4x256xf32>
      %1518 = arith.mulf %1517, %1516 : vector<4x256xf32>
      %1519 = arith.addf %1486, %1518 : vector<4x256xf32>
      %c44 = arith.constant 44 : index
      %1520 = memref.load %arg2[%c44] : memref<98xf32, #tpu.memory_space<smem>>
      %c93 = arith.constant 93 : index
      %1521 = memref.load %arg2[%c93] : memref<98xf32, #tpu.memory_space<smem>>
      %1522 = arith.mulf %63, %66 : vector<1x256xf32>
      %c209_i32 = arith.constant 209 : i32
      %1523 = tpu.dynamic_rotate %42 by %c209_i32 dim 1 : vector<4x256xf32>, i32 -> vector<4x256xf32>
      %c209_i32_292 = arith.constant 209 : i32
      %1524 = tpu.dynamic_rotate %52 by %c209_i32_292 dim 1 : vector<4x256xf32>, i32 -> vector<4x256xf32>
      %1525 = vector.broadcast %1520 : f32 to vector<4x256xf32>
      %1526 = arith.mulf %1525, %1523 : vector<4x256xf32>
      %1527 = vector.broadcast %1521 : f32 to vector<4x256xf32>
      %1528 = arith.mulf %1527, %1524 : vector<4x256xf32>
      %1529 = arith.addf %1526, %1528 : vector<4x256xf32>
      %1530 = vector.broadcast %1522 : vector<1x256xf32> to vector<4x256xf32>
      %1531 = arith.mulf %1530, %1529 : vector<4x256xf32>
      %1532 = arith.addf %1499, %1531 : vector<4x256xf32>
      %c209_i32_293 = arith.constant 209 : i32
      %1533 = tpu.dynamic_rotate %46 by %c209_i32_293 dim 1 : vector<4x256xf32>, i32 -> vector<4x256xf32>
      %c209_i32_294 = arith.constant 209 : i32
      %1534 = tpu.dynamic_rotate %54 by %c209_i32_294 dim 1 : vector<4x256xf32>, i32 -> vector<4x256xf32>
      %1535 = vector.broadcast %1520 : f32 to vector<4x256xf32>
      %1536 = arith.mulf %1535, %1533 : vector<4x256xf32>
      %1537 = vector.broadcast %1521 : f32 to vector<4x256xf32>
      %1538 = arith.mulf %1537, %1534 : vector<4x256xf32>
      %1539 = arith.addf %1536, %1538 : vector<4x256xf32>
      %1540 = vector.broadcast %1522 : vector<1x256xf32> to vector<4x256xf32>
      %1541 = arith.mulf %1540, %1539 : vector<4x256xf32>
      %1542 = arith.addf %1509, %1541 : vector<4x256xf32>
      %c209_i32_295 = arith.constant 209 : i32
      %1543 = tpu.dynamic_rotate %50 by %c209_i32_295 dim 1 : vector<4x256xf32>, i32 -> vector<4x256xf32>
      %c209_i32_296 = arith.constant 209 : i32
      %1544 = tpu.dynamic_rotate %56 by %c209_i32_296 dim 1 : vector<4x256xf32>, i32 -> vector<4x256xf32>
      %1545 = vector.broadcast %1520 : f32 to vector<4x256xf32>
      %1546 = arith.mulf %1545, %1543 : vector<4x256xf32>
      %1547 = vector.broadcast %1521 : f32 to vector<4x256xf32>
      %1548 = arith.mulf %1547, %1544 : vector<4x256xf32>
      %1549 = arith.addf %1546, %1548 : vector<4x256xf32>
      %1550 = vector.broadcast %1522 : vector<1x256xf32> to vector<4x256xf32>
      %1551 = arith.mulf %1550, %1549 : vector<4x256xf32>
      %1552 = arith.addf %1519, %1551 : vector<4x256xf32>
      %c45 = arith.constant 45 : index
      %1553 = memref.load %arg2[%c45] : memref<98xf32, #tpu.memory_space<smem>>
      %c94 = arith.constant 94 : index
      %1554 = memref.load %arg2[%c94] : memref<98xf32, #tpu.memory_space<smem>>
      %1555 = arith.mulf %63, %67 : vector<1x256xf32>
      %c208_i32 = arith.constant 208 : i32
      %1556 = tpu.dynamic_rotate %42 by %c208_i32 dim 1 : vector<4x256xf32>, i32 -> vector<4x256xf32>
      %c208_i32_297 = arith.constant 208 : i32
      %1557 = tpu.dynamic_rotate %52 by %c208_i32_297 dim 1 : vector<4x256xf32>, i32 -> vector<4x256xf32>
      %1558 = vector.broadcast %1553 : f32 to vector<4x256xf32>
      %1559 = arith.mulf %1558, %1556 : vector<4x256xf32>
      %1560 = vector.broadcast %1554 : f32 to vector<4x256xf32>
      %1561 = arith.mulf %1560, %1557 : vector<4x256xf32>
      %1562 = arith.addf %1559, %1561 : vector<4x256xf32>
      %1563 = vector.broadcast %1555 : vector<1x256xf32> to vector<4x256xf32>
      %1564 = arith.mulf %1563, %1562 : vector<4x256xf32>
      %1565 = arith.addf %1532, %1564 : vector<4x256xf32>
      %c208_i32_298 = arith.constant 208 : i32
      %1566 = tpu.dynamic_rotate %46 by %c208_i32_298 dim 1 : vector<4x256xf32>, i32 -> vector<4x256xf32>
      %c208_i32_299 = arith.constant 208 : i32
      %1567 = tpu.dynamic_rotate %54 by %c208_i32_299 dim 1 : vector<4x256xf32>, i32 -> vector<4x256xf32>
      %1568 = vector.broadcast %1553 : f32 to vector<4x256xf32>
      %1569 = arith.mulf %1568, %1566 : vector<4x256xf32>
      %1570 = vector.broadcast %1554 : f32 to vector<4x256xf32>
      %1571 = arith.mulf %1570, %1567 : vector<4x256xf32>
      %1572 = arith.addf %1569, %1571 : vector<4x256xf32>
      %1573 = vector.broadcast %1555 : vector<1x256xf32> to vector<4x256xf32>
      %1574 = arith.mulf %1573, %1572 : vector<4x256xf32>
      %1575 = arith.addf %1542, %1574 : vector<4x256xf32>
      %c208_i32_300 = arith.constant 208 : i32
      %1576 = tpu.dynamic_rotate %50 by %c208_i32_300 dim 1 : vector<4x256xf32>, i32 -> vector<4x256xf32>
      %c208_i32_301 = arith.constant 208 : i32
      %1577 = tpu.dynamic_rotate %56 by %c208_i32_301 dim 1 : vector<4x256xf32>, i32 -> vector<4x256xf32>
      %1578 = vector.broadcast %1553 : f32 to vector<4x256xf32>
      %1579 = arith.mulf %1578, %1576 : vector<4x256xf32>
      %1580 = vector.broadcast %1554 : f32 to vector<4x256xf32>
      %1581 = arith.mulf %1580, %1577 : vector<4x256xf32>
      %1582 = arith.addf %1579, %1581 : vector<4x256xf32>
      %1583 = vector.broadcast %1555 : vector<1x256xf32> to vector<4x256xf32>
      %1584 = arith.mulf %1583, %1582 : vector<4x256xf32>
      %1585 = arith.addf %1552, %1584 : vector<4x256xf32>
      %c46 = arith.constant 46 : index
      %1586 = memref.load %arg2[%c46] : memref<98xf32, #tpu.memory_space<smem>>
      %c95 = arith.constant 95 : index
      %1587 = memref.load %arg2[%c95] : memref<98xf32, #tpu.memory_space<smem>>
      %1588 = arith.mulf %63, %68 : vector<1x256xf32>
      %c207_i32 = arith.constant 207 : i32
      %1589 = tpu.dynamic_rotate %42 by %c207_i32 dim 1 : vector<4x256xf32>, i32 -> vector<4x256xf32>
      %c207_i32_302 = arith.constant 207 : i32
      %1590 = tpu.dynamic_rotate %52 by %c207_i32_302 dim 1 : vector<4x256xf32>, i32 -> vector<4x256xf32>
      %1591 = vector.broadcast %1586 : f32 to vector<4x256xf32>
      %1592 = arith.mulf %1591, %1589 : vector<4x256xf32>
      %1593 = vector.broadcast %1587 : f32 to vector<4x256xf32>
      %1594 = arith.mulf %1593, %1590 : vector<4x256xf32>
      %1595 = arith.addf %1592, %1594 : vector<4x256xf32>
      %1596 = vector.broadcast %1588 : vector<1x256xf32> to vector<4x256xf32>
      %1597 = arith.mulf %1596, %1595 : vector<4x256xf32>
      %1598 = arith.addf %1565, %1597 : vector<4x256xf32>
      %c207_i32_303 = arith.constant 207 : i32
      %1599 = tpu.dynamic_rotate %46 by %c207_i32_303 dim 1 : vector<4x256xf32>, i32 -> vector<4x256xf32>
      %c207_i32_304 = arith.constant 207 : i32
      %1600 = tpu.dynamic_rotate %54 by %c207_i32_304 dim 1 : vector<4x256xf32>, i32 -> vector<4x256xf32>
      %1601 = vector.broadcast %1586 : f32 to vector<4x256xf32>
      %1602 = arith.mulf %1601, %1599 : vector<4x256xf32>
      %1603 = vector.broadcast %1587 : f32 to vector<4x256xf32>
      %1604 = arith.mulf %1603, %1600 : vector<4x256xf32>
      %1605 = arith.addf %1602, %1604 : vector<4x256xf32>
      %1606 = vector.broadcast %1588 : vector<1x256xf32> to vector<4x256xf32>
      %1607 = arith.mulf %1606, %1605 : vector<4x256xf32>
      %1608 = arith.addf %1575, %1607 : vector<4x256xf32>
      %c207_i32_305 = arith.constant 207 : i32
      %1609 = tpu.dynamic_rotate %50 by %c207_i32_305 dim 1 : vector<4x256xf32>, i32 -> vector<4x256xf32>
      %c207_i32_306 = arith.constant 207 : i32
      %1610 = tpu.dynamic_rotate %56 by %c207_i32_306 dim 1 : vector<4x256xf32>, i32 -> vector<4x256xf32>
      %1611 = vector.broadcast %1586 : f32 to vector<4x256xf32>
      %1612 = arith.mulf %1611, %1609 : vector<4x256xf32>
      %1613 = vector.broadcast %1587 : f32 to vector<4x256xf32>
      %1614 = arith.mulf %1613, %1610 : vector<4x256xf32>
      %1615 = arith.addf %1612, %1614 : vector<4x256xf32>
      %1616 = vector.broadcast %1588 : vector<1x256xf32> to vector<4x256xf32>
      %1617 = arith.mulf %1616, %1615 : vector<4x256xf32>
      %1618 = arith.addf %1585, %1617 : vector<4x256xf32>
      %c47 = arith.constant 47 : index
      %1619 = memref.load %arg2[%c47] : memref<98xf32, #tpu.memory_space<smem>>
      %c96 = arith.constant 96 : index
      %1620 = memref.load %arg2[%c96] : memref<98xf32, #tpu.memory_space<smem>>
      %1621 = arith.mulf %63, %69 : vector<1x256xf32>
      %c206_i32 = arith.constant 206 : i32
      %1622 = tpu.dynamic_rotate %42 by %c206_i32 dim 1 : vector<4x256xf32>, i32 -> vector<4x256xf32>
      %c206_i32_307 = arith.constant 206 : i32
      %1623 = tpu.dynamic_rotate %52 by %c206_i32_307 dim 1 : vector<4x256xf32>, i32 -> vector<4x256xf32>
      %1624 = vector.broadcast %1619 : f32 to vector<4x256xf32>
      %1625 = arith.mulf %1624, %1622 : vector<4x256xf32>
      %1626 = vector.broadcast %1620 : f32 to vector<4x256xf32>
      %1627 = arith.mulf %1626, %1623 : vector<4x256xf32>
      %1628 = arith.addf %1625, %1627 : vector<4x256xf32>
      %1629 = vector.broadcast %1621 : vector<1x256xf32> to vector<4x256xf32>
      %1630 = arith.mulf %1629, %1628 : vector<4x256xf32>
      %1631 = arith.addf %1598, %1630 : vector<4x256xf32>
      %c206_i32_308 = arith.constant 206 : i32
      %1632 = tpu.dynamic_rotate %46 by %c206_i32_308 dim 1 : vector<4x256xf32>, i32 -> vector<4x256xf32>
      %c206_i32_309 = arith.constant 206 : i32
      %1633 = tpu.dynamic_rotate %54 by %c206_i32_309 dim 1 : vector<4x256xf32>, i32 -> vector<4x256xf32>
      %1634 = vector.broadcast %1619 : f32 to vector<4x256xf32>
      %1635 = arith.mulf %1634, %1632 : vector<4x256xf32>
      %1636 = vector.broadcast %1620 : f32 to vector<4x256xf32>
      %1637 = arith.mulf %1636, %1633 : vector<4x256xf32>
      %1638 = arith.addf %1635, %1637 : vector<4x256xf32>
      %1639 = vector.broadcast %1621 : vector<1x256xf32> to vector<4x256xf32>
      %1640 = arith.mulf %1639, %1638 : vector<4x256xf32>
      %1641 = arith.addf %1608, %1640 : vector<4x256xf32>
      %c206_i32_310 = arith.constant 206 : i32
      %1642 = tpu.dynamic_rotate %50 by %c206_i32_310 dim 1 : vector<4x256xf32>, i32 -> vector<4x256xf32>
      %c206_i32_311 = arith.constant 206 : i32
      %1643 = tpu.dynamic_rotate %56 by %c206_i32_311 dim 1 : vector<4x256xf32>, i32 -> vector<4x256xf32>
      %1644 = vector.broadcast %1619 : f32 to vector<4x256xf32>
      %1645 = arith.mulf %1644, %1642 : vector<4x256xf32>
      %1646 = vector.broadcast %1620 : f32 to vector<4x256xf32>
      %1647 = arith.mulf %1646, %1643 : vector<4x256xf32>
      %1648 = arith.addf %1645, %1647 : vector<4x256xf32>
      %1649 = vector.broadcast %1621 : vector<1x256xf32> to vector<4x256xf32>
      %1650 = arith.mulf %1649, %1648 : vector<4x256xf32>
      %1651 = arith.addf %1618, %1650 : vector<4x256xf32>
      %c48 = arith.constant 48 : index
      %1652 = memref.load %arg2[%c48] : memref<98xf32, #tpu.memory_space<smem>>
      %c97 = arith.constant 97 : index
      %1653 = memref.load %arg2[%c97] : memref<98xf32, #tpu.memory_space<smem>>
      %1654 = arith.mulf %63, %70 : vector<1x256xf32>
      %c205_i32 = arith.constant 205 : i32
      %1655 = tpu.dynamic_rotate %42 by %c205_i32 dim 1 : vector<4x256xf32>, i32 -> vector<4x256xf32>
      %c205_i32_312 = arith.constant 205 : i32
      %1656 = tpu.dynamic_rotate %52 by %c205_i32_312 dim 1 : vector<4x256xf32>, i32 -> vector<4x256xf32>
      %1657 = vector.broadcast %1652 : f32 to vector<4x256xf32>
      %1658 = arith.mulf %1657, %1655 : vector<4x256xf32>
      %1659 = vector.broadcast %1653 : f32 to vector<4x256xf32>
      %1660 = arith.mulf %1659, %1656 : vector<4x256xf32>
      %1661 = arith.addf %1658, %1660 : vector<4x256xf32>
      %1662 = vector.broadcast %1654 : vector<1x256xf32> to vector<4x256xf32>
      %1663 = arith.mulf %1662, %1661 : vector<4x256xf32>
      %1664 = arith.addf %1631, %1663 : vector<4x256xf32>
      %c205_i32_313 = arith.constant 205 : i32
      %1665 = tpu.dynamic_rotate %46 by %c205_i32_313 dim 1 : vector<4x256xf32>, i32 -> vector<4x256xf32>
      %c205_i32_314 = arith.constant 205 : i32
      %1666 = tpu.dynamic_rotate %54 by %c205_i32_314 dim 1 : vector<4x256xf32>, i32 -> vector<4x256xf32>
      %1667 = vector.broadcast %1652 : f32 to vector<4x256xf32>
      %1668 = arith.mulf %1667, %1665 : vector<4x256xf32>
      %1669 = vector.broadcast %1653 : f32 to vector<4x256xf32>
      %1670 = arith.mulf %1669, %1666 : vector<4x256xf32>
      %1671 = arith.addf %1668, %1670 : vector<4x256xf32>
      %1672 = vector.broadcast %1654 : vector<1x256xf32> to vector<4x256xf32>
      %1673 = arith.mulf %1672, %1671 : vector<4x256xf32>
      %1674 = arith.addf %1641, %1673 : vector<4x256xf32>
      %c205_i32_315 = arith.constant 205 : i32
      %1675 = tpu.dynamic_rotate %50 by %c205_i32_315 dim 1 : vector<4x256xf32>, i32 -> vector<4x256xf32>
      %c205_i32_316 = arith.constant 205 : i32
      %1676 = tpu.dynamic_rotate %56 by %c205_i32_316 dim 1 : vector<4x256xf32>, i32 -> vector<4x256xf32>
      %1677 = vector.broadcast %1652 : f32 to vector<4x256xf32>
      %1678 = arith.mulf %1677, %1675 : vector<4x256xf32>
      %1679 = vector.broadcast %1653 : f32 to vector<4x256xf32>
      %1680 = arith.mulf %1679, %1676 : vector<4x256xf32>
      %1681 = arith.addf %1678, %1680 : vector<4x256xf32>
      %1682 = vector.broadcast %1654 : vector<1x256xf32> to vector<4x256xf32>
      %1683 = arith.mulf %1682, %1681 : vector<4x256xf32>
      %1684 = arith.addf %1651, %1683 : vector<4x256xf32>
      %c0_317 = arith.constant 0 : index
      %1685 = memref.load %arg3[%c0_317] : memref<36xf32, #tpu.memory_space<smem>>
      %1686 = vector.broadcast %1685 : f32 to vector<4x256xf32>
      %1687 = arith.mulf %1686, %1664 : vector<4x256xf32>
      %c1_318 = arith.constant 1 : index
      %1688 = memref.load %arg3[%c1_318] : memref<36xf32, #tpu.memory_space<smem>>
      %1689 = vector.broadcast %1688 : f32 to vector<4x256xf32>
      %1690 = arith.mulf %1689, %1674 : vector<4x256xf32>
      %1691 = arith.addf %1687, %1690 : vector<4x256xf32>
      %c2_319 = arith.constant 2 : index
      %1692 = memref.load %arg3[%c2_319] : memref<36xf32, #tpu.memory_space<smem>>
      %1693 = vector.broadcast %1692 : f32 to vector<4x256xf32>
      %1694 = arith.mulf %1693, %1684 : vector<4x256xf32>
      %1695 = arith.addf %1691, %1694 : vector<4x256xf32>
      %cst_320 = arith.constant 0.000000e+00 : f32
      %1696 = vector.broadcast %cst_320 : f32 to vector<4x256xf32>
      %1697 = arith.maximumf %1695, %1696 : vector<4x256xf32>
      %c3_321 = arith.constant 3 : index
      %1698 = memref.load %arg3[%c3_321] : memref<36xf32, #tpu.memory_space<smem>>
      %1699 = vector.broadcast %1698 : f32 to vector<4x256xf32>
      %1700 = arith.mulf %1699, %1664 : vector<4x256xf32>
      %c4_322 = arith.constant 4 : index
      %1701 = memref.load %arg3[%c4_322] : memref<36xf32, #tpu.memory_space<smem>>
      %1702 = vector.broadcast %1701 : f32 to vector<4x256xf32>
      %1703 = arith.mulf %1702, %1674 : vector<4x256xf32>
      %1704 = arith.addf %1700, %1703 : vector<4x256xf32>
      %c5_323 = arith.constant 5 : index
      %1705 = memref.load %arg3[%c5_323] : memref<36xf32, #tpu.memory_space<smem>>
      %1706 = vector.broadcast %1705 : f32 to vector<4x256xf32>
      %1707 = arith.mulf %1706, %1684 : vector<4x256xf32>
      %1708 = arith.addf %1704, %1707 : vector<4x256xf32>
      %cst_324 = arith.constant 0.000000e+00 : f32
      %1709 = vector.broadcast %cst_324 : f32 to vector<4x256xf32>
      %1710 = arith.maximumf %1708, %1709 : vector<4x256xf32>
      %c6_325 = arith.constant 6 : index
      %1711 = memref.load %arg3[%c6_325] : memref<36xf32, #tpu.memory_space<smem>>
      %1712 = vector.broadcast %1711 : f32 to vector<4x256xf32>
      %1713 = arith.mulf %1712, %1664 : vector<4x256xf32>
      %c7_326 = arith.constant 7 : index
      %1714 = memref.load %arg3[%c7_326] : memref<36xf32, #tpu.memory_space<smem>>
      %1715 = vector.broadcast %1714 : f32 to vector<4x256xf32>
      %1716 = arith.mulf %1715, %1674 : vector<4x256xf32>
      %1717 = arith.addf %1713, %1716 : vector<4x256xf32>
      %c8_327 = arith.constant 8 : index
      %1718 = memref.load %arg3[%c8_327] : memref<36xf32, #tpu.memory_space<smem>>
      %1719 = vector.broadcast %1718 : f32 to vector<4x256xf32>
      %1720 = arith.mulf %1719, %1684 : vector<4x256xf32>
      %1721 = arith.addf %1717, %1720 : vector<4x256xf32>
      %cst_328 = arith.constant 0.000000e+00 : f32
      %1722 = vector.broadcast %cst_328 : f32 to vector<4x256xf32>
      %1723 = arith.maximumf %1721, %1722 : vector<4x256xf32>
      %c9_329 = arith.constant 9 : index
      %1724 = memref.load %arg3[%c9_329] : memref<36xf32, #tpu.memory_space<smem>>
      %1725 = vector.broadcast %1724 : f32 to vector<4x256xf32>
      %1726 = arith.mulf %1725, %1664 : vector<4x256xf32>
      %c10_330 = arith.constant 10 : index
      %1727 = memref.load %arg3[%c10_330] : memref<36xf32, #tpu.memory_space<smem>>
      %1728 = vector.broadcast %1727 : f32 to vector<4x256xf32>
      %1729 = arith.mulf %1728, %1674 : vector<4x256xf32>
      %1730 = arith.addf %1726, %1729 : vector<4x256xf32>
      %c11_331 = arith.constant 11 : index
      %1731 = memref.load %arg3[%c11_331] : memref<36xf32, #tpu.memory_space<smem>>
      %1732 = vector.broadcast %1731 : f32 to vector<4x256xf32>
      %1733 = arith.mulf %1732, %1684 : vector<4x256xf32>
      %1734 = arith.addf %1730, %1733 : vector<4x256xf32>
      %cst_332 = arith.constant 0.000000e+00 : f32
      %1735 = vector.broadcast %cst_332 : f32 to vector<4x256xf32>
      %1736 = arith.maximumf %1734, %1735 : vector<4x256xf32>
      %c12_333 = arith.constant 12 : index
      %1737 = memref.load %arg3[%c12_333] : memref<36xf32, #tpu.memory_space<smem>>
      %1738 = vector.broadcast %1737 : f32 to vector<4x256xf32>
      %1739 = arith.mulf %1738, %1664 : vector<4x256xf32>
      %c13_334 = arith.constant 13 : index
      %1740 = memref.load %arg3[%c13_334] : memref<36xf32, #tpu.memory_space<smem>>
      %1741 = vector.broadcast %1740 : f32 to vector<4x256xf32>
      %1742 = arith.mulf %1741, %1674 : vector<4x256xf32>
      %1743 = arith.addf %1739, %1742 : vector<4x256xf32>
      %c14_335 = arith.constant 14 : index
      %1744 = memref.load %arg3[%c14_335] : memref<36xf32, #tpu.memory_space<smem>>
      %1745 = vector.broadcast %1744 : f32 to vector<4x256xf32>
      %1746 = arith.mulf %1745, %1684 : vector<4x256xf32>
      %1747 = arith.addf %1743, %1746 : vector<4x256xf32>
      %cst_336 = arith.constant 0.000000e+00 : f32
      %1748 = vector.broadcast %cst_336 : f32 to vector<4x256xf32>
      %1749 = arith.maximumf %1747, %1748 : vector<4x256xf32>
      %c15_337 = arith.constant 15 : index
      %1750 = memref.load %arg3[%c15_337] : memref<36xf32, #tpu.memory_space<smem>>
      %1751 = vector.broadcast %1750 : f32 to vector<4x256xf32>
      %1752 = arith.mulf %1751, %1664 : vector<4x256xf32>
      %c16_338 = arith.constant 16 : index
      %1753 = memref.load %arg3[%c16_338] : memref<36xf32, #tpu.memory_space<smem>>
      %1754 = vector.broadcast %1753 : f32 to vector<4x256xf32>
      %1755 = arith.mulf %1754, %1674 : vector<4x256xf32>
      %1756 = arith.addf %1752, %1755 : vector<4x256xf32>
      %c17_339 = arith.constant 17 : index
      %1757 = memref.load %arg3[%c17_339] : memref<36xf32, #tpu.memory_space<smem>>
      %1758 = vector.broadcast %1757 : f32 to vector<4x256xf32>
      %1759 = arith.mulf %1758, %1684 : vector<4x256xf32>
      %1760 = arith.addf %1756, %1759 : vector<4x256xf32>
      %cst_340 = arith.constant 0.000000e+00 : f32
      %1761 = vector.broadcast %cst_340 : f32 to vector<4x256xf32>
      %1762 = arith.maximumf %1760, %1761 : vector<4x256xf32>
      %c18_341 = arith.constant 18 : index
      %1763 = memref.load %arg3[%c18_341] : memref<36xf32, #tpu.memory_space<smem>>
      %1764 = vector.broadcast %1763 : f32 to vector<4x256xf32>
      %1765 = arith.mulf %1764, %1664 : vector<4x256xf32>
      %c19_342 = arith.constant 19 : index
      %1766 = memref.load %arg3[%c19_342] : memref<36xf32, #tpu.memory_space<smem>>
      %1767 = vector.broadcast %1766 : f32 to vector<4x256xf32>
      %1768 = arith.mulf %1767, %1674 : vector<4x256xf32>
      %1769 = arith.addf %1765, %1768 : vector<4x256xf32>
      %c20_343 = arith.constant 20 : index
      %1770 = memref.load %arg3[%c20_343] : memref<36xf32, #tpu.memory_space<smem>>
      %1771 = vector.broadcast %1770 : f32 to vector<4x256xf32>
      %1772 = arith.mulf %1771, %1684 : vector<4x256xf32>
      %1773 = arith.addf %1769, %1772 : vector<4x256xf32>
      %cst_344 = arith.constant 0.000000e+00 : f32
      %1774 = vector.broadcast %cst_344 : f32 to vector<4x256xf32>
      %1775 = arith.maximumf %1773, %1774 : vector<4x256xf32>
      %c21_345 = arith.constant 21 : index
      %1776 = memref.load %arg3[%c21_345] : memref<36xf32, #tpu.memory_space<smem>>
      %1777 = vector.broadcast %1776 : f32 to vector<4x256xf32>
      %1778 = arith.mulf %1777, %1664 : vector<4x256xf32>
      %c22_346 = arith.constant 22 : index
      %1779 = memref.load %arg3[%c22_346] : memref<36xf32, #tpu.memory_space<smem>>
      %1780 = vector.broadcast %1779 : f32 to vector<4x256xf32>
      %1781 = arith.mulf %1780, %1674 : vector<4x256xf32>
      %1782 = arith.addf %1778, %1781 : vector<4x256xf32>
      %c23_347 = arith.constant 23 : index
      %1783 = memref.load %arg3[%c23_347] : memref<36xf32, #tpu.memory_space<smem>>
      %1784 = vector.broadcast %1783 : f32 to vector<4x256xf32>
      %1785 = arith.mulf %1784, %1684 : vector<4x256xf32>
      %1786 = arith.addf %1782, %1785 : vector<4x256xf32>
      %cst_348 = arith.constant 0.000000e+00 : f32
      %1787 = vector.broadcast %cst_348 : f32 to vector<4x256xf32>
      %1788 = arith.maximumf %1786, %1787 : vector<4x256xf32>
      %c24_349 = arith.constant 24 : index
      %1789 = memref.load %arg3[%c24_349] : memref<36xf32, #tpu.memory_space<smem>>
      %1790 = vector.broadcast %1789 : f32 to vector<4x256xf32>
      %1791 = arith.mulf %1790, %1664 : vector<4x256xf32>
      %c25_350 = arith.constant 25 : index
      %1792 = memref.load %arg3[%c25_350] : memref<36xf32, #tpu.memory_space<smem>>
      %1793 = vector.broadcast %1792 : f32 to vector<4x256xf32>
      %1794 = arith.mulf %1793, %1674 : vector<4x256xf32>
      %1795 = arith.addf %1791, %1794 : vector<4x256xf32>
      %c26_351 = arith.constant 26 : index
      %1796 = memref.load %arg3[%c26_351] : memref<36xf32, #tpu.memory_space<smem>>
      %1797 = vector.broadcast %1796 : f32 to vector<4x256xf32>
      %1798 = arith.mulf %1797, %1684 : vector<4x256xf32>
      %1799 = arith.addf %1795, %1798 : vector<4x256xf32>
      %cst_352 = arith.constant 0.000000e+00 : f32
      %1800 = vector.broadcast %cst_352 : f32 to vector<4x256xf32>
      %1801 = arith.maximumf %1799, %1800 : vector<4x256xf32>
      %c27_353 = arith.constant 27 : index
      %1802 = memref.load %arg3[%c27_353] : memref<36xf32, #tpu.memory_space<smem>>
      %1803 = vector.broadcast %1802 : f32 to vector<4x256xf32>
      %1804 = arith.mulf %1803, %1664 : vector<4x256xf32>
      %c28_354 = arith.constant 28 : index
      %1805 = memref.load %arg3[%c28_354] : memref<36xf32, #tpu.memory_space<smem>>
      %1806 = vector.broadcast %1805 : f32 to vector<4x256xf32>
      %1807 = arith.mulf %1806, %1674 : vector<4x256xf32>
      %1808 = arith.addf %1804, %1807 : vector<4x256xf32>
      %c29_355 = arith.constant 29 : index
      %1809 = memref.load %arg3[%c29_355] : memref<36xf32, #tpu.memory_space<smem>>
      %1810 = vector.broadcast %1809 : f32 to vector<4x256xf32>
      %1811 = arith.mulf %1810, %1684 : vector<4x256xf32>
      %1812 = arith.addf %1808, %1811 : vector<4x256xf32>
      %cst_356 = arith.constant 0.000000e+00 : f32
      %1813 = vector.broadcast %cst_356 : f32 to vector<4x256xf32>
      %1814 = arith.maximumf %1812, %1813 : vector<4x256xf32>
      %c30_357 = arith.constant 30 : index
      %1815 = memref.load %arg3[%c30_357] : memref<36xf32, #tpu.memory_space<smem>>
      %1816 = vector.broadcast %1815 : f32 to vector<4x256xf32>
      %1817 = arith.mulf %1816, %1664 : vector<4x256xf32>
      %c31_358 = arith.constant 31 : index
      %1818 = memref.load %arg3[%c31_358] : memref<36xf32, #tpu.memory_space<smem>>
      %1819 = vector.broadcast %1818 : f32 to vector<4x256xf32>
      %1820 = arith.mulf %1819, %1674 : vector<4x256xf32>
      %1821 = arith.addf %1817, %1820 : vector<4x256xf32>
      %c32_359 = arith.constant 32 : index
      %1822 = memref.load %arg3[%c32_359] : memref<36xf32, #tpu.memory_space<smem>>
      %1823 = vector.broadcast %1822 : f32 to vector<4x256xf32>
      %1824 = arith.mulf %1823, %1684 : vector<4x256xf32>
      %1825 = arith.addf %1821, %1824 : vector<4x256xf32>
      %cst_360 = arith.constant 0.000000e+00 : f32
      %1826 = vector.broadcast %cst_360 : f32 to vector<4x256xf32>
      %1827 = arith.maximumf %1825, %1826 : vector<4x256xf32>
      %c33_361 = arith.constant 33 : index
      %1828 = memref.load %arg3[%c33_361] : memref<36xf32, #tpu.memory_space<smem>>
      %1829 = vector.broadcast %1828 : f32 to vector<4x256xf32>
      %1830 = arith.mulf %1829, %1664 : vector<4x256xf32>
      %c34_362 = arith.constant 34 : index
      %1831 = memref.load %arg3[%c34_362] : memref<36xf32, #tpu.memory_space<smem>>
      %1832 = vector.broadcast %1831 : f32 to vector<4x256xf32>
      %1833 = arith.mulf %1832, %1674 : vector<4x256xf32>
      %1834 = arith.addf %1830, %1833 : vector<4x256xf32>
      %c35_363 = arith.constant 35 : index
      %1835 = memref.load %arg3[%c35_363] : memref<36xf32, #tpu.memory_space<smem>>
      %1836 = vector.broadcast %1835 : f32 to vector<4x256xf32>
      %1837 = arith.mulf %1836, %1684 : vector<4x256xf32>
      %1838 = arith.addf %1834, %1837 : vector<4x256xf32>
      %cst_364 = arith.constant 0.000000e+00 : f32
      %1839 = vector.broadcast %cst_364 : f32 to vector<4x256xf32>
      %1840 = arith.maximumf %1838, %1839 : vector<4x256xf32>
      %c0_365 = arith.constant 0 : index
      %1841 = memref.load %arg4[%c0_365] : memref<36xf32, #tpu.memory_space<smem>>
      %1842 = vector.broadcast %1841 : f32 to vector<4x256xf32>
      %1843 = arith.mulf %1842, %1697 : vector<4x256xf32>
      %c1_366 = arith.constant 1 : index
      %1844 = memref.load %arg4[%c1_366] : memref<36xf32, #tpu.memory_space<smem>>
      %1845 = vector.broadcast %1844 : f32 to vector<4x256xf32>
      %1846 = arith.mulf %1845, %1710 : vector<4x256xf32>
      %1847 = arith.addf %1843, %1846 : vector<4x256xf32>
      %c2_367 = arith.constant 2 : index
      %1848 = memref.load %arg4[%c2_367] : memref<36xf32, #tpu.memory_space<smem>>
      %1849 = vector.broadcast %1848 : f32 to vector<4x256xf32>
      %1850 = arith.mulf %1849, %1723 : vector<4x256xf32>
      %1851 = arith.addf %1847, %1850 : vector<4x256xf32>
      %c3_368 = arith.constant 3 : index
      %1852 = memref.load %arg4[%c3_368] : memref<36xf32, #tpu.memory_space<smem>>
      %1853 = vector.broadcast %1852 : f32 to vector<4x256xf32>
      %1854 = arith.mulf %1853, %1736 : vector<4x256xf32>
      %1855 = arith.addf %1851, %1854 : vector<4x256xf32>
      %c4_369 = arith.constant 4 : index
      %1856 = memref.load %arg4[%c4_369] : memref<36xf32, #tpu.memory_space<smem>>
      %1857 = vector.broadcast %1856 : f32 to vector<4x256xf32>
      %1858 = arith.mulf %1857, %1749 : vector<4x256xf32>
      %1859 = arith.addf %1855, %1858 : vector<4x256xf32>
      %c5_370 = arith.constant 5 : index
      %1860 = memref.load %arg4[%c5_370] : memref<36xf32, #tpu.memory_space<smem>>
      %1861 = vector.broadcast %1860 : f32 to vector<4x256xf32>
      %1862 = arith.mulf %1861, %1762 : vector<4x256xf32>
      %1863 = arith.addf %1859, %1862 : vector<4x256xf32>
      %c6_371 = arith.constant 6 : index
      %1864 = memref.load %arg4[%c6_371] : memref<36xf32, #tpu.memory_space<smem>>
      %1865 = vector.broadcast %1864 : f32 to vector<4x256xf32>
      %1866 = arith.mulf %1865, %1775 : vector<4x256xf32>
      %1867 = arith.addf %1863, %1866 : vector<4x256xf32>
      %c7_372 = arith.constant 7 : index
      %1868 = memref.load %arg4[%c7_372] : memref<36xf32, #tpu.memory_space<smem>>
      %1869 = vector.broadcast %1868 : f32 to vector<4x256xf32>
      %1870 = arith.mulf %1869, %1788 : vector<4x256xf32>
      %1871 = arith.addf %1867, %1870 : vector<4x256xf32>
      %c8_373 = arith.constant 8 : index
      %1872 = memref.load %arg4[%c8_373] : memref<36xf32, #tpu.memory_space<smem>>
      %1873 = vector.broadcast %1872 : f32 to vector<4x256xf32>
      %1874 = arith.mulf %1873, %1801 : vector<4x256xf32>
      %1875 = arith.addf %1871, %1874 : vector<4x256xf32>
      %c9_374 = arith.constant 9 : index
      %1876 = memref.load %arg4[%c9_374] : memref<36xf32, #tpu.memory_space<smem>>
      %1877 = vector.broadcast %1876 : f32 to vector<4x256xf32>
      %1878 = arith.mulf %1877, %1814 : vector<4x256xf32>
      %1879 = arith.addf %1875, %1878 : vector<4x256xf32>
      %c10_375 = arith.constant 10 : index
      %1880 = memref.load %arg4[%c10_375] : memref<36xf32, #tpu.memory_space<smem>>
      %1881 = vector.broadcast %1880 : f32 to vector<4x256xf32>
      %1882 = arith.mulf %1881, %1827 : vector<4x256xf32>
      %1883 = arith.addf %1879, %1882 : vector<4x256xf32>
      %c11_376 = arith.constant 11 : index
      %1884 = memref.load %arg4[%c11_376] : memref<36xf32, #tpu.memory_space<smem>>
      %1885 = vector.broadcast %1884 : f32 to vector<4x256xf32>
      %1886 = arith.mulf %1885, %1840 : vector<4x256xf32>
      %1887 = arith.addf %1883, %1886 : vector<4x256xf32>
      %c12_377 = arith.constant 12 : index
      %1888 = memref.load %arg4[%c12_377] : memref<36xf32, #tpu.memory_space<smem>>
      %1889 = vector.broadcast %1888 : f32 to vector<4x256xf32>
      %1890 = arith.mulf %1889, %1697 : vector<4x256xf32>
      %c13_378 = arith.constant 13 : index
      %1891 = memref.load %arg4[%c13_378] : memref<36xf32, #tpu.memory_space<smem>>
      %1892 = vector.broadcast %1891 : f32 to vector<4x256xf32>
      %1893 = arith.mulf %1892, %1710 : vector<4x256xf32>
      %1894 = arith.addf %1890, %1893 : vector<4x256xf32>
      %c14_379 = arith.constant 14 : index
      %1895 = memref.load %arg4[%c14_379] : memref<36xf32, #tpu.memory_space<smem>>
      %1896 = vector.broadcast %1895 : f32 to vector<4x256xf32>
      %1897 = arith.mulf %1896, %1723 : vector<4x256xf32>
      %1898 = arith.addf %1894, %1897 : vector<4x256xf32>
      %c15_380 = arith.constant 15 : index
      %1899 = memref.load %arg4[%c15_380] : memref<36xf32, #tpu.memory_space<smem>>
      %1900 = vector.broadcast %1899 : f32 to vector<4x256xf32>
      %1901 = arith.mulf %1900, %1736 : vector<4x256xf32>
      %1902 = arith.addf %1898, %1901 : vector<4x256xf32>
      %c16_381 = arith.constant 16 : index
      %1903 = memref.load %arg4[%c16_381] : memref<36xf32, #tpu.memory_space<smem>>
      %1904 = vector.broadcast %1903 : f32 to vector<4x256xf32>
      %1905 = arith.mulf %1904, %1749 : vector<4x256xf32>
      %1906 = arith.addf %1902, %1905 : vector<4x256xf32>
      %c17_382 = arith.constant 17 : index
      %1907 = memref.load %arg4[%c17_382] : memref<36xf32, #tpu.memory_space<smem>>
      %1908 = vector.broadcast %1907 : f32 to vector<4x256xf32>
      %1909 = arith.mulf %1908, %1762 : vector<4x256xf32>
      %1910 = arith.addf %1906, %1909 : vector<4x256xf32>
      %c18_383 = arith.constant 18 : index
      %1911 = memref.load %arg4[%c18_383] : memref<36xf32, #tpu.memory_space<smem>>
      %1912 = vector.broadcast %1911 : f32 to vector<4x256xf32>
      %1913 = arith.mulf %1912, %1775 : vector<4x256xf32>
      %1914 = arith.addf %1910, %1913 : vector<4x256xf32>
      %c19_384 = arith.constant 19 : index
      %1915 = memref.load %arg4[%c19_384] : memref<36xf32, #tpu.memory_space<smem>>
      %1916 = vector.broadcast %1915 : f32 to vector<4x256xf32>
      %1917 = arith.mulf %1916, %1788 : vector<4x256xf32>
      %1918 = arith.addf %1914, %1917 : vector<4x256xf32>
      %c20_385 = arith.constant 20 : index
      %1919 = memref.load %arg4[%c20_385] : memref<36xf32, #tpu.memory_space<smem>>
      %1920 = vector.broadcast %1919 : f32 to vector<4x256xf32>
      %1921 = arith.mulf %1920, %1801 : vector<4x256xf32>
      %1922 = arith.addf %1918, %1921 : vector<4x256xf32>
      %c21_386 = arith.constant 21 : index
      %1923 = memref.load %arg4[%c21_386] : memref<36xf32, #tpu.memory_space<smem>>
      %1924 = vector.broadcast %1923 : f32 to vector<4x256xf32>
      %1925 = arith.mulf %1924, %1814 : vector<4x256xf32>
      %1926 = arith.addf %1922, %1925 : vector<4x256xf32>
      %c22_387 = arith.constant 22 : index
      %1927 = memref.load %arg4[%c22_387] : memref<36xf32, #tpu.memory_space<smem>>
      %1928 = vector.broadcast %1927 : f32 to vector<4x256xf32>
      %1929 = arith.mulf %1928, %1827 : vector<4x256xf32>
      %1930 = arith.addf %1926, %1929 : vector<4x256xf32>
      %c23_388 = arith.constant 23 : index
      %1931 = memref.load %arg4[%c23_388] : memref<36xf32, #tpu.memory_space<smem>>
      %1932 = vector.broadcast %1931 : f32 to vector<4x256xf32>
      %1933 = arith.mulf %1932, %1840 : vector<4x256xf32>
      %1934 = arith.addf %1930, %1933 : vector<4x256xf32>
      %c24_389 = arith.constant 24 : index
      %1935 = memref.load %arg4[%c24_389] : memref<36xf32, #tpu.memory_space<smem>>
      %1936 = vector.broadcast %1935 : f32 to vector<4x256xf32>
      %1937 = arith.mulf %1936, %1697 : vector<4x256xf32>
      %c25_390 = arith.constant 25 : index
      %1938 = memref.load %arg4[%c25_390] : memref<36xf32, #tpu.memory_space<smem>>
      %1939 = vector.broadcast %1938 : f32 to vector<4x256xf32>
      %1940 = arith.mulf %1939, %1710 : vector<4x256xf32>
      %1941 = arith.addf %1937, %1940 : vector<4x256xf32>
      %c26_391 = arith.constant 26 : index
      %1942 = memref.load %arg4[%c26_391] : memref<36xf32, #tpu.memory_space<smem>>
      %1943 = vector.broadcast %1942 : f32 to vector<4x256xf32>
      %1944 = arith.mulf %1943, %1723 : vector<4x256xf32>
      %1945 = arith.addf %1941, %1944 : vector<4x256xf32>
      %c27_392 = arith.constant 27 : index
      %1946 = memref.load %arg4[%c27_392] : memref<36xf32, #tpu.memory_space<smem>>
      %1947 = vector.broadcast %1946 : f32 to vector<4x256xf32>
      %1948 = arith.mulf %1947, %1736 : vector<4x256xf32>
      %1949 = arith.addf %1945, %1948 : vector<4x256xf32>
      %c28_393 = arith.constant 28 : index
      %1950 = memref.load %arg4[%c28_393] : memref<36xf32, #tpu.memory_space<smem>>
      %1951 = vector.broadcast %1950 : f32 to vector<4x256xf32>
      %1952 = arith.mulf %1951, %1749 : vector<4x256xf32>
      %1953 = arith.addf %1949, %1952 : vector<4x256xf32>
      %c29_394 = arith.constant 29 : index
      %1954 = memref.load %arg4[%c29_394] : memref<36xf32, #tpu.memory_space<smem>>
      %1955 = vector.broadcast %1954 : f32 to vector<4x256xf32>
      %1956 = arith.mulf %1955, %1762 : vector<4x256xf32>
      %1957 = arith.addf %1953, %1956 : vector<4x256xf32>
      %c30_395 = arith.constant 30 : index
      %1958 = memref.load %arg4[%c30_395] : memref<36xf32, #tpu.memory_space<smem>>
      %1959 = vector.broadcast %1958 : f32 to vector<4x256xf32>
      %1960 = arith.mulf %1959, %1775 : vector<4x256xf32>
      %1961 = arith.addf %1957, %1960 : vector<4x256xf32>
      %c31_396 = arith.constant 31 : index
      %1962 = memref.load %arg4[%c31_396] : memref<36xf32, #tpu.memory_space<smem>>
      %1963 = vector.broadcast %1962 : f32 to vector<4x256xf32>
      %1964 = arith.mulf %1963, %1788 : vector<4x256xf32>
      %1965 = arith.addf %1961, %1964 : vector<4x256xf32>
      %c32_397 = arith.constant 32 : index
      %1966 = memref.load %arg4[%c32_397] : memref<36xf32, #tpu.memory_space<smem>>
      %1967 = vector.broadcast %1966 : f32 to vector<4x256xf32>
      %1968 = arith.mulf %1967, %1801 : vector<4x256xf32>
      %1969 = arith.addf %1965, %1968 : vector<4x256xf32>
      %c33_398 = arith.constant 33 : index
      %1970 = memref.load %arg4[%c33_398] : memref<36xf32, #tpu.memory_space<smem>>
      %1971 = vector.broadcast %1970 : f32 to vector<4x256xf32>
      %1972 = arith.mulf %1971, %1814 : vector<4x256xf32>
      %1973 = arith.addf %1969, %1972 : vector<4x256xf32>
      %c34_399 = arith.constant 34 : index
      %1974 = memref.load %arg4[%c34_399] : memref<36xf32, #tpu.memory_space<smem>>
      %1975 = vector.broadcast %1974 : f32 to vector<4x256xf32>
      %1976 = arith.mulf %1975, %1827 : vector<4x256xf32>
      %1977 = arith.addf %1973, %1976 : vector<4x256xf32>
      %c35_400 = arith.constant 35 : index
      %1978 = memref.load %arg4[%c35_400] : memref<36xf32, #tpu.memory_space<smem>>
      %1979 = vector.broadcast %1978 : f32 to vector<4x256xf32>
      %1980 = arith.mulf %1979, %1840 : vector<4x256xf32>
      %1981 = arith.addf %1977, %1980 : vector<4x256xf32>
      %1982 = arith.maximumf %1887, %1934 : vector<4x256xf32>
      %1983 = arith.maximumf %1982, %1981 : vector<4x256xf32>
      %1984 = arith.subf %1887, %1983 : vector<4x256xf32>
      %1985 = math.exp %1984 : vector<4x256xf32>
      %1986 = arith.subf %1934, %1983 : vector<4x256xf32>
      %1987 = math.exp %1986 : vector<4x256xf32>
      %1988 = arith.subf %1981, %1983 : vector<4x256xf32>
      %1989 = math.exp %1988 : vector<4x256xf32>
      %1990 = arith.addf %1985, %1987 : vector<4x256xf32>
      %1991 = arith.addf %1990, %1989 : vector<4x256xf32>
      %1992 = tpu.reciprocal %1991 {approx = true} : vector<4x256xf32> -> vector<4x256xf32>
      %1993 = arith.mulf %1985, %1992 : vector<4x256xf32>
      %c0_401 = arith.constant 0 : index
      %c0_402 = arith.constant 0 : index
      %c0_403 = arith.constant 0 : index
      %1994 = vector.load %arg10[%c0_401, %c0_402, %c0_403] : memref<3x4x256xf32, #tpu.memory_space<vmem>>, vector<1x4x256xf32>
      %1995 = vector.shape_cast %1994 : vector<1x4x256xf32> to vector<4x256xf32>
      %1996 = vector.shape_cast %1993 : vector<4x256xf32> to vector<1x4x256xf32>
      tpu.vector_store %arg10[%c0_401, %c0_402, %c0_403], %1996 {strides = array<i32>} : memref<3x4x256xf32, #tpu.memory_space<vmem>>, vector<1x4x256xf32>,
      %1997 = arith.mulf %1987, %1992 : vector<4x256xf32>
      %c1_404 = arith.constant 1 : index
      %c0_405 = arith.constant 0 : index
      %c0_406 = arith.constant 0 : index
      %1998 = vector.load %arg10[%c1_404, %c0_405, %c0_406] : memref<3x4x256xf32, #tpu.memory_space<vmem>>, vector<1x4x256xf32>
      %1999 = vector.shape_cast %1998 : vector<1x4x256xf32> to vector<4x256xf32>
      %2000 = vector.shape_cast %1997 : vector<4x256xf32> to vector<1x4x256xf32>
      tpu.vector_store %arg10[%c1_404, %c0_405, %c0_406], %2000 {strides = array<i32>} : memref<3x4x256xf32, #tpu.memory_space<vmem>>, vector<1x4x256xf32>,
      %2001 = arith.mulf %1989, %1992 : vector<4x256xf32>
      %c2_407 = arith.constant 2 : index
      %c0_408 = arith.constant 0 : index
      %c0_409 = arith.constant 0 : index
      %2002 = vector.load %arg10[%c2_407, %c0_408, %c0_409] : memref<3x4x256xf32, #tpu.memory_space<vmem>>, vector<1x4x256xf32>
      %2003 = vector.shape_cast %2002 : vector<1x4x256xf32> to vector<4x256xf32>
      %2004 = vector.shape_cast %2001 : vector<4x256xf32> to vector<1x4x256xf32>
      tpu.vector_store %arg10[%c2_407, %c0_408, %c0_409], %2004 {strides = array<i32>} : memref<3x4x256xf32, #tpu.memory_space<vmem>>, vector<1x4x256xf32>,
    } else {
    }
    return
  }
  func.func @transform_0(%arg0: i32, %arg1: i32) -> i32 {
    %c0_i32 = arith.constant 0 : i32
    %c0_i32_0 = arith.constant 0 : i32
    return %c0_i32 : i32
  }
  func.func @transform_1(%arg0: i32, %arg1: i32) -> i32 {
    %c0_i32 = arith.constant 0 : i32
    %c0_i32_0 = arith.constant 0 : i32
    return %c0_i32 : i32
  }
  func.func @transform_2(%arg0: i32, %arg1: i32) -> i32 {
    %c0_i32 = arith.constant 0 : i32
    %c0_i32_0 = arith.constant 0 : i32
    return %c0_i32 : i32
  }
  func.func @transform_3(%arg0: i32, %arg1: i32) -> (i32, i32) {
    %c0_i32 = arith.constant 0 : i32
    %c0_i32_0 = arith.constant 0 : i32
    %c0_i32_1 = arith.constant 0 : i32
    return %c0_i32, %c0_i32_0 : i32, i32
  }
  func.func @transform_4(%arg0: i32, %arg1: i32) -> (i32, i32) {
    %c0_i32 = arith.constant 0 : i32
    %c0_i32_0 = arith.constant 0 : i32
    %c0_i32_1 = arith.constant 0 : i32
    return %c0_i32, %c0_i32_0 : i32, i32
  }
  func.func @transform_5(%arg0: i32, %arg1: i32) -> (i32, i32) {
    %c0_i32 = arith.constant 0 : i32
    return %arg0, %arg1 : i32, i32
  }
  func.func @transform_6(%arg0: i32, %arg1: i32) -> (i32, i32) {
    %c0_i32 = arith.constant 0 : i32
    return %arg0, %arg1 : i32, i32
  }
  func.func @transform_7(%arg0: i32, %arg1: i32) -> (i32, i32) {
    %c0_i32 = arith.constant 0 : i32
    return %arg0, %arg1 : i32, i32
  }
  func.func @transform_8(%arg0: i32, %arg1: i32) -> (i32, i32, i32) {
    %c0_i32 = arith.constant 0 : i32
    %c0_i32_0 = arith.constant 0 : i32
    %c0_i32_1 = arith.constant 0 : i32
    return %c0_i32, %arg0, %c0_i32_0 : i32, i32, i32
  }
}

</mosaic_0001>

<llo_original>
// kernel: tpu_custom_call.1
$region0: #{tpu_custom_call.1}
  #allocation0 [shape = 'u32[]', space=smem, size = 0x4, offset = 0x4, fixed_abs, tag = 'smem constant byte address 0x4 - core index']
  #allocation1 [shape = 'u32[72,128]{1,0:T(1,128)}', space=vmem, size = 0x9000, scoped, tag = 'internal scratch']
  #allocation2 [shape = 'f32[3,4,256]{2,1,0:T(4,128)}', space=vmem, size = 0x3000, scoped, tag = 'scratch operand']
  #allocation3 [shape = 'f32[3,4,256]{2,1,0:T(4,128)}', space=vmem, size = 0x3000, scoped, tag = 'scratch operand']
  %s0 = inlined_call_operand.hbm [shape: f32[98], index: 0, kind: input, shape index: {}]
  %s1 = inlined_call_operand.hbm [shape: f32[36], index: 1, kind: input, shape index: {}]
  %s2 = inlined_call_operand.vmem [shape: f32[36], index: 2, kind: input, shape index: {}]
  %s3 = inlined_call_operand.hbm [shape: f32[7,256], index: 3, kind: input, shape index: {}]
  %s4 = inlined_call_operand.hbm [shape: f32[7,256], index: 4, kind: input, shape index: {}]
  %s5 = inlined_call_operand.hbm [shape: f32[4,1024], index: 5, kind: input, shape index: {}]
  %s6 = inlined_call_operand.hbm [shape: f32[4,1024], index: 6, kind: input, shape index: {}]
  %s7 = inlined_call_operand.hbm [shape: f32[4,1024], index: 7, kind: input, shape index: {}]
  %s8 = inlined_call_operand.hbm [shape: f32[3,4,256], index: 8, kind: output, shape index: {}]
  %s9 = sld [smem:[#allocation0]]
  $region86: #{tpu_custom_call.1} parent=0
    _
  %s11 = ssub.s32 1, %s9
  %s12 = scalar_select 0, %s11, %s9
  $region1: #{tpu_custom_call.1} parent=0
    #allocation4 [shape = 'u8[512]{0}', space=smem, size = 0x200, scoped, tag = 'input window, operand 0, single buffered']
    #allocation5 [shape = 's32[1]{0}', space=sflag, size = 0x4, scoped, tag = 'scoped memory for tpu_custom_call.1']
    #allocation6 [shape = 's32[1]{0}', space=sflag, size = 0x4, scoped, tag = 'scoped memory for tpu_custom_call.1']
    #allocation7 [shape = 's32[1]{0}', space=sflag, size = 0x4, scoped, tag = 'scoped memory for tpu_custom_call.1']
    #allocation8 [shape = 's32[1]{0}', space=sflag, size = 0x4, scoped, tag = 'scoped memory for tpu_custom_call.1']
    #allocation9 [shape = 'u8[512]{0}', space=smem, size = 0x200, scoped, tag = 'input window, operand 1, single buffered']
    #allocation10 [shape = 's32[1]{0}', space=sflag, size = 0x4, scoped, tag = 'scoped memory for tpu_custom_call.1']
    #allocation11 [shape = 'u8[512]{0}', space=smem, size = 0x200, scoped, tag = 'input window, operand 2, single buffered']
    #allocation12 [shape = 'u8[8192]{0}', space=vmem, size = 0x2000, scoped, tag = 'input window, operand 3, single buffered']
    #allocation13 [shape = 'u8[8192]{0}', space=vmem, size = 0x2000, scoped, tag = 'input window, operand 4, single buffered']
    #allocation14 [shape = 's32[1]{0}', space=sflag, size = 0x4, scoped, tag = 'scoped memory for tpu_custom_call.1']
    #allocation15 [shape = 'u8[16384]{0}', space=vmem, size = 0x4000, scoped, tag = 'input window, operand 5, single buffered']
    #allocation16 [shape = 'u8[16384]{0}', space=vmem, size = 0x4000, scoped, tag = 'input window, operand 6, single buffered']
    #allocation17 [shape = 's32[1]{0}', space=sflag, size = 0x4, scoped, tag = 'scoped memory for tpu_custom_call.1']
    #allocation18 [shape = 'u8[16384]{0}', space=vmem, size = 0x4000, scoped, tag = 'input window, operand 7, single buffered']
    #allocation19 [shape = 'u8[12288]{0}', space=vmem, size = 0x3000, scoped, tag = 'output window, operand 0, single buffered']
    %13 = vsyncpa [#allocation7], 0
    %14 = vsyncpa [#allocation10], 0
    %15 = vsyncpa [#allocation8], 0
    %16 = vsyncpa [#allocation5], 0
    %17 = vsyncpa [#allocation14], 0
    %18 = vsyncpa [#allocation17], 0
    %19 = vsyncpa [#allocation6], 0
    // Predicated region
    $region2: #{tpu_custom_call.1} parent=1 // pred_check
      _
    $region3: #{tpu_custom_call.1} parent=1 // pred_check_branch
      %21 = sbr.rel (0) target = $region5
    $region4: #{tpu_custom_call.1} parent=1 // pred_region
      %23 = vsyncadd [#allocation7], 0
      %s25 = sshll.u32 %s0, 4
      %s26 = int_to_ptr.hbm [resolvable:$true] %s25
      %28 = dma.hbm_to_smem %s26, 16, [#allocation4], [#allocation7]
    $region5: #{tpu_custom_call.1} parent=1 // pred_fallthru
      _
    // Predicated region
    $region6: #{tpu_custom_call.1} parent=1 // pred_check
      _
    $region7: #{tpu_custom_call.1} parent=1 // pred_check_branch
      %30 = sbr.rel (0) target = $region9
    $region8: #{tpu_custom_call.1} parent=1 // pred_region
      %32 = vsyncadd [#allocation10], 0
      %s34 = sshll.u32 %s1, 4
      %s35 = int_to_ptr.hbm [resolvable:$true] %s34
      %37 = dma.hbm_to_smem %s35, 16, [#allocation9], [#allocation10]
    $region9: #{tpu_custom_call.1} parent=1 // pred_fallthru
      _
    // Predicated region
    $region10: #{tpu_custom_call.1} parent=1 // pred_check
      _
    $region11: #{tpu_custom_call.1} parent=1 // pred_check_branch
      %39 = sbr.rel (0) target = $region13
    $region12: #{tpu_custom_call.1} parent=1 // pred_region
      %41 = vsyncadd [#allocation8], 0
      %s43 = sshll.u32 %s2, 4
      %s44 = int_to_ptr.vmem [resolvable:$true] %s43
      %46 = dma.vmem_to_smem %s44, 16, [#allocation11], [#allocation8]
    $region13: #{tpu_custom_call.1} parent=1 // pred_fallthru
      _
    // Predicated region
    $region14: #{tpu_custom_call.1} parent=1 // pred_check
      _
    $region15: #{tpu_custom_call.1} parent=1 // pred_check_branch
      %48 = sbr.rel (0) target = $region17
    $region16: #{tpu_custom_call.1} parent=1 // pred_region
      %50 = vsyncadd [#allocation5], 0
      %s52 = sshll.u32 %s3, 4
      %s53 = int_to_ptr.hbm [resolvable:$true] %s52
      %s54 = sshll.u32 [#allocation12], 4
      %s55 = int_to_ptr.vmem [resolvable:$true] %s54
      %57 = dma.hbm_to_vmem [thread:$0]  %s53, 256, %s55, [#allocation5]
    $region17: #{tpu_custom_call.1} parent=1 // pred_fallthru
      _
    // Predicated region
    $region18: #{tpu_custom_call.1} parent=1 // pred_check
      _
    $region19: #{tpu_custom_call.1} parent=1 // pred_check_branch
      %59 = sbr.rel (0) target = $region21
    $region20: #{tpu_custom_call.1} parent=1 // pred_region
      %61 = vsyncadd [#allocation14], 0
      %s63 = sshll.u32 %s4, 4
      %s64 = int_to_ptr.hbm [resolvable:$true] %s63
      %s65 = sshll.u32 [#allocation13], 4
      %s66 = int_to_ptr.vmem [resolvable:$true] %s65
      %68 = dma.hbm_to_vmem [thread:$0]  %s64, 256, %s66, [#allocation14]
    $region21: #{tpu_custom_call.1} parent=1 // pred_fallthru
      _
    // Predicated region
    $region22: #{tpu_custom_call.1} parent=1 // pred_check
      _
    $region23: #{tpu_custom_call.1} parent=1 // pred_check_branch
      %70 = sbr.rel (0) target = $region25
    $region24: #{tpu_custom_call.1} parent=1 // pred_region
      %72 = vsyncadd [#allocation14], 0
      %s74 = sshll.u32 %s5, 4
      %s75 = int_to_ptr.hbm [resolvable:$true] %s74
      %s76 = sshll.u32 [#allocation15], 4
      %s77 = int_to_ptr.vmem [resolvable:$true] %s76
      %79 = dma.hbm_to_vmem [thread:$0]  %s75, 512, %s77, [#allocation14]
    $region25: #{tpu_custom_call.1} parent=1 // pred_fallthru
      _
    // Predicated region
    $region26: #{tpu_custom_call.1} parent=1 // pred_check
      _
    $region27: #{tpu_custom_call.1} parent=1 // pred_check_branch
      %81 = sbr.rel (0) target = $region29
    $region28: #{tpu_custom_call.1} parent=1 // pred_region
      %83 = vsyncadd [#allocation17], 0
      %s85 = sshll.u32 %s6, 4
      %s86 = int_to_ptr.hbm [resolvable:$true] %s85
      %s87 = sshll.u32 [#allocation16], 4
      %s88 = int_to_ptr.vmem [resolvable:$true] %s87
      %90 = dma.hbm_to_vmem [thread:$0]  %s86, 512, %s88, [#allocation17]
    $region29: #{tpu_custom_call.1} parent=1 // pred_fallthru
      _
    // Predicated region
    $region30: #{tpu_custom_call.1} parent=1 // pred_check
      _
    $region31: #{tpu_custom_call.1} parent=1 // pred_check_branch
      %92 = sbr.rel (0) target = $region33
    $region32: #{tpu_custom_call.1} parent=1 // pred_region
      %94 = vsyncadd [#allocation17], 0
      %s96 = sshll.u32 %s7, 4
      %s97 = int_to_ptr.hbm [resolvable:$true] %s96
      %s98 = sshll.u32 [#allocation18], 4
      %s99 = int_to_ptr.vmem [resolvable:$true] %s98
      %101 = dma.hbm_to_vmem [thread:$0]  %s97, 512, %s99, [#allocation17]
    $region33: #{tpu_custom_call.1} parent=1 // pred_fallthru
      _
    // Predicated region
    $region34: #{tpu_custom_call.1} parent=1 // pred_check
      _
    $region35: #{tpu_custom_call.1} parent=1 // pred_check_branch
      %103 = sbr.rel (0) target = $region37
    $region36: #{tpu_custom_call.1} parent=1 // pred_region
      %105 = dma.done [#allocation7], 16
    $region37: #{tpu_custom_call.1} parent=1 // pred_fallthru
      _
    // Predicated region
    $region38: #{tpu_custom_call.1} parent=1 // pred_check
      _
    $region39: #{tpu_custom_call.1} parent=1 // pred_check_branch
      %107 = sbr.rel (0) target = $region41
    $region40: #{tpu_custom_call.1} parent=1 // pred_region
      %109 = dma.done [#allocation10], 16
    $region41: #{tpu_custom_call.1} parent=1 // pred_fallthru
      _
    // Predicated region
    $region42: #{tpu_custom_call.1} parent=1 // pred_check
      _
    $region43: #{tpu_custom_call.1} parent=1 // pred_check_branch
      %111 = sbr.rel (0) target = $region45
    $region44: #{tpu_custom_call.1} parent=1 // pred_region
      %113 = dma.done [#allocation8], 16
    $region45: #{tpu_custom_call.1} parent=1 // pred_fallthru
      _
    // Predicated region
    $region46: #{tpu_custom_call.1} parent=1 // pred_check
      _
    $region47: #{tpu_custom_call.1} parent=1 // pred_check_branch
      %115 = sbr.rel (0) target = $region49
    $region48: #{tpu_custom_call.1} parent=1 // pred_region
      %117 = dma.done [#allocation5], 256
    $region49: #{tpu_custom_call.1} parent=1 // pred_fallthru
      _
    // Predicated region
    $region50: #{tpu_custom_call.1} parent=1 // pred_check
      _
    $region51: #{tpu_custom_call.1} parent=1 // pred_check_branch
      %119 = sbr.rel (0) target = $region53
    $region52: #{tpu_custom_call.1} parent=1 // pred_region
      %121 = dma.done [#allocation14], 256
    $region53: #{tpu_custom_call.1} parent=1 // pred_fallthru
      _
    // Predicated region
    $region54: #{tpu_custom_call.1} parent=1 // pred_check
      _
    $region55: #{tpu_custom_call.1} parent=1 // pred_check_branch
      %123 = sbr.rel (0) target = $region57
    $region56: #{tpu_custom_call.1} parent=1 // pred_region
      %125 = dma.done [#allocation14], 512
    $region57: #{tpu_custom_call.1} parent=1 // pred_fallthru
      _
    // Predicated region
    $region58: #{tpu_custom_call.1} parent=1 // pred_check
      _
    $region59: #{tpu_custom_call.1} parent=1 // pred_check_branch
      %127 = sbr.rel (0) target = $region61
    $region60: #{tpu_custom_call.1} parent=1 // pred_region
      %129 = dma.done [#allocation17], 512
    $region61: #{tpu_custom_call.1} parent=1 // pred_fallthru
      _
    // Predicated region
    $region62: #{tpu_custom_call.1} parent=1 // pred_check
      _
    $region63: #{tpu_custom_call.1} parent=1 // pred_check_branch
      %131 = sbr.rel (0) target = $region65
    $region64: #{tpu_custom_call.1} parent=1 // pred_region
      %133 = dma.done [#allocation17], 512
    $region65: #{tpu_custom_call.1} parent=1 // pred_fallthru
      _
    %134 = sfence
    %v135 = vld [vmem:[#allocation15] sm:$0xff]
    %v136 = vld [vmem:[#allocation15 + $0x8] sm:$0xff]
    %v137 = vadd.f32 %v135, %v136
    %v138 = vmax.f32 %v135, %v136
    %v139 = vld [vmem:[#allocation15 + $0x10] sm:$0xff]
    %v140 = vadd.f32 %v137, %v139
    %v141 = vmax.f32 %v138, %v139
    %v142 = vld [vmem:[#allocation15 + $0x18] sm:$0xff]
    %v143 = vadd.f32 %v140, %v142
    %v144 = vmax.f32 %v141, %v142
    %v145 = vld [vmem:[#allocation16] sm:$0xff]
    %v146 = vld [vmem:[#allocation16 + $0x8] sm:$0xff]
    %v147 = vadd.f32 %v145, %v146
    %v148 = vmax.f32 %v145, %v146
    %v149 = vld [vmem:[#allocation16 + $0x10] sm:$0xff]
    %v150 = vadd.f32 %v147, %v149
    %v151 = vmax.f32 %v148, %v149
    %v152 = vld [vmem:[#allocation16 + $0x18] sm:$0xff]
    %v153 = vadd.f32 %v150, %v152
    %v154 = vmax.f32 %v151, %v152
    %v155 = vld [vmem:[#allocation18] sm:$0xff]
    %v156 = vld [vmem:[#allocation18 + $0x8] sm:$0xff]
    %v157 = vadd.f32 %v155, %v156
    %v158 = vmax.f32 %v155, %v156
    %v159 = vld [vmem:[#allocation18 + $0x10] sm:$0xff]
    %v160 = vadd.f32 %v157, %v159
    %v161 = vmax.f32 %v158, %v159
    %v162 = vld [vmem:[#allocation18 + $0x18] sm:$0xff]
    %v163 = vadd.f32 %v160, %v162
    %v164 = vmax.f32 %v161, %v162
    %p165 = scmp.eq.s32.totalorder 0, 0
    // Predicated region
    $region66: #{tpu_custom_call.1} parent=1 // pred_check
      %p166 = pneg %p165
    $region67: #{tpu_custom_call.1} parent=1 // pred_check_branch
      %168 = sbr.rel (%p166) target = $region69
    $region68: #{tpu_custom_call.1} parent=1 // pred_region
      %169 = vst [vmem:[#allocation2] sm:$0xff] %v143
      %170 = vst [vmem:[#allocation3] sm:$0xff] %v144
      %s171 = scalar_lea.vmem [#allocation2], 8
      %172 = vst [vmem:[%s171] sm:$0xff] %v153
      %s173 = scalar_lea.vmem [#allocation3], 8
      %174 = vst [vmem:[%s173] sm:$0xff] %v154
      %s175 = scalar_lea.vmem [#allocation2], 16
      %176 = vst [vmem:[%s175] sm:$0xff] %v163
      %s177 = scalar_lea.vmem [#allocation3], 16
      %178 = vst [vmem:[%s177] sm:$0xff] %v164
    $region69: #{tpu_custom_call.1} parent=1 // pred_fallthru
      _
    %p179 = scmp.gt.s32.totalorder 0, 0
    // Predicated region
    $region70: #{tpu_custom_call.1} parent=1 // pred_check
      %p180 = pneg %p179
    $region71: #{tpu_custom_call.1} parent=1 // pred_check_branch
      %182 = sbr.rel (%p180) target = $region73
    $region72: #{tpu_custom_call.1} parent=1 // pred_region
      %v183 = vld [vmem:[#allocation2] sm:$0xff]
      %v184 = vadd.f32 %v183, %v143
      %185 = vst [vmem:[#allocation2] sm:$0xff] %v184
      %v186 = vld [vmem:[#allocation3] sm:$0xff]
      %v187 = vmax.f32 %v186, %v144
      %188 = vst [vmem:[#allocation3] sm:$0xff] %v187
      %s189 = scalar_lea.vmem [#allocation2], 8
      %v190 = vld [vmem:[%s189] sm:$0xff]
      %v191 = vadd.f32 %v190, %v153
      %192 = vst [vmem:[%s189] sm:$0xff] %v191
      %s193 = scalar_lea.vmem [#allocation3], 8
      %v194 = vld [vmem:[%s193] sm:$0xff]
      %v195 = vmax.f32 %v194, %v154
      %196 = vst [vmem:[%s193] sm:$0xff] %v195
      %s197 = scalar_lea.vmem [#allocation2], 16
      %v198 = vld [vmem:[%s197] sm:$0xff]
      %v199 = vadd.f32 %v198, %v163
      %200 = vst [vmem:[%s197] sm:$0xff] %v199
      %s201 = scalar_lea.vmem [#allocation3], 16
      %v202 = vld [vmem:[%s201] sm:$0xff]
      %v203 = vmax.f32 %v202, %v164
      %204 = vst [vmem:[%s201] sm:$0xff] %v203
    $region73: #{tpu_custom_call.1} parent=1 // pred_fallthru
      _
    // Predicated region
    $region74: #{tpu_custom_call.1} parent=1 // pred_check
      %p205 = pneg %p165
    $region75: #{tpu_custom_call.1} parent=1 // pred_check_branch
      %207 = sbr.rel (%p205) target = $region77
    $region76: #{tpu_custom_call.1} parent=1 // pred_region
      %v208 = vld [vmem:[#allocation2] sm:$0xff]
      %v209 = vmul.f32 %v208, 0.25
      %s210 = scalar_lea.vmem [#allocation2], 8
      %v211 = vld [vmem:[%s210] sm:$0xff]
      %v212 = vmul.f32 %v211, 0.25
      %s213 = scalar_lea.vmem [#allocation2], 16
      %v214 = vld [vmem:[%s213] sm:$0xff]
      %v215 = vmul.f32 %v214, 0.25
      %v216 = vld [vmem:[#allocation3] sm:$0xff]
      %s217 = scalar_lea.vmem [#allocation3], 8
      %v218 = vld [vmem:[%s217] sm:$0xff]
      %s219 = scalar_lea.vmem [#allocation3], 16
      %v220 = vld [vmem:[%s219] sm:$0xff]
      %v221 = vld [vmem:[#allocation12] ss:$8 sm:$0x3]
      %s222 = scalar_lea.vmem [#allocation12], 1
      %v223 = vld [vmem:[%s222] ss:$8 sm:$0x3]
      %s224 = scalar_lea.vmem [#allocation12], 2
      %v225 = vld [vmem:[%s224] ss:$8 sm:$0x3]
      %s226 = scalar_lea.vmem [#allocation12], 3
      %v227 = vld [vmem:[%s226] ss:$8 sm:$0x3]
      %s228 = scalar_lea.vmem [#allocation12], 4
      %v229 = vld [vmem:[%s228] ss:$8 sm:$0x3]
      %s230 = scalar_lea.vmem [#allocation12], 5
      %v231 = vld [vmem:[%s230] ss:$8 sm:$0x3]
      %s232 = scalar_lea.vmem [#allocation12], 6
      %v233 = vld [vmem:[%s232] ss:$8 sm:$0x3]
      %v234 = vld [vmem:[#allocation13] ss:$8 sm:$0x3]
      %s235 = scalar_lea.vmem [#allocation13], 1
      %v236 = vld [vmem:[%s235] ss:$8 sm:$0x3]
      %s237 = scalar_lea.vmem [#allocation13], 2
      %v238 = vld [vmem:[%s237] ss:$8 sm:$0x3]
      %s239 = scalar_lea.vmem [#allocation13], 3
      %v240 = vld [vmem:[%s239] ss:$8 sm:$0x3]
      %s241 = scalar_lea.vmem [#allocation13], 4
      %v242 = vld [vmem:[%s241] ss:$8 sm:$0x3]
      %s243 = scalar_lea.vmem [#allocation13], 5
      %v244 = vld [vmem:[%s243] ss:$8 sm:$0x3]
      %s245 = scalar_lea.vmem [#allocation13], 6
      %v246 = vld [vmem:[%s245] ss:$8 sm:$0x3]
      %s247 = sld [smem:[#allocation4]]
      %s248 = sld [smem:[#allocation4 + $0x31]]
      %v249 = vmul.f32 %v221, %v234
      %251 = vst [vmem:[#allocation1] ss:$2 sm:$0xff] %v209
      %v252 = vld.sshfl [vmem:[#allocation1] sm:$0xff pattern:$0x75316420]
      %v253 = vld.sshfl [vmem:[#allocation1 + $0x8] sm:$0xff pattern:$0x75316420]
      %256 = vrot.lane.b32.xlu0 %v252, 51
      %v257 = vpop.permute.xlu0 %256
      %258 = vrot.lane.b32.xlu0 %v253, 51
      %v259 = vpop.permute.xlu0 %258
      %v260 = vlaneseq
      %v261 = vand.u32 %v260, 127
      %vm262 = vcmp.lt.s32.totalorder %v261, 51
      %v263 = vsel %vm262, %v257, %v259
      %v264 = vsel %vm262, %v259, %v257
      %266 = vst [vmem:[#allocation1] ss:$2 sm:$0xff] %v216
      %v267 = vld.sshfl [vmem:[#allocation1] sm:$0xff pattern:$0x75316420]
      %v268 = vld.sshfl [vmem:[#allocation1 + $0x8] sm:$0xff pattern:$0x75316420]
      %271 = vrot.lane.b32.xlu0 %v267, 51
      %v272 = vpop.permute.xlu0 %271
      %273 = vrot.lane.b32.xlu0 %v268, 51
      %v274 = vpop.permute.xlu0 %273
      %v275 = vsel %vm262, %v272, %v274
      %v276 = vsel %vm262, %v274, %v272
      %v277 = vstv %s247
      %v278 = vmul.f32 %v277, %v264
      %v279 = vmul.f32 %v277, %v263
      %v280 = vstv %s248
      %v281 = vmul.f32 %v280, %v276
      %v282 = vmul.f32 %v280, %v275
      %v283 = vadd.f32 %v278, %v281
      %v284 = vadd.f32 %v279, %v282
      %v286 = vperm.slane %v249, 0
      %v287 = vperm.slane %v249, 1
      %v290 = vmul.f32 %v286, %v283
      %v291 = vmul.f32 %v287, %v284
      %v292 = vadd.f32 %v290, 0.0
      %v293 = vadd.f32 %v291, 0.0
      %295 = vst [vmem:[#allocation1] ss:$2 sm:$0xff] %v212
      %v296 = vld.sshfl [vmem:[#allocation1] sm:$0xff pattern:$0x75316420]
      %v297 = vld.sshfl [vmem:[#allocation1 + $0x8] sm:$0xff pattern:$0x75316420]
      %300 = vrot.lane.b32.xlu0 %v296, 51
      %v301 = vpop.permute.xlu0 %300
      %302 = vrot.lane.b32.xlu0 %v297, 51
      %v303 = vpop.permute.xlu0 %302
      %v304 = vsel %vm262, %v301, %v303
      %v305 = vsel %vm262, %v303, %v301
      %307 = vst [vmem:[#allocation1] ss:$2 sm:$0xff] %v218
      %v308 = vld.sshfl [vmem:[#allocation1] sm:$0xff pattern:$0x75316420]
      %v309 = vld.sshfl [vmem:[#allocation1 + $0x8] sm:$0xff pattern:$0x75316420]
      %312 = vrot.lane.b32.xlu0 %v308, 51
      %v313 = vpop.permute.xlu0 %312
      %314 = vrot.lane.b32.xlu0 %v309, 51
      %v315 = vpop.permute.xlu0 %314
      %v316 = vsel %vm262, %v313, %v315
      %v317 = vsel %vm262, %v315, %v313
      %v318 = vmul.f32 %v277, %v305
      %v319 = vmul.f32 %v277, %v304
      %v320 = vmul.f32 %v280, %v317
      %v321 = vmul.f32 %v280, %v316
      %v322 = vadd.f32 %v318, %v320
      %v323 = vadd.f32 %v319, %v321
      %v324 = vmul.f32 %v286, %v322
      %v325 = vmul.f32 %v287, %v323
      %v326 = vadd.f32 %v324, 0.0
      %v327 = vadd.f32 %v325, 0.0
      %329 = vst [vmem:[#allocation1] ss:$2 sm:$0xff] %v215
      %v330 = vld.sshfl [vmem:[#allocation1] sm:$0xff pattern:$0x75316420]
      %v331 = vld.sshfl [vmem:[#allocation1 + $0x8] sm:$0xff pattern:$0x75316420]
      %334 = vrot.lane.b32.xlu0 %v330, 51
      %v335 = vpop.permute.xlu0 %334
      %336 = vrot.lane.b32.xlu0 %v331, 51
      %v337 = vpop.permute.xlu0 %336
      %v338 = vsel %vm262, %v335, %v337
      %v339 = vsel %vm262, %v337, %v335
      %341 = vst [vmem:[#allocation1] ss:$2 sm:$0xff] %v220
      %v342 = vld.sshfl [vmem:[#allocation1] sm:$0xff pattern:$0x75316420]
      %v343 = vld.sshfl [vmem:[#allocation1 + $0x8] sm:$0xff pattern:$0x75316420]
      %346 = vrot.lane.b32.xlu0 %v342, 51
      %v347 = vpop.permute.xlu0 %346
      %348 = vrot.lane.b32.xlu0 %v343, 51
      %v349 = vpop.permute.xlu0 %348
      %v350 = vsel %vm262, %v347, %v349
      %v351 = vsel %vm262, %v349, %v347
      %v352 = vmul.f32 %v277, %v339
      %v353 = vmul.f32 %v277, %v338
      %v354 = vmul.f32 %v280, %v351
      %v355 = vmul.f32 %v280, %v350
      %v356 = vadd.f32 %v352, %v354
      %v357 = vadd.f32 %v353, %v355
      %v358 = vmul.f32 %v286, %v356
      %v359 = vmul.f32 %v287, %v357
      %v360 = vadd.f32 %v358, 0.0
      %v361 = vadd.f32 %v359, 0.0
      %s362 = sld [smem:[#allocation4 + $0x1]]
      %s363 = sld [smem:[#allocation4 + $0x32]]
      %v364 = vmul.f32 %v221, %v236
      %365 = vst [vmem:[#allocation1] ss:$2 sm:$0xff] %v209
      %v366 = vld.sshfl [vmem:[#allocation1] sm:$0xff pattern:$0x75316420]
      %v367 = vld.sshfl [vmem:[#allocation1 + $0x8] sm:$0xff pattern:$0x75316420]
      %370 = vrot.lane.b32.xlu0 %v366, 50
      %v371 = vpop.permute.xlu0 %370
      %372 = vrot.lane.b32.xlu0 %v367, 50
      %v373 = vpop.permute.xlu0 %372
      %vm374 = vcmp.lt.s32.totalorder %v261, 50
      %v375 = vsel %vm374, %v371, %v373
      %v376 = vsel %vm374, %v373, %v371
      %377 = vst [vmem:[#allocation1] ss:$2 sm:$0xff] %v216
      %v378 = vld.sshfl [vmem:[#allocation1] sm:$0xff pattern:$0x75316420]
      %v379 = vld.sshfl [vmem:[#allocation1 + $0x8] sm:$0xff pattern:$0x75316420]
      %382 = vrot.lane.b32.xlu0 %v378, 50
      %v383 = vpop.permute.xlu0 %382
      %384 = vrot.lane.b32.xlu0 %v379, 50
      %v385 = vpop.permute.xlu0 %384
      %v386 = vsel %vm374, %v383, %v385
      %v387 = vsel %vm374, %v385, %v383
      %v388 = vstv %s362
      %v389 = vmul.f32 %v388, %v376
      %v390 = vmul.f32 %v388, %v375
      %v391 = vstv %s363
      %v392 = vmul.f32 %v391, %v387
      %v393 = vmul.f32 %v391, %v386
      %v394 = vadd.f32 %v389, %v392
      %v395 = vadd.f32 %v390, %v393
      %v397 = vperm.slane %v364, 0
      %v398 = vperm.slane %v364, 1
      %v401 = vmul.f32 %v397, %v394
      %v402 = vmul.f32 %v398, %v395
      %v403 = vadd.f32 %v292, %v401
      %v404 = vadd.f32 %v293, %v402
      %405 = vst [vmem:[#allocation1] ss:$2 sm:$0xff] %v212
      %v406 = vld.sshfl [vmem:[#allocation1] sm:$0xff pattern:$0x75316420]
      %v407 = vld.sshfl [vmem:[#allocation1 + $0x8] sm:$0xff pattern:$0x75316420]
      %410 = vrot.lane.b32.xlu0 %v406, 50
      %v411 = vpop.permute.xlu0 %410
      %412 = vrot.lane.b32.xlu0 %v407, 50
      %v413 = vpop.permute.xlu0 %412
      %v414 = vsel %vm374, %v411, %v413
      %v415 = vsel %vm374, %v413, %v411
      %416 = vst [vmem:[#allocation1] ss:$2 sm:$0xff] %v218
      %v417 = vld.sshfl [vmem:[#allocation1] sm:$0xff pattern:$0x75316420]
      %v418 = vld.sshfl [vmem:[#allocation1 + $0x8] sm:$0xff pattern:$0x75316420]
      %421 = vrot.lane.b32.xlu0 %v417, 50
      %v422 = vpop.permute.xlu0 %421
      %423 = vrot.lane.b32.xlu0 %v418, 50
      %v424 = vpop.permute.xlu0 %423
      %v425 = vsel %vm374, %v422, %v424
      %v426 = vsel %vm374, %v424, %v422
      %v427 = vmul.f32 %v388, %v415
      %v428 = vmul.f32 %v388, %v414
      %v429 = vmul.f32 %v391, %v426
      %v430 = vmul.f32 %v391, %v425
      %v431 = vadd.f32 %v427, %v429
      %v432 = vadd.f32 %v428, %v430
      %v433 = vmul.f32 %v397, %v431
      %v434 = vmul.f32 %v398, %v432
      %v435 = vadd.f32 %v326, %v433
      %v436 = vadd.f32 %v327, %v434
      %437 = vst [vmem:[#allocation1] ss:$2 sm:$0xff] %v215
      %v438 = vld.sshfl [vmem:[#allocation1] sm:$0xff pattern:$0x75316420]
      %v439 = vld.sshfl [vmem:[#allocation1 + $0x8] sm:$0xff pattern:$0x75316420]
      %442 = vrot.lane.b32.xlu0 %v438, 50
      %v443 = vpop.permute.xlu0 %442
      %444 = vrot.lane.b32.xlu0 %v439, 50
      %v445 = vpop.permute.xlu0 %444
      %v446 = vsel %vm374, %v443, %v445
      %v447 = vsel %vm374, %v445, %v443
      %448 = vst [vmem:[#allocation1] ss:$2 sm:$0xff] %v220
      %v449 = vld.sshfl [vmem:[#allocation1] sm:$0xff pattern:$0x75316420]
      %v450 = vld.sshfl [vmem:[#allocation1 + $0x8] sm:$0xff pattern:$0x75316420]
      %453 = vrot.lane.b32.xlu0 %v449, 50
      %v454 = vpop.permute.xlu0 %453
      %455 = vrot.lane.b32.xlu0 %v450, 50
      %v456 = vpop.permute.xlu0 %455
      %v457 = vsel %vm374, %v454, %v456
      %v458 = vsel %vm374, %v456, %v454
      %v459 = vmul.f32 %v388, %v447
      %v460 = vmul.f32 %v388, %v446
      %v461 = vmul.f32 %v391, %v458
      %v462 = vmul.f32 %v391, %v457
      %v463 = vadd.f32 %v459, %v461
      %v464 = vadd.f32 %v460, %v462
      %v465 = vmul.f32 %v397, %v463
      %v466 = vmul.f32 %v398, %v464
      %v467 = vadd.f32 %v360, %v465
      %v468 = vadd.f32 %v361, %v466
      %s469 = sld [smem:[#allocation4 + $0x2]]
      %s470 = sld [smem:[#allocation4 + $0x33]]
      %v471 = vmul.f32 %v221, %v238
      %472 = vst [vmem:[#allocation1] ss:$2 sm:$0xff] %v209
      %v473 = vld.sshfl [vmem:[#allocation1] sm:$0xff pattern:$0x75316420]
      %v474 = vld.sshfl [vmem:[#allocation1 + $0x8] sm:$0xff pattern:$0x75316420]
      %477 = vrot.lane.b32.xlu0 %v473, 49
      %v478 = vpop.permute.xlu0 %477
      %479 = vrot.lane.b32.xlu0 %v474, 49
      %v480 = vpop.permute.xlu0 %479
      %vm481 = vcmp.lt.s32.totalorder %v261, 49
      %v482 = vsel %vm481, %v478, %v480
      %v483 = vsel %vm481, %v480, %v478
      %484 = vst [vmem:[#allocation1] ss:$2 sm:$0xff] %v216
      %v485 = vld.sshfl [vmem:[#allocation1] sm:$0xff pattern:$0x75316420]
      %v486 = vld.sshfl [vmem:[#allocation1 + $0x8] sm:$0xff pattern:$0x75316420]
      %489 = vrot.lane.b32.xlu0 %v485, 49
      %v490 = vpop.permute.xlu0 %489
      %491 = vrot.lane.b32.xlu0 %v486, 49
      %v492 = vpop.permute.xlu0 %491
      %v493 = vsel %vm481, %v490, %v492
      %v494 = vsel %vm481, %v492, %v490
      %v495 = vstv %s469
      %v496 = vmul.f32 %v495, %v483
      %v497 = vmul.f32 %v495, %v482
      %v498 = vstv %s470
      %v499 = vmul.f32 %v498, %v494
      %v500 = vmul.f32 %v498, %v493
      %v501 = vadd.f32 %v496, %v499
      %v502 = vadd.f32 %v497, %v500
      %v504 = vperm.slane %v471, 0
      %v505 = vperm.slane %v471, 1
      %v508 = vmul.f32 %v504, %v501
      %v509 = vmul.f32 %v505, %v502
      %v510 = vadd.f32 %v403, %v508
      %v511 = vadd.f32 %v404, %v509
      %512 = vst [vmem:[#allocation1] ss:$2 sm:$0xff] %v212
      %v513 = vld.sshfl [vmem:[#allocation1] sm:$0xff pattern:$0x75316420]
      %v514 = vld.sshfl [vmem:[#allocation1 + $0x8] sm:$0xff pattern:$0x75316420]
      %517 = vrot.lane.b32.xlu0 %v513, 49
      %v518 = vpop.permute.xlu0 %517
      %519 = vrot.lane.b32.xlu0 %v514, 49
      %v520 = vpop.permute.xlu0 %519
      %v521 = vsel %vm481, %v518, %v520
      %v522 = vsel %vm481, %v520, %v518
      %523 = vst [vmem:[#allocation1] ss:$2 sm:$0xff] %v218
      %v524 = vld.sshfl [vmem:[#allocation1] sm:$0xff pattern:$0x75316420]
      %v525 = vld.sshfl [vmem:[#allocation1 + $0x8] sm:$0xff pattern:$0x75316420]
      %528 = vrot.lane.b32.xlu0 %v524, 49
      %v529 = vpop.permute.xlu0 %528
      %530 = vrot.lane.b32.xlu0 %v525, 49
      %v531 = vpop.permute.xlu0 %530
      %v532 = vsel %vm481, %v529, %v531
      %v533 = vsel %vm481, %v531, %v529
      %v534 = vmul.f32 %v495, %v522
      %v535 = vmul.f32 %v495, %v521
      %v536 = vmul.f32 %v498, %v533
      %v537 = vmul.f32 %v498, %v532
      %v538 = vadd.f32 %v534, %v536
      %v539 = vadd.f32 %v535, %v537
      %v540 = vmul.f32 %v504, %v538
      %v541 = vmul.f32 %v505, %v539
      %v542 = vadd.f32 %v435, %v540
      %v543 = vadd.f32 %v436, %v541
      %544 = vst [vmem:[#allocation1] ss:$2 sm:$0xff] %v215
      %v545 = vld.sshfl [vmem:[#allocation1] sm:$0xff pattern:$0x75316420]
      %v546 = vld.sshfl [vmem:[#allocation1 + $0x8] sm:$0xff pattern:$0x75316420]
      %549 = vrot.lane.b32.xlu0 %v545, 49
      %v550 = vpop.permute.xlu0 %549
      %551 = vrot.lane.b32.xlu0 %v546, 49
      %v552 = vpop.permute.xlu0 %551
      %v553 = vsel %vm481, %v550, %v552
      %v554 = vsel %vm481, %v552, %v550
      %555 = vst [vmem:[#allocation1] ss:$2 sm:$0xff] %v220
      %v556 = vld.sshfl [vmem:[#allocation1] sm:$0xff pattern:$0x75316420]
      %v557 = vld.sshfl [vmem:[#allocation1 + $0x8] sm:$0xff pattern:$0x75316420]
      %560 = vrot.lane.b32.xlu0 %v556, 49
      %v561 = vpop.permute.xlu0 %560
      %562 = vrot.lane.b32.xlu0 %v557, 49
      %v563 = vpop.permute.xlu0 %562
      %v564 = vsel %vm481, %v561, %v563
      %v565 = vsel %vm481, %v563, %v561
      %v566 = vmul.f32 %v495, %v554
      %v567 = vmul.f32 %v495, %v553
      %v568 = vmul.f32 %v498, %v565
      %v569 = vmul.f32 %v498, %v564
      %v570 = vadd.f32 %v566, %v568
      %v571 = vadd.f32 %v567, %v569
      %v572 = vmul.f32 %v504, %v570
      %v573 = vmul.f32 %v505, %v571
      %v574 = vadd.f32 %v467, %v572
      %v575 = vadd.f32 %v468, %v573
      %s576 = sld [smem:[#allocation4 + $0x3]]
      %s577 = sld [smem:[#allocation4 + $0x34]]
      %v578 = vmul.f32 %v221, %v240
      %579 = vst [vmem:[#allocation1] ss:$2 sm:$0xff] %v209
      %v580 = vld.sshfl [vmem:[#allocation1] sm:$0xff pattern:$0x75316420]
      %v581 = vld.sshfl [vmem:[#allocation1 + $0x8] sm:$0xff pattern:$0x75316420]
      %584 = vrot.lane.b32.xlu0 %v580, 48
      %v585 = vpop.permute.xlu0 %584
      %586 = vrot.lane.b32.xlu0 %v581, 48
      %v587 = vpop.permute.xlu0 %586
      %vm588 = vcmp.lt.s32.totalorder %v261, 48
      %v589 = vsel %vm588, %v585, %v587
      %v590 = vsel %vm588, %v587, %v585
      %591 = vst [vmem:[#allocation1] ss:$2 sm:$0xff] %v216
      %v592 = vld.sshfl [vmem:[#allocation1] sm:$0xff pattern:$0x75316420]
      %v593 = vld.sshfl [vmem:[#allocation1 + $0x8] sm:$0xff pattern:$0x75316420]
      %596 = vrot.lane.b32.xlu0 %v592, 48
      %v597 = vpop.permute.xlu0 %596
      %598 = vrot.lane.b32.xlu0 %v593, 48
      %v599 = vpop.permute.xlu0 %598
      %v600 = vsel %vm588, %v597, %v599
      %v601 = vsel %vm588, %v599, %v597
      %v602 = vstv %s576
      %v603 = vmul.f32 %v602, %v590
      %v604 = vmul.f32 %v602, %v589
      %v605 = vstv %s577
      %v606 = vmul.f32 %v605, %v601
      %v607 = vmul.f32 %v605, %v600
      %v608 = vadd.f32 %v603, %v606
      %v609 = vadd.f32 %v604, %v607
      %v611 = vperm.slane %v578, 0
      %v612 = vperm.slane %v578, 1
      %v615 = vmul.f32 %v611, %v608
      %v616 = vmul.f32 %v612, %v609
      %v617 = vadd.f32 %v510, %v615
      %v618 = vadd.f32 %v511, %v616
      %619 = vst [vmem:[#allocation1] ss:$2 sm:$0xff] %v212
      %v620 = vld.sshfl [vmem:[#allocation1] sm:$0xff pattern:$0x75316420]
      %v621 = vld.sshfl [vmem:[#allocation1 + $0x8] sm:$0xff pattern:$0x75316420]
      %624 = vrot.lane.b32.xlu0 %v620, 48
      %v625 = vpop.permute.xlu0 %624
      %626 = vrot.lane.b32.xlu0 %v621, 48
      %v627 = vpop.permute.xlu0 %626
      %v628 = vsel %vm588, %v625, %v627
      %v629 = vsel %vm588, %v627, %v625
      %630 = vst [vmem:[#allocation1] ss:$2 sm:$0xff] %v218
      %v631 = vld.sshfl [vmem:[#allocation1] sm:$0xff pattern:$0x75316420]
      %v632 = vld.sshfl [vmem:[#allocation1 + $0x8] sm:$0xff pattern:$0x75316420]
      %635 = vrot.lane.b32.xlu0 %v631, 48
      %v636 = vpop.permute.xlu0 %635
      %637 = vrot.lane.b32.xlu0 %v632, 48
      %v638 = vpop.permute.xlu0 %637
      %v639 = vsel %vm588, %v636, %v638
      %v640 = vsel %vm588, %v638, %v636
      %v641 = vmul.f32 %v602, %v629
      %v642 = vmul.f32 %v602, %v628
      %v643 = vmul.f32 %v605, %v640
      %v644 = vmul.f32 %v605, %v639
      %v645 = vadd.f32 %v641, %v643
      %v646 = vadd.f32 %v642, %v644
      %v647 = vmul.f32 %v611, %v645
      %v648 = vmul.f32 %v612, %v646
      %v649 = vadd.f32 %v542, %v647
      %v650 = vadd.f32 %v543, %v648
      %651 = vst [vmem:[#allocation1] ss:$2 sm:$0xff] %v215
      %v652 = vld.sshfl [vmem:[#allocation1] sm:$0xff pattern:$0x75316420]
      %v653 = vld.sshfl [vmem:[#allocation1 + $0x8] sm:$0xff pattern:$0x75316420]
      %656 = vrot.lane.b32.xlu0 %v652, 48
      %v657 = vpop.permute.xlu0 %656
      %658 = vrot.lane.b32.xlu0 %v653, 48
      %v659 = vpop.permute.xlu0 %658
      %v660 = vsel %vm588, %v657, %v659
      %v661 = vsel %vm588, %v659, %v657
      %662 = vst [vmem:[#allocation1] ss:$2 sm:$0xff] %v220
      %v663 = vld.sshfl [vmem:[#allocation1] sm:$0xff pattern:$0x75316420]
      %v664 = vld.sshfl [vmem:[#allocation1 + $0x8] sm:$0xff pattern:$0x75316420]
      %667 = vrot.lane.b32.xlu0 %v663, 48
      %v668 = vpop.permute.xlu0 %667
      %669 = vrot.lane.b32.xlu0 %v664, 48
      %v670 = vpop.permute.xlu0 %669
      %v671 = vsel %vm588, %v668, %v670
      %v672 = vsel %vm588, %v670, %v668
      %v673 = vmul.f32 %v602, %v661
      %v674 = vmul.f32 %v602, %v660
      %v675 = vmul.f32 %v605, %v672
      %v676 = vmul.f32 %v605, %v671
      %v677 = vadd.f32 %v673, %v675
      %v678 = vadd.f32 %v674, %v676
      %v679 = vmul.f32 %v611, %v677
      %v680 = vmul.f32 %v612, %v678
      %v681 = vadd.f32 %v574, %v679
      %v682 = vadd.f32 %v575, %v680
      %s683 = sld [smem:[#allocation4 + $0x4]]
      %s684 = sld [smem:[#allocation4 + $0x35]]
      %v685 = vmul.f32 %v221, %v242
      %686 = vst [vmem:[#allocation1] ss:$2 sm:$0xff] %v209
      %v687 = vld.sshfl [vmem:[#allocation1] sm:$0xff pattern:$0x75316420]
      %v688 = vld.sshfl [vmem:[#allocation1 + $0x8] sm:$0xff pattern:$0x75316420]
      %691 = vrot.lane.b32.xlu0 %v687, 47
      %v692 = vpop.permute.xlu0 %691
      %693 = vrot.lane.b32.xlu0 %v688, 47
      %v694 = vpop.permute.xlu0 %693
      %vm695 = vcmp.lt.s32.totalorder %v261, 47
      %v696 = vsel %vm695, %v692, %v694
      %v697 = vsel %vm695, %v694, %v692
      %698 = vst [vmem:[#allocation1] ss:$2 sm:$0xff] %v216
      %v699 = vld.sshfl [vmem:[#allocation1] sm:$0xff pattern:$0x75316420]
      %v700 = vld.sshfl [vmem:[#allocation1 + $0x8] sm:$0xff pattern:$0x75316420]
      %703 = vrot.lane.b32.xlu0 %v699, 47
      %v704 = vpop.permute.xlu0 %703
      %705 = vrot.lane.b32.xlu0 %v700, 47
      %v706 = vpop.permute.xlu0 %705
      %v707 = vsel %vm695, %v704, %v706
      %v708 = vsel %vm695, %v706, %v704
      %v709 = vstv %s683
      %v710 = vmul.f32 %v709, %v697
      %v711 = vmul.f32 %v709, %v696
      %v712 = vstv %s684
      %v713 = vmul.f32 %v712, %v708
      %v714 = vmul.f32 %v712, %v707
      %v715 = vadd.f32 %v710, %v713
      %v716 = vadd.f32 %v711, %v714
      %v718 = vperm.slane %v685, 0
      %v719 = vperm.slane %v685, 1
      %v722 = vmul.f32 %v718, %v715
      %v723 = vmul.f32 %v719, %v716
      %v724 = vadd.f32 %v617, %v722
      %v725 = vadd.f32 %v618, %v723
      %726 = vst [vmem:[#allocation1] ss:$2 sm:$0xff] %v212
      %v727 = vld.sshfl [vmem:[#allocation1] sm:$0xff pattern:$0x75316420]
      %v728 = vld.sshfl [vmem:[#allocation1 + $0x8] sm:$0xff pattern:$0x75316420]
      %731 = vrot.lane.b32.xlu0 %v727, 47
      %v732 = vpop.permute.xlu0 %731
      %733 = vrot.lane.b32.xlu0 %v728, 47
      %v734 = vpop.permute.xlu0 %733
      %v735 = vsel %vm695, %v732, %v734
      %v736 = vsel %vm695, %v734, %v732
      %737 = vst [vmem:[#allocation1] ss:$2 sm:$0xff] %v218
      %v738 = vld.sshfl [vmem:[#allocation1] sm:$0xff pattern:$0x75316420]
      %v739 = vld.sshfl [vmem:[#allocation1 + $0x8] sm:$0xff pattern:$0x75316420]
      %742 = vrot.lane.b32.xlu0 %v738, 47
      %v743 = vpop.permute.xlu0 %742
      %744 = vrot.lane.b32.xlu0 %v739, 47
      %v745 = vpop.permute.xlu0 %744
      %v746 = vsel %vm695, %v743, %v745
      %v747 = vsel %vm695, %v745, %v743
      %v748 = vmul.f32 %v709, %v736
      %v749 = vmul.f32 %v709, %v735
      %v750 = vmul.f32 %v712, %v747
      %v751 = vmul.f32 %v712, %v746
      %v752 = vadd.f32 %v748, %v750
      %v753 = vadd.f32 %v749, %v751
      %v754 = vmul.f32 %v718, %v752
      %v755 = vmul.f32 %v719, %v753
      %v756 = vadd.f32 %v649, %v754
      %v757 = vadd.f32 %v650, %v755
      %758 = vst [vmem:[#allocation1] ss:$2 sm:$0xff] %v215
      %v759 = vld.sshfl [vmem:[#allocation1] sm:$0xff pattern:$0x75316420]
      %v760 = vld.sshfl [vmem:[#allocation1 + $0x8] sm:$0xff pattern:$0x75316420]
      %763 = vrot.lane.b32.xlu0 %v759, 47
      %v764 = vpop.permute.xlu0 %763
      %765 = vrot.lane.b32.xlu0 %v760, 47
      %v766 = vpop.permute.xlu0 %765
      %v767 = vsel %vm695, %v764, %v766
      %v768 = vsel %vm695, %v766, %v764
      %769 = vst [vmem:[#allocation1] ss:$2 sm:$0xff] %v220
      %v770 = vld.sshfl [vmem:[#allocation1] sm:$0xff pattern:$0x75316420]
      %v771 = vld.sshfl [vmem:[#allocation1 + $0x8] sm:$0xff pattern:$0x75316420]
      %774 = vrot.lane.b32.xlu0 %v770, 47
      %v775 = vpop.permute.xlu0 %774
      %776 = vrot.lane.b32.xlu0 %v771, 47
      %v777 = vpop.permute.xlu0 %776
      %v778 = vsel %vm695, %v775, %v777
      %v779 = vsel %vm695, %v777, %v775
      %v780 = vmul.f32 %v709, %v768
      %v781 = vmul.f32 %v709, %v767
      %v782 = vmul.f32 %v712, %v779
      %v783 = vmul.f32 %v712, %v778
      %v784 = vadd.f32 %v780, %v782
      %v785 = vadd.f32 %v781, %v783
      %v786 = vmul.f32 %v718, %v784
      %v787 = vmul.f32 %v719, %v785
      %v788 = vadd.f32 %v681, %v786
      %v789 = vadd.f32 %v682, %v787
      %s790 = sld [smem:[#allocation4 + $0x5]]
      %s791 = sld [smem:[#allocation4 + $0x36]]
      %v792 = vmul.f32 %v221, %v244
      %793 = vst [vmem:[#allocation1] ss:$2 sm:$0xff] %v209
      %v794 = vld.sshfl [vmem:[#allocation1] sm:$0xff pattern:$0x75316420]
      %v795 = vld.sshfl [vmem:[#allocation1 + $0x8] sm:$0xff pattern:$0x75316420]
      %798 = vrot.lane.b32.xlu0 %v794, 46
      %v799 = vpop.permute.xlu0 %798
      %800 = vrot.lane.b32.xlu0 %v795, 46
      %v801 = vpop.permute.xlu0 %800
      %vm802 = vcmp.lt.s32.totalorder %v261, 46
      %v803 = vsel %vm802, %v799, %v801
      %v804 = vsel %vm802, %v801, %v799
      %805 = vst [vmem:[#allocation1] ss:$2 sm:$0xff] %v216
      %v806 = vld.sshfl [vmem:[#allocation1] sm:$0xff pattern:$0x75316420]
      %v807 = vld.sshfl [vmem:[#allocation1 + $0x8] sm:$0xff pattern:$0x75316420]
      %810 = vrot.lane.b32.xlu0 %v806, 46
      %v811 = vpop.permute.xlu0 %810
      %812 = vrot.lane.b32.xlu0 %v807, 46
      %v813 = vpop.permute.xlu0 %812
      %v814 = vsel %vm802, %v811, %v813
      %v815 = vsel %vm802, %v813, %v811
      %v816 = vstv %s790
      %v817 = vmul.f32 %v816, %v804
      %v818 = vmul.f32 %v816, %v803
      %v819 = vstv %s791
      %v820 = vmul.f32 %v819, %v815
      %v821 = vmul.f32 %v819, %v814
      %v822 = vadd.f32 %v817, %v820
      %v823 = vadd.f32 %v818, %v821
      %v825 = vperm.slane %v792, 0
      %v826 = vperm.slane %v792, 1
      %v829 = vmul.f32 %v825, %v822
      %v830 = vmul.f32 %v826, %v823
      %v831 = vadd.f32 %v724, %v829
      %v832 = vadd.f32 %v725, %v830
      %833 = vst [vmem:[#allocation1] ss:$2 sm:$0xff] %v212
      %v834 = vld.sshfl [vmem:[#allocation1] sm:$0xff pattern:$0x75316420]
      %v835 = vld.sshfl [vmem:[#allocation1 + $0x8] sm:$0xff pattern:$0x75316420]
      %838 = vrot.lane.b32.xlu0 %v834, 46
      %v839 = vpop.permute.xlu0 %838
      %840 = vrot.lane.b32.xlu0 %v835, 46
      %v841 = vpop.permute.xlu0 %840
      %v842 = vsel %vm802, %v839, %v841
      %v843 = vsel %vm802, %v841, %v839
      %844 = vst [vmem:[#allocation1] ss:$2 sm:$0xff] %v218
      %v845 = vld.sshfl [vmem:[#allocation1] sm:$0xff pattern:$0x75316420]
      %v846 = vld.sshfl [vmem:[#allocation1 + $0x8] sm:$0xff pattern:$0x75316420]
      %849 = vrot.lane.b32.xlu0 %v845, 46
      %v850 = vpop.permute.xlu0 %849
      %851 = vrot.lane.b32.xlu0 %v846, 46
      %v852 = vpop.permute.xlu0 %851
      %v853 = vsel %vm802, %v850, %v852
      %v854 = vsel %vm802, %v852, %v850
      %v855 = vmul.f32 %v816, %v843
      %v856 = vmul.f32 %v816, %v842
      %v857 = vmul.f32 %v819, %v854
      %v858 = vmul.f32 %v819, %v853
      %v859 = vadd.f32 %v855, %v857
      %v860 = vadd.f32 %v856, %v858
      %v861 = vmul.f32 %v825, %v859
      %v862 = vmul.f32 %v826, %v860
      %v863 = vadd.f32 %v756, %v861
      %v864 = vadd.f32 %v757, %v862
      %865 = vst [vmem:[#allocation1] ss:$2 sm:$0xff] %v215
      %v866 = vld.sshfl [vmem:[#allocation1] sm:$0xff pattern:$0x75316420]
      %v867 = vld.sshfl [vmem:[#allocation1 + $0x8] sm:$0xff pattern:$0x75316420]
      %870 = vrot.lane.b32.xlu0 %v866, 46
      %v871 = vpop.permute.xlu0 %870
      %872 = vrot.lane.b32.xlu0 %v867, 46
      %v873 = vpop.permute.xlu0 %872
      %v874 = vsel %vm802, %v871, %v873
      %v875 = vsel %vm802, %v873, %v871
      %876 = vst [vmem:[#allocation1] ss:$2 sm:$0xff] %v220
      %v877 = vld.sshfl [vmem:[#allocation1] sm:$0xff pattern:$0x75316420]
      %v878 = vld.sshfl [vmem:[#allocation1 + $0x8] sm:$0xff pattern:$0x75316420]
      %881 = vrot.lane.b32.xlu0 %v877, 46
      %v882 = vpop.permute.xlu0 %881
      %883 = vrot.lane.b32.xlu0 %v878, 46
      %v884 = vpop.permute.xlu0 %883
      %v885 = vsel %vm802, %v882, %v884
      %v886 = vsel %vm802, %v884, %v882
      %v887 = vmul.f32 %v816, %v875
      %v888 = vmul.f32 %v816, %v874
      %v889 = vmul.f32 %v819, %v886
      %v890 = vmul.f32 %v819, %v885
      %v891 = vadd.f32 %v887, %v889
      %v892 = vadd.f32 %v888, %v890
      %v893 = vmul.f32 %v825, %v891
      %v894 = vmul.f32 %v826, %v892
      %v895 = vadd.f32 %v788, %v893
      %v896 = vadd.f32 %v789, %v894
      %s897 = sld [smem:[#allocation4 + $0x6]]
      %s898 = sld [smem:[#allocation4 + $0x37]]
      %v899 = vmul.f32 %v221, %v246
      %900 = vst [vmem:[#allocation1] ss:$2 sm:$0xff] %v209
      %v901 = vld.sshfl [vmem:[#allocation1] sm:$0xff pattern:$0x75316420]
      %v902 = vld.sshfl [vmem:[#allocation1 + $0x8] sm:$0xff pattern:$0x75316420]
      %905 = vrot.lane.b32.xlu0 %v901, 45
      %v906 = vpop.permute.xlu0 %905
      %907 = vrot.lane.b32.xlu0 %v902, 45
      %v908 = vpop.permute.xlu0 %907
      %vm909 = vcmp.lt.s32.totalorder %v261, 45
      %v910 = vsel %vm909, %v906, %v908
      %v911 = vsel %vm909, %v908, %v906
      %912 = vst [vmem:[#allocation1] ss:$2 sm:$0xff] %v216
      %v913 = vld.sshfl [vmem:[#allocation1] sm:$0xff pattern:$0x75316420]
      %v914 = vld.sshfl [vmem:[#allocation1 + $0x8] sm:$0xff pattern:$0x75316420]
      %917 = vrot.lane.b32.xlu0 %v913, 45
      %v918 = vpop.permute.xlu0 %917
      %919 = vrot.lane.b32.xlu0 %v914, 45
      %v920 = vpop.permute.xlu0 %919
      %v921 = vsel %vm909, %v918, %v920
      %v922 = vsel %vm909, %v920, %v918
      %v923 = vstv %s897
      %v924 = vmul.f32 %v923, %v911
      %v925 = vmul.f32 %v923, %v910
      %v926 = vstv %s898
      %v927 = vmul.f32 %v926, %v922
      %v928 = vmul.f32 %v926, %v921
      %v929 = vadd.f32 %v924, %v927
      %v930 = vadd.f32 %v925, %v928
      %v932 = vperm.slane %v899, 0
      %v933 = vperm.slane %v899, 1
      %v936 = vmul.f32 %v932, %v929
      %v937 = vmul.f32 %v933, %v930
      %v938 = vadd.f32 %v831, %v936
      %v939 = vadd.f32 %v832, %v937
      %940 = vst [vmem:[#allocation1] ss:$2 sm:$0xff] %v212
      %v941 = vld.sshfl [vmem:[#allocation1] sm:$0xff pattern:$0x75316420]
      %v942 = vld.sshfl [vmem:[#allocation1 + $0x8] sm:$0xff pattern:$0x75316420]
      %945 = vrot.lane.b32.xlu0 %v941, 45
      %v946 = vpop.permute.xlu0 %945
      %947 = vrot.lane.b32.xlu0 %v942, 45
      %v948 = vpop.permute.xlu0 %947
      %v949 = vsel %vm909, %v946, %v948
      %v950 = vsel %vm909, %v948, %v946
      %951 = vst [vmem:[#allocation1] ss:$2 sm:$0xff] %v218
      %v952 = vld.sshfl [vmem:[#allocation1] sm:$0xff pattern:$0x75316420]
      %v953 = vld.sshfl [vmem:[#allocation1 + $0x8] sm:$0xff pattern:$0x75316420]
      %956 = vrot.lane.b32.xlu0 %v952, 45
      %v957 = vpop.permute.xlu0 %956
      %958 = vrot.lane.b32.xlu0 %v953, 45
      %v959 = vpop.permute.xlu0 %958
      %v960 = vsel %vm909, %v957, %v959
      %v961 = vsel %vm909, %v959, %v957
      %v962 = vmul.f32 %v923, %v950
      %v963 = vmul.f32 %v923, %v949
      %v964 = vmul.f32 %v926, %v961
      %v965 = vmul.f32 %v926, %v960
      %v966 = vadd.f32 %v962, %v964
      %v967 = vadd.f32 %v963, %v965
      %v968 = vmul.f32 %v932, %v966
      %v969 = vmul.f32 %v933, %v967
      %v970 = vadd.f32 %v863, %v968
      %v971 = vadd.f32 %v864, %v969
      %972 = vst [vmem:[#allocation1] ss:$2 sm:$0xff] %v215
      %v973 = vld.sshfl [vmem:[#allocation1] sm:$0xff pattern:$0x75316420]
      %v974 = vld.sshfl [vmem:[#allocation1 + $0x8] sm:$0xff pattern:$0x75316420]
      %977 = vrot.lane.b32.xlu0 %v973, 45
      %v978 = vpop.permute.xlu0 %977
      %979 = vrot.lane.b32.xlu0 %v974, 45
      %v980 = vpop.permute.xlu0 %979
      %v981 = vsel %vm909, %v978, %v980
      %v982 = vsel %vm909, %v980, %v978
      %983 = vst [vmem:[#allocation1] ss:$2 sm:$0xff] %v220
      %v984 = vld.sshfl [vmem:[#allocation1] sm:$0xff pattern:$0x75316420]
      %v985 = vld.sshfl [vmem:[#allocation1 + $0x8] sm:$0xff pattern:$0x75316420]
      %988 = vrot.lane.b32.xlu0 %v984, 45
      %v989 = vpop.permute.xlu0 %988
      %990 = vrot.lane.b32.xlu0 %v985, 45
      %v991 = vpop.permute.xlu0 %990
      %v992 = vsel %vm909, %v989, %v991
      %v993 = vsel %vm909, %v991, %v989
      %v994 = vmul.f32 %v923, %v982
      %v995 = vmul.f32 %v923, %v981
      %v996 = vmul.f32 %v926, %v993
      %v997 = vmul.f32 %v926, %v992
      %v998 = vadd.f32 %v994, %v996
      %v999 = vadd.f32 %v995, %v997
      %v1000 = vmul.f32 %v932, %v998
      %v1001 = vmul.f32 %v933, %v999
      %v1002 = vadd.f32 %v895, %v1000
      %v1003 = vadd.f32 %v896, %v1001
      %s1004 = sld [smem:[#allocation4 + $0x7]]
      %s1005 = sld [smem:[#allocation4 + $0x38]]
      %v1006 = vmul.f32 %v223, %v234
      %1007 = vst [vmem:[#allocation1] ss:$2 sm:$0xff] %v209
      %v1008 = vld.sshfl [vmem:[#allocation1] sm:$0xff pattern:$0x75316420]
      %v1009 = vld.sshfl [vmem:[#allocation1 + $0x8] sm:$0xff pattern:$0x75316420]
      %1012 = vrot.lane.b32.xlu0 %v1008, 35
      %v1013 = vpop.permute.xlu0 %1012
      %1014 = vrot.lane.b32.xlu0 %v1009, 35
      %v1015 = vpop.permute.xlu0 %1014
      %vm1016 = vcmp.lt.s32.totalorder %v261, 35
      %v1017 = vsel %vm1016, %v1013, %v1015
      %v1018 = vsel %vm1016, %v1015, %v1013
      %1019 = vst [vmem:[#allocation1] ss:$2 sm:$0xff] %v216
      %v1020 = vld.sshfl [vmem:[#allocation1] sm:$0xff pattern:$0x75316420]
      %v1021 = vld.sshfl [vmem:[#allocation1 + $0x8] sm:$0xff pattern:$0x75316420]
      %1024 = vrot.lane.b32.xlu0 %v1020, 35
      %v1025 = vpop.permute.xlu0 %1024
      %1026 = vrot.lane.b32.xlu0 %v1021, 35
      %v1027 = vpop.permute.xlu0 %1026
      %v1028 = vsel %vm1016, %v1025, %v1027
      %v1029 = vsel %vm1016, %v1027, %v1025
      %v1030 = vstv %s1004
      %v1031 = vmul.f32 %v1030, %v1018
      %v1032 = vmul.f32 %v1030, %v1017
      %v1033 = vstv %s1005
      %v1034 = vmul.f32 %v1033, %v1029
      %v1035 = vmul.f32 %v1033, %v1028
      %v1036 = vadd.f32 %v1031, %v1034
      %v1037 = vadd.f32 %v1032, %v1035
      %v1039 = vperm.slane %v1006, 0
      %v1040 = vperm.slane %v1006, 1
      %v1043 = vmul.f32 %v1039, %v1036
      %v1044 = vmul.f32 %v1040, %v1037
      %v1045 = vadd.f32 %v938, %v1043
      %v1046 = vadd.f32 %v939, %v1044
      %1047 = vst [vmem:[#allocation1] ss:$2 sm:$0xff] %v212
      %v1048 = vld.sshfl [vmem:[#allocation1] sm:$0xff pattern:$0x75316420]
      %v1049 = vld.sshfl [vmem:[#allocation1 + $0x8] sm:$0xff pattern:$0x75316420]
      %1052 = vrot.lane.b32.xlu0 %v1048, 35
      %v1053 = vpop.permute.xlu0 %1052
      %1054 = vrot.lane.b32.xlu0 %v1049, 35
      %v1055 = vpop.permute.xlu0 %1054
      %v1056 = vsel %vm1016, %v1053, %v1055
      %v1057 = vsel %vm1016, %v1055, %v1053
      %1058 = vst [vmem:[#allocation1] ss:$2 sm:$0xff] %v218
      %v1059 = vld.sshfl [vmem:[#allocation1] sm:$0xff pattern:$0x75316420]
      %v1060 = vld.sshfl [vmem:[#allocation1 + $0x8] sm:$0xff pattern:$0x75316420]
      %1063 = vrot.lane.b32.xlu0 %v1059, 35
      %v1064 = vpop.permute.xlu0 %1063
      %1065 = vrot.lane.b32.xlu0 %v1060, 35
      %v1066 = vpop.permute.xlu0 %1065
      %v1067 = vsel %vm1016, %v1064, %v1066
      %v1068 = vsel %vm1016, %v1066, %v1064
      %v1069 = vmul.f32 %v1030, %v1057
      %v1070 = vmul.f32 %v1030, %v1056
      %v1071 = vmul.f32 %v1033, %v1068
      %v1072 = vmul.f32 %v1033, %v1067
      %v1073 = vadd.f32 %v1069, %v1071
      %v1074 = vadd.f32 %v1070, %v1072
      %v1075 = vmul.f32 %v1039, %v1073
      %v1076 = vmul.f32 %v1040, %v1074
      %v1077 = vadd.f32 %v970, %v1075
      %v1078 = vadd.f32 %v971, %v1076
      %1079 = vst [vmem:[#allocation1] ss:$2 sm:$0xff] %v215
      %v1080 = vld.sshfl [vmem:[#allocation1] sm:$0xff pattern:$0x75316420]
      %v1081 = vld.sshfl [vmem:[#allocation1 + $0x8] sm:$0xff pattern:$0x75316420]
      %1084 = vrot.lane.b32.xlu0 %v1080, 35
      %v1085 = vpop.permute.xlu0 %1084
      %1086 = vrot.lane.b32.xlu0 %v1081, 35
      %v1087 = vpop.permute.xlu0 %1086
      %v1088 = vsel %vm1016, %v1085, %v1087
      %v1089 = vsel %vm1016, %v1087, %v1085
      %1090 = vst [vmem:[#allocation1] ss:$2 sm:$0xff] %v220
      %v1091 = vld.sshfl [vmem:[#allocation1] sm:$0xff pattern:$0x75316420]
      %v1092 = vld.sshfl [vmem:[#allocation1 + $0x8] sm:$0xff pattern:$0x75316420]
      %1095 = vrot.lane.b32.xlu0 %v1091, 35
      %v1096 = vpop.permute.xlu0 %1095
      %1097 = vrot.lane.b32.xlu0 %v1092, 35
      %v1098 = vpop.permute.xlu0 %1097
      %v1099 = vsel %vm1016, %v1096, %v1098
      %v1100 = vsel %vm1016, %v1098, %v1096
      %v1101 = vmul.f32 %v1030, %v1089
      %v1102 = vmul.f32 %v1030, %v1088
      %v1103 = vmul.f32 %v1033, %v1100
      %v1104 = vmul.f32 %v1033, %v1099
      %v1105 = vadd.f32 %v1101, %v1103
      %v1106 = vadd.f32 %v1102, %v1104
      %v1107 = vmul.f32 %v1039, %v1105
      %v1108 = vmul.f32 %v1040, %v1106
      %v1109 = vadd.f32 %v1002, %v1107
      %v1110 = vadd.f32 %v1003, %v1108
      %s1111 = sld [smem:[#allocation4 + $0x8]]
      %s1112 = sld [smem:[#allocation4 + $0x39]]
      %v1113 = vmul.f32 %v223, %v236
      %1114 = vst [vmem:[#allocation1] ss:$2 sm:$0xff] %v209
      %v1115 = vld.sshfl [vmem:[#allocation1] sm:$0xff pattern:$0x75316420]
      %v1116 = vld.sshfl [vmem:[#allocation1 + $0x8] sm:$0xff pattern:$0x75316420]
      %1119 = vrot.lane.b32.xlu0 %v1115, 34
      %v1120 = vpop.permute.xlu0 %1119
      %1121 = vrot.lane.b32.xlu0 %v1116, 34
      %v1122 = vpop.permute.xlu0 %1121
      %vm1123 = vcmp.lt.s32.totalorder %v261, 34
      %v1124 = vsel %vm1123, %v1120, %v1122
      %v1125 = vsel %vm1123, %v1122, %v1120
      %1126 = vst [vmem:[#allocation1] ss:$2 sm:$0xff] %v216
      %v1127 = vld.sshfl [vmem:[#allocation1] sm:$0xff pattern:$0x75316420]
      %v1128 = vld.sshfl [vmem:[#allocation1 + $0x8] sm:$0xff pattern:$0x75316420]
      %1131 = vrot.lane.b32.xlu0 %v1127, 34
      %v1132 = vpop.permute.xlu0 %1131
      %1133 = vrot.lane.b32.xlu0 %v1128, 34
      %v1134 = vpop.permute.xlu0 %1133
      %v1135 = vsel %vm1123, %v1132, %v1134
      %v1136 = vsel %vm1123, %v1134, %v1132
      %v1137 = vstv %s1111
      %v1138 = vmul.f32 %v1137, %v1125
      %v1139 = vmul.f32 %v1137, %v1124
      %v1140 = vstv %s1112
      %v1141 = vmul.f32 %v1140, %v1136
      %v1142 = vmul.f32 %v1140, %v1135
      %v1143 = vadd.f32 %v1138, %v1141
      %v1144 = vadd.f32 %v1139, %v1142
      %v1146 = vperm.slane %v1113, 0
      %v1147 = vperm.slane %v1113, 1
      %v1150 = vmul.f32 %v1146, %v1143
      %v1151 = vmul.f32 %v1147, %v1144
      %v1152 = vadd.f32 %v1045, %v1150
      %v1153 = vadd.f32 %v1046, %v1151
      %1154 = vst [vmem:[#allocation1] ss:$2 sm:$0xff] %v212
      %v1155 = vld.sshfl [vmem:[#allocation1] sm:$0xff pattern:$0x75316420]
      %v1156 = vld.sshfl [vmem:[#allocation1 + $0x8] sm:$0xff pattern:$0x75316420]
      %1159 = vrot.lane.b32.xlu0 %v1155, 34
      %v1160 = vpop.permute.xlu0 %1159
      %1161 = vrot.lane.b32.xlu0 %v1156, 34
      %v1162 = vpop.permute.xlu0 %1161
      %v1163 = vsel %vm1123, %v1160, %v1162
      %v1164 = vsel %vm1123, %v1162, %v1160
      %1165 = vst [vmem:[#allocation1] ss:$2 sm:$0xff] %v218
      %v1166 = vld.sshfl [vmem:[#allocation1] sm:$0xff pattern:$0x75316420]
      %v1167 = vld.sshfl [vmem:[#allocation1 + $0x8] sm:$0xff pattern:$0x75316420]
      %1170 = vrot.lane.b32.xlu0 %v1166, 34
      %v1171 = vpop.permute.xlu0 %1170
      %1172 = vrot.lane.b32.xlu0 %v1167, 34
      %v1173 = vpop.permute.xlu0 %1172
      %v1174 = vsel %vm1123, %v1171, %v1173
      %v1175 = vsel %vm1123, %v1173, %v1171
      %v1176 = vmul.f32 %v1137, %v1164
      %v1177 = vmul.f32 %v1137, %v1163
      %v1178 = vmul.f32 %v1140, %v1175
      %v1179 = vmul.f32 %v1140, %v1174
      %v1180 = vadd.f32 %v1176, %v1178
      %v1181 = vadd.f32 %v1177, %v1179
      %v1182 = vmul.f32 %v1146, %v1180
      %v1183 = vmul.f32 %v1147, %v1181
      %v1184 = vadd.f32 %v1077, %v1182
      %v1185 = vadd.f32 %v1078, %v1183
      %1186 = vst [vmem:[#allocation1] ss:$2 sm:$0xff] %v215
      %v1187 = vld.sshfl [vmem:[#allocation1] sm:$0xff pattern:$0x75316420]
      %v1188 = vld.sshfl [vmem:[#allocation1 + $0x8] sm:$0xff pattern:$0x75316420]
      %1191 = vrot.lane.b32.xlu0 %v1187, 34
      %v1192 = vpop.permute.xlu0 %1191
      %1193 = vrot.lane.b32.xlu0 %v1188, 34
      %v1194 = vpop.permute.xlu0 %1193
      %v1195 = vsel %vm1123, %v1192, %v1194
      %v1196 = vsel %vm1123, %v1194, %v1192
      %1197 = vst [vmem:[#allocation1] ss:$2 sm:$0xff] %v220
      %v1198 = vld.sshfl [vmem:[#allocation1] sm:$0xff pattern:$0x75316420]
      %v1199 = vld.sshfl [vmem:[#allocation1 + $0x8] sm:$0xff pattern:$0x75316420]
      %1202 = vrot.lane.b32.xlu0 %v1198, 34
      %v1203 = vpop.permute.xlu0 %1202
      %1204 = vrot.lane.b32.xlu0 %v1199, 34
      %v1205 = vpop.permute.xlu0 %1204
      %v1206 = vsel %vm1123, %v1203, %v1205
      %v1207 = vsel %vm1123, %v1205, %v1203
      %v1208 = vmul.f32 %v1137, %v1196
      %v1209 = vmul.f32 %v1137, %v1195
      %v1210 = vmul.f32 %v1140, %v1207
      %v1211 = vmul.f32 %v1140, %v1206
      %v1212 = vadd.f32 %v1208, %v1210
      %v1213 = vadd.f32 %v1209, %v1211
      %v1214 = vmul.f32 %v1146, %v1212
      %v1215 = vmul.f32 %v1147, %v1213
      %v1216 = vadd.f32 %v1109, %v1214
      %v1217 = vadd.f32 %v1110, %v1215
      %s1218 = sld [smem:[#allocation4 + $0x9]]
      %s1219 = sld [smem:[#allocation4 + $0x3a]]
      %v1220 = vmul.f32 %v223, %v238
      %1221 = vst [vmem:[#allocation1] ss:$2 sm:$0xff] %v209
      %v1222 = vld.sshfl [vmem:[#allocation1] sm:$0xff pattern:$0x75316420]
      %v1223 = vld.sshfl [vmem:[#allocation1 + $0x8] sm:$0xff pattern:$0x75316420]
      %1226 = vrot.lane.b32.xlu0 %v1222, 33
      %v1227 = vpop.permute.xlu0 %1226
      %1228 = vrot.lane.b32.xlu0 %v1223, 33
      %v1229 = vpop.permute.xlu0 %1228
      %vm1230 = vcmp.lt.s32.totalorder %v261, 33
      %v1231 = vsel %vm1230, %v1227, %v1229
      %v1232 = vsel %vm1230, %v1229, %v1227
      %1233 = vst [vmem:[#allocation1] ss:$2 sm:$0xff] %v216
      %v1234 = vld.sshfl [vmem:[#allocation1] sm:$0xff pattern:$0x75316420]
      %v1235 = vld.sshfl [vmem:[#allocation1 + $0x8] sm:$0xff pattern:$0x75316420]
      %1238 = vrot.lane.b32.xlu0 %v1234, 33
      %v1239 = vpop.permute.xlu0 %1238
      %1240 = vrot.lane.b32.xlu0 %v1235, 33
      %v1241 = vpop.permute.xlu0 %1240
      %v1242 = vsel %vm1230, %v1239, %v1241
      %v1243 = vsel %vm1230, %v1241, %v1239
      %v1244 = vstv %s1218
      %v1245 = vmul.f32 %v1244, %v1232
      %v1246 = vmul.f32 %v1244, %v1231
      %v1247 = vstv %s1219
      %v1248 = vmul.f32 %v1247, %v1243
      %v1249 = vmul.f32 %v1247, %v1242
      %v1250 = vadd.f32 %v1245, %v1248
      %v1251 = vadd.f32 %v1246, %v1249
      %v1253 = vperm.slane %v1220, 0
      %v1254 = vperm.slane %v1220, 1
      %v1257 = vmul.f32 %v1253, %v1250
      %v1258 = vmul.f32 %v1254, %v1251
      %v1259 = vadd.f32 %v1152, %v1257
      %v1260 = vadd.f32 %v1153, %v1258
      %1261 = vst [vmem:[#allocation1] ss:$2 sm:$0xff] %v212
      %v1262 = vld.sshfl [vmem:[#allocation1] sm:$0xff pattern:$0x75316420]
      %v1263 = vld.sshfl [vmem:[#allocation1 + $0x8] sm:$0xff pattern:$0x75316420]
      %1266 = vrot.lane.b32.xlu0 %v1262, 33
      %v1267 = vpop.permute.xlu0 %1266
      %1268 = vrot.lane.b32.xlu0 %v1263, 33
      %v1269 = vpop.permute.xlu0 %1268
      %v1270 = vsel %vm1230, %v1267, %v1269
      %v1271 = vsel %vm1230, %v1269, %v1267
      %1272 = vst [vmem:[#allocation1] ss:$2 sm:$0xff] %v218
      %v1273 = vld.sshfl [vmem:[#allocation1] sm:$0xff pattern:$0x75316420]
      %v1274 = vld.sshfl [vmem:[#allocation1 + $0x8] sm:$0xff pattern:$0x75316420]
      %1277 = vrot.lane.b32.xlu0 %v1273, 33
      %v1278 = vpop.permute.xlu0 %1277
      %1279 = vrot.lane.b32.xlu0 %v1274, 33
      %v1280 = vpop.permute.xlu0 %1279
      %v1281 = vsel %vm1230, %v1278, %v1280
      %v1282 = vsel %vm1230, %v1280, %v1278
      %v1283 = vmul.f32 %v1244, %v1271
      %v1284 = vmul.f32 %v1244, %v1270
      %v1285 = vmul.f32 %v1247, %v1282
      %v1286 = vmul.f32 %v1247, %v1281
      %v1287 = vadd.f32 %v1283, %v1285
      %v1288 = vadd.f32 %v1284, %v1286
      %v1289 = vmul.f32 %v1253, %v1287
      %v1290 = vmul.f32 %v1254, %v1288
      %v1291 = vadd.f32 %v1184, %v1289
      %v1292 = vadd.f32 %v1185, %v1290
      %1293 = vst [vmem:[#allocation1] ss:$2 sm:$0xff] %v215
      %v1294 = vld.sshfl [vmem:[#allocation1] sm:$0xff pattern:$0x75316420]
      %v1295 = vld.sshfl [vmem:[#allocation1 + $0x8] sm:$0xff pattern:$0x75316420]
      %1298 = vrot.lane.b32.xlu0 %v1294, 33
      %v1299 = vpop.permute.xlu0 %1298
      %1300 = vrot.lane.b32.xlu0 %v1295, 33
      %v1301 = vpop.permute.xlu0 %1300
      %v1302 = vsel %vm1230, %v1299, %v1301
      %v1303 = vsel %vm1230, %v1301, %v1299
      %1304 = vst [vmem:[#allocation1] ss:$2 sm:$0xff] %v220
      %v1305 = vld.sshfl [vmem:[#allocation1] sm:$0xff pattern:$0x75316420]
      %v1306 = vld.sshfl [vmem:[#allocation1 + $0x8] sm:$0xff pattern:$0x75316420]
      %1309 = vrot.lane.b32.xlu0 %v1305, 33
      %v1310 = vpop.permute.xlu0 %1309
      %1311 = vrot.lane.b32.xlu0 %v1306, 33
      %v1312 = vpop.permute.xlu0 %1311
      %v1313 = vsel %vm1230, %v1310, %v1312
      %v1314 = vsel %vm1230, %v1312, %v1310
      %v1315 = vmul.f32 %v1244, %v1303
      %v1316 = vmul.f32 %v1244, %v1302
      %v1317 = vmul.f32 %v1247, %v1314
      %v1318 = vmul.f32 %v1247, %v1313
      %v1319 = vadd.f32 %v1315, %v1317
      %v1320 = vadd.f32 %v1316, %v1318
      %v1321 = vmul.f32 %v1253, %v1319
      %v1322 = vmul.f32 %v1254, %v1320
      %v1323 = vadd.f32 %v1216, %v1321
      %v1324 = vadd.f32 %v1217, %v1322
      %s1325 = sld [smem:[#allocation4 + $0xa]]
      %s1326 = sld [smem:[#allocation4 + $0x3b]]
      %v1327 = vmul.f32 %v223, %v240
      %1328 = vst [vmem:[#allocation1] ss:$2 sm:$0xff] %v209
      %v1329 = vld.sshfl [vmem:[#allocation1] sm:$0xff pattern:$0x75316420]
      %v1330 = vld.sshfl [vmem:[#allocation1 + $0x8] sm:$0xff pattern:$0x75316420]
      %1333 = vrot.lane.b32.xlu0 %v1329, 32
      %v1334 = vpop.permute.xlu0 %1333
      %1335 = vrot.lane.b32.xlu0 %v1330, 32
      %v1336 = vpop.permute.xlu0 %1335
      %vm1337 = vcmp.lt.s32.totalorder %v261, 32
      %v1338 = vsel %vm1337, %v1334, %v1336
      %v1339 = vsel %vm1337, %v1336, %v1334
      %1340 = vst [vmem:[#allocation1] ss:$2 sm:$0xff] %v216
      %v1341 = vld.sshfl [vmem:[#allocation1] sm:$0xff pattern:$0x75316420]
      %v1342 = vld.sshfl [vmem:[#allocation1 + $0x8] sm:$0xff pattern:$0x75316420]
      %1345 = vrot.lane.b32.xlu0 %v1341, 32
      %v1346 = vpop.permute.xlu0 %1345
      %1347 = vrot.lane.b32.xlu0 %v1342, 32
      %v1348 = vpop.permute.xlu0 %1347
      %v1349 = vsel %vm1337, %v1346, %v1348
      %v1350 = vsel %vm1337, %v1348, %v1346
      %v1351 = vstv %s1325
      %v1352 = vmul.f32 %v1351, %v1339
      %v1353 = vmul.f32 %v1351, %v1338
      %v1354 = vstv %s1326
      %v1355 = vmul.f32 %v1354, %v1350
      %v1356 = vmul.f32 %v1354, %v1349
      %v1357 = vadd.f32 %v1352, %v1355
      %v1358 = vadd.f32 %v1353, %v1356
      %v1360 = vperm.slane %v1327, 0
      %v1361 = vperm.slane %v1327, 1
      %v1364 = vmul.f32 %v1360, %v1357
      %v1365 = vmul.f32 %v1361, %v1358
      %v1366 = vadd.f32 %v1259, %v1364
      %v1367 = vadd.f32 %v1260, %v1365
      %1368 = vst [vmem:[#allocation1] ss:$2 sm:$0xff] %v212
      %v1369 = vld.sshfl [vmem:[#allocation1] sm:$0xff pattern:$0x75316420]
      %v1370 = vld.sshfl [vmem:[#allocation1 + $0x8] sm:$0xff pattern:$0x75316420]
      %1373 = vrot.lane.b32.xlu0 %v1369, 32
      %v1374 = vpop.permute.xlu0 %1373
      %1375 = vrot.lane.b32.xlu0 %v1370, 32
      %v1376 = vpop.permute.xlu0 %1375
      %v1377 = vsel %vm1337, %v1374, %v1376
      %v1378 = vsel %vm1337, %v1376, %v1374
      %1379 = vst [vmem:[#allocation1] ss:$2 sm:$0xff] %v218
      %v1380 = vld.sshfl [vmem:[#allocation1] sm:$0xff pattern:$0x75316420]
      %v1381 = vld.sshfl [vmem:[#allocation1 + $0x8] sm:$0xff pattern:$0x75316420]
      %1384 = vrot.lane.b32.xlu0 %v1380, 32
      %v1385 = vpop.permute.xlu0 %1384
      %1386 = vrot.lane.b32.xlu0 %v1381, 32
      %v1387 = vpop.permute.xlu0 %1386
      %v1388 = vsel %vm1337, %v1385, %v1387
      %v1389 = vsel %vm1337, %v1387, %v1385
      %v1390 = vmul.f32 %v1351, %v1378
      %v1391 = vmul.f32 %v1351, %v1377
      %v1392 = vmul.f32 %v1354, %v1389
      %v1393 = vmul.f32 %v1354, %v1388
      %v1394 = vadd.f32 %v1390, %v1392
      %v1395 = vadd.f32 %v1391, %v1393
      %v1396 = vmul.f32 %v1360, %v1394
      %v1397 = vmul.f32 %v1361, %v1395
      %v1398 = vadd.f32 %v1291, %v1396
      %v1399 = vadd.f32 %v1292, %v1397
      %1400 = vst [vmem:[#allocation1] ss:$2 sm:$0xff] %v215
      %v1401 = vld.sshfl [vmem:[#allocation1] sm:$0xff pattern:$0x75316420]
      %v1402 = vld.sshfl [vmem:[#allocation1 + $0x8] sm:$0xff pattern:$0x75316420]
      %1405 = vrot.lane.b32.xlu0 %v1401, 32
      %v1406 = vpop.permute.xlu0 %1405
      %1407 = vrot.lane.b32.xlu0 %v1402, 32
      %v1408 = vpop.permute.xlu0 %1407
      %v1409 = vsel %vm1337, %v1406, %v1408
      %v1410 = vsel %vm1337, %v1408, %v1406
      %1411 = vst [vmem:[#allocation1] ss:$2 sm:$0xff] %v220
      %v1412 = vld.sshfl [vmem:[#allocation1] sm:$0xff pattern:$0x75316420]
      %v1413 = vld.sshfl [vmem:[#allocation1 + $0x8] sm:$0xff pattern:$0x75316420]
      %1416 = vrot.lane.b32.xlu0 %v1412, 32
      %v1417 = vpop.permute.xlu0 %1416
      %1418 = vrot.lane.b32.xlu0 %v1413, 32
      %v1419 = vpop.permute.xlu0 %1418
      %v1420 = vsel %vm1337, %v1417, %v1419
      %v1421 = vsel %vm1337, %v1419, %v1417
      %v1422 = vmul.f32 %v1351, %v1410
      %v1423 = vmul.f32 %v1351, %v1409
      %v1424 = vmul.f32 %v1354, %v1421
      %v1425 = vmul.f32 %v1354, %v1420
      %v1426 = vadd.f32 %v1422, %v1424
      %v1427 = vadd.f32 %v1423, %v1425
      %v1428 = vmul.f32 %v1360, %v1426
      %v1429 = vmul.f32 %v1361, %v1427
      %v1430 = vadd.f32 %v1323, %v1428
      %v1431 = vadd.f32 %v1324, %v1429
      %s1432 = sld [smem:[#allocation4 + $0xb]]
      %s1433 = sld [smem:[#allocation4 + $0x3c]]
      %v1434 = vmul.f32 %v223, %v242
      %1435 = vst [vmem:[#allocation1] ss:$2 sm:$0xff] %v209
      %v1436 = vld.sshfl [vmem:[#allocation1] sm:$0xff pattern:$0x75316420]
      %v1437 = vld.sshfl [vmem:[#allocation1 + $0x8] sm:$0xff pattern:$0x75316420]
      %1440 = vrot.lane.b32.xlu0 %v1436, 31
      %v1441 = vpop.permute.xlu0 %1440
      %1442 = vrot.lane.b32.xlu0 %v1437, 31
      %v1443 = vpop.permute.xlu0 %1442
      %vm1444 = vcmp.lt.s32.totalorder %v261, 31
      %v1445 = vsel %vm1444, %v1441, %v1443
      %v1446 = vsel %vm1444, %v1443, %v1441
      %1447 = vst [vmem:[#allocation1] ss:$2 sm:$0xff] %v216
      %v1448 = vld.sshfl [vmem:[#allocation1] sm:$0xff pattern:$0x75316420]
      %v1449 = vld.sshfl [vmem:[#allocation1 + $0x8] sm:$0xff pattern:$0x75316420]
      %1452 = vrot.lane.b32.xlu0 %v1448, 31
      %v1453 = vpop.permute.xlu0 %1452
      %1454 = vrot.lane.b32.xlu0 %v1449, 31
      %v1455 = vpop.permute.xlu0 %1454
      %v1456 = vsel %vm1444, %v1453, %v1455
      %v1457 = vsel %vm1444, %v1455, %v1453
      %v1458 = vstv %s1432
      %v1459 = vmul.f32 %v1458, %v1446
      %v1460 = vmul.f32 %v1458, %v1445
      %v1461 = vstv %s1433
      %v1462 = vmul.f32 %v1461, %v1457
      %v1463 = vmul.f32 %v1461, %v1456
      %v1464 = vadd.f32 %v1459, %v1462
      %v1465 = vadd.f32 %v1460, %v1463
      %v1467 = vperm.slane %v1434, 0
      %v1468 = vperm.slane %v1434, 1
      %v1471 = vmul.f32 %v1467, %v1464
      %v1472 = vmul.f32 %v1468, %v1465
      %v1473 = vadd.f32 %v1366, %v1471
      %v1474 = vadd.f32 %v1367, %v1472
      %1475 = vst [vmem:[#allocation1] ss:$2 sm:$0xff] %v212
      %v1476 = vld.sshfl [vmem:[#allocation1] sm:$0xff pattern:$0x75316420]
      %v1477 = vld.sshfl [vmem:[#allocation1 + $0x8] sm:$0xff pattern:$0x75316420]
      %1480 = vrot.lane.b32.xlu0 %v1476, 31
      %v1481 = vpop.permute.xlu0 %1480
      %1482 = vrot.lane.b32.xlu0 %v1477, 31
      %v1483 = vpop.permute.xlu0 %1482
      %v1484 = vsel %vm1444, %v1481, %v1483
      %v1485 = vsel %vm1444, %v1483, %v1481
      %1486 = vst [vmem:[#allocation1] ss:$2 sm:$0xff] %v218
      %v1487 = vld.sshfl [vmem:[#allocation1] sm:$0xff pattern:$0x75316420]
      %v1488 = vld.sshfl [vmem:[#allocation1 + $0x8] sm:$0xff pattern:$0x75316420]
      %1491 = vrot.lane.b32.xlu0 %v1487, 31
      %v1492 = vpop.permute.xlu0 %1491
      %1493 = vrot.lane.b32.xlu0 %v1488, 31
      %v1494 = vpop.permute.xlu0 %1493
      %v1495 = vsel %vm1444, %v1492, %v1494
      %v1496 = vsel %vm1444, %v1494, %v1492
      %v1497 = vmul.f32 %v1458, %v1485
      %v1498 = vmul.f32 %v1458, %v1484
      %v1499 = vmul.f32 %v1461, %v1496
      %v1500 = vmul.f32 %v1461, %v1495
      %v1501 = vadd.f32 %v1497, %v1499
      %v1502 = vadd.f32 %v1498, %v1500
      %v1503 = vmul.f32 %v1467, %v1501
      %v1504 = vmul.f32 %v1468, %v1502
      %v1505 = vadd.f32 %v1398, %v1503
      %v1506 = vadd.f32 %v1399, %v1504
      %1507 = vst [vmem:[#allocation1] ss:$2 sm:$0xff] %v215
      %v1508 = vld.sshfl [vmem:[#allocation1] sm:$0xff pattern:$0x75316420]
      %v1509 = vld.sshfl [vmem:[#allocation1 + $0x8] sm:$0xff pattern:$0x75316420]
      %1512 = vrot.lane.b32.xlu0 %v1508, 31
      %v1513 = vpop.permute.xlu0 %1512
      %1514 = vrot.lane.b32.xlu0 %v1509, 31
      %v1515 = vpop.permute.xlu0 %1514
      %v1516 = vsel %vm1444, %v1513, %v1515
      %v1517 = vsel %vm1444, %v1515, %v1513
      %1518 = vst [vmem:[#allocation1] ss:$2 sm:$0xff] %v220
      %v1519 = vld.sshfl [vmem:[#allocation1] sm:$0xff pattern:$0x75316420]
      %v1520 = vld.sshfl [vmem:[#allocation1 + $0x8] sm:$0xff pattern:$0x75316420]
      %1523 = vrot.lane.b32.xlu0 %v1519, 31
      %v1524 = vpop.permute.xlu0 %1523
      %1525 = vrot.lane.b32.xlu0 %v1520, 31
      %v1526 = vpop.permute.xlu0 %1525
      %v1527 = vsel %vm1444, %v1524, %v1526
      %v1528 = vsel %vm1444, %v1526, %v1524
      %v1529 = vmul.f32 %v1458, %v1517
      %v1530 = vmul.f32 %v1458, %v1516
      %v1531 = vmul.f32 %v1461, %v1528
      %v1532 = vmul.f32 %v1461, %v1527
      %v1533 = vadd.f32 %v1529, %v1531
      %v1534 = vadd.f32 %v1530, %v1532
      %v1535 = vmul.f32 %v1467, %v1533
      %v1536 = vmul.f32 %v1468, %v1534
      %v1537 = vadd.f32 %v1430, %v1535
      %v1538 = vadd.f32 %v1431, %v1536
      %s1539 = sld [smem:[#allocation4 + $0xc]]
      %s1540 = sld [smem:[#allocation4 + $0x3d]]
      %v1541 = vmul.f32 %v223, %v244
      %1542 = vst [vmem:[#allocation1] ss:$2 sm:$0xff] %v209
      %v1543 = vld.sshfl [vmem:[#allocation1] sm:$0xff pattern:$0x75316420]
      %v1544 = vld.sshfl [vmem:[#allocation1 + $0x8] sm:$0xff pattern:$0x75316420]
      %1547 = vrot.lane.b32.xlu0 %v1543, 30
      %v1548 = vpop.permute.xlu0 %1547
      %1549 = vrot.lane.b32.xlu0 %v1544, 30
      %v1550 = vpop.permute.xlu0 %1549
      %vm1551 = vcmp.lt.s32.totalorder %v261, 30
      %v1552 = vsel %vm1551, %v1548, %v1550
      %v1553 = vsel %vm1551, %v1550, %v1548
      %1554 = vst [vmem:[#allocation1] ss:$2 sm:$0xff] %v216
      %v1555 = vld.sshfl [vmem:[#allocation1] sm:$0xff pattern:$0x75316420]
      %v1556 = vld.sshfl [vmem:[#allocation1 + $0x8] sm:$0xff pattern:$0x75316420]
      %1559 = vrot.lane.b32.xlu0 %v1555, 30
      %v1560 = vpop.permute.xlu0 %1559
      %1561 = vrot.lane.b32.xlu0 %v1556, 30
      %v1562 = vpop.permute.xlu0 %1561
      %v1563 = vsel %vm1551, %v1560, %v1562
      %v1564 = vsel %vm1551, %v1562, %v1560
      %v1565 = vstv %s1539
      %v1566 = vmul.f32 %v1565, %v1553
      %v1567 = vmul.f32 %v1565, %v1552
      %v1568 = vstv %s1540
      %v1569 = vmul.f32 %v1568, %v1564
      %v1570 = vmul.f32 %v1568, %v1563
      %v1571 = vadd.f32 %v1566, %v1569
      %v1572 = vadd.f32 %v1567, %v1570
      %v1574 = vperm.slane %v1541, 0
      %v1575 = vperm.slane %v1541, 1
      %v1578 = vmul.f32 %v1574, %v1571
      %v1579 = vmul.f32 %v1575, %v1572
      %v1580 = vadd.f32 %v1473, %v1578
      %v1581 = vadd.f32 %v1474, %v1579
      %1582 = vst [vmem:[#allocation1] ss:$2 sm:$0xff] %v212
      %v1583 = vld.sshfl [vmem:[#allocation1] sm:$0xff pattern:$0x75316420]
      %v1584 = vld.sshfl [vmem:[#allocation1 + $0x8] sm:$0xff pattern:$0x75316420]
      %1587 = vrot.lane.b32.xlu0 %v1583, 30
      %v1588 = vpop.permute.xlu0 %1587
      %1589 = vrot.lane.b32.xlu0 %v1584, 30
      %v1590 = vpop.permute.xlu0 %1589
      %v1591 = vsel %vm1551, %v1588, %v1590
      %v1592 = vsel %vm1551, %v1590, %v1588
      %1593 = vst [vmem:[#allocation1] ss:$2 sm:$0xff] %v218
      %v1594 = vld.sshfl [vmem:[#allocation1] sm:$0xff pattern:$0x75316420]
      %v1595 = vld.sshfl [vmem:[#allocation1 + $0x8] sm:$0xff pattern:$0x75316420]
      %1598 = vrot.lane.b32.xlu0 %v1594, 30
      %v1599 = vpop.permute.xlu0 %1598
      %1600 = vrot.lane.b32.xlu0 %v1595, 30
      %v1601 = vpop.permute.xlu0 %1600
      %v1602 = vsel %vm1551, %v1599, %v1601
      %v1603 = vsel %vm1551, %v1601, %v1599
      %v1604 = vmul.f32 %v1565, %v1592
      %v1605 = vmul.f32 %v1565, %v1591
      %v1606 = vmul.f32 %v1568, %v1603
      %v1607 = vmul.f32 %v1568, %v1602
      %v1608 = vadd.f32 %v1604, %v1606
      %v1609 = vadd.f32 %v1605, %v1607
      %v1610 = vmul.f32 %v1574, %v1608
      %v1611 = vmul.f32 %v1575, %v1609
      %v1612 = vadd.f32 %v1505, %v1610
      %v1613 = vadd.f32 %v1506, %v1611
      %1614 = vst [vmem:[#allocation1] ss:$2 sm:$0xff] %v215
      %v1615 = vld.sshfl [vmem:[#allocation1] sm:$0xff pattern:$0x75316420]
      %v1616 = vld.sshfl [vmem:[#allocation1 + $0x8] sm:$0xff pattern:$0x75316420]
      %1619 = vrot.lane.b32.xlu0 %v1615, 30
      %v1620 = vpop.permute.xlu0 %1619
      %1621 = vrot.lane.b32.xlu0 %v1616, 30
      %v1622 = vpop.permute.xlu0 %1621
      %v1623 = vsel %vm1551, %v1620, %v1622
      %v1624 = vsel %vm1551, %v1622, %v1620
      %1625 = vst [vmem:[#allocation1] ss:$2 sm:$0xff] %v220
      %v1626 = vld.sshfl [vmem:[#allocation1] sm:$0xff pattern:$0x75316420]
      %v1627 = vld.sshfl [vmem:[#allocation1 + $0x8] sm:$0xff pattern:$0x75316420]
      %1630 = vrot.lane.b32.xlu0 %v1626, 30
      %v1631 = vpop.permute.xlu0 %1630
      %1632 = vrot.lane.b32.xlu0 %v1627, 30
      %v1633 = vpop.permute.xlu0 %1632
      %v1634 = vsel %vm1551, %v1631, %v1633
      %v1635 = vsel %vm1551, %v1633, %v1631
      %v1636 = vmul.f32 %v1565, %v1624
      %v1637 = vmul.f32 %v1565, %v1623
      %v1638 = vmul.f32 %v1568, %v1635
      %v1639 = vmul.f32 %v1568, %v1634
      %v1640 = vadd.f32 %v1636, %v1638
      %v1641 = vadd.f32 %v1637, %v1639
      %v1642 = vmul.f32 %v1574, %v1640
      %v1643 = vmul.f32 %v1575, %v1641
      %v1644 = vadd.f32 %v1537, %v1642
      %v1645 = vadd.f32 %v1538, %v1643
      %s1646 = sld [smem:[#allocation4 + $0xd]]
      %s1647 = sld [smem:[#allocation4 + $0x3e]]
      %v1648 = vmul.f32 %v223, %v246
      %1649 = vst [vmem:[#allocation1] ss:$2 sm:$0xff] %v209
      %v1650 = vld.sshfl [vmem:[#allocation1] sm:$0xff pattern:$0x75316420]
      %v1651 = vld.sshfl [vmem:[#allocation1 + $0x8] sm:$0xff pattern:$0x75316420]
      %1654 = vrot.lane.b32.xlu0 %v1650, 29
      %v1655 = vpop.permute.xlu0 %1654
      %1656 = vrot.lane.b32.xlu0 %v1651, 29
      %v1657 = vpop.permute.xlu0 %1656
      %vm1658 = vcmp.lt.s32.totalorder %v261, 29
      %v1659 = vsel %vm1658, %v1655, %v1657
      %v1660 = vsel %vm1658, %v1657, %v1655
      %1661 = vst [vmem:[#allocation1] ss:$2 sm:$0xff] %v216
      %v1662 = vld.sshfl [vmem:[#allocation1] sm:$0xff pattern:$0x75316420]
      %v1663 = vld.sshfl [vmem:[#allocation1 + $0x8] sm:$0xff pattern:$0x75316420]
      %1666 = vrot.lane.b32.xlu0 %v1662, 29
      %v1667 = vpop.permute.xlu0 %1666
      %1668 = vrot.lane.b32.xlu0 %v1663, 29
      %v1669 = vpop.permute.xlu0 %1668
      %v1670 = vsel %vm1658, %v1667, %v1669
      %v1671 = vsel %vm1658, %v1669, %v1667
      %v1672 = vstv %s1646
      %v1673 = vmul.f32 %v1672, %v1660
      %v1674 = vmul.f32 %v1672, %v1659
      %v1675 = vstv %s1647
      %v1676 = vmul.f32 %v1675, %v1671
      %v1677 = vmul.f32 %v1675, %v1670
      %v1678 = vadd.f32 %v1673, %v1676
      %v1679 = vadd.f32 %v1674, %v1677
      %v1681 = vperm.slane %v1648, 0
      %v1682 = vperm.slane %v1648, 1
      %v1685 = vmul.f32 %v1681, %v1678
      %v1686 = vmul.f32 %v1682, %v1679
      %v1687 = vadd.f32 %v1580, %v1685
      %v1688 = vadd.f32 %v1581, %v1686
      %1689 = vst [vmem:[#allocation1] ss:$2 sm:$0xff] %v212
      %v1690 = vld.sshfl [vmem:[#allocation1] sm:$0xff pattern:$0x75316420]
      %v1691 = vld.sshfl [vmem:[#allocation1 + $0x8] sm:$0xff pattern:$0x75316420]
      %1694 = vrot.lane.b32.xlu0 %v1690, 29
      %v1695 = vpop.permute.xlu0 %1694
      %1696 = vrot.lane.b32.xlu0 %v1691, 29
      %v1697 = vpop.permute.xlu0 %1696
      %v1698 = vsel %vm1658, %v1695, %v1697
      %v1699 = vsel %vm1658, %v1697, %v1695
      %1700 = vst [vmem:[#allocation1] ss:$2 sm:$0xff] %v218
      %v1701 = vld.sshfl [vmem:[#allocation1] sm:$0xff pattern:$0x75316420]
      %v1702 = vld.sshfl [vmem:[#allocation1 + $0x8] sm:$0xff pattern:$0x75316420]
      %1705 = vrot.lane.b32.xlu0 %v1701, 29
      %v1706 = vpop.permute.xlu0 %1705
      %1707 = vrot.lane.b32.xlu0 %v1702, 29
      %v1708 = vpop.permute.xlu0 %1707
      %v1709 = vsel %vm1658, %v1706, %v1708
      %v1710 = vsel %vm1658, %v1708, %v1706
      %v1711 = vmul.f32 %v1672, %v1699
      %v1712 = vmul.f32 %v1672, %v1698
      %v1713 = vmul.f32 %v1675, %v1710
      %v1714 = vmul.f32 %v1675, %v1709
      %v1715 = vadd.f32 %v1711, %v1713
      %v1716 = vadd.f32 %v1712, %v1714
      %v1717 = vmul.f32 %v1681, %v1715
      %v1718 = vmul.f32 %v1682, %v1716
      %v1719 = vadd.f32 %v1612, %v1717
      %v1720 = vadd.f32 %v1613, %v1718
      %1721 = vst [vmem:[#allocation1] ss:$2 sm:$0xff] %v215
      %v1722 = vld.sshfl [vmem:[#allocation1] sm:$0xff pattern:$0x75316420]
      %v1723 = vld.sshfl [vmem:[#allocation1 + $0x8] sm:$0xff pattern:$0x75316420]
      %1726 = vrot.lane.b32.xlu0 %v1722, 29
      %v1727 = vpop.permute.xlu0 %1726
      %1728 = vrot.lane.b32.xlu0 %v1723, 29
      %v1729 = vpop.permute.xlu0 %1728
      %v1730 = vsel %vm1658, %v1727, %v1729
      %v1731 = vsel %vm1658, %v1729, %v1727
      %1732 = vst [vmem:[#allocation1] ss:$2 sm:$0xff] %v220
      %v1733 = vld.sshfl [vmem:[#allocation1] sm:$0xff pattern:$0x75316420]
      %v1734 = vld.sshfl [vmem:[#allocation1 + $0x8] sm:$0xff pattern:$0x75316420]
      %1737 = vrot.lane.b32.xlu0 %v1733, 29
      %v1738 = vpop.permute.xlu0 %1737
      %1739 = vrot.lane.b32.xlu0 %v1734, 29
      %v1740 = vpop.permute.xlu0 %1739
      %v1741 = vsel %vm1658, %v1738, %v1740
      %v1742 = vsel %vm1658, %v1740, %v1738
      %v1743 = vmul.f32 %v1672, %v1731
      %v1744 = vmul.f32 %v1672, %v1730
      %v1745 = vmul.f32 %v1675, %v1742
      %v1746 = vmul.f32 %v1675, %v1741
      %v1747 = vadd.f32 %v1743, %v1745
      %v1748 = vadd.f32 %v1744, %v1746
      %v1749 = vmul.f32 %v1681, %v1747
      %v1750 = vmul.f32 %v1682, %v1748
      %v1751 = vadd.f32 %v1644, %v1749
      %v1752 = vadd.f32 %v1645, %v1750
      %s1753 = sld [smem:[#allocation4 + $0xe]]
      %s1754 = sld [smem:[#allocation4 + $0x3f]]
      %v1755 = vmul.f32 %v225, %v234
      %1756 = vst [vmem:[#allocation1] ss:$2 sm:$0xff] %v209
      %v1757 = vld.sshfl [vmem:[#allocation1] sm:$0xff pattern:$0x75316420]
      %v1758 = vld.sshfl [vmem:[#allocation1 + $0x8] sm:$0xff pattern:$0x75316420]
      %1761 = vrot.lane.b32.xlu0 %v1757, 19
      %v1762 = vpop.permute.xlu0 %1761
      %1763 = vrot.lane.b32.xlu0 %v1758, 19
      %v1764 = vpop.permute.xlu0 %1763
      %vm1765 = vcmp.lt.s32.totalorder %v261, 19
      %v1766 = vsel %vm1765, %v1762, %v1764
      %v1767 = vsel %vm1765, %v1764, %v1762
      %1768 = vst [vmem:[#allocation1] ss:$2 sm:$0xff] %v216
      %v1769 = vld.sshfl [vmem:[#allocation1] sm:$0xff pattern:$0x75316420]
      %v1770 = vld.sshfl [vmem:[#allocation1 + $0x8] sm:$0xff pattern:$0x75316420]
      %1773 = vrot.lane.b32.xlu0 %v1769, 19
      %v1774 = vpop.permute.xlu0 %1773
      %1775 = vrot.lane.b32.xlu0 %v1770, 19
      %v1776 = vpop.permute.xlu0 %1775
      %v1777 = vsel %vm1765, %v1774, %v1776
      %v1778 = vsel %vm1765, %v1776, %v1774
      %v1779 = vstv %s1753
      %v1780 = vmul.f32 %v1779, %v1767
      %v1781 = vmul.f32 %v1779, %v1766
      %v1782 = vstv %s1754
      %v1783 = vmul.f32 %v1782, %v1778
      %v1784 = vmul.f32 %v1782, %v1777
      %v1785 = vadd.f32 %v1780, %v1783
      %v1786 = vadd.f32 %v1781, %v1784
      %v1788 = vperm.slane %v1755, 0
      %v1789 = vperm.slane %v1755, 1
      %v1792 = vmul.f32 %v1788, %v1785
      %v1793 = vmul.f32 %v1789, %v1786
      %v1794 = vadd.f32 %v1687, %v1792
      %v1795 = vadd.f32 %v1688, %v1793
      %1796 = vst [vmem:[#allocation1] ss:$2 sm:$0xff] %v212
      %v1797 = vld.sshfl [vmem:[#allocation1] sm:$0xff pattern:$0x75316420]
      %v1798 = vld.sshfl [vmem:[#allocation1 + $0x8] sm:$0xff pattern:$0x75316420]
      %1801 = vrot.lane.b32.xlu0 %v1797, 19
      %v1802 = vpop.permute.xlu0 %1801
      %1803 = vrot.lane.b32.xlu0 %v1798, 19
      %v1804 = vpop.permute.xlu0 %1803
      %v1805 = vsel %vm1765, %v1802, %v1804
      %v1806 = vsel %vm1765, %v1804, %v1802
      %1807 = vst [vmem:[#allocation1] ss:$2 sm:$0xff] %v218
      %v1808 = vld.sshfl [vmem:[#allocation1] sm:$0xff pattern:$0x75316420]
      %v1809 = vld.sshfl [vmem:[#allocation1 + $0x8] sm:$0xff pattern:$0x75316420]
      %1812 = vrot.lane.b32.xlu0 %v1808, 19
      %v1813 = vpop.permute.xlu0 %1812
      %1814 = vrot.lane.b32.xlu0 %v1809, 19
      %v1815 = vpop.permute.xlu0 %1814
      %v1816 = vsel %vm1765, %v1813, %v1815
      %v1817 = vsel %vm1765, %v1815, %v1813
      %v1818 = vmul.f32 %v1779, %v1806
      %v1819 = vmul.f32 %v1779, %v1805
      %v1820 = vmul.f32 %v1782, %v1817
      %v1821 = vmul.f32 %v1782, %v1816
      %v1822 = vadd.f32 %v1818, %v1820
      %v1823 = vadd.f32 %v1819, %v1821
      %v1824 = vmul.f32 %v1788, %v1822
      %v1825 = vmul.f32 %v1789, %v1823
      %v1826 = vadd.f32 %v1719, %v1824
      %v1827 = vadd.f32 %v1720, %v1825
      %1828 = vst [vmem:[#allocation1] ss:$2 sm:$0xff] %v215
      %v1829 = vld.sshfl [vmem:[#allocation1] sm:$0xff pattern:$0x75316420]
      %v1830 = vld.sshfl [vmem:[#allocation1 + $0x8] sm:$0xff pattern:$0x75316420]
      %1833 = vrot.lane.b32.xlu0 %v1829, 19
      %v1834 = vpop.permute.xlu0 %1833
      %1835 = vrot.lane.b32.xlu0 %v1830, 19
      %v1836 = vpop.permute.xlu0 %1835
      %v1837 = vsel %vm1765, %v1834, %v1836
      %v1838 = vsel %vm1765, %v1836, %v1834
      %1839 = vst [vmem:[#allocation1] ss:$2 sm:$0xff] %v220
      %v1840 = vld.sshfl [vmem:[#allocation1] sm:$0xff pattern:$0x75316420]
      %v1841 = vld.sshfl [vmem:[#allocation1 + $0x8] sm:$0xff pattern:$0x75316420]
      %1844 = vrot.lane.b32.xlu0 %v1840, 19
      %v1845 = vpop.permute.xlu0 %1844
      %1846 = vrot.lane.b32.xlu0 %v1841, 19
      %v1847 = vpop.permute.xlu0 %1846
      %v1848 = vsel %vm1765, %v1845, %v1847
      %v1849 = vsel %vm1765, %v1847, %v1845
      %v1850 = vmul.f32 %v1779, %v1838
      %v1851 = vmul.f32 %v1779, %v1837
      %v1852 = vmul.f32 %v1782, %v1849
      %v1853 = vmul.f32 %v1782, %v1848
      %v1854 = vadd.f32 %v1850, %v1852
      %v1855 = vadd.f32 %v1851, %v1853
      %v1856 = vmul.f32 %v1788, %v1854
      %v1857 = vmul.f32 %v1789, %v1855
      %v1858 = vadd.f32 %v1751, %v1856
      %v1859 = vadd.f32 %v1752, %v1857
      %s1860 = sld [smem:[#allocation4 + $0xf]]
      %s1861 = sld [smem:[#allocation4 + $0x40]]
      %v1862 = vmul.f32 %v225, %v236
      %1863 = vst [vmem:[#allocation1] ss:$2 sm:$0xff] %v209
      %v1864 = vld.sshfl [vmem:[#allocation1] sm:$0xff pattern:$0x75316420]
      %v1865 = vld.sshfl [vmem:[#allocation1 + $0x8] sm:$0xff pattern:$0x75316420]
      %1868 = vrot.lane.b32.xlu0 %v1864, 18
      %v1869 = vpop.permute.xlu0 %1868
      %1870 = vrot.lane.b32.xlu0 %v1865, 18
      %v1871 = vpop.permute.xlu0 %1870
      %vm1872 = vcmp.lt.s32.totalorder %v261, 18
      %v1873 = vsel %vm1872, %v1869, %v1871
      %v1874 = vsel %vm1872, %v1871, %v1869
      %1875 = vst [vmem:[#allocation1] ss:$2 sm:$0xff] %v216
      %v1876 = vld.sshfl [vmem:[#allocation1] sm:$0xff pattern:$0x75316420]
      %v1877 = vld.sshfl [vmem:[#allocation1 + $0x8] sm:$0xff pattern:$0x75316420]
      %1880 = vrot.lane.b32.xlu0 %v1876, 18
      %v1881 = vpop.permute.xlu0 %1880
      %1882 = vrot.lane.b32.xlu0 %v1877, 18
      %v1883 = vpop.permute.xlu0 %1882
      %v1884 = vsel %vm1872, %v1881, %v1883
      %v1885 = vsel %vm1872, %v1883, %v1881
      %v1886 = vstv %s1860
      %v1887 = vmul.f32 %v1886, %v1874
      %v1888 = vmul.f32 %v1886, %v1873
      %v1889 = vstv %s1861
      %v1890 = vmul.f32 %v1889, %v1885
      %v1891 = vmul.f32 %v1889, %v1884
      %v1892 = vadd.f32 %v1887, %v1890
      %v1893 = vadd.f32 %v1888, %v1891
      %v1895 = vperm.slane %v1862, 0
      %v1896 = vperm.slane %v1862, 1
      %v1899 = vmul.f32 %v1895, %v1892
      %v1900 = vmul.f32 %v1896, %v1893
      %v1901 = vadd.f32 %v1794, %v1899
      %v1902 = vadd.f32 %v1795, %v1900
      %1903 = vst [vmem:[#allocation1] ss:$2 sm:$0xff] %v212
      %v1904 = vld.sshfl [vmem:[#allocation1] sm:$0xff pattern:$0x75316420]
      %v1905 = vld.sshfl [vmem:[#allocation1 + $0x8] sm:$0xff pattern:$0x75316420]
      %1908 = vrot.lane.b32.xlu0 %v1904, 18
      %v1909 = vpop.permute.xlu0 %1908
      %1910 = vrot.lane.b32.xlu0 %v1905, 18
      %v1911 = vpop.permute.xlu0 %1910
      %v1912 = vsel %vm1872, %v1909, %v1911
      %v1913 = vsel %vm1872, %v1911, %v1909
      %1914 = vst [vmem:[#allocation1] ss:$2 sm:$0xff] %v218
      %v1915 = vld.sshfl [vmem:[#allocation1] sm:$0xff pattern:$0x75316420]
      %v1916 = vld.sshfl [vmem:[#allocation1 + $0x8] sm:$0xff pattern:$0x75316420]
      %1919 = vrot.lane.b32.xlu0 %v1915, 18
      %v1920 = vpop.permute.xlu0 %1919
      %1921 = vrot.lane.b32.xlu0 %v1916, 18
      %v1922 = vpop.permute.xlu0 %1921
      %v1923 = vsel %vm1872, %v1920, %v1922
      %v1924 = vsel %vm1872, %v1922, %v1920
      %v1925 = vmul.f32 %v1886, %v1913
      %v1926 = vmul.f32 %v1886, %v1912
      %v1927 = vmul.f32 %v1889, %v1924
      %v1928 = vmul.f32 %v1889, %v1923
      %v1929 = vadd.f32 %v1925, %v1927
      %v1930 = vadd.f32 %v1926, %v1928
      %v1931 = vmul.f32 %v1895, %v1929
      %v1932 = vmul.f32 %v1896, %v1930
      %v1933 = vadd.f32 %v1826, %v1931
      %v1934 = vadd.f32 %v1827, %v1932
      %1935 = vst [vmem:[#allocation1] ss:$2 sm:$0xff] %v215
      %v1936 = vld.sshfl [vmem:[#allocation1] sm:$0xff pattern:$0x75316420]
      %v1937 = vld.sshfl [vmem:[#allocation1 + $0x8] sm:$0xff pattern:$0x75316420]
      %1940 = vrot.lane.b32.xlu0 %v1936, 18
      %v1941 = vpop.permute.xlu0 %1940
      %1942 = vrot.lane.b32.xlu0 %v1937, 18
      %v1943 = vpop.permute.xlu0 %1942
      %v1944 = vsel %vm1872, %v1941, %v1943
      %v1945 = vsel %vm1872, %v1943, %v1941
      %1946 = vst [vmem:[#allocation1] ss:$2 sm:$0xff] %v220
      %v1947 = vld.sshfl [vmem:[#allocation1] sm:$0xff pattern:$0x75316420]
      %v1948 = vld.sshfl [vmem:[#allocation1 + $0x8] sm:$0xff pattern:$0x75316420]
      %1951 = vrot.lane.b32.xlu0 %v1947, 18
      %v1952 = vpop.permute.xlu0 %1951
      %1953 = vrot.lane.b32.xlu0 %v1948, 18
      %v1954 = vpop.permute.xlu0 %1953
      %v1955 = vsel %vm1872, %v1952, %v1954
      %v1956 = vsel %vm1872, %v1954, %v1952
      %v1957 = vmul.f32 %v1886, %v1945
      %v1958 = vmul.f32 %v1886, %v1944
      %v1959 = vmul.f32 %v1889, %v1956
      %v1960 = vmul.f32 %v1889, %v1955
      %v1961 = vadd.f32 %v1957, %v1959
      %v1962 = vadd.f32 %v1958, %v1960
      %v1963 = vmul.f32 %v1895, %v1961
      %v1964 = vmul.f32 %v1896, %v1962
      %v1965 = vadd.f32 %v1858, %v1963
      %v1966 = vadd.f32 %v1859, %v1964
      %s1967 = sld [smem:[#allocation4 + $0x10]]
      %s1968 = sld [smem:[#allocation4 + $0x41]]
      %v1969 = vmul.f32 %v225, %v238
      %1970 = vst [vmem:[#allocation1] ss:$2 sm:$0xff] %v209
      %v1971 = vld.sshfl [vmem:[#allocation1] sm:$0xff pattern:$0x75316420]
      %v1972 = vld.sshfl [vmem:[#allocation1 + $0x8] sm:$0xff pattern:$0x75316420]
      %1975 = vrot.lane.b32.xlu0 %v1971, 17
      %v1976 = vpop.permute.xlu0 %1975
      %1977 = vrot.lane.b32.xlu0 %v1972, 17
      %v1978 = vpop.permute.xlu0 %1977
      %vm1979 = vcmp.lt.s32.totalorder %v261, 17
      %v1980 = vsel %vm1979, %v1976, %v1978
      %v1981 = vsel %vm1979, %v1978, %v1976
      %1982 = vst [vmem:[#allocation1] ss:$2 sm:$0xff] %v216
      %v1983 = vld.sshfl [vmem:[#allocation1] sm:$0xff pattern:$0x75316420]
      %v1984 = vld.sshfl [vmem:[#allocation1 + $0x8] sm:$0xff pattern:$0x75316420]
      %1987 = vrot.lane.b32.xlu0 %v1983, 17
      %v1988 = vpop.permute.xlu0 %1987
      %1989 = vrot.lane.b32.xlu0 %v1984, 17
      %v1990 = vpop.permute.xlu0 %1989
      %v1991 = vsel %vm1979, %v1988, %v1990
      %v1992 = vsel %vm1979, %v1990, %v1988
      %v1993 = vstv %s1967
      %v1994 = vmul.f32 %v1993, %v1981
      %v1995 = vmul.f32 %v1993, %v1980
      %v1996 = vstv %s1968
      %v1997 = vmul.f32 %v1996, %v1992
      %v1998 = vmul.f32 %v1996, %v1991
      %v1999 = vadd.f32 %v1994, %v1997
      %v2000 = vadd.f32 %v1995, %v1998
      %v2002 = vperm.slane %v1969, 0
      %v2003 = vperm.slane %v1969, 1
      %v2006 = vmul.f32 %v2002, %v1999
      %v2007 = vmul.f32 %v2003, %v2000
      %v2008 = vadd.f32 %v1901, %v2006
      %v2009 = vadd.f32 %v1902, %v2007
      %2010 = vst [vmem:[#allocation1] ss:$2 sm:$0xff] %v212
      %v2011 = vld.sshfl [vmem:[#allocation1] sm:$0xff pattern:$0x75316420]
      %v2012 = vld.sshfl [vmem:[#allocation1 + $0x8] sm:$0xff pattern:$0x75316420]
      %2015 = vrot.lane.b32.xlu0 %v2011, 17
      %v2016 = vpop.permute.xlu0 %2015
      %2017 = vrot.lane.b32.xlu0 %v2012, 17
      %v2018 = vpop.permute.xlu0 %2017
      %v2019 = vsel %vm1979, %v2016, %v2018
      %v2020 = vsel %vm1979, %v2018, %v2016
      %2021 = vst [vmem:[#allocation1] ss:$2 sm:$0xff] %v218
      %v2022 = vld.sshfl [vmem:[#allocation1] sm:$0xff pattern:$0x75316420]
      %v2023 = vld.sshfl [vmem:[#allocation1 + $0x8] sm:$0xff pattern:$0x75316420]
      %2026 = vrot.lane.b32.xlu0 %v2022, 17
      %v2027 = vpop.permute.xlu0 %2026
      %2028 = vrot.lane.b32.xlu0 %v2023, 17
      %v2029 = vpop.permute.xlu0 %2028
      %v2030 = vsel %vm1979, %v2027, %v2029
      %v2031 = vsel %vm1979, %v2029, %v2027
      %v2032 = vmul.f32 %v1993, %v2020
      %v2033 = vmul.f32 %v1993, %v2019
      %v2034 = vmul.f32 %v1996, %v2031
      %v2035 = vmul.f32 %v1996, %v2030
      %v2036 = vadd.f32 %v2032, %v2034
      %v2037 = vadd.f32 %v2033, %v2035
      %v2038 = vmul.f32 %v2002, %v2036
      %v2039 = vmul.f32 %v2003, %v2037
      %v2040 = vadd.f32 %v1933, %v2038
      %v2041 = vadd.f32 %v1934, %v2039
      %2042 = vst [vmem:[#allocation1] ss:$2 sm:$0xff] %v215
      %v2043 = vld.sshfl [vmem:[#allocation1] sm:$0xff pattern:$0x75316420]
      %v2044 = vld.sshfl [vmem:[#allocation1 + $0x8] sm:$0xff pattern:$0x75316420]
      %2047 = vrot.lane.b32.xlu0 %v2043, 17
      %v2048 = vpop.permute.xlu0 %2047
      %2049 = vrot.lane.b32.xlu0 %v2044, 17
      %v2050 = vpop.permute.xlu0 %2049
      %v2051 = vsel %vm1979, %v2048, %v2050
      %v2052 = vsel %vm1979, %v2050, %v2048
      %2053 = vst [vmem:[#allocation1] ss:$2 sm:$0xff] %v220
      %v2054 = vld.sshfl [vmem:[#allocation1] sm:$0xff pattern:$0x75316420]
      %v2055 = vld.sshfl [vmem:[#allocation1 + $0x8] sm:$0xff pattern:$0x75316420]
      %2058 = vrot.lane.b32.xlu0 %v2054, 17
      %v2059 = vpop.permute.xlu0 %2058
      %2060 = vrot.lane.b32.xlu0 %v2055, 17
      %v2061 = vpop.permute.xlu0 %2060
      %v2062 = vsel %vm1979, %v2059, %v2061
      %v2063 = vsel %vm1979, %v2061, %v2059
      %v2064 = vmul.f32 %v1993, %v2052
      %v2065 = vmul.f32 %v1993, %v2051
      %v2066 = vmul.f32 %v1996, %v2063
      %v2067 = vmul.f32 %v1996, %v2062
      %v2068 = vadd.f32 %v2064, %v2066
      %v2069 = vadd.f32 %v2065, %v2067
      %v2070 = vmul.f32 %v2002, %v2068
      %v2071 = vmul.f32 %v2003, %v2069
      %v2072 = vadd.f32 %v1965, %v2070
      %v2073 = vadd.f32 %v1966, %v2071
      %s2074 = sld [smem:[#allocation4 + $0x11]]
      %s2075 = sld [smem:[#allocation4 + $0x42]]
      %v2076 = vmul.f32 %v225, %v240
      %2077 = vst [vmem:[#allocation1] ss:$2 sm:$0xff] %v209
      %v2078 = vld.sshfl [vmem:[#allocation1] sm:$0xff pattern:$0x75316420]
      %v2079 = vld.sshfl [vmem:[#allocation1 + $0x8] sm:$0xff pattern:$0x75316420]
      %2082 = vrot.lane.b32.xlu0 %v2078, 16
      %v2083 = vpop.permute.xlu0 %2082
      %2084 = vrot.lane.b32.xlu0 %v2079, 16
      %v2085 = vpop.permute.xlu0 %2084
      %vm2086 = vcmp.lt.s32.totalorder %v261, 16
      %v2087 = vsel %vm2086, %v2083, %v2085
      %v2088 = vsel %vm2086, %v2085, %v2083
      %2089 = vst [vmem:[#allocation1] ss:$2 sm:$0xff] %v216
      %v2090 = vld.sshfl [vmem:[#allocation1] sm:$0xff pattern:$0x75316420]
      %v2091 = vld.sshfl [vmem:[#allocation1 + $0x8] sm:$0xff pattern:$0x75316420]
      %2094 = vrot.lane.b32.xlu0 %v2090, 16
      %v2095 = vpop.permute.xlu0 %2094
      %2096 = vrot.lane.b32.xlu0 %v2091, 16
      %v2097 = vpop.permute.xlu0 %2096
      %v2098 = vsel %vm2086, %v2095, %v2097
      %v2099 = vsel %vm2086, %v2097, %v2095
      %v2100 = vstv %s2074
      %v2101 = vmul.f32 %v2100, %v2088
      %v2102 = vmul.f32 %v2100, %v2087
      %v2103 = vstv %s2075
      %v2104 = vmul.f32 %v2103, %v2099
      %v2105 = vmul.f32 %v2103, %v2098
      %v2106 = vadd.f32 %v2101, %v2104
      %v2107 = vadd.f32 %v2102, %v2105
      %v2109 = vperm.slane %v2076, 0
      %v2110 = vperm.slane %v2076, 1
      %v2113 = vmul.f32 %v2109, %v2106
      %v2114 = vmul.f32 %v2110, %v2107
      %v2115 = vadd.f32 %v2008, %v2113
      %v2116 = vadd.f32 %v2009, %v2114
      %2117 = vst [vmem:[#allocation1] ss:$2 sm:$0xff] %v212
      %v2118 = vld.sshfl [vmem:[#allocation1] sm:$0xff pattern:$0x75316420]
      %v2119 = vld.sshfl [vmem:[#allocation1 + $0x8] sm:$0xff pattern:$0x75316420]
      %2122 = vrot.lane.b32.xlu0 %v2118, 16
      %v2123 = vpop.permute.xlu0 %2122
      %2124 = vrot.lane.b32.xlu0 %v2119, 16
      %v2125 = vpop.permute.xlu0 %2124
      %v2126 = vsel %vm2086, %v2123, %v2125
      %v2127 = vsel %vm2086, %v2125, %v2123
      %2128 = vst [vmem:[#allocation1] ss:$2 sm:$0xff] %v218
      %v2129 = vld.sshfl [vmem:[#allocation1] sm:$0xff pattern:$0x75316420]
      %v2130 = vld.sshfl [vmem:[#allocation1 + $0x8] sm:$0xff pattern:$0x75316420]
      %2133 = vrot.lane.b32.xlu0 %v2129, 16
      %v2134 = vpop.permute.xlu0 %2133
      %2135 = vrot.lane.b32.xlu0 %v2130, 16
      %v2136 = vpop.permute.xlu0 %2135
      %v2137 = vsel %vm2086, %v2134, %v2136
      %v2138 = vsel %vm2086, %v2136, %v2134
      %v2139 = vmul.f32 %v2100, %v2127
      %v2140 = vmul.f32 %v2100, %v2126
      %v2141 = vmul.f32 %v2103, %v2138
      %v2142 = vmul.f32 %v2103, %v2137
      %v2143 = vadd.f32 %v2139, %v2141
      %v2144 = vadd.f32 %v2140, %v2142
      %v2145 = vmul.f32 %v2109, %v2143
      %v2146 = vmul.f32 %v2110, %v2144
      %v2147 = vadd.f32 %v2040, %v2145
      %v2148 = vadd.f32 %v2041, %v2146
      %2149 = vst [vmem:[#allocation1] ss:$2 sm:$0xff] %v215
      %v2150 = vld.sshfl [vmem:[#allocation1] sm:$0xff pattern:$0x75316420]
      %v2151 = vld.sshfl [vmem:[#allocation1 + $0x8] sm:$0xff pattern:$0x75316420]
      %2154 = vrot.lane.b32.xlu0 %v2150, 16
      %v2155 = vpop.permute.xlu0 %2154
      %2156 = vrot.lane.b32.xlu0 %v2151, 16
      %v2157 = vpop.permute.xlu0 %2156
      %v2158 = vsel %vm2086, %v2155, %v2157
      %v2159 = vsel %vm2086, %v2157, %v2155
      %2160 = vst [vmem:[#allocation1] ss:$2 sm:$0xff] %v220
      %v2161 = vld.sshfl [vmem:[#allocation1] sm:$0xff pattern:$0x75316420]
      %v2162 = vld.sshfl [vmem:[#allocation1 + $0x8] sm:$0xff pattern:$0x75316420]
      %2165 = vrot.lane.b32.xlu0 %v2161, 16
      %v2166 = vpop.permute.xlu0 %2165
      %2167 = vrot.lane.b32.xlu0 %v2162, 16
      %v2168 = vpop.permute.xlu0 %2167
      %v2169 = vsel %vm2086, %v2166, %v2168
      %v2170 = vsel %vm2086, %v2168, %v2166
      %v2171 = vmul.f32 %v2100, %v2159
      %v2172 = vmul.f32 %v2100, %v2158
      %v2173 = vmul.f32 %v2103, %v2170
      %v2174 = vmul.f32 %v2103, %v2169
      %v2175 = vadd.f32 %v2171, %v2173
      %v2176 = vadd.f32 %v2172, %v2174
      %v2177 = vmul.f32 %v2109, %v2175
      %v2178 = vmul.f32 %v2110, %v2176
      %v2179 = vadd.f32 %v2072, %v2177
      %v2180 = vadd.f32 %v2073, %v2178
      %s2181 = sld [smem:[#allocation4 + $0x12]]
      %s2182 = sld [smem:[#allocation4 + $0x43]]
      %v2183 = vmul.f32 %v225, %v242
      %2184 = vst [vmem:[#allocation1] ss:$2 sm:$0xff] %v209
      %v2185 = vld.sshfl [vmem:[#allocation1] sm:$0xff pattern:$0x75316420]
      %v2186 = vld.sshfl [vmem:[#allocation1 + $0x8] sm:$0xff pattern:$0x75316420]
      %2189 = vrot.lane.b32.xlu0 %v2185, 15
      %v2190 = vpop.permute.xlu0 %2189
      %2191 = vrot.lane.b32.xlu0 %v2186, 15
      %v2192 = vpop.permute.xlu0 %2191
      %vm2193 = vcmp.lt.s32.totalorder %v261, 15
      %v2194 = vsel %vm2193, %v2190, %v2192
      %v2195 = vsel %vm2193, %v2192, %v2190
      %2196 = vst [vmem:[#allocation1] ss:$2 sm:$0xff] %v216
      %v2197 = vld.sshfl [vmem:[#allocation1] sm:$0xff pattern:$0x75316420]
      %v2198 = vld.sshfl [vmem:[#allocation1 + $0x8] sm:$0xff pattern:$0x75316420]
      %2201 = vrot.lane.b32.xlu0 %v2197, 15
      %v2202 = vpop.permute.xlu0 %2201
      %2203 = vrot.lane.b32.xlu0 %v2198, 15
      %v2204 = vpop.permute.xlu0 %2203
      %v2205 = vsel %vm2193, %v2202, %v2204
      %v2206 = vsel %vm2193, %v2204, %v2202
      %v2207 = vstv %s2181
      %v2208 = vmul.f32 %v2207, %v2195
      %v2209 = vmul.f32 %v2207, %v2194
      %v2210 = vstv %s2182
      %v2211 = vmul.f32 %v2210, %v2206
      %v2212 = vmul.f32 %v2210, %v2205
      %v2213 = vadd.f32 %v2208, %v2211
      %v2214 = vadd.f32 %v2209, %v2212
      %v2216 = vperm.slane %v2183, 0
      %v2217 = vperm.slane %v2183, 1
      %v2220 = vmul.f32 %v2216, %v2213
      %v2221 = vmul.f32 %v2217, %v2214
      %v2222 = vadd.f32 %v2115, %v2220
      %v2223 = vadd.f32 %v2116, %v2221
      %2224 = vst [vmem:[#allocation1] ss:$2 sm:$0xff] %v212
      %v2225 = vld.sshfl [vmem:[#allocation1] sm:$0xff pattern:$0x75316420]
      %v2226 = vld.sshfl [vmem:[#allocation1 + $0x8] sm:$0xff pattern:$0x75316420]
      %2229 = vrot.lane.b32.xlu0 %v2225, 15
      %v2230 = vpop.permute.xlu0 %2229
      %2231 = vrot.lane.b32.xlu0 %v2226, 15
      %v2232 = vpop.permute.xlu0 %2231
      %v2233 = vsel %vm2193, %v2230, %v2232
      %v2234 = vsel %vm2193, %v2232, %v2230
      %2235 = vst [vmem:[#allocation1] ss:$2 sm:$0xff] %v218
      %v2236 = vld.sshfl [vmem:[#allocation1] sm:$0xff pattern:$0x75316420]
      %v2237 = vld.sshfl [vmem:[#allocation1 + $0x8] sm:$0xff pattern:$0x75316420]
      %2240 = vrot.lane.b32.xlu0 %v2236, 15
      %v2241 = vpop.permute.xlu0 %2240
      %2242 = vrot.lane.b32.xlu0 %v2237, 15
      %v2243 = vpop.permute.xlu0 %2242
      %v2244 = vsel %vm2193, %v2241, %v2243
      %v2245 = vsel %vm2193, %v2243, %v2241
      %v2246 = vmul.f32 %v2207, %v2234
      %v2247 = vmul.f32 %v2207, %v2233
      %v2248 = vmul.f32 %v2210, %v2245
      %v2249 = vmul.f32 %v2210, %v2244
      %v2250 = vadd.f32 %v2246, %v2248
      %v2251 = vadd.f32 %v2247, %v2249
      %v2252 = vmul.f32 %v2216, %v2250
      %v2253 = vmul.f32 %v2217, %v2251
      %v2254 = vadd.f32 %v2147, %v2252
      %v2255 = vadd.f32 %v2148, %v2253
      %2256 = vst [vmem:[#allocation1] ss:$2 sm:$0xff] %v215
      %v2257 = vld.sshfl [vmem:[#allocation1] sm:$0xff pattern:$0x75316420]
      %v2258 = vld.sshfl [vmem:[#allocation1 + $0x8] sm:$0xff pattern:$0x75316420]
      %2261 = vrot.lane.b32.xlu0 %v2257, 15
      %v2262 = vpop.permute.xlu0 %2261
      %2263 = vrot.lane.b32.xlu0 %v2258, 15
      %v2264 = vpop.permute.xlu0 %2263
      %v2265 = vsel %vm2193, %v2262, %v2264
      %v2266 = vsel %vm2193, %v2264, %v2262
      %2267 = vst [vmem:[#allocation1] ss:$2 sm:$0xff] %v220
      %v2268 = vld.sshfl [vmem:[#allocation1] sm:$0xff pattern:$0x75316420]
      %v2269 = vld.sshfl [vmem:[#allocation1 + $0x8] sm:$0xff pattern:$0x75316420]
      %2272 = vrot.lane.b32.xlu0 %v2268, 15
      %v2273 = vpop.permute.xlu0 %2272
      %2274 = vrot.lane.b32.xlu0 %v2269, 15
      %v2275 = vpop.permute.xlu0 %2274
      %v2276 = vsel %vm2193, %v2273, %v2275
      %v2277 = vsel %vm2193, %v2275, %v2273
      %v2278 = vmul.f32 %v2207, %v2266
      %v2279 = vmul.f32 %v2207, %v2265
      %v2280 = vmul.f32 %v2210, %v2277
      %v2281 = vmul.f32 %v2210, %v2276
      %v2282 = vadd.f32 %v2278, %v2280
      %v2283 = vadd.f32 %v2279, %v2281
      %v2284 = vmul.f32 %v2216, %v2282
      %v2285 = vmul.f32 %v2217, %v2283
      %v2286 = vadd.f32 %v2179, %v2284
      %v2287 = vadd.f32 %v2180, %v2285
      %s2288 = sld [smem:[#allocation4 + $0x13]]
      %s2289 = sld [smem:[#allocation4 + $0x44]]
      %v2290 = vmul.f32 %v225, %v244
      %2291 = vst [vmem:[#allocation1] ss:$2 sm:$0xff] %v209
      %v2292 = vld.sshfl [vmem:[#allocation1] sm:$0xff pattern:$0x75316420]
      %v2293 = vld.sshfl [vmem:[#allocation1 + $0x8] sm:$0xff pattern:$0x75316420]
      %2296 = vrot.lane.b32.xlu0 %v2292, 14
      %v2297 = vpop.permute.xlu0 %2296
      %2298 = vrot.lane.b32.xlu0 %v2293, 14
      %v2299 = vpop.permute.xlu0 %2298
      %vm2300 = vcmp.lt.s32.totalorder %v261, 14
      %v2301 = vsel %vm2300, %v2297, %v2299
      %v2302 = vsel %vm2300, %v2299, %v2297
      %2303 = vst [vmem:[#allocation1] ss:$2 sm:$0xff] %v216
      %v2304 = vld.sshfl [vmem:[#allocation1] sm:$0xff pattern:$0x75316420]
      %v2305 = vld.sshfl [vmem:[#allocation1 + $0x8] sm:$0xff pattern:$0x75316420]
      %2308 = vrot.lane.b32.xlu0 %v2304, 14
      %v2309 = vpop.permute.xlu0 %2308
      %2310 = vrot.lane.b32.xlu0 %v2305, 14
      %v2311 = vpop.permute.xlu0 %2310
      %v2312 = vsel %vm2300, %v2309, %v2311
      %v2313 = vsel %vm2300, %v2311, %v2309
      %v2314 = vstv %s2288
      %v2315 = vmul.f32 %v2314, %v2302
      %v2316 = vmul.f32 %v2314, %v2301
      %v2317 = vstv %s2289
      %v2318 = vmul.f32 %v2317, %v2313
      %v2319 = vmul.f32 %v2317, %v2312
      %v2320 = vadd.f32 %v2315, %v2318
      %v2321 = vadd.f32 %v2316, %v2319
      %v2323 = vperm.slane %v2290, 0
      %v2324 = vperm.slane %v2290, 1
      %v2327 = vmul.f32 %v2323, %v2320
      %v2328 = vmul.f32 %v2324, %v2321
      %v2329 = vadd.f32 %v2222, %v2327
      %v2330 = vadd.f32 %v2223, %v2328
      %2331 = vst [vmem:[#allocation1] ss:$2 sm:$0xff] %v212
      %v2332 = vld.sshfl [vmem:[#allocation1] sm:$0xff pattern:$0x75316420]
      %v2333 = vld.sshfl [vmem:[#allocation1 + $0x8] sm:$0xff pattern:$0x75316420]
      %2336 = vrot.lane.b32.xlu0 %v2332, 14
      %v2337 = vpop.permute.xlu0 %2336
      %2338 = vrot.lane.b32.xlu0 %v2333, 14
      %v2339 = vpop.permute.xlu0 %2338
      %v2340 = vsel %vm2300, %v2337, %v2339
      %v2341 = vsel %vm2300, %v2339, %v2337
      %2342 = vst [vmem:[#allocation1] ss:$2 sm:$0xff] %v218
      %v2343 = vld.sshfl [vmem:[#allocation1] sm:$0xff pattern:$0x75316420]
      %v2344 = vld.sshfl [vmem:[#allocation1 + $0x8] sm:$0xff pattern:$0x75316420]
      %2347 = vrot.lane.b32.xlu0 %v2343, 14
      %v2348 = vpop.permute.xlu0 %2347
      %2349 = vrot.lane.b32.xlu0 %v2344, 14
      %v2350 = vpop.permute.xlu0 %2349
      %v2351 = vsel %vm2300, %v2348, %v2350
      %v2352 = vsel %vm2300, %v2350, %v2348
      %v2353 = vmul.f32 %v2314, %v2341
      %v2354 = vmul.f32 %v2314, %v2340
      %v2355 = vmul.f32 %v2317, %v2352
      %v2356 = vmul.f32 %v2317, %v2351
      %v2357 = vadd.f32 %v2353, %v2355
      %v2358 = vadd.f32 %v2354, %v2356
      %v2359 = vmul.f32 %v2323, %v2357
      %v2360 = vmul.f32 %v2324, %v2358
      %v2361 = vadd.f32 %v2254, %v2359
      %v2362 = vadd.f32 %v2255, %v2360
      %2363 = vst [vmem:[#allocation1] ss:$2 sm:$0xff] %v215
      %v2364 = vld.sshfl [vmem:[#allocation1] sm:$0xff pattern:$0x75316420]
      %v2365 = vld.sshfl [vmem:[#allocation1 + $0x8] sm:$0xff pattern:$0x75316420]
      %2368 = vrot.lane.b32.xlu0 %v2364, 14
      %v2369 = vpop.permute.xlu0 %2368
      %2370 = vrot.lane.b32.xlu0 %v2365, 14
      %v2371 = vpop.permute.xlu0 %2370
      %v2372 = vsel %vm2300, %v2369, %v2371
      %v2373 = vsel %vm2300, %v2371, %v2369
      %2374 = vst [vmem:[#allocation1] ss:$2 sm:$0xff] %v220
      %v2375 = vld.sshfl [vmem:[#allocation1] sm:$0xff pattern:$0x75316420]
      %v2376 = vld.sshfl [vmem:[#allocation1 + $0x8] sm:$0xff pattern:$0x75316420]
      %2379 = vrot.lane.b32.xlu0 %v2375, 14
      %v2380 = vpop.permute.xlu0 %2379
      %2381 = vrot.lane.b32.xlu0 %v2376, 14
      %v2382 = vpop.permute.xlu0 %2381
      %v2383 = vsel %vm2300, %v2380, %v2382
      %v2384 = vsel %vm2300, %v2382, %v2380
      %v2385 = vmul.f32 %v2314, %v2373
      %v2386 = vmul.f32 %v2314, %v2372
      %v2387 = vmul.f32 %v2317, %v2384
      %v2388 = vmul.f32 %v2317, %v2383
      %v2389 = vadd.f32 %v2385, %v2387
      %v2390 = vadd.f32 %v2386, %v2388
      %v2391 = vmul.f32 %v2323, %v2389
      %v2392 = vmul.f32 %v2324, %v2390
      %v2393 = vadd.f32 %v2286, %v2391
      %v2394 = vadd.f32 %v2287, %v2392
      %s2395 = sld [smem:[#allocation4 + $0x14]]
      %s2396 = sld [smem:[#allocation4 + $0x45]]
      %v2397 = vmul.f32 %v225, %v246
      %2398 = vst [vmem:[#allocation1] ss:$2 sm:$0xff] %v209
      %v2399 = vld.sshfl [vmem:[#allocation1] sm:$0xff pattern:$0x75316420]
      %v2400 = vld.sshfl [vmem:[#allocation1 + $0x8] sm:$0xff pattern:$0x75316420]
      %2403 = vrot.lane.b32.xlu0 %v2399, 13
      %v2404 = vpop.permute.xlu0 %2403
      %2405 = vrot.lane.b32.xlu0 %v2400, 13
      %v2406 = vpop.permute.xlu0 %2405
      %vm2407 = vcmp.lt.s32.totalorder %v261, 13
      %v2408 = vsel %vm2407, %v2404, %v2406
      %v2409 = vsel %vm2407, %v2406, %v2404
      %2410 = vst [vmem:[#allocation1] ss:$2 sm:$0xff] %v216
      %v2411 = vld.sshfl [vmem:[#allocation1] sm:$0xff pattern:$0x75316420]
      %v2412 = vld.sshfl [vmem:[#allocation1 + $0x8] sm:$0xff pattern:$0x75316420]
      %2415 = vrot.lane.b32.xlu0 %v2411, 13
      %v2416 = vpop.permute.xlu0 %2415
      %2417 = vrot.lane.b32.xlu0 %v2412, 13
      %v2418 = vpop.permute.xlu0 %2417
      %v2419 = vsel %vm2407, %v2416, %v2418
      %v2420 = vsel %vm2407, %v2418, %v2416
      %v2421 = vstv %s2395
      %v2422 = vmul.f32 %v2421, %v2409
      %v2423 = vmul.f32 %v2421, %v2408
      %v2424 = vstv %s2396
      %v2425 = vmul.f32 %v2424, %v2420
      %v2426 = vmul.f32 %v2424, %v2419
      %v2427 = vadd.f32 %v2422, %v2425
      %v2428 = vadd.f32 %v2423, %v2426
      %v2430 = vperm.slane %v2397, 0
      %v2431 = vperm.slane %v2397, 1
      %v2434 = vmul.f32 %v2430, %v2427
      %v2435 = vmul.f32 %v2431, %v2428
      %v2436 = vadd.f32 %v2329, %v2434
      %v2437 = vadd.f32 %v2330, %v2435
      %2438 = vst [vmem:[#allocation1] ss:$2 sm:$0xff] %v212
      %v2439 = vld.sshfl [vmem:[#allocation1] sm:$0xff pattern:$0x75316420]
      %v2440 = vld.sshfl [vmem:[#allocation1 + $0x8] sm:$0xff pattern:$0x75316420]
      %2443 = vrot.lane.b32.xlu0 %v2439, 13
      %v2444 = vpop.permute.xlu0 %2443
      %2445 = vrot.lane.b32.xlu0 %v2440, 13
      %v2446 = vpop.permute.xlu0 %2445
      %v2447 = vsel %vm2407, %v2444, %v2446
      %v2448 = vsel %vm2407, %v2446, %v2444
      %2449 = vst [vmem:[#allocation1] ss:$2 sm:$0xff] %v218
      %v2450 = vld.sshfl [vmem:[#allocation1] sm:$0xff pattern:$0x75316420]
      %v2451 = vld.sshfl [vmem:[#allocation1 + $0x8] sm:$0xff pattern:$0x75316420]
      %2454 = vrot.lane.b32.xlu0 %v2450, 13
      %v2455 = vpop.permute.xlu0 %2454
      %2456 = vrot.lane.b32.xlu0 %v2451, 13
      %v2457 = vpop.permute.xlu0 %2456
      %v2458 = vsel %vm2407, %v2455, %v2457
      %v2459 = vsel %vm2407, %v2457, %v2455
      %v2460 = vmul.f32 %v2421, %v2448
      %v2461 = vmul.f32 %v2421, %v2447
      %v2462 = vmul.f32 %v2424, %v2459
      %v2463 = vmul.f32 %v2424, %v2458
      %v2464 = vadd.f32 %v2460, %v2462
      %v2465 = vadd.f32 %v2461, %v2463
      %v2466 = vmul.f32 %v2430, %v2464
      %v2467 = vmul.f32 %v2431, %v2465
      %v2468 = vadd.f32 %v2361, %v2466
      %v2469 = vadd.f32 %v2362, %v2467
      %2470 = vst [vmem:[#allocation1] ss:$2 sm:$0xff] %v215
      %v2471 = vld.sshfl [vmem:[#allocation1] sm:$0xff pattern:$0x75316420]
      %v2472 = vld.sshfl [vmem:[#allocation1 + $0x8] sm:$0xff pattern:$0x75316420]
      %2475 = vrot.lane.b32.xlu0 %v2471, 13
      %v2476 = vpop.permute.xlu0 %2475
      %2477 = vrot.lane.b32.xlu0 %v2472, 13
      %v2478 = vpop.permute.xlu0 %2477
      %v2479 = vsel %vm2407, %v2476, %v2478
      %v2480 = vsel %vm2407, %v2478, %v2476
      %2481 = vst [vmem:[#allocation1] ss:$2 sm:$0xff] %v220
      %v2482 = vld.sshfl [vmem:[#allocation1] sm:$0xff pattern:$0x75316420]
      %v2483 = vld.sshfl [vmem:[#allocation1 + $0x8] sm:$0xff pattern:$0x75316420]
      %2486 = vrot.lane.b32.xlu0 %v2482, 13
      %v2487 = vpop.permute.xlu0 %2486
      %2488 = vrot.lane.b32.xlu0 %v2483, 13
      %v2489 = vpop.permute.xlu0 %2488
      %v2490 = vsel %vm2407, %v2487, %v2489
      %v2491 = vsel %vm2407, %v2489, %v2487
      %v2492 = vmul.f32 %v2421, %v2480
      %v2493 = vmul.f32 %v2421, %v2479
      %v2494 = vmul.f32 %v2424, %v2491
      %v2495 = vmul.f32 %v2424, %v2490
      %v2496 = vadd.f32 %v2492, %v2494
      %v2497 = vadd.f32 %v2493, %v2495
      %v2498 = vmul.f32 %v2430, %v2496
      %v2499 = vmul.f32 %v2431, %v2497
      %v2500 = vadd.f32 %v2393, %v2498
      %v2501 = vadd.f32 %v2394, %v2499
      %s2502 = sld [smem:[#allocation4 + $0x15]]
      %s2503 = sld [smem:[#allocation4 + $0x46]]
      %v2504 = vmul.f32 %v227, %v234
      %2505 = vst [vmem:[#allocation1] ss:$2 sm:$0xff] %v209
      %v2506 = vld.sshfl [vmem:[#allocation1] sm:$0xff pattern:$0x75316420]
      %v2507 = vld.sshfl [vmem:[#allocation1 + $0x8] sm:$0xff pattern:$0x75316420]
      %2510 = vrot.lane.b32.xlu0 %v2506, 3
      %v2511 = vpop.permute.xlu0 %2510
      %2512 = vrot.lane.b32.xlu0 %v2507, 3
      %v2513 = vpop.permute.xlu0 %2512
      %vm2514 = vcmp.lt.s32.totalorder %v261, 3
      %v2515 = vsel %vm2514, %v2511, %v2513
      %v2516 = vsel %vm2514, %v2513, %v2511
      %2517 = vst [vmem:[#allocation1] ss:$2 sm:$0xff] %v216
      %v2518 = vld.sshfl [vmem:[#allocation1] sm:$0xff pattern:$0x75316420]
      %v2519 = vld.sshfl [vmem:[#allocation1 + $0x8] sm:$0xff pattern:$0x75316420]
      %2522 = vrot.lane.b32.xlu0 %v2518, 3
      %v2523 = vpop.permute.xlu0 %2522
      %2524 = vrot.lane.b32.xlu0 %v2519, 3
      %v2525 = vpop.permute.xlu0 %2524
      %v2526 = vsel %vm2514, %v2523, %v2525
      %v2527 = vsel %vm2514, %v2525, %v2523
      %v2528 = vstv %s2502
      %v2529 = vmul.f32 %v2528, %v2516
      %v2530 = vmul.f32 %v2528, %v2515
      %v2531 = vstv %s2503
      %v2532 = vmul.f32 %v2531, %v2527
      %v2533 = vmul.f32 %v2531, %v2526
      %v2534 = vadd.f32 %v2529, %v2532
      %v2535 = vadd.f32 %v2530, %v2533
      %v2537 = vperm.slane %v2504, 0
      %v2538 = vperm.slane %v2504, 1
      %v2541 = vmul.f32 %v2537, %v2534
      %v2542 = vmul.f32 %v2538, %v2535
      %v2543 = vadd.f32 %v2436, %v2541
      %v2544 = vadd.f32 %v2437, %v2542
      %2545 = vst [vmem:[#allocation1] ss:$2 sm:$0xff] %v212
      %v2546 = vld.sshfl [vmem:[#allocation1] sm:$0xff pattern:$0x75316420]
      %v2547 = vld.sshfl [vmem:[#allocation1 + $0x8] sm:$0xff pattern:$0x75316420]
      %2550 = vrot.lane.b32.xlu0 %v2546, 3
      %v2551 = vpop.permute.xlu0 %2550
      %2552 = vrot.lane.b32.xlu0 %v2547, 3
      %v2553 = vpop.permute.xlu0 %2552
      %v2554 = vsel %vm2514, %v2551, %v2553
      %v2555 = vsel %vm2514, %v2553, %v2551
      %2556 = vst [vmem:[#allocation1] ss:$2 sm:$0xff] %v218
      %v2557 = vld.sshfl [vmem:[#allocation1] sm:$0xff pattern:$0x75316420]
      %v2558 = vld.sshfl [vmem:[#allocation1 + $0x8] sm:$0xff pattern:$0x75316420]
      %2561 = vrot.lane.b32.xlu0 %v2557, 3
      %v2562 = vpop.permute.xlu0 %2561
      %2563 = vrot.lane.b32.xlu0 %v2558, 3
      %v2564 = vpop.permute.xlu0 %2563
      %v2565 = vsel %vm2514, %v2562, %v2564
      %v2566 = vsel %vm2514, %v2564, %v2562
      %v2567 = vmul.f32 %v2528, %v2555
      %v2568 = vmul.f32 %v2528, %v2554
      %v2569 = vmul.f32 %v2531, %v2566
      %v2570 = vmul.f32 %v2531, %v2565
      %v2571 = vadd.f32 %v2567, %v2569
      %v2572 = vadd.f32 %v2568, %v2570
      %v2573 = vmul.f32 %v2537, %v2571
      %v2574 = vmul.f32 %v2538, %v2572
      %v2575 = vadd.f32 %v2468, %v2573
      %v2576 = vadd.f32 %v2469, %v2574
      %2577 = vst [vmem:[#allocation1] ss:$2 sm:$0xff] %v215
      %v2578 = vld.sshfl [vmem:[#allocation1] sm:$0xff pattern:$0x75316420]
      %v2579 = vld.sshfl [vmem:[#allocation1 + $0x8] sm:$0xff pattern:$0x75316420]
      %2582 = vrot.lane.b32.xlu0 %v2578, 3
      %v2583 = vpop.permute.xlu0 %2582
      %2584 = vrot.lane.b32.xlu0 %v2579, 3
      %v2585 = vpop.permute.xlu0 %2584
      %v2586 = vsel %vm2514, %v2583, %v2585
      %v2587 = vsel %vm2514, %v2585, %v2583
      %2588 = vst [vmem:[#allocation1] ss:$2 sm:$0xff] %v220
      %v2589 = vld.sshfl [vmem:[#allocation1] sm:$0xff pattern:$0x75316420]
      %v2590 = vld.sshfl [vmem:[#allocation1 + $0x8] sm:$0xff pattern:$0x75316420]
      %2593 = vrot.lane.b32.xlu0 %v2589, 3
      %v2594 = vpop.permute.xlu0 %2593
      %2595 = vrot.lane.b32.xlu0 %v2590, 3
      %v2596 = vpop.permute.xlu0 %2595
      %v2597 = vsel %vm2514, %v2594, %v2596
      %v2598 = vsel %vm2514, %v2596, %v2594
      %v2599 = vmul.f32 %v2528, %v2587
      %v2600 = vmul.f32 %v2528, %v2586
      %v2601 = vmul.f32 %v2531, %v2598
      %v2602 = vmul.f32 %v2531, %v2597
      %v2603 = vadd.f32 %v2599, %v2601
      %v2604 = vadd.f32 %v2600, %v2602
      %v2605 = vmul.f32 %v2537, %v2603
      %v2606 = vmul.f32 %v2538, %v2604
      %v2607 = vadd.f32 %v2500, %v2605
      %v2608 = vadd.f32 %v2501, %v2606
      %s2609 = sld [smem:[#allocation4 + $0x16]]
      %s2610 = sld [smem:[#allocation4 + $0x47]]
      %v2611 = vmul.f32 %v227, %v236
      %2612 = vst [vmem:[#allocation1] ss:$2 sm:$0xff] %v209
      %v2613 = vld.sshfl [vmem:[#allocation1] sm:$0xff pattern:$0x75316420]
      %v2614 = vld.sshfl [vmem:[#allocation1 + $0x8] sm:$0xff pattern:$0x75316420]
      %2617 = vrot.lane.b32.xlu0 %v2613, 2
      %v2618 = vpop.permute.xlu0 %2617
      %2619 = vrot.lane.b32.xlu0 %v2614, 2
      %v2620 = vpop.permute.xlu0 %2619
      %vm2621 = vcmp.lt.s32.totalorder %v261, 2
      %v2622 = vsel %vm2621, %v2618, %v2620
      %v2623 = vsel %vm2621, %v2620, %v2618
      %2624 = vst [vmem:[#allocation1] ss:$2 sm:$0xff] %v216
      %v2625 = vld.sshfl [vmem:[#allocation1] sm:$0xff pattern:$0x75316420]
      %v2626 = vld.sshfl [vmem:[#allocation1 + $0x8] sm:$0xff pattern:$0x75316420]
      %2629 = vrot.lane.b32.xlu0 %v2625, 2
      %v2630 = vpop.permute.xlu0 %2629
      %2631 = vrot.lane.b32.xlu0 %v2626, 2
      %v2632 = vpop.permute.xlu0 %2631
      %v2633 = vsel %vm2621, %v2630, %v2632
      %v2634 = vsel %vm2621, %v2632, %v2630
      %v2635 = vstv %s2609
      %v2636 = vmul.f32 %v2635, %v2623
      %v2637 = vmul.f32 %v2635, %v2622
      %v2638 = vstv %s2610
      %v2639 = vmul.f32 %v2638, %v2634
      %v2640 = vmul.f32 %v2638, %v2633
      %v2641 = vadd.f32 %v2636, %v2639
      %v2642 = vadd.f32 %v2637, %v2640
      %v2644 = vperm.slane %v2611, 0
      %v2645 = vperm.slane %v2611, 1
      %v2648 = vmul.f32 %v2644, %v2641
      %v2649 = vmul.f32 %v2645, %v2642
      %v2650 = vadd.f32 %v2543, %v2648
      %v2651 = vadd.f32 %v2544, %v2649
      %2652 = vst [vmem:[#allocation1] ss:$2 sm:$0xff] %v212
      %v2653 = vld.sshfl [vmem:[#allocation1] sm:$0xff pattern:$0x75316420]
      %v2654 = vld.sshfl [vmem:[#allocation1 + $0x8] sm:$0xff pattern:$0x75316420]
      %2657 = vrot.lane.b32.xlu0 %v2653, 2
      %v2658 = vpop.permute.xlu0 %2657
      %2659 = vrot.lane.b32.xlu0 %v2654, 2
      %v2660 = vpop.permute.xlu0 %2659
      %v2661 = vsel %vm2621, %v2658, %v2660
      %v2662 = vsel %vm2621, %v2660, %v2658
      %2663 = vst [vmem:[#allocation1] ss:$2 sm:$0xff] %v218
      %v2664 = vld.sshfl [vmem:[#allocation1] sm:$0xff pattern:$0x75316420]
      %v2665 = vld.sshfl [vmem:[#allocation1 + $0x8] sm:$0xff pattern:$0x75316420]
      %2668 = vrot.lane.b32.xlu0 %v2664, 2
      %v2669 = vpop.permute.xlu0 %2668
      %2670 = vrot.lane.b32.xlu0 %v2665, 2
      %v2671 = vpop.permute.xlu0 %2670
      %v2672 = vsel %vm2621, %v2669, %v2671
      %v2673 = vsel %vm2621, %v2671, %v2669
      %v2674 = vmul.f32 %v2635, %v2662
      %v2675 = vmul.f32 %v2635, %v2661
      %v2676 = vmul.f32 %v2638, %v2673
      %v2677 = vmul.f32 %v2638, %v2672
      %v2678 = vadd.f32 %v2674, %v2676
      %v2679 = vadd.f32 %v2675, %v2677
      %v2680 = vmul.f32 %v2644, %v2678
      %v2681 = vmul.f32 %v2645, %v2679
      %v2682 = vadd.f32 %v2575, %v2680
      %v2683 = vadd.f32 %v2576, %v2681
      %2684 = vst [vmem:[#allocation1] ss:$2 sm:$0xff] %v215
      %v2685 = vld.sshfl [vmem:[#allocation1] sm:$0xff pattern:$0x75316420]
      %v2686 = vld.sshfl [vmem:[#allocation1 + $0x8] sm:$0xff pattern:$0x75316420]
      %2689 = vrot.lane.b32.xlu0 %v2685, 2
      %v2690 = vpop.permute.xlu0 %2689
      %2691 = vrot.lane.b32.xlu0 %v2686, 2
      %v2692 = vpop.permute.xlu0 %2691
      %v2693 = vsel %vm2621, %v2690, %v2692
      %v2694 = vsel %vm2621, %v2692, %v2690
      %2695 = vst [vmem:[#allocation1] ss:$2 sm:$0xff] %v220
      %v2696 = vld.sshfl [vmem:[#allocation1] sm:$0xff pattern:$0x75316420]
      %v2697 = vld.sshfl [vmem:[#allocation1 + $0x8] sm:$0xff pattern:$0x75316420]
      %2700 = vrot.lane.b32.xlu0 %v2696, 2
      %v2701 = vpop.permute.xlu0 %2700
      %2702 = vrot.lane.b32.xlu0 %v2697, 2
      %v2703 = vpop.permute.xlu0 %2702
      %v2704 = vsel %vm2621, %v2701, %v2703
      %v2705 = vsel %vm2621, %v2703, %v2701
      %v2706 = vmul.f32 %v2635, %v2694
      %v2707 = vmul.f32 %v2635, %v2693
      %v2708 = vmul.f32 %v2638, %v2705
      %v2709 = vmul.f32 %v2638, %v2704
      %v2710 = vadd.f32 %v2706, %v2708
      %v2711 = vadd.f32 %v2707, %v2709
      %v2712 = vmul.f32 %v2644, %v2710
      %v2713 = vmul.f32 %v2645, %v2711
      %v2714 = vadd.f32 %v2607, %v2712
      %v2715 = vadd.f32 %v2608, %v2713
      %s2716 = sld [smem:[#allocation4 + $0x17]]
      %s2717 = sld [smem:[#allocation4 + $0x48]]
      %v2718 = vmul.f32 %v227, %v238
      %2719 = vst [vmem:[#allocation1] ss:$2 sm:$0xff] %v209
      %v2720 = vld.sshfl [vmem:[#allocation1] sm:$0xff pattern:$0x75316420]
      %v2721 = vld.sshfl [vmem:[#allocation1 + $0x8] sm:$0xff pattern:$0x75316420]
      %2724 = vrot.lane.b32.xlu0 %v2720, 1
      %v2725 = vpop.permute.xlu0 %2724
      %2726 = vrot.lane.b32.xlu0 %v2721, 1
      %v2727 = vpop.permute.xlu0 %2726
      %vm2728 = vcmp.lt.s32.totalorder %v261, 1
      %v2729 = vsel %vm2728, %v2725, %v2727
      %v2730 = vsel %vm2728, %v2727, %v2725
      %2731 = vst [vmem:[#allocation1] ss:$2 sm:$0xff] %v216
      %v2732 = vld.sshfl [vmem:[#allocation1] sm:$0xff pattern:$0x75316420]
      %v2733 = vld.sshfl [vmem:[#allocation1 + $0x8] sm:$0xff pattern:$0x75316420]
      %2736 = vrot.lane.b32.xlu0 %v2732, 1
      %v2737 = vpop.permute.xlu0 %2736
      %2738 = vrot.lane.b32.xlu0 %v2733, 1
      %v2739 = vpop.permute.xlu0 %2738
      %v2740 = vsel %vm2728, %v2737, %v2739
      %v2741 = vsel %vm2728, %v2739, %v2737
      %v2742 = vstv %s2716
      %v2743 = vmul.f32 %v2742, %v2730
      %v2744 = vmul.f32 %v2742, %v2729
      %v2745 = vstv %s2717
      %v2746 = vmul.f32 %v2745, %v2741
      %v2747 = vmul.f32 %v2745, %v2740
      %v2748 = vadd.f32 %v2743, %v2746
      %v2749 = vadd.f32 %v2744, %v2747
      %v2751 = vperm.slane %v2718, 0
      %v2752 = vperm.slane %v2718, 1
      %v2755 = vmul.f32 %v2751, %v2748
      %v2756 = vmul.f32 %v2752, %v2749
      %v2757 = vadd.f32 %v2650, %v2755
      %v2758 = vadd.f32 %v2651, %v2756
      %2759 = vst [vmem:[#allocation1] ss:$2 sm:$0xff] %v212
      %v2760 = vld.sshfl [vmem:[#allocation1] sm:$0xff pattern:$0x75316420]
      %v2761 = vld.sshfl [vmem:[#allocation1 + $0x8] sm:$0xff pattern:$0x75316420]
      %2764 = vrot.lane.b32.xlu0 %v2760, 1
      %v2765 = vpop.permute.xlu0 %2764
      %2766 = vrot.lane.b32.xlu0 %v2761, 1
      %v2767 = vpop.permute.xlu0 %2766
      %v2768 = vsel %vm2728, %v2765, %v2767
      %v2769 = vsel %vm2728, %v2767, %v2765
      %2770 = vst [vmem:[#allocation1] ss:$2 sm:$0xff] %v218
      %v2771 = vld.sshfl [vmem:[#allocation1] sm:$0xff pattern:$0x75316420]
      %v2772 = vld.sshfl [vmem:[#allocation1 + $0x8] sm:$0xff pattern:$0x75316420]
      %2775 = vrot.lane.b32.xlu0 %v2771, 1
      %v2776 = vpop.permute.xlu0 %2775
      %2777 = vrot.lane.b32.xlu0 %v2772, 1
      %v2778 = vpop.permute.xlu0 %2777
      %v2779 = vsel %vm2728, %v2776, %v2778
      %v2780 = vsel %vm2728, %v2778, %v2776
      %v2781 = vmul.f32 %v2742, %v2769
      %v2782 = vmul.f32 %v2742, %v2768
      %v2783 = vmul.f32 %v2745, %v2780
      %v2784 = vmul.f32 %v2745, %v2779
      %v2785 = vadd.f32 %v2781, %v2783
      %v2786 = vadd.f32 %v2782, %v2784
      %v2787 = vmul.f32 %v2751, %v2785
      %v2788 = vmul.f32 %v2752, %v2786
      %v2789 = vadd.f32 %v2682, %v2787
      %v2790 = vadd.f32 %v2683, %v2788
      %2791 = vst [vmem:[#allocation1] ss:$2 sm:$0xff] %v215
      %v2792 = vld.sshfl [vmem:[#allocation1] sm:$0xff pattern:$0x75316420]
      %v2793 = vld.sshfl [vmem:[#allocation1 + $0x8] sm:$0xff pattern:$0x75316420]
      %2796 = vrot.lane.b32.xlu0 %v2792, 1
      %v2797 = vpop.permute.xlu0 %2796
      %2798 = vrot.lane.b32.xlu0 %v2793, 1
      %v2799 = vpop.permute.xlu0 %2798
      %v2800 = vsel %vm2728, %v2797, %v2799
      %v2801 = vsel %vm2728, %v2799, %v2797
      %2802 = vst [vmem:[#allocation1] ss:$2 sm:$0xff] %v220
      %v2803 = vld.sshfl [vmem:[#allocation1] sm:$0xff pattern:$0x75316420]
      %v2804 = vld.sshfl [vmem:[#allocation1 + $0x8] sm:$0xff pattern:$0x75316420]
      %2807 = vrot.lane.b32.xlu0 %v2803, 1
      %v2808 = vpop.permute.xlu0 %2807
      %2809 = vrot.lane.b32.xlu0 %v2804, 1
      %v2810 = vpop.permute.xlu0 %2809
      %v2811 = vsel %vm2728, %v2808, %v2810
      %v2812 = vsel %vm2728, %v2810, %v2808
      %v2813 = vmul.f32 %v2742, %v2801
      %v2814 = vmul.f32 %v2742, %v2800
      %v2815 = vmul.f32 %v2745, %v2812
      %v2816 = vmul.f32 %v2745, %v2811
      %v2817 = vadd.f32 %v2813, %v2815
      %v2818 = vadd.f32 %v2814, %v2816
      %v2819 = vmul.f32 %v2751, %v2817
      %v2820 = vmul.f32 %v2752, %v2818
      %v2821 = vadd.f32 %v2714, %v2819
      %v2822 = vadd.f32 %v2715, %v2820
      %s2823 = sld [smem:[#allocation4 + $0x18]]
      %s2824 = sld [smem:[#allocation4 + $0x49]]
      %v2825 = vmul.f32 %v227, %v240
      %v2826 = vstv %s2823
      %v2827 = vmul.f32 %v2826, %v209
      %v2828 = vstv %s2824
      %v2829 = vmul.f32 %v2828, %v216
      %v2830 = vadd.f32 %v2827, %v2829
      %v2832 = vperm.slane %v2825, 0
      %v2833 = vperm.slane %v2825, 1
      %2837 = vst [vmem:[#allocation1] ss:$2 sm:$0xff] %v2830
      %v2838 = vld.sshfl [vmem:[#allocation1] sm:$0xff pattern:$0x75316420]
      %v2839 = vld.sshfl [vmem:[#allocation1 + $0x8] sm:$0xff pattern:$0x75316420]
      %v2842 = vmul.f32 %v2832, %v2838
      %v2843 = vmul.f32 %v2833, %v2839
      %v2844 = vadd.f32 %v2757, %v2842
      %v2845 = vadd.f32 %v2758, %v2843
      %v2846 = vmul.f32 %v2826, %v212
      %v2847 = vmul.f32 %v2828, %v218
      %v2848 = vadd.f32 %v2846, %v2847
      %2850 = vst [vmem:[#allocation1] ss:$2 sm:$0xff] %v2848
      %v2851 = vld.sshfl [vmem:[#allocation1] sm:$0xff pattern:$0x75316420]
      %v2852 = vld.sshfl [vmem:[#allocation1 + $0x8] sm:$0xff pattern:$0x75316420]
      %v2855 = vmul.f32 %v2832, %v2851
      %v2856 = vmul.f32 %v2833, %v2852
      %v2857 = vadd.f32 %v2789, %v2855
      %v2858 = vadd.f32 %v2790, %v2856
      %v2859 = vmul.f32 %v2826, %v215
      %v2860 = vmul.f32 %v2828, %v220
      %v2861 = vadd.f32 %v2859, %v2860
      %2863 = vst [vmem:[#allocation1] ss:$2 sm:$0xff] %v2861
      %v2864 = vld.sshfl [vmem:[#allocation1] sm:$0xff pattern:$0x75316420]
      %v2865 = vld.sshfl [vmem:[#allocation1 + $0x8] sm:$0xff pattern:$0x75316420]
      %v2868 = vmul.f32 %v2832, %v2864
      %v2869 = vmul.f32 %v2833, %v2865
      %v2870 = vadd.f32 %v2821, %v2868
      %v2871 = vadd.f32 %v2822, %v2869
      %s2872 = sld [smem:[#allocation4 + $0x19]]
      %s2873 = sld [smem:[#allocation4 + $0x4a]]
      %v2874 = vmul.f32 %v227, %v242
      %2875 = vst [vmem:[#allocation1] ss:$2 sm:$0xff] %v209
      %v2876 = vld.sshfl [vmem:[#allocation1] sm:$0xff pattern:$0x75316420]
      %v2877 = vld.sshfl [vmem:[#allocation1 + $0x8] sm:$0xff pattern:$0x75316420]
      %2880 = vrot.lane.b32.xlu0 %v2876, 127
      %v2881 = vpop.permute.xlu0 %2880
      %2882 = vrot.lane.b32.xlu0 %v2877, 127
      %v2883 = vpop.permute.xlu0 %2882
      %vm2884 = vcmp.lt.s32.totalorder %v261, 127
      %v2885 = vsel %vm2884, %v2881, %v2883
      %v2886 = vsel %vm2884, %v2883, %v2881
      %2887 = vst [vmem:[#allocation1] ss:$2 sm:$0xff] %v216
      %v2888 = vld.sshfl [vmem:[#allocation1] sm:$0xff pattern:$0x75316420]
      %v2889 = vld.sshfl [vmem:[#allocation1 + $0x8] sm:$0xff pattern:$0x75316420]
      %2892 = vrot.lane.b32.xlu0 %v2888, 127
      %v2893 = vpop.permute.xlu0 %2892
      %2894 = vrot.lane.b32.xlu0 %v2889, 127
      %v2895 = vpop.permute.xlu0 %2894
      %v2896 = vsel %vm2884, %v2893, %v2895
      %v2897 = vsel %vm2884, %v2895, %v2893
      %v2898 = vstv %s2872
      %v2899 = vmul.f32 %v2898, %v2885
      %v2900 = vmul.f32 %v2898, %v2886
      %v2901 = vstv %s2873
      %v2902 = vmul.f32 %v2901, %v2896
      %v2903 = vmul.f32 %v2901, %v2897
      %v2904 = vadd.f32 %v2899, %v2902
      %v2905 = vadd.f32 %v2900, %v2903
      %v2907 = vperm.slane %v2874, 0
      %v2908 = vperm.slane %v2874, 1
      %v2911 = vmul.f32 %v2907, %v2904
      %v2912 = vmul.f32 %v2908, %v2905
      %v2913 = vadd.f32 %v2844, %v2911
      %v2914 = vadd.f32 %v2845, %v2912
      %2915 = vst [vmem:[#allocation1] ss:$2 sm:$0xff] %v212
      %v2916 = vld.sshfl [vmem:[#allocation1] sm:$0xff pattern:$0x75316420]
      %v2917 = vld.sshfl [vmem:[#allocation1 + $0x8] sm:$0xff pattern:$0x75316420]
      %2920 = vrot.lane.b32.xlu0 %v2916, 127
      %v2921 = vpop.permute.xlu0 %2920
      %2922 = vrot.lane.b32.xlu0 %v2917, 127
      %v2923 = vpop.permute.xlu0 %2922
      %v2924 = vsel %vm2884, %v2921, %v2923
      %v2925 = vsel %vm2884, %v2923, %v2921
      %2926 = vst [vmem:[#allocation1] ss:$2 sm:$0xff] %v218
      %v2927 = vld.sshfl [vmem:[#allocation1] sm:$0xff pattern:$0x75316420]
      %v2928 = vld.sshfl [vmem:[#allocation1 + $0x8] sm:$0xff pattern:$0x75316420]
      %2931 = vrot.lane.b32.xlu0 %v2927, 127
      %v2932 = vpop.permute.xlu0 %2931
      %2933 = vrot.lane.b32.xlu0 %v2928, 127
      %v2934 = vpop.permute.xlu0 %2933
      %v2935 = vsel %vm2884, %v2932, %v2934
      %v2936 = vsel %vm2884, %v2934, %v2932
      %v2937 = vmul.f32 %v2898, %v2924
      %v2938 = vmul.f32 %v2898, %v2925
      %v2939 = vmul.f32 %v2901, %v2935
      %v2940 = vmul.f32 %v2901, %v2936
      %v2941 = vadd.f32 %v2937, %v2939
      %v2942 = vadd.f32 %v2938, %v2940
      %v2943 = vmul.f32 %v2907, %v2941
      %v2944 = vmul.f32 %v2908, %v2942
      %v2945 = vadd.f32 %v2857, %v2943
      %v2946 = vadd.f32 %v2858, %v2944
      %2947 = vst [vmem:[#allocation1] ss:$2 sm:$0xff] %v215
      %v2948 = vld.sshfl [vmem:[#allocation1] sm:$0xff pattern:$0x75316420]
      %v2949 = vld.sshfl [vmem:[#allocation1 + $0x8] sm:$0xff pattern:$0x75316420]
      %2952 = vrot.lane.b32.xlu0 %v2948, 127
      %v2953 = vpop.permute.xlu0 %2952
      %2954 = vrot.lane.b32.xlu0 %v2949, 127
      %v2955 = vpop.permute.xlu0 %2954
      %v2956 = vsel %vm2884, %v2953, %v2955
      %v2957 = vsel %vm2884, %v2955, %v2953
      %2958 = vst [vmem:[#allocation1] ss:$2 sm:$0xff] %v220
      %v2959 = vld.sshfl [vmem:[#allocation1] sm:$0xff pattern:$0x75316420]
      %v2960 = vld.sshfl [vmem:[#allocation1 + $0x8] sm:$0xff pattern:$0x75316420]
      %2963 = vrot.lane.b32.xlu0 %v2959, 127
      %v2964 = vpop.permute.xlu0 %2963
      %2965 = vrot.lane.b32.xlu0 %v2960, 127
      %v2966 = vpop.permute.xlu0 %2965
      %v2967 = vsel %vm2884, %v2964, %v2966
      %v2968 = vsel %vm2884, %v2966, %v2964
      %v2969 = vmul.f32 %v2898, %v2956
      %v2970 = vmul.f32 %v2898, %v2957
      %v2971 = vmul.f32 %v2901, %v2967
      %v2972 = vmul.f32 %v2901, %v2968
      %v2973 = vadd.f32 %v2969, %v2971
      %v2974 = vadd.f32 %v2970, %v2972
      %v2975 = vmul.f32 %v2907, %v2973
      %v2976 = vmul.f32 %v2908, %v2974
      %v2977 = vadd.f32 %v2870, %v2975
      %v2978 = vadd.f32 %v2871, %v2976
      %s2979 = sld [smem:[#allocation4 + $0x1a]]
      %s2980 = sld [smem:[#allocation4 + $0x4b]]
      %v2981 = vmul.f32 %v227, %v244
      %2982 = vst [vmem:[#allocation1] ss:$2 sm:$0xff] %v209
      %v2983 = vld.sshfl [vmem:[#allocation1] sm:$0xff pattern:$0x75316420]
      %v2984 = vld.sshfl [vmem:[#allocation1 + $0x8] sm:$0xff pattern:$0x75316420]
      %2987 = vrot.lane.b32.xlu0 %v2983, 126
      %v2988 = vpop.permute.xlu0 %2987
      %2989 = vrot.lane.b32.xlu0 %v2984, 126
      %v2990 = vpop.permute.xlu0 %2989
      %vm2991 = vcmp.lt.s32.totalorder %v261, 126
      %v2992 = vsel %vm2991, %v2988, %v2990
      %v2993 = vsel %vm2991, %v2990, %v2988
      %2994 = vst [vmem:[#allocation1] ss:$2 sm:$0xff] %v216
      %v2995 = vld.sshfl [vmem:[#allocation1] sm:$0xff pattern:$0x75316420]
      %v2996 = vld.sshfl [vmem:[#allocation1 + $0x8] sm:$0xff pattern:$0x75316420]
      %2999 = vrot.lane.b32.xlu0 %v2995, 126
      %v3000 = vpop.permute.xlu0 %2999
      %3001 = vrot.lane.b32.xlu0 %v2996, 126
      %v3002 = vpop.permute.xlu0 %3001
      %v3003 = vsel %vm2991, %v3000, %v3002
      %v3004 = vsel %vm2991, %v3002, %v3000
      %v3005 = vstv %s2979
      %v3006 = vmul.f32 %v3005, %v2992
      %v3007 = vmul.f32 %v3005, %v2993
      %v3008 = vstv %s2980
      %v3009 = vmul.f32 %v3008, %v3003
      %v3010 = vmul.f32 %v3008, %v3004
      %v3011 = vadd.f32 %v3006, %v3009
      %v3012 = vadd.f32 %v3007, %v3010
      %v3014 = vperm.slane %v2981, 0
      %v3015 = vperm.slane %v2981, 1
      %v3018 = vmul.f32 %v3014, %v3011
      %v3019 = vmul.f32 %v3015, %v3012
      %v3020 = vadd.f32 %v2913, %v3018
      %v3021 = vadd.f32 %v2914, %v3019
      %3022 = vst [vmem:[#allocation1] ss:$2 sm:$0xff] %v212
      %v3023 = vld.sshfl [vmem:[#allocation1] sm:$0xff pattern:$0x75316420]
      %v3024 = vld.sshfl [vmem:[#allocation1 + $0x8] sm:$0xff pattern:$0x75316420]
      %3027 = vrot.lane.b32.xlu0 %v3023, 126
      %v3028 = vpop.permute.xlu0 %3027
      %3029 = vrot.lane.b32.xlu0 %v3024, 126
      %v3030 = vpop.permute.xlu0 %3029
      %v3031 = vsel %vm2991, %v3028, %v3030
      %v3032 = vsel %vm2991, %v3030, %v3028
      %3033 = vst [vmem:[#allocation1] ss:$2 sm:$0xff] %v218
      %v3034 = vld.sshfl [vmem:[#allocation1] sm:$0xff pattern:$0x75316420]
      %v3035 = vld.sshfl [vmem:[#allocation1 + $0x8] sm:$0xff pattern:$0x75316420]
      %3038 = vrot.lane.b32.xlu0 %v3034, 126
      %v3039 = vpop.permute.xlu0 %3038
      %3040 = vrot.lane.b32.xlu0 %v3035, 126
      %v3041 = vpop.permute.xlu0 %3040
      %v3042 = vsel %vm2991, %v3039, %v3041
      %v3043 = vsel %vm2991, %v3041, %v3039
      %v3044 = vmul.f32 %v3005, %v3031
      %v3045 = vmul.f32 %v3005, %v3032
      %v3046 = vmul.f32 %v3008, %v3042
      %v3047 = vmul.f32 %v3008, %v3043
      %v3048 = vadd.f32 %v3044, %v3046
      %v3049 = vadd.f32 %v3045, %v3047
      %v3050 = vmul.f32 %v3014, %v3048
      %v3051 = vmul.f32 %v3015, %v3049
      %v3052 = vadd.f32 %v2945, %v3050
      %v3053 = vadd.f32 %v2946, %v3051
      %3054 = vst [vmem:[#allocation1] ss:$2 sm:$0xff] %v215
      %v3055 = vld.sshfl [vmem:[#allocation1] sm:$0xff pattern:$0x75316420]
      %v3056 = vld.sshfl [vmem:[#allocation1 + $0x8] sm:$0xff pattern:$0x75316420]
      %3059 = vrot.lane.b32.xlu0 %v3055, 126
      %v3060 = vpop.permute.xlu0 %3059
      %3061 = vrot.lane.b32.xlu0 %v3056, 126
      %v3062 = vpop.permute.xlu0 %3061
      %v3063 = vsel %vm2991, %v3060, %v3062
      %v3064 = vsel %vm2991, %v3062, %v3060
      %3065 = vst [vmem:[#allocation1] ss:$2 sm:$0xff] %v220
      %v3066 = vld.sshfl [vmem:[#allocation1] sm:$0xff pattern:$0x75316420]
      %v3067 = vld.sshfl [vmem:[#allocation1 + $0x8] sm:$0xff pattern:$0x75316420]
      %3070 = vrot.lane.b32.xlu0 %v3066, 126
      %v3071 = vpop.permute.xlu0 %3070
      %3072 = vrot.lane.b32.xlu0 %v3067, 126
      %v3073 = vpop.permute.xlu0 %3072
      %v3074 = vsel %vm2991, %v3071, %v3073
      %v3075 = vsel %vm2991, %v3073, %v3071
      %v3076 = vmul.f32 %v3005, %v3063
      %v3077 = vmul.f32 %v3005, %v3064
      %v3078 = vmul.f32 %v3008, %v3074
      %v3079 = vmul.f32 %v3008, %v3075
      %v3080 = vadd.f32 %v3076, %v3078
      %v3081 = vadd.f32 %v3077, %v3079
      %v3082 = vmul.f32 %v3014, %v3080
      %v3083 = vmul.f32 %v3015, %v3081
      %v3084 = vadd.f32 %v2977, %v3082
      %v3085 = vadd.f32 %v2978, %v3083
      %s3086 = sld [smem:[#allocation4 + $0x1b]]
      %s3087 = sld [smem:[#allocation4 + $0x4c]]
      %v3088 = vmul.f32 %v227, %v246
      %3089 = vst [vmem:[#allocation1] ss:$2 sm:$0xff] %v209
      %v3090 = vld.sshfl [vmem:[#allocation1] sm:$0xff pattern:$0x75316420]
      %v3091 = vld.sshfl [vmem:[#allocation1 + $0x8] sm:$0xff pattern:$0x75316420]
      %3094 = vrot.lane.b32.xlu0 %v3090, 125
      %v3095 = vpop.permute.xlu0 %3094
      %3096 = vrot.lane.b32.xlu0 %v3091, 125
      %v3097 = vpop.permute.xlu0 %3096
      %vm3098 = vcmp.lt.s32.totalorder %v261, 125
      %v3099 = vsel %vm3098, %v3095, %v3097
      %v3100 = vsel %vm3098, %v3097, %v3095
      %3101 = vst [vmem:[#allocation1] ss:$2 sm:$0xff] %v216
      %v3102 = vld.sshfl [vmem:[#allocation1] sm:$0xff pattern:$0x75316420]
      %v3103 = vld.sshfl [vmem:[#allocation1 + $0x8] sm:$0xff pattern:$0x75316420]
      %3106 = vrot.lane.b32.xlu0 %v3102, 125
      %v3107 = vpop.permute.xlu0 %3106
      %3108 = vrot.lane.b32.xlu0 %v3103, 125
      %v3109 = vpop.permute.xlu0 %3108
      %v3110 = vsel %vm3098, %v3107, %v3109
      %v3111 = vsel %vm3098, %v3109, %v3107
      %v3112 = vstv %s3086
      %v3113 = vmul.f32 %v3112, %v3099
      %v3114 = vmul.f32 %v3112, %v3100
      %v3115 = vstv %s3087
      %v3116 = vmul.f32 %v3115, %v3110
      %v3117 = vmul.f32 %v3115, %v3111
      %v3118 = vadd.f32 %v3113, %v3116
      %v3119 = vadd.f32 %v3114, %v3117
      %v3121 = vperm.slane %v3088, 0
      %v3122 = vperm.slane %v3088, 1
      %v3125 = vmul.f32 %v3121, %v3118
      %v3126 = vmul.f32 %v3122, %v3119
      %v3127 = vadd.f32 %v3020, %v3125
      %v3128 = vadd.f32 %v3021, %v3126
      %3129 = vst [vmem:[#allocation1] ss:$2 sm:$0xff] %v212
      %v3130 = vld.sshfl [vmem:[#allocation1] sm:$0xff pattern:$0x75316420]
      %v3131 = vld.sshfl [vmem:[#allocation1 + $0x8] sm:$0xff pattern:$0x75316420]
      %3134 = vrot.lane.b32.xlu0 %v3130, 125
      %v3135 = vpop.permute.xlu0 %3134
      %3136 = vrot.lane.b32.xlu0 %v3131, 125
      %v3137 = vpop.permute.xlu0 %3136
      %v3138 = vsel %vm3098, %v3135, %v3137
      %v3139 = vsel %vm3098, %v3137, %v3135
      %3140 = vst [vmem:[#allocation1] ss:$2 sm:$0xff] %v218
      %v3141 = vld.sshfl [vmem:[#allocation1] sm:$0xff pattern:$0x75316420]
      %v3142 = vld.sshfl [vmem:[#allocation1 + $0x8] sm:$0xff pattern:$0x75316420]
      %3145 = vrot.lane.b32.xlu0 %v3141, 125
      %v3146 = vpop.permute.xlu0 %3145
      %3147 = vrot.lane.b32.xlu0 %v3142, 125
      %v3148 = vpop.permute.xlu0 %3147
      %v3149 = vsel %vm3098, %v3146, %v3148
      %v3150 = vsel %vm3098, %v3148, %v3146
      %v3151 = vmul.f32 %v3112, %v3138
      %v3152 = vmul.f32 %v3112, %v3139
      %v3153 = vmul.f32 %v3115, %v3149
      %v3154 = vmul.f32 %v3115, %v3150
      %v3155 = vadd.f32 %v3151, %v3153
      %v3156 = vadd.f32 %v3152, %v3154
      %v3157 = vmul.f32 %v3121, %v3155
      %v3158 = vmul.f32 %v3122, %v3156
      %v3159 = vadd.f32 %v3052, %v3157
      %v3160 = vadd.f32 %v3053, %v3158
      %3161 = vst [vmem:[#allocation1] ss:$2 sm:$0xff] %v215
      %v3162 = vld.sshfl [vmem:[#allocation1] sm:$0xff pattern:$0x75316420]
      %v3163 = vld.sshfl [vmem:[#allocation1 + $0x8] sm:$0xff pattern:$0x75316420]
      %3166 = vrot.lane.b32.xlu0 %v3162, 125
      %v3167 = vpop.permute.xlu0 %3166
      %3168 = vrot.lane.b32.xlu0 %v3163, 125
      %v3169 = vpop.permute.xlu0 %3168
      %v3170 = vsel %vm3098, %v3167, %v3169
      %v3171 = vsel %vm3098, %v3169, %v3167
      %3172 = vst [vmem:[#allocation1] ss:$2 sm:$0xff] %v220
      %v3173 = vld.sshfl [vmem:[#allocation1] sm:$0xff pattern:$0x75316420]
      %v3174 = vld.sshfl [vmem:[#allocation1 + $0x8] sm:$0xff pattern:$0x75316420]
      %3177 = vrot.lane.b32.xlu0 %v3173, 125
      %v3178 = vpop.permute.xlu0 %3177
      %3179 = vrot.lane.b32.xlu0 %v3174, 125
      %v3180 = vpop.permute.xlu0 %3179
      %v3181 = vsel %vm3098, %v3178, %v3180
      %v3182 = vsel %vm3098, %v3180, %v3178
      %v3183 = vmul.f32 %v3112, %v3170
      %v3184 = vmul.f32 %v3112, %v3171
      %v3185 = vmul.f32 %v3115, %v3181
      %v3186 = vmul.f32 %v3115, %v3182
      %v3187 = vadd.f32 %v3183, %v3185
      %v3188 = vadd.f32 %v3184, %v3186
      %v3189 = vmul.f32 %v3121, %v3187
      %v3190 = vmul.f32 %v3122, %v3188
      %v3191 = vadd.f32 %v3084, %v3189
      %v3192 = vadd.f32 %v3085, %v3190
      %s3193 = sld [smem:[#allocation4 + $0x1c]]
      %s3194 = sld [smem:[#allocation4 + $0x4d]]
      %v3195 = vmul.f32 %v229, %v234
      %3196 = vst [vmem:[#allocation1] ss:$2 sm:$0xff] %v209
      %v3197 = vld.sshfl [vmem:[#allocation1] sm:$0xff pattern:$0x75316420]
      %v3198 = vld.sshfl [vmem:[#allocation1 + $0x8] sm:$0xff pattern:$0x75316420]
      %3201 = vrot.lane.b32.xlu0 %v3197, 115
      %v3202 = vpop.permute.xlu0 %3201
      %3203 = vrot.lane.b32.xlu0 %v3198, 115
      %v3204 = vpop.permute.xlu0 %3203
      %vm3205 = vcmp.lt.s32.totalorder %v261, 115
      %v3206 = vsel %vm3205, %v3202, %v3204
      %v3207 = vsel %vm3205, %v3204, %v3202
      %3208 = vst [vmem:[#allocation1] ss:$2 sm:$0xff] %v216
      %v3209 = vld.sshfl [vmem:[#allocation1] sm:$0xff pattern:$0x75316420]
      %v3210 = vld.sshfl [vmem:[#allocation1 + $0x8] sm:$0xff pattern:$0x75316420]
      %3213 = vrot.lane.b32.xlu0 %v3209, 115
      %v3214 = vpop.permute.xlu0 %3213
      %3215 = vrot.lane.b32.xlu0 %v3210, 115
      %v3216 = vpop.permute.xlu0 %3215
      %v3217 = vsel %vm3205, %v3214, %v3216
      %v3218 = vsel %vm3205, %v3216, %v3214
      %v3219 = vstv %s3193
      %v3220 = vmul.f32 %v3219, %v3206
      %v3221 = vmul.f32 %v3219, %v3207
      %v3222 = vstv %s3194
      %v3223 = vmul.f32 %v3222, %v3217
      %v3224 = vmul.f32 %v3222, %v3218
      %v3225 = vadd.f32 %v3220, %v3223
      %v3226 = vadd.f32 %v3221, %v3224
      %v3228 = vperm.slane %v3195, 0
      %v3229 = vperm.slane %v3195, 1
      %v3232 = vmul.f32 %v3228, %v3225
      %v3233 = vmul.f32 %v3229, %v3226
      %v3234 = vadd.f32 %v3127, %v3232
      %v3235 = vadd.f32 %v3128, %v3233
      %3236 = vst [vmem:[#allocation1] ss:$2 sm:$0xff] %v212
      %v3237 = vld.sshfl [vmem:[#allocation1] sm:$0xff pattern:$0x75316420]
      %v3238 = vld.sshfl [vmem:[#allocation1 + $0x8] sm:$0xff pattern:$0x75316420]
      %3241 = vrot.lane.b32.xlu0 %v3237, 115
      %v3242 = vpop.permute.xlu0 %3241
      %3243 = vrot.lane.b32.xlu0 %v3238, 115
      %v3244 = vpop.permute.xlu0 %3243
      %v3245 = vsel %vm3205, %v3242, %v3244
      %v3246 = vsel %vm3205, %v3244, %v3242
      %3247 = vst [vmem:[#allocation1] ss:$2 sm:$0xff] %v218
      %v3248 = vld.sshfl [vmem:[#allocation1] sm:$0xff pattern:$0x75316420]
      %v3249 = vld.sshfl [vmem:[#allocation1 + $0x8] sm:$0xff pattern:$0x75316420]
      %3252 = vrot.lane.b32.xlu0 %v3248, 115
      %v3253 = vpop.permute.xlu0 %3252
      %3254 = vrot.lane.b32.xlu0 %v3249, 115
      %v3255 = vpop.permute.xlu0 %3254
      %v3256 = vsel %vm3205, %v3253, %v3255
      %v3257 = vsel %vm3205, %v3255, %v3253
      %v3258 = vmul.f32 %v3219, %v3245
      %v3259 = vmul.f32 %v3219, %v3246
      %v3260 = vmul.f32 %v3222, %v3256
      %v3261 = vmul.f32 %v3222, %v3257
      %v3262 = vadd.f32 %v3258, %v3260
      %v3263 = vadd.f32 %v3259, %v3261
      %v3264 = vmul.f32 %v3228, %v3262
      %v3265 = vmul.f32 %v3229, %v3263
      %v3266 = vadd.f32 %v3159, %v3264
      %v3267 = vadd.f32 %v3160, %v3265
      %3268 = vst [vmem:[#allocation1] ss:$2 sm:$0xff] %v215
      %v3269 = vld.sshfl [vmem:[#allocation1] sm:$0xff pattern:$0x75316420]
      %v3270 = vld.sshfl [vmem:[#allocation1 + $0x8] sm:$0xff pattern:$0x75316420]
      %3273 = vrot.lane.b32.xlu0 %v3269, 115
      %v3274 = vpop.permute.xlu0 %3273
      %3275 = vrot.lane.b32.xlu0 %v3270, 115
      %v3276 = vpop.permute.xlu0 %3275
      %v3277 = vsel %vm3205, %v3274, %v3276
      %v3278 = vsel %vm3205, %v3276, %v3274
      %3279 = vst [vmem:[#allocation1] ss:$2 sm:$0xff] %v220
      %v3280 = vld.sshfl [vmem:[#allocation1] sm:$0xff pattern:$0x75316420]
      %v3281 = vld.sshfl [vmem:[#allocation1 + $0x8] sm:$0xff pattern:$0x75316420]
      %3284 = vrot.lane.b32.xlu0 %v3280, 115
      %v3285 = vpop.permute.xlu0 %3284
      %3286 = vrot.lane.b32.xlu0 %v3281, 115
      %v3287 = vpop.permute.xlu0 %3286
      %v3288 = vsel %vm3205, %v3285, %v3287
      %v3289 = vsel %vm3205, %v3287, %v3285
      %v3290 = vmul.f32 %v3219, %v3277
      %v3291 = vmul.f32 %v3219, %v3278
      %v3292 = vmul.f32 %v3222, %v3288
      %v3293 = vmul.f32 %v3222, %v3289
      %v3294 = vadd.f32 %v3290, %v3292
      %v3295 = vadd.f32 %v3291, %v3293
      %v3296 = vmul.f32 %v3228, %v3294
      %v3297 = vmul.f32 %v3229, %v3295
      %v3298 = vadd.f32 %v3191, %v3296
      %v3299 = vadd.f32 %v3192, %v3297
      %s3300 = sld [smem:[#allocation4 + $0x1d]]
      %s3301 = sld [smem:[#allocation4 + $0x4e]]
      %v3302 = vmul.f32 %v229, %v236
      %3303 = vst [vmem:[#allocation1] ss:$2 sm:$0xff] %v209
      %v3304 = vld.sshfl [vmem:[#allocation1] sm:$0xff pattern:$0x75316420]
      %v3305 = vld.sshfl [vmem:[#allocation1 + $0x8] sm:$0xff pattern:$0x75316420]
      %3308 = vrot.lane.b32.xlu0 %v3304, 114
      %v3309 = vpop.permute.xlu0 %3308
      %3310 = vrot.lane.b32.xlu0 %v3305, 114
      %v3311 = vpop.permute.xlu0 %3310
      %vm3312 = vcmp.lt.s32.totalorder %v261, 114
      %v3313 = vsel %vm3312, %v3309, %v3311
      %v3314 = vsel %vm3312, %v3311, %v3309
      %3315 = vst [vmem:[#allocation1] ss:$2 sm:$0xff] %v216
      %v3316 = vld.sshfl [vmem:[#allocation1] sm:$0xff pattern:$0x75316420]
      %v3317 = vld.sshfl [vmem:[#allocation1 + $0x8] sm:$0xff pattern:$0x75316420]
      %3320 = vrot.lane.b32.xlu0 %v3316, 114
      %v3321 = vpop.permute.xlu0 %3320
      %3322 = vrot.lane.b32.xlu0 %v3317, 114
      %v3323 = vpop.permute.xlu0 %3322
      %v3324 = vsel %vm3312, %v3321, %v3323
      %v3325 = vsel %vm3312, %v3323, %v3321
      %v3326 = vstv %s3300
      %v3327 = vmul.f32 %v3326, %v3313
      %v3328 = vmul.f32 %v3326, %v3314
      %v3329 = vstv %s3301
      %v3330 = vmul.f32 %v3329, %v3324
      %v3331 = vmul.f32 %v3329, %v3325
      %v3332 = vadd.f32 %v3327, %v3330
      %v3333 = vadd.f32 %v3328, %v3331
      %v3335 = vperm.slane %v3302, 0
      %v3336 = vperm.slane %v3302, 1
      %v3339 = vmul.f32 %v3335, %v3332
      %v3340 = vmul.f32 %v3336, %v3333
      %v3341 = vadd.f32 %v3234, %v3339
      %v3342 = vadd.f32 %v3235, %v3340
      %3343 = vst [vmem:[#allocation1] ss:$2 sm:$0xff] %v212
      %v3344 = vld.sshfl [vmem:[#allocation1] sm:$0xff pattern:$0x75316420]
      %v3345 = vld.sshfl [vmem:[#allocation1 + $0x8] sm:$0xff pattern:$0x75316420]
      %3348 = vrot.lane.b32.xlu0 %v3344, 114
      %v3349 = vpop.permute.xlu0 %3348
      %3350 = vrot.lane.b32.xlu0 %v3345, 114
      %v3351 = vpop.permute.xlu0 %3350
      %v3352 = vsel %vm3312, %v3349, %v3351
      %v3353 = vsel %vm3312, %v3351, %v3349
      %3354 = vst [vmem:[#allocation1] ss:$2 sm:$0xff] %v218
      %v3355 = vld.sshfl [vmem:[#allocation1] sm:$0xff pattern:$0x75316420]
      %v3356 = vld.sshfl [vmem:[#allocation1 + $0x8] sm:$0xff pattern:$0x75316420]
      %3359 = vrot.lane.b32.xlu0 %v3355, 114
      %v3360 = vpop.permute.xlu0 %3359
      %3361 = vrot.lane.b32.xlu0 %v3356, 114
      %v3362 = vpop.permute.xlu0 %3361
      %v3363 = vsel %vm3312, %v3360, %v3362
      %v3364 = vsel %vm3312, %v3362, %v3360
      %v3365 = vmul.f32 %v3326, %v3352
      %v3366 = vmul.f32 %v3326, %v3353
      %v3367 = vmul.f32 %v3329, %v3363
      %v3368 = vmul.f32 %v3329, %v3364
      %v3369 = vadd.f32 %v3365, %v3367
      %v3370 = vadd.f32 %v3366, %v3368
      %v3371 = vmul.f32 %v3335, %v3369
      %v3372 = vmul.f32 %v3336, %v3370
      %v3373 = vadd.f32 %v3266, %v3371
      %v3374 = vadd.f32 %v3267, %v3372
      %3375 = vst [vmem:[#allocation1] ss:$2 sm:$0xff] %v215
      %v3376 = vld.sshfl [vmem:[#allocation1] sm:$0xff pattern:$0x75316420]
      %v3377 = vld.sshfl [vmem:[#allocation1 + $0x8] sm:$0xff pattern:$0x75316420]
      %3380 = vrot.lane.b32.xlu0 %v3376, 114
      %v3381 = vpop.permute.xlu0 %3380
      %3382 = vrot.lane.b32.xlu0 %v3377, 114
      %v3383 = vpop.permute.xlu0 %3382
      %v3384 = vsel %vm3312, %v3381, %v3383
      %v3385 = vsel %vm3312, %v3383, %v3381
      %3386 = vst [vmem:[#allocation1] ss:$2 sm:$0xff] %v220
      %v3387 = vld.sshfl [vmem:[#allocation1] sm:$0xff pattern:$0x75316420]
      %v3388 = vld.sshfl [vmem:[#allocation1 + $0x8] sm:$0xff pattern:$0x75316420]
      %3391 = vrot.lane.b32.xlu0 %v3387, 114
      %v3392 = vpop.permute.xlu0 %3391
      %3393 = vrot.lane.b32.xlu0 %v3388, 114
      %v3394 = vpop.permute.xlu0 %3393
      %v3395 = vsel %vm3312, %v3392, %v3394
      %v3396 = vsel %vm3312, %v3394, %v3392
      %v3397 = vmul.f32 %v3326, %v3384
      %v3398 = vmul.f32 %v3326, %v3385
      %v3399 = vmul.f32 %v3329, %v3395
      %v3400 = vmul.f32 %v3329, %v3396
      %v3401 = vadd.f32 %v3397, %v3399
      %v3402 = vadd.f32 %v3398, %v3400
      %v3403 = vmul.f32 %v3335, %v3401
      %v3404 = vmul.f32 %v3336, %v3402
      %v3405 = vadd.f32 %v3298, %v3403
      %v3406 = vadd.f32 %v3299, %v3404
      %s3407 = sld [smem:[#allocation4 + $0x1e]]
      %s3408 = sld [smem:[#allocation4 + $0x4f]]
      %v3409 = vmul.f32 %v229, %v238
      %3410 = vst [vmem:[#allocation1] ss:$2 sm:$0xff] %v209
      %v3411 = vld.sshfl [vmem:[#allocation1] sm:$0xff pattern:$0x75316420]
      %v3412 = vld.sshfl [vmem:[#allocation1 + $0x8] sm:$0xff pattern:$0x75316420]
      %3415 = vrot.lane.b32.xlu0 %v3411, 113
      %v3416 = vpop.permute.xlu0 %3415
      %3417 = vrot.lane.b32.xlu0 %v3412, 113
      %v3418 = vpop.permute.xlu0 %3417
      %vm3419 = vcmp.lt.s32.totalorder %v261, 113
      %v3420 = vsel %vm3419, %v3416, %v3418
      %v3421 = vsel %vm3419, %v3418, %v3416
      %3422 = vst [vmem:[#allocation1] ss:$2 sm:$0xff] %v216
      %v3423 = vld.sshfl [vmem:[#allocation1] sm:$0xff pattern:$0x75316420]
      %v3424 = vld.sshfl [vmem:[#allocation1 + $0x8] sm:$0xff pattern:$0x75316420]
      %3427 = vrot.lane.b32.xlu0 %v3423, 113
      %v3428 = vpop.permute.xlu0 %3427
      %3429 = vrot.lane.b32.xlu0 %v3424, 113
      %v3430 = vpop.permute.xlu0 %3429
      %v3431 = vsel %vm3419, %v3428, %v3430
      %v3432 = vsel %vm3419, %v3430, %v3428
      %v3433 = vstv %s3407
      %v3434 = vmul.f32 %v3433, %v3420
      %v3435 = vmul.f32 %v3433, %v3421
      %v3436 = vstv %s3408
      %v3437 = vmul.f32 %v3436, %v3431
      %v3438 = vmul.f32 %v3436, %v3432
      %v3439 = vadd.f32 %v3434, %v3437
      %v3440 = vadd.f32 %v3435, %v3438
      %v3442 = vperm.slane %v3409, 0
      %v3443 = vperm.slane %v3409, 1
      %v3446 = vmul.f32 %v3442, %v3439
      %v3447 = vmul.f32 %v3443, %v3440
      %v3448 = vadd.f32 %v3341, %v3446
      %v3449 = vadd.f32 %v3342, %v3447
      %3450 = vst [vmem:[#allocation1] ss:$2 sm:$0xff] %v212
      %v3451 = vld.sshfl [vmem:[#allocation1] sm:$0xff pattern:$0x75316420]
      %v3452 = vld.sshfl [vmem:[#allocation1 + $0x8] sm:$0xff pattern:$0x75316420]
      %3455 = vrot.lane.b32.xlu0 %v3451, 113
      %v3456 = vpop.permute.xlu0 %3455
      %3457 = vrot.lane.b32.xlu0 %v3452, 113
      %v3458 = vpop.permute.xlu0 %3457
      %v3459 = vsel %vm3419, %v3456, %v3458
      %v3460 = vsel %vm3419, %v3458, %v3456
      %3461 = vst [vmem:[#allocation1] ss:$2 sm:$0xff] %v218
      %v3462 = vld.sshfl [vmem:[#allocation1] sm:$0xff pattern:$0x75316420]
      %v3463 = vld.sshfl [vmem:[#allocation1 + $0x8] sm:$0xff pattern:$0x75316420]
      %3466 = vrot.lane.b32.xlu0 %v3462, 113
      %v3467 = vpop.permute.xlu0 %3466
      %3468 = vrot.lane.b32.xlu0 %v3463, 113
      %v3469 = vpop.permute.xlu0 %3468
      %v3470 = vsel %vm3419, %v3467, %v3469
      %v3471 = vsel %vm3419, %v3469, %v3467
      %v3472 = vmul.f32 %v3433, %v3459
      %v3473 = vmul.f32 %v3433, %v3460
      %v3474 = vmul.f32 %v3436, %v3470
      %v3475 = vmul.f32 %v3436, %v3471
      %v3476 = vadd.f32 %v3472, %v3474
      %v3477 = vadd.f32 %v3473, %v3475
      %v3478 = vmul.f32 %v3442, %v3476
      %v3479 = vmul.f32 %v3443, %v3477
      %v3480 = vadd.f32 %v3373, %v3478
      %v3481 = vadd.f32 %v3374, %v3479
      %3482 = vst [vmem:[#allocation1] ss:$2 sm:$0xff] %v215
      %v3483 = vld.sshfl [vmem:[#allocation1] sm:$0xff pattern:$0x75316420]
      %v3484 = vld.sshfl [vmem:[#allocation1 + $0x8] sm:$0xff pattern:$0x75316420]
      %3487 = vrot.lane.b32.xlu0 %v3483, 113
      %v3488 = vpop.permute.xlu0 %3487
      %3489 = vrot.lane.b32.xlu0 %v3484, 113
      %v3490 = vpop.permute.xlu0 %3489
      %v3491 = vsel %vm3419, %v3488, %v3490
      %v3492 = vsel %vm3419, %v3490, %v3488
      %3493 = vst [vmem:[#allocation1] ss:$2 sm:$0xff] %v220
      %v3494 = vld.sshfl [vmem:[#allocation1] sm:$0xff pattern:$0x75316420]
      %v3495 = vld.sshfl [vmem:[#allocation1 + $0x8] sm:$0xff pattern:$0x75316420]
      %3498 = vrot.lane.b32.xlu0 %v3494, 113
      %v3499 = vpop.permute.xlu0 %3498
      %3500 = vrot.lane.b32.xlu0 %v3495, 113
      %v3501 = vpop.permute.xlu0 %3500
      %v3502 = vsel %vm3419, %v3499, %v3501
      %v3503 = vsel %vm3419, %v3501, %v3499
      %v3504 = vmul.f32 %v3433, %v3491
      %v3505 = vmul.f32 %v3433, %v3492
      %v3506 = vmul.f32 %v3436, %v3502
      %v3507 = vmul.f32 %v3436, %v3503
      %v3508 = vadd.f32 %v3504, %v3506
      %v3509 = vadd.f32 %v3505, %v3507
      %v3510 = vmul.f32 %v3442, %v3508
      %v3511 = vmul.f32 %v3443, %v3509
      %v3512 = vadd.f32 %v3405, %v3510
      %v3513 = vadd.f32 %v3406, %v3511
      %s3514 = sld [smem:[#allocation4 + $0x1f]]
      %s3515 = sld [smem:[#allocation4 + $0x50]]
      %v3516 = vmul.f32 %v229, %v240
      %3517 = vst [vmem:[#allocation1] ss:$2 sm:$0xff] %v209
      %v3518 = vld.sshfl [vmem:[#allocation1] sm:$0xff pattern:$0x75316420]
      %v3519 = vld.sshfl [vmem:[#allocation1 + $0x8] sm:$0xff pattern:$0x75316420]
      %3522 = vrot.lane.b32.xlu0 %v3518, 112
      %v3523 = vpop.permute.xlu0 %3522
      %3524 = vrot.lane.b32.xlu0 %v3519, 112
      %v3525 = vpop.permute.xlu0 %3524
      %vm3526 = vcmp.lt.s32.totalorder %v261, 112
      %v3527 = vsel %vm3526, %v3523, %v3525
      %v3528 = vsel %vm3526, %v3525, %v3523
      %3529 = vst [vmem:[#allocation1] ss:$2 sm:$0xff] %v216
      %v3530 = vld.sshfl [vmem:[#allocation1] sm:$0xff pattern:$0x75316420]
      %v3531 = vld.sshfl [vmem:[#allocation1 + $0x8] sm:$0xff pattern:$0x75316420]
      %3534 = vrot.lane.b32.xlu0 %v3530, 112
      %v3535 = vpop.permute.xlu0 %3534
      %3536 = vrot.lane.b32.xlu0 %v3531, 112
      %v3537 = vpop.permute.xlu0 %3536
      %v3538 = vsel %vm3526, %v3535, %v3537
      %v3539 = vsel %vm3526, %v3537, %v3535
      %v3540 = vstv %s3514
      %v3541 = vmul.f32 %v3540, %v3527
      %v3542 = vmul.f32 %v3540, %v3528
      %v3543 = vstv %s3515
      %v3544 = vmul.f32 %v3543, %v3538
      %v3545 = vmul.f32 %v3543, %v3539
      %v3546 = vadd.f32 %v3541, %v3544
      %v3547 = vadd.f32 %v3542, %v3545
      %v3549 = vperm.slane %v3516, 0
      %v3550 = vperm.slane %v3516, 1
      %v3553 = vmul.f32 %v3549, %v3546
      %v3554 = vmul.f32 %v3550, %v3547
      %v3555 = vadd.f32 %v3448, %v3553
      %v3556 = vadd.f32 %v3449, %v3554
      %3557 = vst [vmem:[#allocation1] ss:$2 sm:$0xff] %v212
      %v3558 = vld.sshfl [vmem:[#allocation1] sm:$0xff pattern:$0x75316420]
      %v3559 = vld.sshfl [vmem:[#allocation1 + $0x8] sm:$0xff pattern:$0x75316420]
      %3562 = vrot.lane.b32.xlu0 %v3558, 112
      %v3563 = vpop.permute.xlu0 %3562
      %3564 = vrot.lane.b32.xlu0 %v3559, 112
      %v3565 = vpop.permute.xlu0 %3564
      %v3566 = vsel %vm3526, %v3563, %v3565
      %v3567 = vsel %vm3526, %v3565, %v3563
      %3568 = vst [vmem:[#allocation1] ss:$2 sm:$0xff] %v218
      %v3569 = vld.sshfl [vmem:[#allocation1] sm:$0xff pattern:$0x75316420]
      %v3570 = vld.sshfl [vmem:[#allocation1 + $0x8] sm:$0xff pattern:$0x75316420]
      %3573 = vrot.lane.b32.xlu0 %v3569, 112
      %v3574 = vpop.permute.xlu0 %3573
      %3575 = vrot.lane.b32.xlu0 %v3570, 112
      %v3576 = vpop.permute.xlu0 %3575
      %v3577 = vsel %vm3526, %v3574, %v3576
      %v3578 = vsel %vm3526, %v3576, %v3574
      %v3579 = vmul.f32 %v3540, %v3566
      %v3580 = vmul.f32 %v3540, %v3567
      %v3581 = vmul.f32 %v3543, %v3577
      %v3582 = vmul.f32 %v3543, %v3578
      %v3583 = vadd.f32 %v3579, %v3581
      %v3584 = vadd.f32 %v3580, %v3582
      %v3585 = vmul.f32 %v3549, %v3583
      %v3586 = vmul.f32 %v3550, %v3584
      %v3587 = vadd.f32 %v3480, %v3585
      %v3588 = vadd.f32 %v3481, %v3586
      %3589 = vst [vmem:[#allocation1] ss:$2 sm:$0xff] %v215
      %v3590 = vld.sshfl [vmem:[#allocation1] sm:$0xff pattern:$0x75316420]
      %v3591 = vld.sshfl [vmem:[#allocation1 + $0x8] sm:$0xff pattern:$0x75316420]
      %3594 = vrot.lane.b32.xlu0 %v3590, 112
      %v3595 = vpop.permute.xlu0 %3594
      %3596 = vrot.lane.b32.xlu0 %v3591, 112
      %v3597 = vpop.permute.xlu0 %3596
      %v3598 = vsel %vm3526, %v3595, %v3597
      %v3599 = vsel %vm3526, %v3597, %v3595
      %3600 = vst [vmem:[#allocation1] ss:$2 sm:$0xff] %v220
      %v3601 = vld.sshfl [vmem:[#allocation1] sm:$0xff pattern:$0x75316420]
      %v3602 = vld.sshfl [vmem:[#allocation1 + $0x8] sm:$0xff pattern:$0x75316420]
      %3605 = vrot.lane.b32.xlu0 %v3601, 112
      %v3606 = vpop.permute.xlu0 %3605
      %3607 = vrot.lane.b32.xlu0 %v3602, 112
      %v3608 = vpop.permute.xlu0 %3607
      %v3609 = vsel %vm3526, %v3606, %v3608
      %v3610 = vsel %vm3526, %v3608, %v3606
      %v3611 = vmul.f32 %v3540, %v3598
      %v3612 = vmul.f32 %v3540, %v3599
      %v3613 = vmul.f32 %v3543, %v3609
      %v3614 = vmul.f32 %v3543, %v3610
      %v3615 = vadd.f32 %v3611, %v3613
      %v3616 = vadd.f32 %v3612, %v3614
      %v3617 = vmul.f32 %v3549, %v3615
      %v3618 = vmul.f32 %v3550, %v3616
      %v3619 = vadd.f32 %v3512, %v3617
      %v3620 = vadd.f32 %v3513, %v3618
      %s3621 = sld [smem:[#allocation4 + $0x20]]
      %s3622 = sld [smem:[#allocation4 + $0x51]]
      %v3623 = vmul.f32 %v229, %v242
      %3624 = vst [vmem:[#allocation1] ss:$2 sm:$0xff] %v209
      %v3625 = vld.sshfl [vmem:[#allocation1] sm:$0xff pattern:$0x75316420]
      %v3626 = vld.sshfl [vmem:[#allocation1 + $0x8] sm:$0xff pattern:$0x75316420]
      %3629 = vrot.lane.b32.xlu0 %v3625, 111
      %v3630 = vpop.permute.xlu0 %3629
      %3631 = vrot.lane.b32.xlu0 %v3626, 111
      %v3632 = vpop.permute.xlu0 %3631
      %vm3633 = vcmp.lt.s32.totalorder %v261, 111
      %v3634 = vsel %vm3633, %v3630, %v3632
      %v3635 = vsel %vm3633, %v3632, %v3630
      %3636 = vst [vmem:[#allocation1] ss:$2 sm:$0xff] %v216
      %v3637 = vld.sshfl [vmem:[#allocation1] sm:$0xff pattern:$0x75316420]
      %v3638 = vld.sshfl [vmem:[#allocation1 + $0x8] sm:$0xff pattern:$0x75316420]
      %3641 = vrot.lane.b32.xlu0 %v3637, 111
      %v3642 = vpop.permute.xlu0 %3641
      %3643 = vrot.lane.b32.xlu0 %v3638, 111
      %v3644 = vpop.permute.xlu0 %3643
      %v3645 = vsel %vm3633, %v3642, %v3644
      %v3646 = vsel %vm3633, %v3644, %v3642
      %v3647 = vstv %s3621
      %v3648 = vmul.f32 %v3647, %v3634
      %v3649 = vmul.f32 %v3647, %v3635
      %v3650 = vstv %s3622
      %v3651 = vmul.f32 %v3650, %v3645
      %v3652 = vmul.f32 %v3650, %v3646
      %v3653 = vadd.f32 %v3648, %v3651
      %v3654 = vadd.f32 %v3649, %v3652
      %v3656 = vperm.slane %v3623, 0
      %v3657 = vperm.slane %v3623, 1
      %v3660 = vmul.f32 %v3656, %v3653
      %v3661 = vmul.f32 %v3657, %v3654
      %v3662 = vadd.f32 %v3555, %v3660
      %v3663 = vadd.f32 %v3556, %v3661
      %3664 = vst [vmem:[#allocation1] ss:$2 sm:$0xff] %v212
      %v3665 = vld.sshfl [vmem:[#allocation1] sm:$0xff pattern:$0x75316420]
      %v3666 = vld.sshfl [vmem:[#allocation1 + $0x8] sm:$0xff pattern:$0x75316420]
      %3669 = vrot.lane.b32.xlu0 %v3665, 111
      %v3670 = vpop.permute.xlu0 %3669
      %3671 = vrot.lane.b32.xlu0 %v3666, 111
      %v3672 = vpop.permute.xlu0 %3671
      %v3673 = vsel %vm3633, %v3670, %v3672
      %v3674 = vsel %vm3633, %v3672, %v3670
      %3675 = vst [vmem:[#allocation1] ss:$2 sm:$0xff] %v218
      %v3676 = vld.sshfl [vmem:[#allocation1] sm:$0xff pattern:$0x75316420]
      %v3677 = vld.sshfl [vmem:[#allocation1 + $0x8] sm:$0xff pattern:$0x75316420]
      %3680 = vrot.lane.b32.xlu0 %v3676, 111
      %v3681 = vpop.permute.xlu0 %3680
      %3682 = vrot.lane.b32.xlu0 %v3677, 111
      %v3683 = vpop.permute.xlu0 %3682
      %v3684 = vsel %vm3633, %v3681, %v3683
      %v3685 = vsel %vm3633, %v3683, %v3681
      %v3686 = vmul.f32 %v3647, %v3673
      %v3687 = vmul.f32 %v3647, %v3674
      %v3688 = vmul.f32 %v3650, %v3684
      %v3689 = vmul.f32 %v3650, %v3685
      %v3690 = vadd.f32 %v3686, %v3688
      %v3691 = vadd.f32 %v3687, %v3689
      %v3692 = vmul.f32 %v3656, %v3690
      %v3693 = vmul.f32 %v3657, %v3691
      %v3694 = vadd.f32 %v3587, %v3692
      %v3695 = vadd.f32 %v3588, %v3693
      %3696 = vst [vmem:[#allocation1] ss:$2 sm:$0xff] %v215
      %v3697 = vld.sshfl [vmem:[#allocation1] sm:$0xff pattern:$0x75316420]
      %v3698 = vld.sshfl [vmem:[#allocation1 + $0x8] sm:$0xff pattern:$0x75316420]
      %3701 = vrot.lane.b32.xlu0 %v3697, 111
      %v3702 = vpop.permute.xlu0 %3701
      %3703 = vrot.lane.b32.xlu0 %v3698, 111
      %v3704 = vpop.permute.xlu0 %3703
      %v3705 = vsel %vm3633, %v3702, %v3704
      %v3706 = vsel %vm3633, %v3704, %v3702
      %3707 = vst [vmem:[#allocation1] ss:$2 sm:$0xff] %v220
      %v3708 = vld.sshfl [vmem:[#allocation1] sm:$0xff pattern:$0x75316420]
      %v3709 = vld.sshfl [vmem:[#allocation1 + $0x8] sm:$0xff pattern:$0x75316420]
      %3712 = vrot.lane.b32.xlu0 %v3708, 111
      %v3713 = vpop.permute.xlu0 %3712
      %3714 = vrot.lane.b32.xlu0 %v3709, 111
      %v3715 = vpop.permute.xlu0 %3714
      %v3716 = vsel %vm3633, %v3713, %v3715
      %v3717 = vsel %vm3633, %v3715, %v3713
      %v3718 = vmul.f32 %v3647, %v3705
      %v3719 = vmul.f32 %v3647, %v3706
      %v3720 = vmul.f32 %v3650, %v3716
      %v3721 = vmul.f32 %v3650, %v3717
      %v3722 = vadd.f32 %v3718, %v3720
      %v3723 = vadd.f32 %v3719, %v3721
      %v3724 = vmul.f32 %v3656, %v3722
      %v3725 = vmul.f32 %v3657, %v3723
      %v3726 = vadd.f32 %v3619, %v3724
      %v3727 = vadd.f32 %v3620, %v3725
      %s3728 = sld [smem:[#allocation4 + $0x21]]
      %s3729 = sld [smem:[#allocation4 + $0x52]]
      %v3730 = vmul.f32 %v229, %v244
      %3731 = vst [vmem:[#allocation1] ss:$2 sm:$0xff] %v209
      %v3732 = vld.sshfl [vmem:[#allocation1] sm:$0xff pattern:$0x75316420]
      %v3733 = vld.sshfl [vmem:[#allocation1 + $0x8] sm:$0xff pattern:$0x75316420]
      %3736 = vrot.lane.b32.xlu0 %v3732, 110
      %v3737 = vpop.permute.xlu0 %3736
      %3738 = vrot.lane.b32.xlu0 %v3733, 110
      %v3739 = vpop.permute.xlu0 %3738
      %vm3740 = vcmp.lt.s32.totalorder %v261, 110
      %v3741 = vsel %vm3740, %v3737, %v3739
      %v3742 = vsel %vm3740, %v3739, %v3737
      %3743 = vst [vmem:[#allocation1] ss:$2 sm:$0xff] %v216
      %v3744 = vld.sshfl [vmem:[#allocation1] sm:$0xff pattern:$0x75316420]
      %v3745 = vld.sshfl [vmem:[#allocation1 + $0x8] sm:$0xff pattern:$0x75316420]
      %3748 = vrot.lane.b32.xlu0 %v3744, 110
      %v3749 = vpop.permute.xlu0 %3748
      %3750 = vrot.lane.b32.xlu0 %v3745, 110
      %v3751 = vpop.permute.xlu0 %3750
      %v3752 = vsel %vm3740, %v3749, %v3751
      %v3753 = vsel %vm3740, %v3751, %v3749
      %v3754 = vstv %s3728
      %v3755 = vmul.f32 %v3754, %v3741
      %v3756 = vmul.f32 %v3754, %v3742
      %v3757 = vstv %s3729
      %v3758 = vmul.f32 %v3757, %v3752
      %v3759 = vmul.f32 %v3757, %v3753
      %v3760 = vadd.f32 %v3755, %v3758
      %v3761 = vadd.f32 %v3756, %v3759
      %v3763 = vperm.slane %v3730, 0
      %v3764 = vperm.slane %v3730, 1
      %v3767 = vmul.f32 %v3763, %v3760
      %v3768 = vmul.f32 %v3764, %v3761
      %v3769 = vadd.f32 %v3662, %v3767
      %v3770 = vadd.f32 %v3663, %v3768
      %3771 = vst [vmem:[#allocation1] ss:$2 sm:$0xff] %v212
      %v3772 = vld.sshfl [vmem:[#allocation1] sm:$0xff pattern:$0x75316420]
      %v3773 = vld.sshfl [vmem:[#allocation1 + $0x8] sm:$0xff pattern:$0x75316420]
      %3776 = vrot.lane.b32.xlu0 %v3772, 110
      %v3777 = vpop.permute.xlu0 %3776
      %3778 = vrot.lane.b32.xlu0 %v3773, 110
      %v3779 = vpop.permute.xlu0 %3778
      %v3780 = vsel %vm3740, %v3777, %v3779
      %v3781 = vsel %vm3740, %v3779, %v3777
      %3782 = vst [vmem:[#allocation1] ss:$2 sm:$0xff] %v218
      %v3783 = vld.sshfl [vmem:[#allocation1] sm:$0xff pattern:$0x75316420]
      %v3784 = vld.sshfl [vmem:[#allocation1 + $0x8] sm:$0xff pattern:$0x75316420]
      %3787 = vrot.lane.b32.xlu0 %v3783, 110
      %v3788 = vpop.permute.xlu0 %3787
      %3789 = vrot.lane.b32.xlu0 %v3784, 110
      %v3790 = vpop.permute.xlu0 %3789
      %v3791 = vsel %vm3740, %v3788, %v3790
      %v3792 = vsel %vm3740, %v3790, %v3788
      %v3793 = vmul.f32 %v3754, %v3780
      %v3794 = vmul.f32 %v3754, %v3781
      %v3795 = vmul.f32 %v3757, %v3791
      %v3796 = vmul.f32 %v3757, %v3792
      %v3797 = vadd.f32 %v3793, %v3795
      %v3798 = vadd.f32 %v3794, %v3796
      %v3799 = vmul.f32 %v3763, %v3797
      %v3800 = vmul.f32 %v3764, %v3798
      %v3801 = vadd.f32 %v3694, %v3799
      %v3802 = vadd.f32 %v3695, %v3800
      %3803 = vst [vmem:[#allocation1] ss:$2 sm:$0xff] %v215
      %v3804 = vld.sshfl [vmem:[#allocation1] sm:$0xff pattern:$0x75316420]
      %v3805 = vld.sshfl [vmem:[#allocation1 + $0x8] sm:$0xff pattern:$0x75316420]
      %3808 = vrot.lane.b32.xlu0 %v3804, 110
      %v3809 = vpop.permute.xlu0 %3808
      %3810 = vrot.lane.b32.xlu0 %v3805, 110
      %v3811 = vpop.permute.xlu0 %3810
      %v3812 = vsel %vm3740, %v3809, %v3811
      %v3813 = vsel %vm3740, %v3811, %v3809
      %3814 = vst [vmem:[#allocation1] ss:$2 sm:$0xff] %v220
      %v3815 = vld.sshfl [vmem:[#allocation1] sm:$0xff pattern:$0x75316420]
      %v3816 = vld.sshfl [vmem:[#allocation1 + $0x8] sm:$0xff pattern:$0x75316420]
      %3819 = vrot.lane.b32.xlu0 %v3815, 110
      %v3820 = vpop.permute.xlu0 %3819
      %3821 = vrot.lane.b32.xlu0 %v3816, 110
      %v3822 = vpop.permute.xlu0 %3821
      %v3823 = vsel %vm3740, %v3820, %v3822
      %v3824 = vsel %vm3740, %v3822, %v3820
      %v3825 = vmul.f32 %v3754, %v3812
      %v3826 = vmul.f32 %v3754, %v3813
      %v3827 = vmul.f32 %v3757, %v3823
      %v3828 = vmul.f32 %v3757, %v3824
      %v3829 = vadd.f32 %v3825, %v3827
      %v3830 = vadd.f32 %v3826, %v3828
      %v3831 = vmul.f32 %v3763, %v3829
      %v3832 = vmul.f32 %v3764, %v3830
      %v3833 = vadd.f32 %v3726, %v3831
      %v3834 = vadd.f32 %v3727, %v3832
      %s3835 = sld [smem:[#allocation4 + $0x22]]
      %s3836 = sld [smem:[#allocation4 + $0x53]]
      %v3837 = vmul.f32 %v229, %v246
      %3838 = vst [vmem:[#allocation1] ss:$2 sm:$0xff] %v209
      %v3839 = vld.sshfl [vmem:[#allocation1] sm:$0xff pattern:$0x75316420]
      %v3840 = vld.sshfl [vmem:[#allocation1 + $0x8] sm:$0xff pattern:$0x75316420]
      %3843 = vrot.lane.b32.xlu0 %v3839, 109
      %v3844 = vpop.permute.xlu0 %3843
      %3845 = vrot.lane.b32.xlu0 %v3840, 109
      %v3846 = vpop.permute.xlu0 %3845
      %vm3847 = vcmp.lt.s32.totalorder %v261, 109
      %v3848 = vsel %vm3847, %v3844, %v3846
      %v3849 = vsel %vm3847, %v3846, %v3844
      %3850 = vst [vmem:[#allocation1] ss:$2 sm:$0xff] %v216
      %v3851 = vld.sshfl [vmem:[#allocation1] sm:$0xff pattern:$0x75316420]
      %v3852 = vld.sshfl [vmem:[#allocation1 + $0x8] sm:$0xff pattern:$0x75316420]
      %3855 = vrot.lane.b32.xlu0 %v3851, 109
      %v3856 = vpop.permute.xlu0 %3855
      %3857 = vrot.lane.b32.xlu0 %v3852, 109
      %v3858 = vpop.permute.xlu0 %3857
      %v3859 = vsel %vm3847, %v3856, %v3858
      %v3860 = vsel %vm3847, %v3858, %v3856
      %v3861 = vstv %s3835
      %v3862 = vmul.f32 %v3861, %v3848
      %v3863 = vmul.f32 %v3861, %v3849
      %v3864 = vstv %s3836
      %v3865 = vmul.f32 %v3864, %v3859
      %v3866 = vmul.f32 %v3864, %v3860
      %v3867 = vadd.f32 %v3862, %v3865
      %v3868 = vadd.f32 %v3863, %v3866
      %v3870 = vperm.slane %v3837, 0
      %v3871 = vperm.slane %v3837, 1
      %v3874 = vmul.f32 %v3870, %v3867
      %v3875 = vmul.f32 %v3871, %v3868
      %v3876 = vadd.f32 %v3769, %v3874
      %v3877 = vadd.f32 %v3770, %v3875
      %3878 = vst [vmem:[#allocation1] ss:$2 sm:$0xff] %v212
      %v3879 = vld.sshfl [vmem:[#allocation1] sm:$0xff pattern:$0x75316420]
      %v3880 = vld.sshfl [vmem:[#allocation1 + $0x8] sm:$0xff pattern:$0x75316420]
      %3883 = vrot.lane.b32.xlu0 %v3879, 109
      %v3884 = vpop.permute.xlu0 %3883
      %3885 = vrot.lane.b32.xlu0 %v3880, 109
      %v3886 = vpop.permute.xlu0 %3885
      %v3887 = vsel %vm3847, %v3884, %v3886
      %v3888 = vsel %vm3847, %v3886, %v3884
      %3889 = vst [vmem:[#allocation1] ss:$2 sm:$0xff] %v218
      %v3890 = vld.sshfl [vmem:[#allocation1] sm:$0xff pattern:$0x75316420]
      %v3891 = vld.sshfl [vmem:[#allocation1 + $0x8] sm:$0xff pattern:$0x75316420]
      %3894 = vrot.lane.b32.xlu0 %v3890, 109
      %v3895 = vpop.permute.xlu0 %3894
      %3896 = vrot.lane.b32.xlu0 %v3891, 109
      %v3897 = vpop.permute.xlu0 %3896
      %v3898 = vsel %vm3847, %v3895, %v3897
      %v3899 = vsel %vm3847, %v3897, %v3895
      %v3900 = vmul.f32 %v3861, %v3887
      %v3901 = vmul.f32 %v3861, %v3888
      %v3902 = vmul.f32 %v3864, %v3898
      %v3903 = vmul.f32 %v3864, %v3899
      %v3904 = vadd.f32 %v3900, %v3902
      %v3905 = vadd.f32 %v3901, %v3903
      %v3906 = vmul.f32 %v3870, %v3904
      %v3907 = vmul.f32 %v3871, %v3905
      %v3908 = vadd.f32 %v3801, %v3906
      %v3909 = vadd.f32 %v3802, %v3907
      %3910 = vst [vmem:[#allocation1] ss:$2 sm:$0xff] %v215
      %v3911 = vld.sshfl [vmem:[#allocation1] sm:$0xff pattern:$0x75316420]
      %v3912 = vld.sshfl [vmem:[#allocation1 + $0x8] sm:$0xff pattern:$0x75316420]
      %3915 = vrot.lane.b32.xlu0 %v3911, 109
      %v3916 = vpop.permute.xlu0 %3915
      %3917 = vrot.lane.b32.xlu0 %v3912, 109
      %v3918 = vpop.permute.xlu0 %3917
      %v3919 = vsel %vm3847, %v3916, %v3918
      %v3920 = vsel %vm3847, %v3918, %v3916
      %3921 = vst [vmem:[#allocation1] ss:$2 sm:$0xff] %v220
      %v3922 = vld.sshfl [vmem:[#allocation1] sm:$0xff pattern:$0x75316420]
      %v3923 = vld.sshfl [vmem:[#allocation1 + $0x8] sm:$0xff pattern:$0x75316420]
      %3926 = vrot.lane.b32.xlu0 %v3922, 109
      %v3927 = vpop.permute.xlu0 %3926
      %3928 = vrot.lane.b32.xlu0 %v3923, 109
      %v3929 = vpop.permute.xlu0 %3928
      %v3930 = vsel %vm3847, %v3927, %v3929
      %v3931 = vsel %vm3847, %v3929, %v3927
      %v3932 = vmul.f32 %v3861, %v3919
      %v3933 = vmul.f32 %v3861, %v3920
      %v3934 = vmul.f32 %v3864, %v3930
      %v3935 = vmul.f32 %v3864, %v3931
      %v3936 = vadd.f32 %v3932, %v3934
      %v3937 = vadd.f32 %v3933, %v3935
      %v3938 = vmul.f32 %v3870, %v3936
      %v3939 = vmul.f32 %v3871, %v3937
      %v3940 = vadd.f32 %v3833, %v3938
      %v3941 = vadd.f32 %v3834, %v3939
      %s3942 = sld [smem:[#allocation4 + $0x23]]
      %s3943 = sld [smem:[#allocation4 + $0x54]]
      %v3944 = vmul.f32 %v231, %v234
      %3945 = vst [vmem:[#allocation1] ss:$2 sm:$0xff] %v209
      %v3946 = vld.sshfl [vmem:[#allocation1] sm:$0xff pattern:$0x75316420]
      %v3947 = vld.sshfl [vmem:[#allocation1 + $0x8] sm:$0xff pattern:$0x75316420]
      %3950 = vrot.lane.b32.xlu0 %v3946, 99
      %v3951 = vpop.permute.xlu0 %3950
      %3952 = vrot.lane.b32.xlu0 %v3947, 99
      %v3953 = vpop.permute.xlu0 %3952
      %vm3954 = vcmp.lt.s32.totalorder %v261, 99
      %v3955 = vsel %vm3954, %v3951, %v3953
      %v3956 = vsel %vm3954, %v3953, %v3951
      %3957 = vst [vmem:[#allocation1] ss:$2 sm:$0xff] %v216
      %v3958 = vld.sshfl [vmem:[#allocation1] sm:$0xff pattern:$0x75316420]
      %v3959 = vld.sshfl [vmem:[#allocation1 + $0x8] sm:$0xff pattern:$0x75316420]
      %3962 = vrot.lane.b32.xlu0 %v3958, 99
      %v3963 = vpop.permute.xlu0 %3962
      %3964 = vrot.lane.b32.xlu0 %v3959, 99
      %v3965 = vpop.permute.xlu0 %3964
      %v3966 = vsel %vm3954, %v3963, %v3965
      %v3967 = vsel %vm3954, %v3965, %v3963
      %v3968 = vstv %s3942
      %v3969 = vmul.f32 %v3968, %v3955
      %v3970 = vmul.f32 %v3968, %v3956
      %v3971 = vstv %s3943
      %v3972 = vmul.f32 %v3971, %v3966
      %v3973 = vmul.f32 %v3971, %v3967
      %v3974 = vadd.f32 %v3969, %v3972
      %v3975 = vadd.f32 %v3970, %v3973
      %v3977 = vperm.slane %v3944, 0
      %v3978 = vperm.slane %v3944, 1
      %v3981 = vmul.f32 %v3977, %v3974
      %v3982 = vmul.f32 %v3978, %v3975
      %v3983 = vadd.f32 %v3876, %v3981
      %v3984 = vadd.f32 %v3877, %v3982
      %3985 = vst [vmem:[#allocation1] ss:$2 sm:$0xff] %v212
      %v3986 = vld.sshfl [vmem:[#allocation1] sm:$0xff pattern:$0x75316420]
      %v3987 = vld.sshfl [vmem:[#allocation1 + $0x8] sm:$0xff pattern:$0x75316420]
      %3990 = vrot.lane.b32.xlu0 %v3986, 99
      %v3991 = vpop.permute.xlu0 %3990
      %3992 = vrot.lane.b32.xlu0 %v3987, 99
      %v3993 = vpop.permute.xlu0 %3992
      %v3994 = vsel %vm3954, %v3991, %v3993
      %v3995 = vsel %vm3954, %v3993, %v3991
      %3996 = vst [vmem:[#allocation1] ss:$2 sm:$0xff] %v218
      %v3997 = vld.sshfl [vmem:[#allocation1] sm:$0xff pattern:$0x75316420]
      %v3998 = vld.sshfl [vmem:[#allocation1 + $0x8] sm:$0xff pattern:$0x75316420]
      %4001 = vrot.lane.b32.xlu0 %v3997, 99
      %v4002 = vpop.permute.xlu0 %4001
      %4003 = vrot.lane.b32.xlu0 %v3998, 99
      %v4004 = vpop.permute.xlu0 %4003
      %v4005 = vsel %vm3954, %v4002, %v4004
      %v4006 = vsel %vm3954, %v4004, %v4002
      %v4007 = vmul.f32 %v3968, %v3994
      %v4008 = vmul.f32 %v3968, %v3995
      %v4009 = vmul.f32 %v3971, %v4005
      %v4010 = vmul.f32 %v3971, %v4006
      %v4011 = vadd.f32 %v4007, %v4009
      %v4012 = vadd.f32 %v4008, %v4010
      %v4013 = vmul.f32 %v3977, %v4011
      %v4014 = vmul.f32 %v3978, %v4012
      %v4015 = vadd.f32 %v3908, %v4013
      %v4016 = vadd.f32 %v3909, %v4014
      %4017 = vst [vmem:[#allocation1] ss:$2 sm:$0xff] %v215
      %v4018 = vld.sshfl [vmem:[#allocation1] sm:$0xff pattern:$0x75316420]
      %v4019 = vld.sshfl [vmem:[#allocation1 + $0x8] sm:$0xff pattern:$0x75316420]
      %4022 = vrot.lane.b32.xlu0 %v4018, 99
      %v4023 = vpop.permute.xlu0 %4022
      %4024 = vrot.lane.b32.xlu0 %v4019, 99
      %v4025 = vpop.permute.xlu0 %4024
      %v4026 = vsel %vm3954, %v4023, %v4025
      %v4027 = vsel %vm3954, %v4025, %v4023
      %4028 = vst [vmem:[#allocation1] ss:$2 sm:$0xff] %v220
      %v4029 = vld.sshfl [vmem:[#allocation1] sm:$0xff pattern:$0x75316420]
      %v4030 = vld.sshfl [vmem:[#allocation1 + $0x8] sm:$0xff pattern:$0x75316420]
      %4033 = vrot.lane.b32.xlu0 %v4029, 99
      %v4034 = vpop.permute.xlu0 %4033
      %4035 = vrot.lane.b32.xlu0 %v4030, 99
      %v4036 = vpop.permute.xlu0 %4035
      %v4037 = vsel %vm3954, %v4034, %v4036
      %v4038 = vsel %vm3954, %v4036, %v4034
      %v4039 = vmul.f32 %v3968, %v4026
      %v4040 = vmul.f32 %v3968, %v4027
      %v4041 = vmul.f32 %v3971, %v4037
      %v4042 = vmul.f32 %v3971, %v4038
      %v4043 = vadd.f32 %v4039, %v4041
      %v4044 = vadd.f32 %v4040, %v4042
      %v4045 = vmul.f32 %v3977, %v4043
      %v4046 = vmul.f32 %v3978, %v4044
      %v4047 = vadd.f32 %v3940, %v4045
      %v4048 = vadd.f32 %v3941, %v4046
      %s4049 = sld [smem:[#allocation4 + $0x24]]
      %s4050 = sld [smem:[#allocation4 + $0x55]]
      %v4051 = vmul.f32 %v231, %v236
      %4052 = vst [vmem:[#allocation1] ss:$2 sm:$0xff] %v209
      %v4053 = vld.sshfl [vmem:[#allocation1] sm:$0xff pattern:$0x75316420]
      %v4054 = vld.sshfl [vmem:[#allocation1 + $0x8] sm:$0xff pattern:$0x75316420]
      %4057 = vrot.lane.b32.xlu0 %v4053, 98
      %v4058 = vpop.permute.xlu0 %4057
      %4059 = vrot.lane.b32.xlu0 %v4054, 98
      %v4060 = vpop.permute.xlu0 %4059
      %vm4061 = vcmp.lt.s32.totalorder %v261, 98
      %v4062 = vsel %vm4061, %v4058, %v4060
      %v4063 = vsel %vm4061, %v4060, %v4058
      %4064 = vst [vmem:[#allocation1] ss:$2 sm:$0xff] %v216
      %v4065 = vld.sshfl [vmem:[#allocation1] sm:$0xff pattern:$0x75316420]
      %v4066 = vld.sshfl [vmem:[#allocation1 + $0x8] sm:$0xff pattern:$0x75316420]
      %4069 = vrot.lane.b32.xlu0 %v4065, 98
      %v4070 = vpop.permute.xlu0 %4069
      %4071 = vrot.lane.b32.xlu0 %v4066, 98
      %v4072 = vpop.permute.xlu0 %4071
      %v4073 = vsel %vm4061, %v4070, %v4072
      %v4074 = vsel %vm4061, %v4072, %v4070
      %v4075 = vstv %s4049
      %v4076 = vmul.f32 %v4075, %v4062
      %v4077 = vmul.f32 %v4075, %v4063
      %v4078 = vstv %s4050
      %v4079 = vmul.f32 %v4078, %v4073
      %v4080 = vmul.f32 %v4078, %v4074
      %v4081 = vadd.f32 %v4076, %v4079
      %v4082 = vadd.f32 %v4077, %v4080
      %v4084 = vperm.slane %v4051, 0
      %v4085 = vperm.slane %v4051, 1
      %v4088 = vmul.f32 %v4084, %v4081
      %v4089 = vmul.f32 %v4085, %v4082
      %v4090 = vadd.f32 %v3983, %v4088
      %v4091 = vadd.f32 %v3984, %v4089
      %4092 = vst [vmem:[#allocation1] ss:$2 sm:$0xff] %v212
      %v4093 = vld.sshfl [vmem:[#allocation1] sm:$0xff pattern:$0x75316420]
      %v4094 = vld.sshfl [vmem:[#allocation1 + $0x8] sm:$0xff pattern:$0x75316420]
      %4097 = vrot.lane.b32.xlu0 %v4093, 98
      %v4098 = vpop.permute.xlu0 %4097
      %4099 = vrot.lane.b32.xlu0 %v4094, 98
      %v4100 = vpop.permute.xlu0 %4099
      %v4101 = vsel %vm4061, %v4098, %v4100
      %v4102 = vsel %vm4061, %v4100, %v4098
      %4103 = vst [vmem:[#allocation1] ss:$2 sm:$0xff] %v218
      %v4104 = vld.sshfl [vmem:[#allocation1] sm:$0xff pattern:$0x75316420]
      %v4105 = vld.sshfl [vmem:[#allocation1 + $0x8] sm:$0xff pattern:$0x75316420]
      %4108 = vrot.lane.b32.xlu0 %v4104, 98
      %v4109 = vpop.permute.xlu0 %4108
      %4110 = vrot.lane.b32.xlu0 %v4105, 98
      %v4111 = vpop.permute.xlu0 %4110
      %v4112 = vsel %vm4061, %v4109, %v4111
      %v4113 = vsel %vm4061, %v4111, %v4109
      %v4114 = vmul.f32 %v4075, %v4101
      %v4115 = vmul.f32 %v4075, %v4102
      %v4116 = vmul.f32 %v4078, %v4112
      %v4117 = vmul.f32 %v4078, %v4113
      %v4118 = vadd.f32 %v4114, %v4116
      %v4119 = vadd.f32 %v4115, %v4117
      %v4120 = vmul.f32 %v4084, %v4118
      %v4121 = vmul.f32 %v4085, %v4119
      %v4122 = vadd.f32 %v4015, %v4120
      %v4123 = vadd.f32 %v4016, %v4121
      %4124 = vst [vmem:[#allocation1] ss:$2 sm:$0xff] %v215
      %v4125 = vld.sshfl [vmem:[#allocation1] sm:$0xff pattern:$0x75316420]
      %v4126 = vld.sshfl [vmem:[#allocation1 + $0x8] sm:$0xff pattern:$0x75316420]
      %4129 = vrot.lane.b32.xlu0 %v4125, 98
      %v4130 = vpop.permute.xlu0 %4129
      %4131 = vrot.lane.b32.xlu0 %v4126, 98
      %v4132 = vpop.permute.xlu0 %4131
      %v4133 = vsel %vm4061, %v4130, %v4132
      %v4134 = vsel %vm4061, %v4132, %v4130
      %4135 = vst [vmem:[#allocation1] ss:$2 sm:$0xff] %v220
      %v4136 = vld.sshfl [vmem:[#allocation1] sm:$0xff pattern:$0x75316420]
      %v4137 = vld.sshfl [vmem:[#allocation1 + $0x8] sm:$0xff pattern:$0x75316420]
      %4140 = vrot.lane.b32.xlu0 %v4136, 98
      %v4141 = vpop.permute.xlu0 %4140
      %4142 = vrot.lane.b32.xlu0 %v4137, 98
      %v4143 = vpop.permute.xlu0 %4142
      %v4144 = vsel %vm4061, %v4141, %v4143
      %v4145 = vsel %vm4061, %v4143, %v4141
      %v4146 = vmul.f32 %v4075, %v4133
      %v4147 = vmul.f32 %v4075, %v4134
      %v4148 = vmul.f32 %v4078, %v4144
      %v4149 = vmul.f32 %v4078, %v4145
      %v4150 = vadd.f32 %v4146, %v4148
      %v4151 = vadd.f32 %v4147, %v4149
      %v4152 = vmul.f32 %v4084, %v4150
      %v4153 = vmul.f32 %v4085, %v4151
      %v4154 = vadd.f32 %v4047, %v4152
      %v4155 = vadd.f32 %v4048, %v4153
      %s4156 = sld [smem:[#allocation4 + $0x25]]
      %s4157 = sld [smem:[#allocation4 + $0x56]]
      %v4158 = vmul.f32 %v231, %v238
      %4159 = vst [vmem:[#allocation1] ss:$2 sm:$0xff] %v209
      %v4160 = vld.sshfl [vmem:[#allocation1] sm:$0xff pattern:$0x75316420]
      %v4161 = vld.sshfl [vmem:[#allocation1 + $0x8] sm:$0xff pattern:$0x75316420]
      %4164 = vrot.lane.b32.xlu0 %v4160, 97
      %v4165 = vpop.permute.xlu0 %4164
      %4166 = vrot.lane.b32.xlu0 %v4161, 97
      %v4167 = vpop.permute.xlu0 %4166
      %vm4168 = vcmp.lt.s32.totalorder %v261, 97
      %v4169 = vsel %vm4168, %v4165, %v4167
      %v4170 = vsel %vm4168, %v4167, %v4165
      %4171 = vst [vmem:[#allocation1] ss:$2 sm:$0xff] %v216
      %v4172 = vld.sshfl [vmem:[#allocation1] sm:$0xff pattern:$0x75316420]
      %v4173 = vld.sshfl [vmem:[#allocation1 + $0x8] sm:$0xff pattern:$0x75316420]
      %4176 = vrot.lane.b32.xlu0 %v4172, 97
      %v4177 = vpop.permute.xlu0 %4176
      %4178 = vrot.lane.b32.xlu0 %v4173, 97
      %v4179 = vpop.permute.xlu0 %4178
      %v4180 = vsel %vm4168, %v4177, %v4179
      %v4181 = vsel %vm4168, %v4179, %v4177
      %v4182 = vstv %s4156
      %v4183 = vmul.f32 %v4182, %v4169
      %v4184 = vmul.f32 %v4182, %v4170
      %v4185 = vstv %s4157
      %v4186 = vmul.f32 %v4185, %v4180
      %v4187 = vmul.f32 %v4185, %v4181
      %v4188 = vadd.f32 %v4183, %v4186
      %v4189 = vadd.f32 %v4184, %v4187
      %v4191 = vperm.slane %v4158, 0
      %v4192 = vperm.slane %v4158, 1
      %v4195 = vmul.f32 %v4191, %v4188
      %v4196 = vmul.f32 %v4192, %v4189
      %v4197 = vadd.f32 %v4090, %v4195
      %v4198 = vadd.f32 %v4091, %v4196
      %4199 = vst [vmem:[#allocation1] ss:$2 sm:$0xff] %v212
      %v4200 = vld.sshfl [vmem:[#allocation1] sm:$0xff pattern:$0x75316420]
      %v4201 = vld.sshfl [vmem:[#allocation1 + $0x8] sm:$0xff pattern:$0x75316420]
      %4204 = vrot.lane.b32.xlu0 %v4200, 97
      %v4205 = vpop.permute.xlu0 %4204
      %4206 = vrot.lane.b32.xlu0 %v4201, 97
      %v4207 = vpop.permute.xlu0 %4206
      %v4208 = vsel %vm4168, %v4205, %v4207
      %v4209 = vsel %vm4168, %v4207, %v4205
      %4210 = vst [vmem:[#allocation1] ss:$2 sm:$0xff] %v218
      %v4211 = vld.sshfl [vmem:[#allocation1] sm:$0xff pattern:$0x75316420]
      %v4212 = vld.sshfl [vmem:[#allocation1 + $0x8] sm:$0xff pattern:$0x75316420]
      %4215 = vrot.lane.b32.xlu0 %v4211, 97
      %v4216 = vpop.permute.xlu0 %4215
      %4217 = vrot.lane.b32.xlu0 %v4212, 97
      %v4218 = vpop.permute.xlu0 %4217
      %v4219 = vsel %vm4168, %v4216, %v4218
      %v4220 = vsel %vm4168, %v4218, %v4216
      %v4221 = vmul.f32 %v4182, %v4208
      %v4222 = vmul.f32 %v4182, %v4209
      %v4223 = vmul.f32 %v4185, %v4219
      %v4224 = vmul.f32 %v4185, %v4220
      %v4225 = vadd.f32 %v4221, %v4223
      %v4226 = vadd.f32 %v4222, %v4224
      %v4227 = vmul.f32 %v4191, %v4225
      %v4228 = vmul.f32 %v4192, %v4226
      %v4229 = vadd.f32 %v4122, %v4227
      %v4230 = vadd.f32 %v4123, %v4228
      %4231 = vst [vmem:[#allocation1] ss:$2 sm:$0xff] %v215
      %v4232 = vld.sshfl [vmem:[#allocation1] sm:$0xff pattern:$0x75316420]
      %v4233 = vld.sshfl [vmem:[#allocation1 + $0x8] sm:$0xff pattern:$0x75316420]
      %4236 = vrot.lane.b32.xlu0 %v4232, 97
      %v4237 = vpop.permute.xlu0 %4236
      %4238 = vrot.lane.b32.xlu0 %v4233, 97
      %v4239 = vpop.permute.xlu0 %4238
      %v4240 = vsel %vm4168, %v4237, %v4239
      %v4241 = vsel %vm4168, %v4239, %v4237
      %4242 = vst [vmem:[#allocation1] ss:$2 sm:$0xff] %v220
      %v4243 = vld.sshfl [vmem:[#allocation1] sm:$0xff pattern:$0x75316420]
      %v4244 = vld.sshfl [vmem:[#allocation1 + $0x8] sm:$0xff pattern:$0x75316420]
      %4247 = vrot.lane.b32.xlu0 %v4243, 97
      %v4248 = vpop.permute.xlu0 %4247
      %4249 = vrot.lane.b32.xlu0 %v4244, 97
      %v4250 = vpop.permute.xlu0 %4249
      %v4251 = vsel %vm4168, %v4248, %v4250
      %v4252 = vsel %vm4168, %v4250, %v4248
      %v4253 = vmul.f32 %v4182, %v4240
      %v4254 = vmul.f32 %v4182, %v4241
      %v4255 = vmul.f32 %v4185, %v4251
      %v4256 = vmul.f32 %v4185, %v4252
      %v4257 = vadd.f32 %v4253, %v4255
      %v4258 = vadd.f32 %v4254, %v4256
      %v4259 = vmul.f32 %v4191, %v4257
      %v4260 = vmul.f32 %v4192, %v4258
      %v4261 = vadd.f32 %v4154, %v4259
      %v4262 = vadd.f32 %v4155, %v4260
      %s4263 = sld [smem:[#allocation4 + $0x26]]
      %s4264 = sld [smem:[#allocation4 + $0x57]]
      %v4265 = vmul.f32 %v231, %v240
      %4266 = vst [vmem:[#allocation1] ss:$2 sm:$0xff] %v209
      %v4267 = vld.sshfl [vmem:[#allocation1] sm:$0xff pattern:$0x75316420]
      %v4268 = vld.sshfl [vmem:[#allocation1 + $0x8] sm:$0xff pattern:$0x75316420]
      %4271 = vrot.lane.b32.xlu0 %v4267, 96
      %v4272 = vpop.permute.xlu0 %4271
      %4273 = vrot.lane.b32.xlu0 %v4268, 96
      %v4274 = vpop.permute.xlu0 %4273
      %vm4275 = vcmp.lt.s32.totalorder %v261, 96
      %v4276 = vsel %vm4275, %v4272, %v4274
      %v4277 = vsel %vm4275, %v4274, %v4272
      %4278 = vst [vmem:[#allocation1] ss:$2 sm:$0xff] %v216
      %v4279 = vld.sshfl [vmem:[#allocation1] sm:$0xff pattern:$0x75316420]
      %v4280 = vld.sshfl [vmem:[#allocation1 + $0x8] sm:$0xff pattern:$0x75316420]
      %4283 = vrot.lane.b32.xlu0 %v4279, 96
      %v4284 = vpop.permute.xlu0 %4283
      %4285 = vrot.lane.b32.xlu0 %v4280, 96
      %v4286 = vpop.permute.xlu0 %4285
      %v4287 = vsel %vm4275, %v4284, %v4286
      %v4288 = vsel %vm4275, %v4286, %v4284
      %v4289 = vstv %s4263
      %v4290 = vmul.f32 %v4289, %v4276
      %v4291 = vmul.f32 %v4289, %v4277
      %v4292 = vstv %s4264
      %v4293 = vmul.f32 %v4292, %v4287
      %v4294 = vmul.f32 %v4292, %v4288
      %v4295 = vadd.f32 %v4290, %v4293
      %v4296 = vadd.f32 %v4291, %v4294
      %v4298 = vperm.slane %v4265, 0
      %v4299 = vperm.slane %v4265, 1
      %v4302 = vmul.f32 %v4298, %v4295
      %v4303 = vmul.f32 %v4299, %v4296
      %v4304 = vadd.f32 %v4197, %v4302
      %v4305 = vadd.f32 %v4198, %v4303
      %4306 = vst [vmem:[#allocation1] ss:$2 sm:$0xff] %v212
      %v4307 = vld.sshfl [vmem:[#allocation1] sm:$0xff pattern:$0x75316420]
      %v4308 = vld.sshfl [vmem:[#allocation1 + $0x8] sm:$0xff pattern:$0x75316420]
      %4311 = vrot.lane.b32.xlu0 %v4307, 96
      %v4312 = vpop.permute.xlu0 %4311
      %4313 = vrot.lane.b32.xlu0 %v4308, 96
      %v4314 = vpop.permute.xlu0 %4313
      %v4315 = vsel %vm4275, %v4312, %v4314
      %v4316 = vsel %vm4275, %v4314, %v4312
      %4317 = vst [vmem:[#allocation1] ss:$2 sm:$0xff] %v218
      %v4318 = vld.sshfl [vmem:[#allocation1] sm:$0xff pattern:$0x75316420]
      %v4319 = vld.sshfl [vmem:[#allocation1 + $0x8] sm:$0xff pattern:$0x75316420]
      %4322 = vrot.lane.b32.xlu0 %v4318, 96
      %v4323 = vpop.permute.xlu0 %4322
      %4324 = vrot.lane.b32.xlu0 %v4319, 96
      %v4325 = vpop.permute.xlu0 %4324
      %v4326 = vsel %vm4275, %v4323, %v4325
      %v4327 = vsel %vm4275, %v4325, %v4323
      %v4328 = vmul.f32 %v4289, %v4315
      %v4329 = vmul.f32 %v4289, %v4316
      %v4330 = vmul.f32 %v4292, %v4326
      %v4331 = vmul.f32 %v4292, %v4327
      %v4332 = vadd.f32 %v4328, %v4330
      %v4333 = vadd.f32 %v4329, %v4331
      %v4334 = vmul.f32 %v4298, %v4332
      %v4335 = vmul.f32 %v4299, %v4333
      %v4336 = vadd.f32 %v4229, %v4334
      %v4337 = vadd.f32 %v4230, %v4335
      %4338 = vst [vmem:[#allocation1] ss:$2 sm:$0xff] %v215
      %v4339 = vld.sshfl [vmem:[#allocation1] sm:$0xff pattern:$0x75316420]
      %v4340 = vld.sshfl [vmem:[#allocation1 + $0x8] sm:$0xff pattern:$0x75316420]
      %4343 = vrot.lane.b32.xlu0 %v4339, 96
      %v4344 = vpop.permute.xlu0 %4343
      %4345 = vrot.lane.b32.xlu0 %v4340, 96
      %v4346 = vpop.permute.xlu0 %4345
      %v4347 = vsel %vm4275, %v4344, %v4346
      %v4348 = vsel %vm4275, %v4346, %v4344
      %4349 = vst [vmem:[#allocation1] ss:$2 sm:$0xff] %v220
      %v4350 = vld.sshfl [vmem:[#allocation1] sm:$0xff pattern:$0x75316420]
      %v4351 = vld.sshfl [vmem:[#allocation1 + $0x8] sm:$0xff pattern:$0x75316420]
      %4354 = vrot.lane.b32.xlu0 %v4350, 96
      %v4355 = vpop.permute.xlu0 %4354
      %4356 = vrot.lane.b32.xlu0 %v4351, 96
      %v4357 = vpop.permute.xlu0 %4356
      %v4358 = vsel %vm4275, %v4355, %v4357
      %v4359 = vsel %vm4275, %v4357, %v4355
      %v4360 = vmul.f32 %v4289, %v4347
      %v4361 = vmul.f32 %v4289, %v4348
      %v4362 = vmul.f32 %v4292, %v4358
      %v4363 = vmul.f32 %v4292, %v4359
      %v4364 = vadd.f32 %v4360, %v4362
      %v4365 = vadd.f32 %v4361, %v4363
      %v4366 = vmul.f32 %v4298, %v4364
      %v4367 = vmul.f32 %v4299, %v4365
      %v4368 = vadd.f32 %v4261, %v4366
      %v4369 = vadd.f32 %v4262, %v4367
      %s4370 = sld [smem:[#allocation4 + $0x27]]
      %s4371 = sld [smem:[#allocation4 + $0x58]]
      %v4372 = vmul.f32 %v231, %v242
      %4373 = vst [vmem:[#allocation1] ss:$2 sm:$0xff] %v209
      %v4374 = vld.sshfl [vmem:[#allocation1] sm:$0xff pattern:$0x75316420]
      %v4375 = vld.sshfl [vmem:[#allocation1 + $0x8] sm:$0xff pattern:$0x75316420]
      %4378 = vrot.lane.b32.xlu0 %v4374, 95
      %v4379 = vpop.permute.xlu0 %4378
      %4380 = vrot.lane.b32.xlu0 %v4375, 95
      %v4381 = vpop.permute.xlu0 %4380
      %vm4382 = vcmp.lt.s32.totalorder %v261, 95
      %v4383 = vsel %vm4382, %v4379, %v4381
      %v4384 = vsel %vm4382, %v4381, %v4379
      %4385 = vst [vmem:[#allocation1] ss:$2 sm:$0xff] %v216
      %v4386 = vld.sshfl [vmem:[#allocation1] sm:$0xff pattern:$0x75316420]
      %v4387 = vld.sshfl [vmem:[#allocation1 + $0x8] sm:$0xff pattern:$0x75316420]
      %4390 = vrot.lane.b32.xlu0 %v4386, 95
      %v4391 = vpop.permute.xlu0 %4390
      %4392 = vrot.lane.b32.xlu0 %v4387, 95
      %v4393 = vpop.permute.xlu0 %4392
      %v4394 = vsel %vm4382, %v4391, %v4393
      %v4395 = vsel %vm4382, %v4393, %v4391
      %v4396 = vstv %s4370
      %v4397 = vmul.f32 %v4396, %v4383
      %v4398 = vmul.f32 %v4396, %v4384
      %v4399 = vstv %s4371
      %v4400 = vmul.f32 %v4399, %v4394
      %v4401 = vmul.f32 %v4399, %v4395
      %v4402 = vadd.f32 %v4397, %v4400
      %v4403 = vadd.f32 %v4398, %v4401
      %v4405 = vperm.slane %v4372, 0
      %v4406 = vperm.slane %v4372, 1
      %v4409 = vmul.f32 %v4405, %v4402
      %v4410 = vmul.f32 %v4406, %v4403
      %v4411 = vadd.f32 %v4304, %v4409
      %v4412 = vadd.f32 %v4305, %v4410
      %4413 = vst [vmem:[#allocation1] ss:$2 sm:$0xff] %v212
      %v4414 = vld.sshfl [vmem:[#allocation1] sm:$0xff pattern:$0x75316420]
      %v4415 = vld.sshfl [vmem:[#allocation1 + $0x8] sm:$0xff pattern:$0x75316420]
      %4418 = vrot.lane.b32.xlu0 %v4414, 95
      %v4419 = vpop.permute.xlu0 %4418
      %4420 = vrot.lane.b32.xlu0 %v4415, 95
      %v4421 = vpop.permute.xlu0 %4420
      %v4422 = vsel %vm4382, %v4419, %v4421
      %v4423 = vsel %vm4382, %v4421, %v4419
      %4424 = vst [vmem:[#allocation1] ss:$2 sm:$0xff] %v218
      %v4425 = vld.sshfl [vmem:[#allocation1] sm:$0xff pattern:$0x75316420]
      %v4426 = vld.sshfl [vmem:[#allocation1 + $0x8] sm:$0xff pattern:$0x75316420]
      %4429 = vrot.lane.b32.xlu0 %v4425, 95
      %v4430 = vpop.permute.xlu0 %4429
      %4431 = vrot.lane.b32.xlu0 %v4426, 95
      %v4432 = vpop.permute.xlu0 %4431
      %v4433 = vsel %vm4382, %v4430, %v4432
      %v4434 = vsel %vm4382, %v4432, %v4430
      %v4435 = vmul.f32 %v4396, %v4422
      %v4436 = vmul.f32 %v4396, %v4423
      %v4437 = vmul.f32 %v4399, %v4433
      %v4438 = vmul.f32 %v4399, %v4434
      %v4439 = vadd.f32 %v4435, %v4437
      %v4440 = vadd.f32 %v4436, %v4438
      %v4441 = vmul.f32 %v4405, %v4439
      %v4442 = vmul.f32 %v4406, %v4440
      %v4443 = vadd.f32 %v4336, %v4441
      %v4444 = vadd.f32 %v4337, %v4442
      %4445 = vst [vmem:[#allocation1] ss:$2 sm:$0xff] %v215
      %v4446 = vld.sshfl [vmem:[#allocation1] sm:$0xff pattern:$0x75316420]
      %v4447 = vld.sshfl [vmem:[#allocation1 + $0x8] sm:$0xff pattern:$0x75316420]
      %4450 = vrot.lane.b32.xlu0 %v4446, 95
      %v4451 = vpop.permute.xlu0 %4450
      %4452 = vrot.lane.b32.xlu0 %v4447, 95
      %v4453 = vpop.permute.xlu0 %4452
      %v4454 = vsel %vm4382, %v4451, %v4453
      %v4455 = vsel %vm4382, %v4453, %v4451
      %4456 = vst [vmem:[#allocation1] ss:$2 sm:$0xff] %v220
      %v4457 = vld.sshfl [vmem:[#allocation1] sm:$0xff pattern:$0x75316420]
      %v4458 = vld.sshfl [vmem:[#allocation1 + $0x8] sm:$0xff pattern:$0x75316420]
      %4461 = vrot.lane.b32.xlu0 %v4457, 95
      %v4462 = vpop.permute.xlu0 %4461
      %4463 = vrot.lane.b32.xlu0 %v4458, 95
      %v4464 = vpop.permute.xlu0 %4463
      %v4465 = vsel %vm4382, %v4462, %v4464
      %v4466 = vsel %vm4382, %v4464, %v4462
      %v4467 = vmul.f32 %v4396, %v4454
      %v4468 = vmul.f32 %v4396, %v4455
      %v4469 = vmul.f32 %v4399, %v4465
      %v4470 = vmul.f32 %v4399, %v4466
      %v4471 = vadd.f32 %v4467, %v4469
      %v4472 = vadd.f32 %v4468, %v4470
      %v4473 = vmul.f32 %v4405, %v4471
      %v4474 = vmul.f32 %v4406, %v4472
      %v4475 = vadd.f32 %v4368, %v4473
      %v4476 = vadd.f32 %v4369, %v4474
      %s4477 = sld [smem:[#allocation4 + $0x28]]
      %s4478 = sld [smem:[#allocation4 + $0x59]]
      %v4479 = vmul.f32 %v231, %v244
      %4480 = vst [vmem:[#allocation1] ss:$2 sm:$0xff] %v209
      %v4481 = vld.sshfl [vmem:[#allocation1] sm:$0xff pattern:$0x75316420]
      %v4482 = vld.sshfl [vmem:[#allocation1 + $0x8] sm:$0xff pattern:$0x75316420]
      %4485 = vrot.lane.b32.xlu0 %v4481, 94
      %v4486 = vpop.permute.xlu0 %4485
      %4487 = vrot.lane.b32.xlu0 %v4482, 94
      %v4488 = vpop.permute.xlu0 %4487
      %vm4489 = vcmp.lt.s32.totalorder %v261, 94
      %v4490 = vsel %vm4489, %v4486, %v4488
      %v4491 = vsel %vm4489, %v4488, %v4486
      %4492 = vst [vmem:[#allocation1] ss:$2 sm:$0xff] %v216
      %v4493 = vld.sshfl [vmem:[#allocation1] sm:$0xff pattern:$0x75316420]
      %v4494 = vld.sshfl [vmem:[#allocation1 + $0x8] sm:$0xff pattern:$0x75316420]
      %4497 = vrot.lane.b32.xlu0 %v4493, 94
      %v4498 = vpop.permute.xlu0 %4497
      %4499 = vrot.lane.b32.xlu0 %v4494, 94
      %v4500 = vpop.permute.xlu0 %4499
      %v4501 = vsel %vm4489, %v4498, %v4500
      %v4502 = vsel %vm4489, %v4500, %v4498
      %v4503 = vstv %s4477
      %v4504 = vmul.f32 %v4503, %v4490
      %v4505 = vmul.f32 %v4503, %v4491
      %v4506 = vstv %s4478
      %v4507 = vmul.f32 %v4506, %v4501
      %v4508 = vmul.f32 %v4506, %v4502
      %v4509 = vadd.f32 %v4504, %v4507
      %v4510 = vadd.f32 %v4505, %v4508
      %v4512 = vperm.slane %v4479, 0
      %v4513 = vperm.slane %v4479, 1
      %v4516 = vmul.f32 %v4512, %v4509
      %v4517 = vmul.f32 %v4513, %v4510
      %v4518 = vadd.f32 %v4411, %v4516
      %v4519 = vadd.f32 %v4412, %v4517
      %4520 = vst [vmem:[#allocation1] ss:$2 sm:$0xff] %v212
      %v4521 = vld.sshfl [vmem:[#allocation1] sm:$0xff pattern:$0x75316420]
      %v4522 = vld.sshfl [vmem:[#allocation1 + $0x8] sm:$0xff pattern:$0x75316420]
      %4525 = vrot.lane.b32.xlu0 %v4521, 94
      %v4526 = vpop.permute.xlu0 %4525
      %4527 = vrot.lane.b32.xlu0 %v4522, 94
      %v4528 = vpop.permute.xlu0 %4527
      %v4529 = vsel %vm4489, %v4526, %v4528
      %v4530 = vsel %vm4489, %v4528, %v4526
      %4531 = vst [vmem:[#allocation1] ss:$2 sm:$0xff] %v218
      %v4532 = vld.sshfl [vmem:[#allocation1] sm:$0xff pattern:$0x75316420]
      %v4533 = vld.sshfl [vmem:[#allocation1 + $0x8] sm:$0xff pattern:$0x75316420]
      %4536 = vrot.lane.b32.xlu0 %v4532, 94
      %v4537 = vpop.permute.xlu0 %4536
      %4538 = vrot.lane.b32.xlu0 %v4533, 94
      %v4539 = vpop.permute.xlu0 %4538
      %v4540 = vsel %vm4489, %v4537, %v4539
      %v4541 = vsel %vm4489, %v4539, %v4537
      %v4542 = vmul.f32 %v4503, %v4529
      %v4543 = vmul.f32 %v4503, %v4530
      %v4544 = vmul.f32 %v4506, %v4540
      %v4545 = vmul.f32 %v4506, %v4541
      %v4546 = vadd.f32 %v4542, %v4544
      %v4547 = vadd.f32 %v4543, %v4545
      %v4548 = vmul.f32 %v4512, %v4546
      %v4549 = vmul.f32 %v4513, %v4547
      %v4550 = vadd.f32 %v4443, %v4548
      %v4551 = vadd.f32 %v4444, %v4549
      %4552 = vst [vmem:[#allocation1] ss:$2 sm:$0xff] %v215
      %v4553 = vld.sshfl [vmem:[#allocation1] sm:$0xff pattern:$0x75316420]
      %v4554 = vld.sshfl [vmem:[#allocation1 + $0x8] sm:$0xff pattern:$0x75316420]
      %4557 = vrot.lane.b32.xlu0 %v4553, 94
      %v4558 = vpop.permute.xlu0 %4557
      %4559 = vrot.lane.b32.xlu0 %v4554, 94
      %v4560 = vpop.permute.xlu0 %4559
      %v4561 = vsel %vm4489, %v4558, %v4560
      %v4562 = vsel %vm4489, %v4560, %v4558
      %4563 = vst [vmem:[#allocation1] ss:$2 sm:$0xff] %v220
      %v4564 = vld.sshfl [vmem:[#allocation1] sm:$0xff pattern:$0x75316420]
      %v4565 = vld.sshfl [vmem:[#allocation1 + $0x8] sm:$0xff pattern:$0x75316420]
      %4568 = vrot.lane.b32.xlu0 %v4564, 94
      %v4569 = vpop.permute.xlu0 %4568
      %4570 = vrot.lane.b32.xlu0 %v4565, 94
      %v4571 = vpop.permute.xlu0 %4570
      %v4572 = vsel %vm4489, %v4569, %v4571
      %v4573 = vsel %vm4489, %v4571, %v4569
      %v4574 = vmul.f32 %v4503, %v4561
      %v4575 = vmul.f32 %v4503, %v4562
      %v4576 = vmul.f32 %v4506, %v4572
      %v4577 = vmul.f32 %v4506, %v4573
      %v4578 = vadd.f32 %v4574, %v4576
      %v4579 = vadd.f32 %v4575, %v4577
      %v4580 = vmul.f32 %v4512, %v4578
      %v4581 = vmul.f32 %v4513, %v4579
      %v4582 = vadd.f32 %v4475, %v4580
      %v4583 = vadd.f32 %v4476, %v4581
      %s4584 = sld [smem:[#allocation4 + $0x29]]
      %s4585 = sld [smem:[#allocation4 + $0x5a]]
      %v4586 = vmul.f32 %v231, %v246
      %4587 = vst [vmem:[#allocation1] ss:$2 sm:$0xff] %v209
      %v4588 = vld.sshfl [vmem:[#allocation1] sm:$0xff pattern:$0x75316420]
      %v4589 = vld.sshfl [vmem:[#allocation1 + $0x8] sm:$0xff pattern:$0x75316420]
      %4592 = vrot.lane.b32.xlu0 %v4588, 93
      %v4593 = vpop.permute.xlu0 %4592
      %4594 = vrot.lane.b32.xlu0 %v4589, 93
      %v4595 = vpop.permute.xlu0 %4594
      %vm4596 = vcmp.lt.s32.totalorder %v261, 93
      %v4597 = vsel %vm4596, %v4593, %v4595
      %v4598 = vsel %vm4596, %v4595, %v4593
      %4599 = vst [vmem:[#allocation1] ss:$2 sm:$0xff] %v216
      %v4600 = vld.sshfl [vmem:[#allocation1] sm:$0xff pattern:$0x75316420]
      %v4601 = vld.sshfl [vmem:[#allocation1 + $0x8] sm:$0xff pattern:$0x75316420]
      %4604 = vrot.lane.b32.xlu0 %v4600, 93
      %v4605 = vpop.permute.xlu0 %4604
      %4606 = vrot.lane.b32.xlu0 %v4601, 93
      %v4607 = vpop.permute.xlu0 %4606
      %v4608 = vsel %vm4596, %v4605, %v4607
      %v4609 = vsel %vm4596, %v4607, %v4605
      %v4610 = vstv %s4584
      %v4611 = vmul.f32 %v4610, %v4597
      %v4612 = vmul.f32 %v4610, %v4598
      %v4613 = vstv %s4585
      %v4614 = vmul.f32 %v4613, %v4608
      %v4615 = vmul.f32 %v4613, %v4609
      %v4616 = vadd.f32 %v4611, %v4614
      %v4617 = vadd.f32 %v4612, %v4615
      %v4619 = vperm.slane %v4586, 0
      %v4620 = vperm.slane %v4586, 1
      %v4623 = vmul.f32 %v4619, %v4616
      %v4624 = vmul.f32 %v4620, %v4617
      %v4625 = vadd.f32 %v4518, %v4623
      %v4626 = vadd.f32 %v4519, %v4624
      %4627 = vst [vmem:[#allocation1] ss:$2 sm:$0xff] %v212
      %v4628 = vld.sshfl [vmem:[#allocation1] sm:$0xff pattern:$0x75316420]
      %v4629 = vld.sshfl [vmem:[#allocation1 + $0x8] sm:$0xff pattern:$0x75316420]
      %4632 = vrot.lane.b32.xlu0 %v4628, 93
      %v4633 = vpop.permute.xlu0 %4632
      %4634 = vrot.lane.b32.xlu0 %v4629, 93
      %v4635 = vpop.permute.xlu0 %4634
      %v4636 = vsel %vm4596, %v4633, %v4635
      %v4637 = vsel %vm4596, %v4635, %v4633
      %4638 = vst [vmem:[#allocation1] ss:$2 sm:$0xff] %v218
      %v4639 = vld.sshfl [vmem:[#allocation1] sm:$0xff pattern:$0x75316420]
      %v4640 = vld.sshfl [vmem:[#allocation1 + $0x8] sm:$0xff pattern:$0x75316420]
      %4643 = vrot.lane.b32.xlu0 %v4639, 93
      %v4644 = vpop.permute.xlu0 %4643
      %4645 = vrot.lane.b32.xlu0 %v4640, 93
      %v4646 = vpop.permute.xlu0 %4645
      %v4647 = vsel %vm4596, %v4644, %v4646
      %v4648 = vsel %vm4596, %v4646, %v4644
      %v4649 = vmul.f32 %v4610, %v4636
      %v4650 = vmul.f32 %v4610, %v4637
      %v4651 = vmul.f32 %v4613, %v4647
      %v4652 = vmul.f32 %v4613, %v4648
      %v4653 = vadd.f32 %v4649, %v4651
      %v4654 = vadd.f32 %v4650, %v4652
      %v4655 = vmul.f32 %v4619, %v4653
      %v4656 = vmul.f32 %v4620, %v4654
      %v4657 = vadd.f32 %v4550, %v4655
      %v4658 = vadd.f32 %v4551, %v4656
      %4659 = vst [vmem:[#allocation1] ss:$2 sm:$0xff] %v215
      %v4660 = vld.sshfl [vmem:[#allocation1] sm:$0xff pattern:$0x75316420]
      %v4661 = vld.sshfl [vmem:[#allocation1 + $0x8] sm:$0xff pattern:$0x75316420]
      %4664 = vrot.lane.b32.xlu0 %v4660, 93
      %v4665 = vpop.permute.xlu0 %4664
      %4666 = vrot.lane.b32.xlu0 %v4661, 93
      %v4667 = vpop.permute.xlu0 %4666
      %v4668 = vsel %vm4596, %v4665, %v4667
      %v4669 = vsel %vm4596, %v4667, %v4665
      %4670 = vst [vmem:[#allocation1] ss:$2 sm:$0xff] %v220
      %v4671 = vld.sshfl [vmem:[#allocation1] sm:$0xff pattern:$0x75316420]
      %v4672 = vld.sshfl [vmem:[#allocation1 + $0x8] sm:$0xff pattern:$0x75316420]
      %4675 = vrot.lane.b32.xlu0 %v4671, 93
      %v4676 = vpop.permute.xlu0 %4675
      %4677 = vrot.lane.b32.xlu0 %v4672, 93
      %v4678 = vpop.permute.xlu0 %4677
      %v4679 = vsel %vm4596, %v4676, %v4678
      %v4680 = vsel %vm4596, %v4678, %v4676
      %v4681 = vmul.f32 %v4610, %v4668
      %v4682 = vmul.f32 %v4610, %v4669
      %v4683 = vmul.f32 %v4613, %v4679
      %v4684 = vmul.f32 %v4613, %v4680
      %v4685 = vadd.f32 %v4681, %v4683
      %v4686 = vadd.f32 %v4682, %v4684
      %v4687 = vmul.f32 %v4619, %v4685
      %v4688 = vmul.f32 %v4620, %v4686
      %v4689 = vadd.f32 %v4582, %v4687
      %v4690 = vadd.f32 %v4583, %v4688
      %s4691 = sld [smem:[#allocation4 + $0x2a]]
      %s4692 = sld [smem:[#allocation4 + $0x5b]]
      %v4693 = vmul.f32 %v233, %v234
      %4694 = vst [vmem:[#allocation1] ss:$2 sm:$0xff] %v209
      %v4695 = vld.sshfl [vmem:[#allocation1] sm:$0xff pattern:$0x75316420]
      %v4696 = vld.sshfl [vmem:[#allocation1 + $0x8] sm:$0xff pattern:$0x75316420]
      %4699 = vrot.lane.b32.xlu0 %v4695, 83
      %v4700 = vpop.permute.xlu0 %4699
      %4701 = vrot.lane.b32.xlu0 %v4696, 83
      %v4702 = vpop.permute.xlu0 %4701
      %vm4703 = vcmp.lt.s32.totalorder %v261, 83
      %v4704 = vsel %vm4703, %v4700, %v4702
      %v4705 = vsel %vm4703, %v4702, %v4700
      %4706 = vst [vmem:[#allocation1] ss:$2 sm:$0xff] %v216
      %v4707 = vld.sshfl [vmem:[#allocation1] sm:$0xff pattern:$0x75316420]
      %v4708 = vld.sshfl [vmem:[#allocation1 + $0x8] sm:$0xff pattern:$0x75316420]
      %4711 = vrot.lane.b32.xlu0 %v4707, 83
      %v4712 = vpop.permute.xlu0 %4711
      %4713 = vrot.lane.b32.xlu0 %v4708, 83
      %v4714 = vpop.permute.xlu0 %4713
      %v4715 = vsel %vm4703, %v4712, %v4714
      %v4716 = vsel %vm4703, %v4714, %v4712
      %v4717 = vstv %s4691
      %v4718 = vmul.f32 %v4717, %v4704
      %v4719 = vmul.f32 %v4717, %v4705
      %v4720 = vstv %s4692
      %v4721 = vmul.f32 %v4720, %v4715
      %v4722 = vmul.f32 %v4720, %v4716
      %v4723 = vadd.f32 %v4718, %v4721
      %v4724 = vadd.f32 %v4719, %v4722
      %v4726 = vperm.slane %v4693, 0
      %v4727 = vperm.slane %v4693, 1
      %v4730 = vmul.f32 %v4726, %v4723
      %v4731 = vmul.f32 %v4727, %v4724
      %v4732 = vadd.f32 %v4625, %v4730
      %v4733 = vadd.f32 %v4626, %v4731
      %4734 = vst [vmem:[#allocation1] ss:$2 sm:$0xff] %v212
      %v4735 = vld.sshfl [vmem:[#allocation1] sm:$0xff pattern:$0x75316420]
      %v4736 = vld.sshfl [vmem:[#allocation1 + $0x8] sm:$0xff pattern:$0x75316420]
      %4739 = vrot.lane.b32.xlu0 %v4735, 83
      %v4740 = vpop.permute.xlu0 %4739
      %4741 = vrot.lane.b32.xlu0 %v4736, 83
      %v4742 = vpop.permute.xlu0 %4741
      %v4743 = vsel %vm4703, %v4740, %v4742
      %v4744 = vsel %vm4703, %v4742, %v4740
      %4745 = vst [vmem:[#allocation1] ss:$2 sm:$0xff] %v218
      %v4746 = vld.sshfl [vmem:[#allocation1] sm:$0xff pattern:$0x75316420]
      %v4747 = vld.sshfl [vmem:[#allocation1 + $0x8] sm:$0xff pattern:$0x75316420]
      %4750 = vrot.lane.b32.xlu0 %v4746, 83
      %v4751 = vpop.permute.xlu0 %4750
      %4752 = vrot.lane.b32.xlu0 %v4747, 83
      %v4753 = vpop.permute.xlu0 %4752
      %v4754 = vsel %vm4703, %v4751, %v4753
      %v4755 = vsel %vm4703, %v4753, %v4751
      %v4756 = vmul.f32 %v4717, %v4743
      %v4757 = vmul.f32 %v4717, %v4744
      %v4758 = vmul.f32 %v4720, %v4754
      %v4759 = vmul.f32 %v4720, %v4755
      %v4760 = vadd.f32 %v4756, %v4758
      %v4761 = vadd.f32 %v4757, %v4759
      %v4762 = vmul.f32 %v4726, %v4760
      %v4763 = vmul.f32 %v4727, %v4761
      %v4764 = vadd.f32 %v4657, %v4762
      %v4765 = vadd.f32 %v4658, %v4763
      %4766 = vst [vmem:[#allocation1] ss:$2 sm:$0xff] %v215
      %v4767 = vld.sshfl [vmem:[#allocation1] sm:$0xff pattern:$0x75316420]
      %v4768 = vld.sshfl [vmem:[#allocation1 + $0x8] sm:$0xff pattern:$0x75316420]
      %4771 = vrot.lane.b32.xlu0 %v4767, 83
      %v4772 = vpop.permute.xlu0 %4771
      %4773 = vrot.lane.b32.xlu0 %v4768, 83
      %v4774 = vpop.permute.xlu0 %4773
      %v4775 = vsel %vm4703, %v4772, %v4774
      %v4776 = vsel %vm4703, %v4774, %v4772
      %4777 = vst [vmem:[#allocation1] ss:$2 sm:$0xff] %v220
      %v4778 = vld.sshfl [vmem:[#allocation1] sm:$0xff pattern:$0x75316420]
      %v4779 = vld.sshfl [vmem:[#allocation1 + $0x8] sm:$0xff pattern:$0x75316420]
      %4782 = vrot.lane.b32.xlu0 %v4778, 83
      %v4783 = vpop.permute.xlu0 %4782
      %4784 = vrot.lane.b32.xlu0 %v4779, 83
      %v4785 = vpop.permute.xlu0 %4784
      %v4786 = vsel %vm4703, %v4783, %v4785
      %v4787 = vsel %vm4703, %v4785, %v4783
      %v4788 = vmul.f32 %v4717, %v4775
      %v4789 = vmul.f32 %v4717, %v4776
      %v4790 = vmul.f32 %v4720, %v4786
      %v4791 = vmul.f32 %v4720, %v4787
      %v4792 = vadd.f32 %v4788, %v4790
      %v4793 = vadd.f32 %v4789, %v4791
      %v4794 = vmul.f32 %v4726, %v4792
      %v4795 = vmul.f32 %v4727, %v4793
      %v4796 = vadd.f32 %v4689, %v4794
      %v4797 = vadd.f32 %v4690, %v4795
      %s4798 = sld [smem:[#allocation4 + $0x2b]]
      %s4799 = sld [smem:[#allocation4 + $0x5c]]
      %v4800 = vmul.f32 %v233, %v236
      %4801 = vst [vmem:[#allocation1] ss:$2 sm:$0xff] %v209
      %v4802 = vld.sshfl [vmem:[#allocation1] sm:$0xff pattern:$0x75316420]
      %v4803 = vld.sshfl [vmem:[#allocation1 + $0x8] sm:$0xff pattern:$0x75316420]
      %4806 = vrot.lane.b32.xlu0 %v4802, 82
      %v4807 = vpop.permute.xlu0 %4806
      %4808 = vrot.lane.b32.xlu0 %v4803, 82
      %v4809 = vpop.permute.xlu0 %4808
      %vm4810 = vcmp.lt.s32.totalorder %v261, 82
      %v4811 = vsel %vm4810, %v4807, %v4809
      %v4812 = vsel %vm4810, %v4809, %v4807
      %4813 = vst [vmem:[#allocation1] ss:$2 sm:$0xff] %v216
      %v4814 = vld.sshfl [vmem:[#allocation1] sm:$0xff pattern:$0x75316420]
      %v4815 = vld.sshfl [vmem:[#allocation1 + $0x8] sm:$0xff pattern:$0x75316420]
      %4818 = vrot.lane.b32.xlu0 %v4814, 82
      %v4819 = vpop.permute.xlu0 %4818
      %4820 = vrot.lane.b32.xlu0 %v4815, 82
      %v4821 = vpop.permute.xlu0 %4820
      %v4822 = vsel %vm4810, %v4819, %v4821
      %v4823 = vsel %vm4810, %v4821, %v4819
      %v4824 = vstv %s4798
      %v4825 = vmul.f32 %v4824, %v4811
      %v4826 = vmul.f32 %v4824, %v4812
      %v4827 = vstv %s4799
      %v4828 = vmul.f32 %v4827, %v4822
      %v4829 = vmul.f32 %v4827, %v4823
      %v4830 = vadd.f32 %v4825, %v4828
      %v4831 = vadd.f32 %v4826, %v4829
      %v4833 = vperm.slane %v4800, 0
      %v4834 = vperm.slane %v4800, 1
      %v4837 = vmul.f32 %v4833, %v4830
      %v4838 = vmul.f32 %v4834, %v4831
      %v4839 = vadd.f32 %v4732, %v4837
      %v4840 = vadd.f32 %v4733, %v4838
      %4841 = vst [vmem:[#allocation1] ss:$2 sm:$0xff] %v212
      %v4842 = vld.sshfl [vmem:[#allocation1] sm:$0xff pattern:$0x75316420]
      %v4843 = vld.sshfl [vmem:[#allocation1 + $0x8] sm:$0xff pattern:$0x75316420]
      %4846 = vrot.lane.b32.xlu0 %v4842, 82
      %v4847 = vpop.permute.xlu0 %4846
      %4848 = vrot.lane.b32.xlu0 %v4843, 82
      %v4849 = vpop.permute.xlu0 %4848
      %v4850 = vsel %vm4810, %v4847, %v4849
      %v4851 = vsel %vm4810, %v4849, %v4847
      %4852 = vst [vmem:[#allocation1] ss:$2 sm:$0xff] %v218
      %v4853 = vld.sshfl [vmem:[#allocation1] sm:$0xff pattern:$0x75316420]
      %v4854 = vld.sshfl [vmem:[#allocation1 + $0x8] sm:$0xff pattern:$0x75316420]
      %4857 = vrot.lane.b32.xlu0 %v4853, 82
      %v4858 = vpop.permute.xlu0 %4857
      %4859 = vrot.lane.b32.xlu0 %v4854, 82
      %v4860 = vpop.permute.xlu0 %4859
      %v4861 = vsel %vm4810, %v4858, %v4860
      %v4862 = vsel %vm4810, %v4860, %v4858
      %v4863 = vmul.f32 %v4824, %v4850
      %v4864 = vmul.f32 %v4824, %v4851
      %v4865 = vmul.f32 %v4827, %v4861
      %v4866 = vmul.f32 %v4827, %v4862
      %v4867 = vadd.f32 %v4863, %v4865
      %v4868 = vadd.f32 %v4864, %v4866
      %v4869 = vmul.f32 %v4833, %v4867
      %v4870 = vmul.f32 %v4834, %v4868
      %v4871 = vadd.f32 %v4764, %v4869
      %v4872 = vadd.f32 %v4765, %v4870
      %4873 = vst [vmem:[#allocation1] ss:$2 sm:$0xff] %v215
      %v4874 = vld.sshfl [vmem:[#allocation1] sm:$0xff pattern:$0x75316420]
      %v4875 = vld.sshfl [vmem:[#allocation1 + $0x8] sm:$0xff pattern:$0x75316420]
      %4878 = vrot.lane.b32.xlu0 %v4874, 82
      %v4879 = vpop.permute.xlu0 %4878
      %4880 = vrot.lane.b32.xlu0 %v4875, 82
      %v4881 = vpop.permute.xlu0 %4880
      %v4882 = vsel %vm4810, %v4879, %v4881
      %v4883 = vsel %vm4810, %v4881, %v4879
      %4884 = vst [vmem:[#allocation1] ss:$2 sm:$0xff] %v220
      %v4885 = vld.sshfl [vmem:[#allocation1] sm:$0xff pattern:$0x75316420]
      %v4886 = vld.sshfl [vmem:[#allocation1 + $0x8] sm:$0xff pattern:$0x75316420]
      %4889 = vrot.lane.b32.xlu0 %v4885, 82
      %v4890 = vpop.permute.xlu0 %4889
      %4891 = vrot.lane.b32.xlu0 %v4886, 82
      %v4892 = vpop.permute.xlu0 %4891
      %v4893 = vsel %vm4810, %v4890, %v4892
      %v4894 = vsel %vm4810, %v4892, %v4890
      %v4895 = vmul.f32 %v4824, %v4882
      %v4896 = vmul.f32 %v4824, %v4883
      %v4897 = vmul.f32 %v4827, %v4893
      %v4898 = vmul.f32 %v4827, %v4894
      %v4899 = vadd.f32 %v4895, %v4897
      %v4900 = vadd.f32 %v4896, %v4898
      %v4901 = vmul.f32 %v4833, %v4899
      %v4902 = vmul.f32 %v4834, %v4900
      %v4903 = vadd.f32 %v4796, %v4901
      %v4904 = vadd.f32 %v4797, %v4902
      %s4905 = sld [smem:[#allocation4 + $0x2c]]
      %s4906 = sld [smem:[#allocation4 + $0x5d]]
      %v4907 = vmul.f32 %v233, %v238
      %4908 = vst [vmem:[#allocation1] ss:$2 sm:$0xff] %v209
      %v4909 = vld.sshfl [vmem:[#allocation1] sm:$0xff pattern:$0x75316420]
      %v4910 = vld.sshfl [vmem:[#allocation1 + $0x8] sm:$0xff pattern:$0x75316420]
      %4913 = vrot.lane.b32.xlu0 %v4909, 81
      %v4914 = vpop.permute.xlu0 %4913
      %4915 = vrot.lane.b32.xlu0 %v4910, 81
      %v4916 = vpop.permute.xlu0 %4915
      %vm4917 = vcmp.lt.s32.totalorder %v261, 81
      %v4918 = vsel %vm4917, %v4914, %v4916
      %v4919 = vsel %vm4917, %v4916, %v4914
      %4920 = vst [vmem:[#allocation1] ss:$2 sm:$0xff] %v216
      %v4921 = vld.sshfl [vmem:[#allocation1] sm:$0xff pattern:$0x75316420]
      %v4922 = vld.sshfl [vmem:[#allocation1 + $0x8] sm:$0xff pattern:$0x75316420]
      %4925 = vrot.lane.b32.xlu0 %v4921, 81
      %v4926 = vpop.permute.xlu0 %4925
      %4927 = vrot.lane.b32.xlu0 %v4922, 81
      %v4928 = vpop.permute.xlu0 %4927
      %v4929 = vsel %vm4917, %v4926, %v4928
      %v4930 = vsel %vm4917, %v4928, %v4926
      %v4931 = vstv %s4905
      %v4932 = vmul.f32 %v4931, %v4918
      %v4933 = vmul.f32 %v4931, %v4919
      %v4934 = vstv %s4906
      %v4935 = vmul.f32 %v4934, %v4929
      %v4936 = vmul.f32 %v4934, %v4930
      %v4937 = vadd.f32 %v4932, %v4935
      %v4938 = vadd.f32 %v4933, %v4936
      %v4940 = vperm.slane %v4907, 0
      %v4941 = vperm.slane %v4907, 1
      %v4944 = vmul.f32 %v4940, %v4937
      %v4945 = vmul.f32 %v4941, %v4938
      %v4946 = vadd.f32 %v4839, %v4944
      %v4947 = vadd.f32 %v4840, %v4945
      %4948 = vst [vmem:[#allocation1] ss:$2 sm:$0xff] %v212
      %v4949 = vld.sshfl [vmem:[#allocation1] sm:$0xff pattern:$0x75316420]
      %v4950 = vld.sshfl [vmem:[#allocation1 + $0x8] sm:$0xff pattern:$0x75316420]
      %4953 = vrot.lane.b32.xlu0 %v4949, 81
      %v4954 = vpop.permute.xlu0 %4953
      %4955 = vrot.lane.b32.xlu0 %v4950, 81
      %v4956 = vpop.permute.xlu0 %4955
      %v4957 = vsel %vm4917, %v4954, %v4956
      %v4958 = vsel %vm4917, %v4956, %v4954
      %4959 = vst [vmem:[#allocation1] ss:$2 sm:$0xff] %v218
      %v4960 = vld.sshfl [vmem:[#allocation1] sm:$0xff pattern:$0x75316420]
      %v4961 = vld.sshfl [vmem:[#allocation1 + $0x8] sm:$0xff pattern:$0x75316420]
      %4964 = vrot.lane.b32.xlu0 %v4960, 81
      %v4965 = vpop.permute.xlu0 %4964
      %4966 = vrot.lane.b32.xlu0 %v4961, 81
      %v4967 = vpop.permute.xlu0 %4966
      %v4968 = vsel %vm4917, %v4965, %v4967
      %v4969 = vsel %vm4917, %v4967, %v4965
      %v4970 = vmul.f32 %v4931, %v4957
      %v4971 = vmul.f32 %v4931, %v4958
      %v4972 = vmul.f32 %v4934, %v4968
      %v4973 = vmul.f32 %v4934, %v4969
      %v4974 = vadd.f32 %v4970, %v4972
      %v4975 = vadd.f32 %v4971, %v4973
      %v4976 = vmul.f32 %v4940, %v4974
      %v4977 = vmul.f32 %v4941, %v4975
      %v4978 = vadd.f32 %v4871, %v4976
      %v4979 = vadd.f32 %v4872, %v4977
      %4980 = vst [vmem:[#allocation1] ss:$2 sm:$0xff] %v215
      %v4981 = vld.sshfl [vmem:[#allocation1] sm:$0xff pattern:$0x75316420]
      %v4982 = vld.sshfl [vmem:[#allocation1 + $0x8] sm:$0xff pattern:$0x75316420]
      %4985 = vrot.lane.b32.xlu0 %v4981, 81
      %v4986 = vpop.permute.xlu0 %4985
      %4987 = vrot.lane.b32.xlu0 %v4982, 81
      %v4988 = vpop.permute.xlu0 %4987
      %v4989 = vsel %vm4917, %v4986, %v4988
      %v4990 = vsel %vm4917, %v4988, %v4986
      %4991 = vst [vmem:[#allocation1] ss:$2 sm:$0xff] %v220
      %v4992 = vld.sshfl [vmem:[#allocation1] sm:$0xff pattern:$0x75316420]
      %v4993 = vld.sshfl [vmem:[#allocation1 + $0x8] sm:$0xff pattern:$0x75316420]
      %4996 = vrot.lane.b32.xlu0 %v4992, 81
      %v4997 = vpop.permute.xlu0 %4996
      %4998 = vrot.lane.b32.xlu0 %v4993, 81
      %v4999 = vpop.permute.xlu0 %4998
      %v5000 = vsel %vm4917, %v4997, %v4999
      %v5001 = vsel %vm4917, %v4999, %v4997
      %v5002 = vmul.f32 %v4931, %v4989
      %v5003 = vmul.f32 %v4931, %v4990
      %v5004 = vmul.f32 %v4934, %v5000
      %v5005 = vmul.f32 %v4934, %v5001
      %v5006 = vadd.f32 %v5002, %v5004
      %v5007 = vadd.f32 %v5003, %v5005
      %v5008 = vmul.f32 %v4940, %v5006
      %v5009 = vmul.f32 %v4941, %v5007
      %v5010 = vadd.f32 %v4903, %v5008
      %v5011 = vadd.f32 %v4904, %v5009
      %s5012 = sld [smem:[#allocation4 + $0x2d]]
      %s5013 = sld [smem:[#allocation4 + $0x5e]]
      %v5014 = vmul.f32 %v233, %v240
      %5015 = vst [vmem:[#allocation1] ss:$2 sm:$0xff] %v209
      %v5016 = vld.sshfl [vmem:[#allocation1] sm:$0xff pattern:$0x75316420]
      %v5017 = vld.sshfl [vmem:[#allocation1 + $0x8] sm:$0xff pattern:$0x75316420]
      %5020 = vrot.lane.b32.xlu0 %v5016, 80
      %v5021 = vpop.permute.xlu0 %5020
      %5022 = vrot.lane.b32.xlu0 %v5017, 80
      %v5023 = vpop.permute.xlu0 %5022
      %vm5024 = vcmp.lt.s32.totalorder %v261, 80
      %v5025 = vsel %vm5024, %v5021, %v5023
      %v5026 = vsel %vm5024, %v5023, %v5021
      %5027 = vst [vmem:[#allocation1] ss:$2 sm:$0xff] %v216
      %v5028 = vld.sshfl [vmem:[#allocation1] sm:$0xff pattern:$0x75316420]
      %v5029 = vld.sshfl [vmem:[#allocation1 + $0x8] sm:$0xff pattern:$0x75316420]
      %5032 = vrot.lane.b32.xlu0 %v5028, 80
      %v5033 = vpop.permute.xlu0 %5032
      %5034 = vrot.lane.b32.xlu0 %v5029, 80
      %v5035 = vpop.permute.xlu0 %5034
      %v5036 = vsel %vm5024, %v5033, %v5035
      %v5037 = vsel %vm5024, %v5035, %v5033
      %v5038 = vstv %s5012
      %v5039 = vmul.f32 %v5038, %v5025
      %v5040 = vmul.f32 %v5038, %v5026
      %v5041 = vstv %s5013
      %v5042 = vmul.f32 %v5041, %v5036
      %v5043 = vmul.f32 %v5041, %v5037
      %v5044 = vadd.f32 %v5039, %v5042
      %v5045 = vadd.f32 %v5040, %v5043
      %v5047 = vperm.slane %v5014, 0
      %v5048 = vperm.slane %v5014, 1
      %v5051 = vmul.f32 %v5047, %v5044
      %v5052 = vmul.f32 %v5048, %v5045
      %v5053 = vadd.f32 %v4946, %v5051
      %v5054 = vadd.f32 %v4947, %v5052
      %5055 = vst [vmem:[#allocation1] ss:$2 sm:$0xff] %v212
      %v5056 = vld.sshfl [vmem:[#allocation1] sm:$0xff pattern:$0x75316420]
      %v5057 = vld.sshfl [vmem:[#allocation1 + $0x8] sm:$0xff pattern:$0x75316420]
      %5060 = vrot.lane.b32.xlu0 %v5056, 80
      %v5061 = vpop.permute.xlu0 %5060
      %5062 = vrot.lane.b32.xlu0 %v5057, 80
      %v5063 = vpop.permute.xlu0 %5062
      %v5064 = vsel %vm5024, %v5061, %v5063
      %v5065 = vsel %vm5024, %v5063, %v5061
      %5066 = vst [vmem:[#allocation1] ss:$2 sm:$0xff] %v218
      %v5067 = vld.sshfl [vmem:[#allocation1] sm:$0xff pattern:$0x75316420]
      %v5068 = vld.sshfl [vmem:[#allocation1 + $0x8] sm:$0xff pattern:$0x75316420]
      %5071 = vrot.lane.b32.xlu0 %v5067, 80
      %v5072 = vpop.permute.xlu0 %5071
      %5073 = vrot.lane.b32.xlu0 %v5068, 80
      %v5074 = vpop.permute.xlu0 %5073
      %v5075 = vsel %vm5024, %v5072, %v5074
      %v5076 = vsel %vm5024, %v5074, %v5072
      %v5077 = vmul.f32 %v5038, %v5064
      %v5078 = vmul.f32 %v5038, %v5065
      %v5079 = vmul.f32 %v5041, %v5075
      %v5080 = vmul.f32 %v5041, %v5076
      %v5081 = vadd.f32 %v5077, %v5079
      %v5082 = vadd.f32 %v5078, %v5080
      %v5083 = vmul.f32 %v5047, %v5081
      %v5084 = vmul.f32 %v5048, %v5082
      %v5085 = vadd.f32 %v4978, %v5083
      %v5086 = vadd.f32 %v4979, %v5084
      %5087 = vst [vmem:[#allocation1] ss:$2 sm:$0xff] %v215
      %v5088 = vld.sshfl [vmem:[#allocation1] sm:$0xff pattern:$0x75316420]
      %v5089 = vld.sshfl [vmem:[#allocation1 + $0x8] sm:$0xff pattern:$0x75316420]
      %5092 = vrot.lane.b32.xlu0 %v5088, 80
      %v5093 = vpop.permute.xlu0 %5092
      %5094 = vrot.lane.b32.xlu0 %v5089, 80
      %v5095 = vpop.permute.xlu0 %5094
      %v5096 = vsel %vm5024, %v5093, %v5095
      %v5097 = vsel %vm5024, %v5095, %v5093
      %5098 = vst [vmem:[#allocation1] ss:$2 sm:$0xff] %v220
      %v5099 = vld.sshfl [vmem:[#allocation1] sm:$0xff pattern:$0x75316420]
      %v5100 = vld.sshfl [vmem:[#allocation1 + $0x8] sm:$0xff pattern:$0x75316420]
      %5103 = vrot.lane.b32.xlu0 %v5099, 80
      %v5104 = vpop.permute.xlu0 %5103
      %5105 = vrot.lane.b32.xlu0 %v5100, 80
      %v5106 = vpop.permute.xlu0 %5105
      %v5107 = vsel %vm5024, %v5104, %v5106
      %v5108 = vsel %vm5024, %v5106, %v5104
      %v5109 = vmul.f32 %v5038, %v5096
      %v5110 = vmul.f32 %v5038, %v5097
      %v5111 = vmul.f32 %v5041, %v5107
      %v5112 = vmul.f32 %v5041, %v5108
      %v5113 = vadd.f32 %v5109, %v5111
      %v5114 = vadd.f32 %v5110, %v5112
      %v5115 = vmul.f32 %v5047, %v5113
      %v5116 = vmul.f32 %v5048, %v5114
      %v5117 = vadd.f32 %v5010, %v5115
      %v5118 = vadd.f32 %v5011, %v5116
      %s5119 = sld [smem:[#allocation4 + $0x2e]]
      %s5120 = sld [smem:[#allocation4 + $0x5f]]
      %v5121 = vmul.f32 %v233, %v242
      %5122 = vst [vmem:[#allocation1] ss:$2 sm:$0xff] %v209
      %v5123 = vld.sshfl [vmem:[#allocation1] sm:$0xff pattern:$0x75316420]
      %v5124 = vld.sshfl [vmem:[#allocation1 + $0x8] sm:$0xff pattern:$0x75316420]
      %5127 = vrot.lane.b32.xlu0 %v5123, 79
      %v5128 = vpop.permute.xlu0 %5127
      %5129 = vrot.lane.b32.xlu0 %v5124, 79
      %v5130 = vpop.permute.xlu0 %5129
      %vm5131 = vcmp.lt.s32.totalorder %v261, 79
      %v5132 = vsel %vm5131, %v5128, %v5130
      %v5133 = vsel %vm5131, %v5130, %v5128
      %5134 = vst [vmem:[#allocation1] ss:$2 sm:$0xff] %v216
      %v5135 = vld.sshfl [vmem:[#allocation1] sm:$0xff pattern:$0x75316420]
      %v5136 = vld.sshfl [vmem:[#allocation1 + $0x8] sm:$0xff pattern:$0x75316420]
      %5139 = vrot.lane.b32.xlu0 %v5135, 79
      %v5140 = vpop.permute.xlu0 %5139
      %5141 = vrot.lane.b32.xlu0 %v5136, 79
      %v5142 = vpop.permute.xlu0 %5141
      %v5143 = vsel %vm5131, %v5140, %v5142
      %v5144 = vsel %vm5131, %v5142, %v5140
      %v5145 = vstv %s5119
      %v5146 = vmul.f32 %v5145, %v5132
      %v5147 = vmul.f32 %v5145, %v5133
      %v5148 = vstv %s5120
      %v5149 = vmul.f32 %v5148, %v5143
      %v5150 = vmul.f32 %v5148, %v5144
      %v5151 = vadd.f32 %v5146, %v5149
      %v5152 = vadd.f32 %v5147, %v5150
      %v5154 = vperm.slane %v5121, 0
      %v5155 = vperm.slane %v5121, 1
      %v5158 = vmul.f32 %v5154, %v5151
      %v5159 = vmul.f32 %v5155, %v5152
      %v5160 = vadd.f32 %v5053, %v5158
      %v5161 = vadd.f32 %v5054, %v5159
      %5162 = vst [vmem:[#allocation1] ss:$2 sm:$0xff] %v212
      %v5163 = vld.sshfl [vmem:[#allocation1] sm:$0xff pattern:$0x75316420]
      %v5164 = vld.sshfl [vmem:[#allocation1 + $0x8] sm:$0xff pattern:$0x75316420]
      %5167 = vrot.lane.b32.xlu0 %v5163, 79
      %v5168 = vpop.permute.xlu0 %5167
      %5169 = vrot.lane.b32.xlu0 %v5164, 79
      %v5170 = vpop.permute.xlu0 %5169
      %v5171 = vsel %vm5131, %v5168, %v5170
      %v5172 = vsel %vm5131, %v5170, %v5168
      %5173 = vst [vmem:[#allocation1] ss:$2 sm:$0xff] %v218
      %v5174 = vld.sshfl [vmem:[#allocation1] sm:$0xff pattern:$0x75316420]
      %v5175 = vld.sshfl [vmem:[#allocation1 + $0x8] sm:$0xff pattern:$0x75316420]
      %5178 = vrot.lane.b32.xlu0 %v5174, 79
      %v5179 = vpop.permute.xlu0 %5178
      %5180 = vrot.lane.b32.xlu0 %v5175, 79
      %v5181 = vpop.permute.xlu0 %5180
      %v5182 = vsel %vm5131, %v5179, %v5181
      %v5183 = vsel %vm5131, %v5181, %v5179
      %v5184 = vmul.f32 %v5145, %v5171
      %v5185 = vmul.f32 %v5145, %v5172
      %v5186 = vmul.f32 %v5148, %v5182
      %v5187 = vmul.f32 %v5148, %v5183
      %v5188 = vadd.f32 %v5184, %v5186
      %v5189 = vadd.f32 %v5185, %v5187
      %v5190 = vmul.f32 %v5154, %v5188
      %v5191 = vmul.f32 %v5155, %v5189
      %v5192 = vadd.f32 %v5085, %v5190
      %v5193 = vadd.f32 %v5086, %v5191
      %5194 = vst [vmem:[#allocation1] ss:$2 sm:$0xff] %v215
      %v5195 = vld.sshfl [vmem:[#allocation1] sm:$0xff pattern:$0x75316420]
      %v5196 = vld.sshfl [vmem:[#allocation1 + $0x8] sm:$0xff pattern:$0x75316420]
      %5199 = vrot.lane.b32.xlu0 %v5195, 79
      %v5200 = vpop.permute.xlu0 %5199
      %5201 = vrot.lane.b32.xlu0 %v5196, 79
      %v5202 = vpop.permute.xlu0 %5201
      %v5203 = vsel %vm5131, %v5200, %v5202
      %v5204 = vsel %vm5131, %v5202, %v5200
      %5205 = vst [vmem:[#allocation1] ss:$2 sm:$0xff] %v220
      %v5206 = vld.sshfl [vmem:[#allocation1] sm:$0xff pattern:$0x75316420]
      %v5207 = vld.sshfl [vmem:[#allocation1 + $0x8] sm:$0xff pattern:$0x75316420]
      %5210 = vrot.lane.b32.xlu0 %v5206, 79
      %v5211 = vpop.permute.xlu0 %5210
      %5212 = vrot.lane.b32.xlu0 %v5207, 79
      %v5213 = vpop.permute.xlu0 %5212
      %v5214 = vsel %vm5131, %v5211, %v5213
      %v5215 = vsel %vm5131, %v5213, %v5211
      %v5216 = vmul.f32 %v5145, %v5203
      %v5217 = vmul.f32 %v5145, %v5204
      %v5218 = vmul.f32 %v5148, %v5214
      %v5219 = vmul.f32 %v5148, %v5215
      %v5220 = vadd.f32 %v5216, %v5218
      %v5221 = vadd.f32 %v5217, %v5219
      %v5222 = vmul.f32 %v5154, %v5220
      %v5223 = vmul.f32 %v5155, %v5221
      %v5224 = vadd.f32 %v5117, %v5222
      %v5225 = vadd.f32 %v5118, %v5223
      %s5226 = sld [smem:[#allocation4 + $0x2f]]
      %s5227 = sld [smem:[#allocation4 + $0x60]]
      %v5228 = vmul.f32 %v233, %v244
      %5229 = vst [vmem:[#allocation1] ss:$2 sm:$0xff] %v209
      %v5230 = vld.sshfl [vmem:[#allocation1] sm:$0xff pattern:$0x75316420]
      %v5231 = vld.sshfl [vmem:[#allocation1 + $0x8] sm:$0xff pattern:$0x75316420]
      %5234 = vrot.lane.b32.xlu0 %v5230, 78
      %v5235 = vpop.permute.xlu0 %5234
      %5236 = vrot.lane.b32.xlu0 %v5231, 78
      %v5237 = vpop.permute.xlu0 %5236
      %vm5238 = vcmp.lt.s32.totalorder %v261, 78
      %v5239 = vsel %vm5238, %v5235, %v5237
      %v5240 = vsel %vm5238, %v5237, %v5235
      %5241 = vst [vmem:[#allocation1] ss:$2 sm:$0xff] %v216
      %v5242 = vld.sshfl [vmem:[#allocation1] sm:$0xff pattern:$0x75316420]
      %v5243 = vld.sshfl [vmem:[#allocation1 + $0x8] sm:$0xff pattern:$0x75316420]
      %5246 = vrot.lane.b32.xlu0 %v5242, 78
      %v5247 = vpop.permute.xlu0 %5246
      %5248 = vrot.lane.b32.xlu0 %v5243, 78
      %v5249 = vpop.permute.xlu0 %5248
      %v5250 = vsel %vm5238, %v5247, %v5249
      %v5251 = vsel %vm5238, %v5249, %v5247
      %v5252 = vstv %s5226
      %v5253 = vmul.f32 %v5252, %v5239
      %v5254 = vmul.f32 %v5252, %v5240
      %v5255 = vstv %s5227
      %v5256 = vmul.f32 %v5255, %v5250
      %v5257 = vmul.f32 %v5255, %v5251
      %v5258 = vadd.f32 %v5253, %v5256
      %v5259 = vadd.f32 %v5254, %v5257
      %v5261 = vperm.slane %v5228, 0
      %v5262 = vperm.slane %v5228, 1
      %v5265 = vmul.f32 %v5261, %v5258
      %v5266 = vmul.f32 %v5262, %v5259
      %v5267 = vadd.f32 %v5160, %v5265
      %v5268 = vadd.f32 %v5161, %v5266
      %5269 = vst [vmem:[#allocation1] ss:$2 sm:$0xff] %v212
      %v5270 = vld.sshfl [vmem:[#allocation1] sm:$0xff pattern:$0x75316420]
      %v5271 = vld.sshfl [vmem:[#allocation1 + $0x8] sm:$0xff pattern:$0x75316420]
      %5274 = vrot.lane.b32.xlu0 %v5270, 78
      %v5275 = vpop.permute.xlu0 %5274
      %5276 = vrot.lane.b32.xlu0 %v5271, 78
      %v5277 = vpop.permute.xlu0 %5276
      %v5278 = vsel %vm5238, %v5275, %v5277
      %v5279 = vsel %vm5238, %v5277, %v5275
      %5280 = vst [vmem:[#allocation1] ss:$2 sm:$0xff] %v218
      %v5281 = vld.sshfl [vmem:[#allocation1] sm:$0xff pattern:$0x75316420]
      %v5282 = vld.sshfl [vmem:[#allocation1 + $0x8] sm:$0xff pattern:$0x75316420]
      %5285 = vrot.lane.b32.xlu0 %v5281, 78
      %v5286 = vpop.permute.xlu0 %5285
      %5287 = vrot.lane.b32.xlu0 %v5282, 78
      %v5288 = vpop.permute.xlu0 %5287
      %v5289 = vsel %vm5238, %v5286, %v5288
      %v5290 = vsel %vm5238, %v5288, %v5286
      %v5291 = vmul.f32 %v5252, %v5278
      %v5292 = vmul.f32 %v5252, %v5279
      %v5293 = vmul.f32 %v5255, %v5289
      %v5294 = vmul.f32 %v5255, %v5290
      %v5295 = vadd.f32 %v5291, %v5293
      %v5296 = vadd.f32 %v5292, %v5294
      %v5297 = vmul.f32 %v5261, %v5295
      %v5298 = vmul.f32 %v5262, %v5296
      %v5299 = vadd.f32 %v5192, %v5297
      %v5300 = vadd.f32 %v5193, %v5298
      %5301 = vst [vmem:[#allocation1] ss:$2 sm:$0xff] %v215
      %v5302 = vld.sshfl [vmem:[#allocation1] sm:$0xff pattern:$0x75316420]
      %v5303 = vld.sshfl [vmem:[#allocation1 + $0x8] sm:$0xff pattern:$0x75316420]
      %5306 = vrot.lane.b32.xlu0 %v5302, 78
      %v5307 = vpop.permute.xlu0 %5306
      %5308 = vrot.lane.b32.xlu0 %v5303, 78
      %v5309 = vpop.permute.xlu0 %5308
      %v5310 = vsel %vm5238, %v5307, %v5309
      %v5311 = vsel %vm5238, %v5309, %v5307
      %5312 = vst [vmem:[#allocation1] ss:$2 sm:$0xff] %v220
      %v5313 = vld.sshfl [vmem:[#allocation1] sm:$0xff pattern:$0x75316420]
      %v5314 = vld.sshfl [vmem:[#allocation1 + $0x8] sm:$0xff pattern:$0x75316420]
      %5317 = vrot.lane.b32.xlu0 %v5313, 78
      %v5318 = vpop.permute.xlu0 %5317
      %5319 = vrot.lane.b32.xlu0 %v5314, 78
      %v5320 = vpop.permute.xlu0 %5319
      %v5321 = vsel %vm5238, %v5318, %v5320
      %v5322 = vsel %vm5238, %v5320, %v5318
      %v5323 = vmul.f32 %v5252, %v5310
      %v5324 = vmul.f32 %v5252, %v5311
      %v5325 = vmul.f32 %v5255, %v5321
      %v5326 = vmul.f32 %v5255, %v5322
      %v5327 = vadd.f32 %v5323, %v5325
      %v5328 = vadd.f32 %v5324, %v5326
      %v5329 = vmul.f32 %v5261, %v5327
      %v5330 = vmul.f32 %v5262, %v5328
      %v5331 = vadd.f32 %v5224, %v5329
      %v5332 = vadd.f32 %v5225, %v5330
      %s5333 = sld [smem:[#allocation4 + $0x30]]
      %s5334 = sld [smem:[#allocation4 + $0x61]]
      %v5335 = vmul.f32 %v233, %v246
      %5336 = vst [vmem:[#allocation1] ss:$2 sm:$0xff] %v209
      %v5337 = vld.sshfl [vmem:[#allocation1] sm:$0xff pattern:$0x75316420]
      %v5338 = vld.sshfl [vmem:[#allocation1 + $0x8] sm:$0xff pattern:$0x75316420]
      %5341 = vrot.lane.b32.xlu0 %v5337, 77
      %v5342 = vpop.permute.xlu0 %5341
      %5343 = vrot.lane.b32.xlu0 %v5338, 77
      %v5344 = vpop.permute.xlu0 %5343
      %vm5345 = vcmp.lt.s32.totalorder %v261, 77
      %v5346 = vsel %vm5345, %v5342, %v5344
      %v5347 = vsel %vm5345, %v5344, %v5342
      %5348 = vst [vmem:[#allocation1] ss:$2 sm:$0xff] %v216
      %v5349 = vld.sshfl [vmem:[#allocation1] sm:$0xff pattern:$0x75316420]
      %v5350 = vld.sshfl [vmem:[#allocation1 + $0x8] sm:$0xff pattern:$0x75316420]
      %5353 = vrot.lane.b32.xlu0 %v5349, 77
      %v5354 = vpop.permute.xlu0 %5353
      %5355 = vrot.lane.b32.xlu0 %v5350, 77
      %v5356 = vpop.permute.xlu0 %5355
      %v5357 = vsel %vm5345, %v5354, %v5356
      %v5358 = vsel %vm5345, %v5356, %v5354
      %v5359 = vstv %s5333
      %v5360 = vmul.f32 %v5359, %v5346
      %v5361 = vmul.f32 %v5359, %v5347
      %v5362 = vstv %s5334
      %v5363 = vmul.f32 %v5362, %v5357
      %v5364 = vmul.f32 %v5362, %v5358
      %v5365 = vadd.f32 %v5360, %v5363
      %v5366 = vadd.f32 %v5361, %v5364
      %v5368 = vperm.slane %v5335, 0
      %v5369 = vperm.slane %v5335, 1
      %v5372 = vmul.f32 %v5368, %v5365
      %v5373 = vmul.f32 %v5369, %v5366
      %v5374 = vadd.f32 %v5267, %v5372
      %v5375 = vadd.f32 %v5268, %v5373
      %5376 = vst [vmem:[#allocation1] ss:$2 sm:$0xff] %v212
      %v5377 = vld.sshfl [vmem:[#allocation1] sm:$0xff pattern:$0x75316420]
      %v5378 = vld.sshfl [vmem:[#allocation1 + $0x8] sm:$0xff pattern:$0x75316420]
      %5381 = vrot.lane.b32.xlu0 %v5377, 77
      %v5382 = vpop.permute.xlu0 %5381
      %5383 = vrot.lane.b32.xlu0 %v5378, 77
      %v5384 = vpop.permute.xlu0 %5383
      %v5385 = vsel %vm5345, %v5382, %v5384
      %v5386 = vsel %vm5345, %v5384, %v5382
      %5387 = vst [vmem:[#allocation1] ss:$2 sm:$0xff] %v218
      %v5388 = vld.sshfl [vmem:[#allocation1] sm:$0xff pattern:$0x75316420]
      %v5389 = vld.sshfl [vmem:[#allocation1 + $0x8] sm:$0xff pattern:$0x75316420]
      %5392 = vrot.lane.b32.xlu0 %v5388, 77
      %v5393 = vpop.permute.xlu0 %5392
      %5394 = vrot.lane.b32.xlu0 %v5389, 77
      %v5395 = vpop.permute.xlu0 %5394
      %v5396 = vsel %vm5345, %v5393, %v5395
      %v5397 = vsel %vm5345, %v5395, %v5393
      %v5398 = vmul.f32 %v5359, %v5385
      %v5399 = vmul.f32 %v5359, %v5386
      %v5400 = vmul.f32 %v5362, %v5396
      %v5401 = vmul.f32 %v5362, %v5397
      %v5402 = vadd.f32 %v5398, %v5400
      %v5403 = vadd.f32 %v5399, %v5401
      %v5404 = vmul.f32 %v5368, %v5402
      %v5405 = vmul.f32 %v5369, %v5403
      %v5406 = vadd.f32 %v5299, %v5404
      %v5407 = vadd.f32 %v5300, %v5405
      %5408 = vst [vmem:[#allocation1] ss:$2 sm:$0xff] %v215
      %v5409 = vld.sshfl [vmem:[#allocation1] sm:$0xff pattern:$0x75316420]
      %v5410 = vld.sshfl [vmem:[#allocation1 + $0x8] sm:$0xff pattern:$0x75316420]
      %5413 = vrot.lane.b32.xlu0 %v5409, 77
      %v5414 = vpop.permute.xlu0 %5413
      %5415 = vrot.lane.b32.xlu0 %v5410, 77
      %v5416 = vpop.permute.xlu0 %5415
      %v5417 = vsel %vm5345, %v5414, %v5416
      %v5418 = vsel %vm5345, %v5416, %v5414
      %5419 = vst [vmem:[#allocation1] ss:$2 sm:$0xff] %v220
      %v5420 = vld.sshfl [vmem:[#allocation1] sm:$0xff pattern:$0x75316420]
      %v5421 = vld.sshfl [vmem:[#allocation1 + $0x8] sm:$0xff pattern:$0x75316420]
      %5424 = vrot.lane.b32.xlu0 %v5420, 77
      %v5425 = vpop.permute.xlu0 %5424
      %5426 = vrot.lane.b32.xlu0 %v5421, 77
      %v5427 = vpop.permute.xlu0 %5426
      %v5428 = vsel %vm5345, %v5425, %v5427
      %v5429 = vsel %vm5345, %v5427, %v5425
      %v5430 = vmul.f32 %v5359, %v5417
      %v5431 = vmul.f32 %v5359, %v5418
      %v5432 = vmul.f32 %v5362, %v5428
      %v5433 = vmul.f32 %v5362, %v5429
      %v5434 = vadd.f32 %v5430, %v5432
      %v5435 = vadd.f32 %v5431, %v5433
      %v5436 = vmul.f32 %v5368, %v5434
      %v5437 = vmul.f32 %v5369, %v5435
      %v5438 = vadd.f32 %v5331, %v5436
      %v5439 = vadd.f32 %v5332, %v5437
      %s5440 = sld [smem:[#allocation9]]
      %v5441 = vstv %s5440
      %v5442 = vmul.f32 %v5441, %v5374
      %v5443 = vmul.f32 %v5441, %v5375
      %s5444 = sld [smem:[#allocation9 + $0x1]]
      %v5445 = vstv %s5444
      %v5446 = vmul.f32 %v5445, %v5406
      %v5447 = vmul.f32 %v5445, %v5407
      %v5448 = vadd.f32 %v5442, %v5446
      %v5449 = vadd.f32 %v5443, %v5447
      %s5450 = sld [smem:[#allocation9 + $0x2]]
      %v5451 = vstv %s5450
      %v5452 = vmul.f32 %v5451, %v5438
      %v5453 = vmul.f32 %v5451, %v5439
      %v5454 = vadd.f32 %v5448, %v5452
      %v5455 = vadd.f32 %v5449, %v5453
      %v5456 = vmax.f32 %v5454, 0.0
      %v5457 = vmax.f32 %v5455, 0.0
      %s5458 = sld [smem:[#allocation9 + $0x3]]
      %v5459 = vstv %s5458
      %v5460 = vmul.f32 %v5459, %v5374
      %v5461 = vmul.f32 %v5459, %v5375
      %s5462 = sld [smem:[#allocation9 + $0x4]]
      %v5463 = vstv %s5462
      %v5464 = vmul.f32 %v5463, %v5406
      %v5465 = vmul.f32 %v5463, %v5407
      %v5466 = vadd.f32 %v5460, %v5464
      %v5467 = vadd.f32 %v5461, %v5465
      %s5468 = sld [smem:[#allocation9 + $0x5]]
      %v5469 = vstv %s5468
      %v5470 = vmul.f32 %v5469, %v5438
      %v5471 = vmul.f32 %v5469, %v5439
      %v5472 = vadd.f32 %v5466, %v5470
      %v5473 = vadd.f32 %v5467, %v5471
      %v5474 = vmax.f32 %v5472, 0.0
      %v5475 = vmax.f32 %v5473, 0.0
      %s5476 = sld [smem:[#allocation9 + $0x6]]
      %v5477 = vstv %s5476
      %v5478 = vmul.f32 %v5477, %v5374
      %v5479 = vmul.f32 %v5477, %v5375
      %s5480 = sld [smem:[#allocation9 + $0x7]]
      %v5481 = vstv %s5480
      %v5482 = vmul.f32 %v5481, %v5406
      %v5483 = vmul.f32 %v5481, %v5407
      %v5484 = vadd.f32 %v5478, %v5482
      %v5485 = vadd.f32 %v5479, %v5483
      %s5486 = sld [smem:[#allocation9 + $0x8]]
      %v5487 = vstv %s5486
      %v5488 = vmul.f32 %v5487, %v5438
      %v5489 = vmul.f32 %v5487, %v5439
      %v5490 = vadd.f32 %v5484, %v5488
      %v5491 = vadd.f32 %v5485, %v5489
      %v5492 = vmax.f32 %v5490, 0.0
      %v5493 = vmax.f32 %v5491, 0.0
      %s5494 = sld [smem:[#allocation9 + $0x9]]
      %v5495 = vstv %s5494
      %v5496 = vmul.f32 %v5495, %v5374
      %v5497 = vmul.f32 %v5495, %v5375
      %s5498 = sld [smem:[#allocation9 + $0xa]]
      %v5499 = vstv %s5498
      %v5500 = vmul.f32 %v5499, %v5406
      %v5501 = vmul.f32 %v5499, %v5407
      %v5502 = vadd.f32 %v5496, %v5500
      %v5503 = vadd.f32 %v5497, %v5501
      %s5504 = sld [smem:[#allocation9 + $0xb]]
      %v5505 = vstv %s5504
      %v5506 = vmul.f32 %v5505, %v5438
      %v5507 = vmul.f32 %v5505, %v5439
      %v5508 = vadd.f32 %v5502, %v5506
      %v5509 = vadd.f32 %v5503, %v5507
      %v5510 = vmax.f32 %v5508, 0.0
      %v5511 = vmax.f32 %v5509, 0.0
      %s5512 = sld [smem:[#allocation9 + $0xc]]
      %v5513 = vstv %s5512
      %v5514 = vmul.f32 %v5513, %v5374
      %v5515 = vmul.f32 %v5513, %v5375
      %s5516 = sld [smem:[#allocation9 + $0xd]]
      %v5517 = vstv %s5516
      %v5518 = vmul.f32 %v5517, %v5406
      %v5519 = vmul.f32 %v5517, %v5407
      %v5520 = vadd.f32 %v5514, %v5518
      %v5521 = vadd.f32 %v5515, %v5519
      %s5522 = sld [smem:[#allocation9 + $0xe]]
      %v5523 = vstv %s5522
      %v5524 = vmul.f32 %v5523, %v5438
      %v5525 = vmul.f32 %v5523, %v5439
      %v5526 = vadd.f32 %v5520, %v5524
      %v5527 = vadd.f32 %v5521, %v5525
      %v5528 = vmax.f32 %v5526, 0.0
      %v5529 = vmax.f32 %v5527, 0.0
      %s5530 = sld [smem:[#allocation9 + $0xf]]
      %v5531 = vstv %s5530
      %v5532 = vmul.f32 %v5531, %v5374
      %v5533 = vmul.f32 %v5531, %v5375
      %s5534 = sld [smem:[#allocation9 + $0x10]]
      %v5535 = vstv %s5534
      %v5536 = vmul.f32 %v5535, %v5406
      %v5537 = vmul.f32 %v5535, %v5407
      %v5538 = vadd.f32 %v5532, %v5536
      %v5539 = vadd.f32 %v5533, %v5537
      %s5540 = sld [smem:[#allocation9 + $0x11]]
      %v5541 = vstv %s5540
      %v5542 = vmul.f32 %v5541, %v5438
      %v5543 = vmul.f32 %v5541, %v5439
      %v5544 = vadd.f32 %v5538, %v5542
      %v5545 = vadd.f32 %v5539, %v5543
      %v5546 = vmax.f32 %v5544, 0.0
      %v5547 = vmax.f32 %v5545, 0.0
      %s5548 = sld [smem:[#allocation9 + $0x12]]
      %v5549 = vstv %s5548
      %v5550 = vmul.f32 %v5549, %v5374
      %v5551 = vmul.f32 %v5549, %v5375
      %s5552 = sld [smem:[#allocation9 + $0x13]]
      %v5553 = vstv %s5552
      %v5554 = vmul.f32 %v5553, %v5406
      %v5555 = vmul.f32 %v5553, %v5407
      %v5556 = vadd.f32 %v5550, %v5554
      %v5557 = vadd.f32 %v5551, %v5555
      %s5558 = sld [smem:[#allocation9 + $0x14]]
      %v5559 = vstv %s5558
      %v5560 = vmul.f32 %v5559, %v5438
      %v5561 = vmul.f32 %v5559, %v5439
      %v5562 = vadd.f32 %v5556, %v5560
      %v5563 = vadd.f32 %v5557, %v5561
      %v5564 = vmax.f32 %v5562, 0.0
      %v5565 = vmax.f32 %v5563, 0.0
      %s5566 = sld [smem:[#allocation9 + $0x15]]
      %v5567 = vstv %s5566
      %v5568 = vmul.f32 %v5567, %v5374
      %v5569 = vmul.f32 %v5567, %v5375
      %s5570 = sld [smem:[#allocation9 + $0x16]]
      %v5571 = vstv %s5570
      %v5572 = vmul.f32 %v5571, %v5406
      %v5573 = vmul.f32 %v5571, %v5407
      %v5574 = vadd.f32 %v5568, %v5572
      %v5575 = vadd.f32 %v5569, %v5573
      %s5576 = sld [smem:[#allocation9 + $0x17]]
      %v5577 = vstv %s5576
      %v5578 = vmul.f32 %v5577, %v5438
      %v5579 = vmul.f32 %v5577, %v5439
      %v5580 = vadd.f32 %v5574, %v5578
      %v5581 = vadd.f32 %v5575, %v5579
      %v5582 = vmax.f32 %v5580, 0.0
      %v5583 = vmax.f32 %v5581, 0.0
      %s5584 = sld [smem:[#allocation9 + $0x18]]
      %v5585 = vstv %s5584
      %v5586 = vmul.f32 %v5585, %v5374
      %v5587 = vmul.f32 %v5585, %v5375
      %s5588 = sld [smem:[#allocation9 + $0x19]]
      %v5589 = vstv %s5588
      %v5590 = vmul.f32 %v5589, %v5406
      %v5591 = vmul.f32 %v5589, %v5407
      %v5592 = vadd.f32 %v5586, %v5590
      %v5593 = vadd.f32 %v5587, %v5591
      %s5594 = sld [smem:[#allocation9 + $0x1a]]
      %v5595 = vstv %s5594
      %v5596 = vmul.f32 %v5595, %v5438
      %v5597 = vmul.f32 %v5595, %v5439
      %v5598 = vadd.f32 %v5592, %v5596
      %v5599 = vadd.f32 %v5593, %v5597
      %v5600 = vmax.f32 %v5598, 0.0
      %v5601 = vmax.f32 %v5599, 0.0
      %s5602 = sld [smem:[#allocation9 + $0x1b]]
      %v5603 = vstv %s5602
      %v5604 = vmul.f32 %v5603, %v5374
      %v5605 = vmul.f32 %v5603, %v5375
      %s5606 = sld [smem:[#allocation9 + $0x1c]]
      %v5607 = vstv %s5606
      %v5608 = vmul.f32 %v5607, %v5406
      %v5609 = vmul.f32 %v5607, %v5407
      %v5610 = vadd.f32 %v5604, %v5608
      %v5611 = vadd.f32 %v5605, %v5609
      %s5612 = sld [smem:[#allocation9 + $0x1d]]
      %v5613 = vstv %s5612
      %v5614 = vmul.f32 %v5613, %v5438
      %v5615 = vmul.f32 %v5613, %v5439
      %v5616 = vadd.f32 %v5610, %v5614
      %v5617 = vadd.f32 %v5611, %v5615
      %v5618 = vmax.f32 %v5616, 0.0
      %v5619 = vmax.f32 %v5617, 0.0
      %s5620 = sld [smem:[#allocation9 + $0x1e]]
      %v5621 = vstv %s5620
      %v5622 = vmul.f32 %v5621, %v5374
      %v5623 = vmul.f32 %v5621, %v5375
      %s5624 = sld [smem:[#allocation9 + $0x1f]]
      %v5625 = vstv %s5624
      %v5626 = vmul.f32 %v5625, %v5406
      %v5627 = vmul.f32 %v5625, %v5407
      %v5628 = vadd.f32 %v5622, %v5626
      %v5629 = vadd.f32 %v5623, %v5627
      %s5630 = sld [smem:[#allocation9 + $0x20]]
      %v5631 = vstv %s5630
      %v5632 = vmul.f32 %v5631, %v5438
      %v5633 = vmul.f32 %v5631, %v5439
      %v5634 = vadd.f32 %v5628, %v5632
      %v5635 = vadd.f32 %v5629, %v5633
      %v5636 = vmax.f32 %v5634, 0.0
      %v5637 = vmax.f32 %v5635, 0.0
      %s5638 = sld [smem:[#allocation9 + $0x21]]
      %v5639 = vstv %s5638
      %v5640 = vmul.f32 %v5639, %v5374
      %v5641 = vmul.f32 %v5639, %v5375
      %s5642 = sld [smem:[#allocation9 + $0x22]]
      %v5643 = vstv %s5642
      %v5644 = vmul.f32 %v5643, %v5406
      %v5645 = vmul.f32 %v5643, %v5407
      %v5646 = vadd.f32 %v5640, %v5644
      %v5647 = vadd.f32 %v5641, %v5645
      %s5648 = sld [smem:[#allocation9 + $0x23]]
      %v5649 = vstv %s5648
      %v5650 = vmul.f32 %v5649, %v5438
      %v5651 = vmul.f32 %v5649, %v5439
      %v5652 = vadd.f32 %v5646, %v5650
      %v5653 = vadd.f32 %v5647, %v5651
      %v5654 = vmax.f32 %v5652, 0.0
      %v5655 = vmax.f32 %v5653, 0.0
      %s5656 = sld [smem:[#allocation11]]
      %v5657 = vstv %s5656
      %v5658 = vmul.f32 %v5657, %v5456
      %v5659 = vmul.f32 %v5657, %v5457
      %s5660 = sld [smem:[#allocation11 + $0x1]]
      %v5661 = vstv %s5660
      %v5662 = vmul.f32 %v5661, %v5474
      %v5663 = vmul.f32 %v5661, %v5475
      %v5664 = vadd.f32 %v5658, %v5662
      %v5665 = vadd.f32 %v5659, %v5663
      %s5666 = sld [smem:[#allocation11 + $0x2]]
      %v5667 = vstv %s5666
      %v5668 = vmul.f32 %v5667, %v5492
      %v5669 = vmul.f32 %v5667, %v5493
      %v5670 = vadd.f32 %v5664, %v5668
      %v5671 = vadd.f32 %v5665, %v5669
      %s5672 = sld [smem:[#allocation11 + $0x3]]
      %v5673 = vstv %s5672
      %v5674 = vmul.f32 %v5673, %v5510
      %v5675 = vmul.f32 %v5673, %v5511
      %v5676 = vadd.f32 %v5670, %v5674
      %v5677 = vadd.f32 %v5671, %v5675
      %s5678 = sld [smem:[#allocation11 + $0x4]]
      %v5679 = vstv %s5678
      %v5680 = vmul.f32 %v5679, %v5528
      %v5681 = vmul.f32 %v5679, %v5529
      %v5682 = vadd.f32 %v5676, %v5680
      %v5683 = vadd.f32 %v5677, %v5681
      %s5684 = sld [smem:[#allocation11 + $0x5]]
      %v5685 = vstv %s5684
      %v5686 = vmul.f32 %v5685, %v5546
      %v5687 = vmul.f32 %v5685, %v5547
      %v5688 = vadd.f32 %v5682, %v5686
      %v5689 = vadd.f32 %v5683, %v5687
      %s5690 = sld [smem:[#allocation11 + $0x6]]
      %v5691 = vstv %s5690
      %v5692 = vmul.f32 %v5691, %v5564
      %v5693 = vmul.f32 %v5691, %v5565
      %v5694 = vadd.f32 %v5688, %v5692
      %v5695 = vadd.f32 %v5689, %v5693
      %s5696 = sld [smem:[#allocation11 + $0x7]]
      %v5697 = vstv %s5696
      %v5698 = vmul.f32 %v5697, %v5582
      %v5699 = vmul.f32 %v5697, %v5583
      %v5700 = vadd.f32 %v5694, %v5698
      %v5701 = vadd.f32 %v5695, %v5699
      %s5702 = sld [smem:[#allocation11 + $0x8]]
      %v5703 = vstv %s5702
      %v5704 = vmul.f32 %v5703, %v5600
      %v5705 = vmul.f32 %v5703, %v5601
      %v5706 = vadd.f32 %v5700, %v5704
      %v5707 = vadd.f32 %v5701, %v5705
      %s5708 = sld [smem:[#allocation11 + $0x9]]
      %v5709 = vstv %s5708
      %v5710 = vmul.f32 %v5709, %v5618
      %v5711 = vmul.f32 %v5709, %v5619
      %v5712 = vadd.f32 %v5706, %v5710
      %v5713 = vadd.f32 %v5707, %v5711
      %s5714 = sld [smem:[#allocation11 + $0xa]]
      %v5715 = vstv %s5714
      %v5716 = vmul.f32 %v5715, %v5636
      %v5717 = vmul.f32 %v5715, %v5637
      %v5718 = vadd.f32 %v5712, %v5716
      %v5719 = vadd.f32 %v5713, %v5717
      %s5720 = sld [smem:[#allocation11 + $0xb]]
      %v5721 = vstv %s5720
      %v5722 = vmul.f32 %v5721, %v5654
      %v5723 = vmul.f32 %v5721, %v5655
      %v5724 = vadd.f32 %v5718, %v5722
      %v5725 = vadd.f32 %v5719, %v5723
      %s5726 = sld [smem:[#allocation11 + $0xc]]
      %v5727 = vstv %s5726
      %v5728 = vmul.f32 %v5727, %v5456
      %v5729 = vmul.f32 %v5727, %v5457
      %s5730 = sld [smem:[#allocation11 + $0xd]]
      %v5731 = vstv %s5730
      %v5732 = vmul.f32 %v5731, %v5474
      %v5733 = vmul.f32 %v5731, %v5475
      %v5734 = vadd.f32 %v5728, %v5732
      %v5735 = vadd.f32 %v5729, %v5733
      %s5736 = sld [smem:[#allocation11 + $0xe]]
      %v5737 = vstv %s5736
      %v5738 = vmul.f32 %v5737, %v5492
      %v5739 = vmul.f32 %v5737, %v5493
      %v5740 = vadd.f32 %v5734, %v5738
      %v5741 = vadd.f32 %v5735, %v5739
      %s5742 = sld [smem:[#allocation11 + $0xf]]
      %v5743 = vstv %s5742
      %v5744 = vmul.f32 %v5743, %v5510
      %v5745 = vmul.f32 %v5743, %v5511
      %v5746 = vadd.f32 %v5740, %v5744
      %v5747 = vadd.f32 %v5741, %v5745
      %s5748 = sld [smem:[#allocation11 + $0x10]]
      %v5749 = vstv %s5748
      %v5750 = vmul.f32 %v5749, %v5528
      %v5751 = vmul.f32 %v5749, %v5529
      %v5752 = vadd.f32 %v5746, %v5750
      %v5753 = vadd.f32 %v5747, %v5751
      %s5754 = sld [smem:[#allocation11 + $0x11]]
      %v5755 = vstv %s5754
      %v5756 = vmul.f32 %v5755, %v5546
      %v5757 = vmul.f32 %v5755, %v5547
      %v5758 = vadd.f32 %v5752, %v5756
      %v5759 = vadd.f32 %v5753, %v5757
      %s5760 = sld [smem:[#allocation11 + $0x12]]
      %v5761 = vstv %s5760
      %v5762 = vmul.f32 %v5761, %v5564
      %v5763 = vmul.f32 %v5761, %v5565
      %v5764 = vadd.f32 %v5758, %v5762
      %v5765 = vadd.f32 %v5759, %v5763
      %s5766 = sld [smem:[#allocation11 + $0x13]]
      %v5767 = vstv %s5766
      %v5768 = vmul.f32 %v5767, %v5582
      %v5769 = vmul.f32 %v5767, %v5583
      %v5770 = vadd.f32 %v5764, %v5768
      %v5771 = vadd.f32 %v5765, %v5769
      %s5772 = sld [smem:[#allocation11 + $0x14]]
      %v5773 = vstv %s5772
      %v5774 = vmul.f32 %v5773, %v5600
      %v5775 = vmul.f32 %v5773, %v5601
      %v5776 = vadd.f32 %v5770, %v5774
      %v5777 = vadd.f32 %v5771, %v5775
      %s5778 = sld [smem:[#allocation11 + $0x15]]
      %v5779 = vstv %s5778
      %v5780 = vmul.f32 %v5779, %v5618
      %v5781 = vmul.f32 %v5779, %v5619
      %v5782 = vadd.f32 %v5776, %v5780
      %v5783 = vadd.f32 %v5777, %v5781
      %s5784 = sld [smem:[#allocation11 + $0x16]]
      %v5785 = vstv %s5784
      %v5786 = vmul.f32 %v5785, %v5636
      %v5787 = vmul.f32 %v5785, %v5637
      %v5788 = vadd.f32 %v5782, %v5786
      %v5789 = vadd.f32 %v5783, %v5787
      %s5790 = sld [smem:[#allocation11 + $0x17]]
      %v5791 = vstv %s5790
      %v5792 = vmul.f32 %v5791, %v5654
      %v5793 = vmul.f32 %v5791, %v5655
      %v5794 = vadd.f32 %v5788, %v5792
      %v5795 = vadd.f32 %v5789, %v5793
      %s5796 = sld [smem:[#allocation11 + $0x18]]
      %v5797 = vstv %s5796
      %v5798 = vmul.f32 %v5797, %v5456
      %v5799 = vmul.f32 %v5797, %v5457
      %s5800 = sld [smem:[#allocation11 + $0x19]]
      %v5801 = vstv %s5800
      %v5802 = vmul.f32 %v5801, %v5474
      %v5803 = vmul.f32 %v5801, %v5475
      %v5804 = vadd.f32 %v5798, %v5802
      %v5805 = vadd.f32 %v5799, %v5803
      %s5806 = sld [smem:[#allocation11 + $0x1a]]
      %v5807 = vstv %s5806
      %v5808 = vmul.f32 %v5807, %v5492
      %v5809 = vmul.f32 %v5807, %v5493
      %v5810 = vadd.f32 %v5804, %v5808
      %v5811 = vadd.f32 %v5805, %v5809
      %s5812 = sld [smem:[#allocation11 + $0x1b]]
      %v5813 = vstv %s5812
      %v5814 = vmul.f32 %v5813, %v5510
      %v5815 = vmul.f32 %v5813, %v5511
      %v5816 = vadd.f32 %v5810, %v5814
      %v5817 = vadd.f32 %v5811, %v5815
      %s5818 = sld [smem:[#allocation11 + $0x1c]]
      %v5819 = vstv %s5818
      %v5820 = vmul.f32 %v5819, %v5528
      %v5821 = vmul.f32 %v5819, %v5529
      %v5822 = vadd.f32 %v5816, %v5820
      %v5823 = vadd.f32 %v5817, %v5821
      %s5824 = sld [smem:[#allocation11 + $0x1d]]
      %v5825 = vstv %s5824
      %v5826 = vmul.f32 %v5825, %v5546
      %v5827 = vmul.f32 %v5825, %v5547
      %v5828 = vadd.f32 %v5822, %v5826
      %v5829 = vadd.f32 %v5823, %v5827
      %s5830 = sld [smem:[#allocation11 + $0x1e]]
      %v5831 = vstv %s5830
      %v5832 = vmul.f32 %v5831, %v5564
      %v5833 = vmul.f32 %v5831, %v5565
      %v5834 = vadd.f32 %v5828, %v5832
      %v5835 = vadd.f32 %v5829, %v5833
      %s5836 = sld [smem:[#allocation11 + $0x1f]]
      %v5837 = vstv %s5836
      %v5838 = vmul.f32 %v5837, %v5582
      %v5839 = vmul.f32 %v5837, %v5583
      %v5840 = vadd.f32 %v5834, %v5838
      %v5841 = vadd.f32 %v5835, %v5839
      %s5842 = sld [smem:[#allocation11 + $0x20]]
      %v5843 = vstv %s5842
      %v5844 = vmul.f32 %v5843, %v5600
      %v5845 = vmul.f32 %v5843, %v5601
      %v5846 = vadd.f32 %v5840, %v5844
      %v5847 = vadd.f32 %v5841, %v5845
      %s5848 = sld [smem:[#allocation11 + $0x21]]
      %v5849 = vstv %s5848
      %v5850 = vmul.f32 %v5849, %v5618
      %v5851 = vmul.f32 %v5849, %v5619
      %v5852 = vadd.f32 %v5846, %v5850
      %v5853 = vadd.f32 %v5847, %v5851
      %s5854 = sld [smem:[#allocation11 + $0x22]]
      %v5855 = vstv %s5854
      %v5856 = vmul.f32 %v5855, %v5636
      %v5857 = vmul.f32 %v5855, %v5637
      %v5858 = vadd.f32 %v5852, %v5856
      %v5859 = vadd.f32 %v5853, %v5857
      %s5860 = sld [smem:[#allocation11 + $0x23]]
      %v5861 = vstv %s5860
      %v5862 = vmul.f32 %v5861, %v5654
      %v5863 = vmul.f32 %v5861, %v5655
      %v5864 = vadd.f32 %v5858, %v5862
      %v5865 = vadd.f32 %v5859, %v5863
      %v5866 = vmax.f32 %v5724, %v5794
      %v5867 = vmax.f32 %v5725, %v5795
      %v5868 = vmax.f32 %v5866, %v5864
      %v5869 = vmax.f32 %v5867, %v5865
      %v5870 = vsub.f32 %v5724, %v5868
      %v5871 = vsub.f32 %v5725, %v5869
      %v5872 = vmul.f32 %v5870, 1.442695
      %v5873 = vpow.pop %v5872
      %v5874 = vmul.f32 %v5871, 1.442695
      %v5875 = vpow.pop %v5874
      %v5876 = vsub.f32 %v5794, %v5868
      %v5877 = vsub.f32 %v5795, %v5869
      %v5878 = vmul.f32 %v5876, 1.442695
      %v5879 = vpow.pop %v5878
      %v5880 = vmul.f32 %v5877, 1.442695
      %v5881 = vpow.pop %v5880
      %v5882 = vsub.f32 %v5864, %v5868
      %v5883 = vsub.f32 %v5865, %v5869
      %v5884 = vmul.f32 %v5882, 1.442695
      %v5885 = vpow.pop %v5884
      %v5886 = vmul.f32 %v5883, 1.442695
      %v5887 = vpow.pop %v5886
      %v5888 = vadd.f32 %v5873, %v5879
      %v5889 = vadd.f32 %v5875, %v5881
      %v5890 = vadd.f32 %v5888, %v5885
      %v5891 = vadd.f32 %v5889, %v5887
      %v5892 = vrcp.pop %v5890
      %v5893 = vrcp.pop %v5891
      %v5894 = vmul.f32 %v5873, %v5892
      %v5895 = vmul.f32 %v5875, %v5893
      %v5898 = vrot.slane %v5895, 4
      %vm5899 = vcmask 1043456
      %v5900 = vsel %vm5899, %v5894, %v5898
      %5902 = vst [vmem:[#allocation19] sm:$0xff] %v5900
      %v5903 = vmul.f32 %v5879, %v5892
      %v5904 = vmul.f32 %v5881, %v5893
      %v5907 = vrot.slane %v5904, 4
      %v5908 = vsel %vm5899, %v5903, %v5907
      %s5910 = scalar_lea.vmem [#allocation19], 8
      %5911 = vst [vmem:[%s5910] sm:$0xff] %v5908
      %v5912 = vmul.f32 %v5885, %v5892
      %v5913 = vmul.f32 %v5887, %v5893
      %v5916 = vrot.slane %v5913, 4
      %v5917 = vsel %vm5899, %v5912, %v5916
      %s5919 = scalar_lea.vmem [#allocation19], 16
      %5920 = vst [vmem:[%s5919] sm:$0xff] %v5917
    $region77: #{tpu_custom_call.1} parent=1 // pred_fallthru
      _
    // Predicated region
    $region78: #{tpu_custom_call.1} parent=1 // pred_check
      _
    $region79: #{tpu_custom_call.1} parent=1 // pred_check_branch
      %5922 = sbr.rel (0) target = $region81
    $region80: #{tpu_custom_call.1} parent=1 // pred_region
      %5924 = vsyncadd [#allocation6], 0
      %s5925 = sshll.u32 [#allocation19], 4
      %s5926 = int_to_ptr.vmem [resolvable:$true] %s5925
      %s5927 = sshll.u32 %s8, 4
      %s5928 = int_to_ptr.hbm [resolvable:$true] %s5927
      %5933 = dma.vmem_to_hbm [thread:$0]  %s5926, 384, %s5928, [#allocation6], 128, 128, 8
    $region81: #{tpu_custom_call.1} parent=1 // pred_fallthru
      _
    // Predicated region
    $region82: #{tpu_custom_call.1} parent=1 // pred_check
      _
    $region83: #{tpu_custom_call.1} parent=1 // pred_check_branch
      %5935 = sbr.rel (0) target = $region85
    $region84: #{tpu_custom_call.1} parent=1 // pred_region
      %5937 = dma.done [#allocation6], 384
    $region85: #{tpu_custom_call.1} parent=1 // pred_fallthru
      _
    %5938 = vsyncpa [#allocation5], 1
    %5939 = vsyncpa [#allocation14], 1
    %5940 = vsyncpa [#allocation17], 1
    %5941 = vsyncpa [#allocation6], 1
    %5942 = vsyncpa [#allocation7], 1
    %5943 = vsyncpa [#allocation10], 1
    %5944 = vsyncpa [#allocation8], 1

</llo_original>
